<compile_context>
chip_gen: v7x
topology: tpu7x:2x2x1
jax: 0.10.0
libtpu: 0.0.40
codegen_flags: <defaults>
</compile_context>

<pallas_src>
import math

import jax
import jax.numpy as jnp
from jax.experimental import pallas as pl
from jax.experimental.pallas import tpu as pltpu

_STRIDES = (2, 4, 5, 8)
_DILATIONS = (1, 3, 9)
_MXU_DTYPE = jnp.bfloat16          # MXU operand dtype; accumulation stays float32
_ROW_ALIGN = 16                    # sublane alignment of packed-weight row offsets


def _ru(v, m):
    return -(-v // m) * m


def _elu(x):
    # ELU(alpha=1): x if x > 0 else exp(x) - 1   (kept in f32: v5e has no bf16 VPU/EUP)
    return jnp.where(x > 0, x, jnp.exp(jnp.minimum(x, 0.0)) - 1.0)


# --------------------------------- model definition --------------------------------- #

def _layer_configs(scale, embedding_dim):
    """(kind, K, dilation, stride, cin, cout) for every conv layer, in order."""
    cfgs = [("conv", 7, 1, 1, 1, scale)]                 # CausalConv1d(1, scale, 7) + ELU
    c = scale
    for s in _STRIDES:                                   # EncoderBlock(c, 2c, stride=s)
        for d in _DILATIONS:
            cfgs.append(("res", 7, d, 1, c, c))          # ResidualUnit(c, dilation=d)
        cfgs.append(("down", 2 * s, 1, s, c, 2 * c))     # downsample CausalConv1d + ELU
        c *= 2
    cfgs.append(("conv", 3, 1, 1, c, embedding_dim))     # CausalConv1d(16*scale, emb, 3) + ELU
    return cfgs


def _init_conv(key, K, cin, cout):
    kw, kb = jax.random.split(key)
    bound = 1.0 / math.sqrt(cin * K)                     # nn.Conv1d default init statistics
    w = jax.random.uniform(kw, (cout, cin, K), jnp.float32, -bound, bound)
    b = jax.random.uniform(kb, (cout,), jnp.float32, -bound, bound)
    return w, b


def init_encoder_params(key, scale, embedding_dim):
    cfgs = _layer_configs(scale, embedding_dim)
    n_keys = sum(2 if kind == "res" else 1 for kind, *_ in cfgs)
    keys = iter(jax.random.split(key, n_keys))
    params = []
    for kind, K, d, s, cin, cout in cfgs:
        if kind == "res":
            params.append((_init_conv(next(keys), K, cin, cout),
                           _init_conv(next(keys), 1, cin, cout)))
        else:
            params.append((_init_conv(next(keys), K, cin, cout),))
    return params


# ------------------------------ fused forward pass ----------------------------------- #

def encoder_forward(params, x, scale, embedding_dim):
    """x: (B, samples) f32 -> (B, samples // 320, embedding_dim). One fused pallas_call."""
    B, T = x.shape
    assert T % 320 == 0, "samples must be a multiple of prod(strides) = 320"
    cfgs = _layer_configs(scale, embedding_dim)
    assert len(params) == len(cfgs)

    # ----------------------- static plan + packed parameter tensors ------------------ #
    cf_w, cf_b, ls_w, ls_b = [], [], [], []   # channels-first / channels-last matmuls
    cf_off = ls_off = 0
    plan = []
    col_shapes, col_index = [], {}

    def _col(rows, cols):
        key = (rows, cols)
        if key not in col_index:
            col_index[key] = len(col_shapes)
            col_shapes.append(key)
        return col_index[key]

    def _add_cf(w, b):                         # w: (cout, cin, K) -> (cout, K*cin)
        nonlocal cf_off
        cout, cin, K = w.shape
        cf_w.append(jnp.transpose(w, (0, 2, 1)).reshape(cout, K * cin))
        cf_b.append(b)
        row, cf_off = cf_off, cf_off + _ru(cout, _ROW_ALIGN)
        return row, len(cf_b) - 1

    def _add_ls(w, b):                         # w: (cout, cin, K) -> (K*cin, cout)
        nonlocal ls_off
        cout, cin, K = w.shape
        ls_w.append(jnp.transpose(w, (2, 1, 0)).reshape(K * cin, cout))
        ls_b.append(b)
        row, ls_off = ls_off, ls_off + _ru(K * cin, _ROW_ALIGN)
        return row, len(ls_b) - 1

    t = T
    for cfg, p in zip(cfgs, params):
        kind, K, d, s, cin, cout = cfg
        t_out = t // s
        if kind == "down":
            row, bi = _add_ls(*p[0])
            plan.append(dict(kind=kind, K=K, s=s, cin=cin, cout=cout, T_in=t,
                             T_out=t_out, col=_col(t_out, K * cin), row=row, b=bi))
        else:
            row, bi = _add_cf(*p[0])
            e = dict(kind=kind, K=K, d=d, cin=cin, cout=cout, T_out=t_out,
                     col=_col(K * cin, t_out), row=row, b=bi)
            if kind == "res":
                row2, b2 = _add_cf(*p[1])
                e.update(row2=row2, b2=b2)
            plan.append(e)
        t = t_out
    n_frames = t

    wcf_cols = _ru(max(w.shape[1] for w in cf_w), 128)
    wls_cols = _ru(max(w.shape[1] for w in ls_w), 128)
    bcf_rows = _ru(max(b.shape[0] for b in cf_b), 8)
    bls_cols = max(b.shape[0] for b in ls_b)

    def _pack(blocks, total_rows, width, dtype):
        out = jnp.zeros((total_rows, width), dtype)
        off = 0
        for w in blocks:
            r, c = w.shape
            out = out.at[off:off + r, 0:c].set(w.astype(dtype))
            off += _ru(r, _ROW_ALIGN)
        return out

    w_cf = _pack(cf_w, cf_off, wcf_cols, _MXU_DTYPE)
    w_ls = _pack(ls_w, ls_off, wls_cols, _MXU_DTYPE)
    b_cf = jnp.stack([jnp.pad(b, (0, bcf_rows - b.shape[0])) for b in cf_b],
                     axis=1).astype(jnp.float32)                       # (bcf_rows, n_cf)
    b_ls = jnp.stack([jnp.pad(b, (0, bls_cols - b.shape[0])) for b in ls_b],
                     axis=0).astype(jnp.float32)                       # (n_ls, bls_cols)
    b_ls = jnp.pad(b_ls, ((0, _ru(b_ls.shape[0], 8) - b_ls.shape[0]), (0, 0)))

    down_layers = [e for e in plan if e["kind"] == "down"]
    act_shape = (max(e["T_in"] for e in down_layers), max(e["cin"] for e in down_layers))

    # ---------------------------------- the kernel ----------------------------------- #
    def kernel(x_ref, wcf_ref, bcf_ref, wls_ref, bls_ref, o_ref, act_ref, *col_refs):

        def cf_matmul(lhs_bf, row, bcol, cout, kc):
            w = wcf_ref[row:row + cout, 0:kc]                      # bf16 (cout, kc)
            b = bcf_ref[0:cout, bcol:bcol + 1]                     # f32  (cout, 1)
            return jnp.dot(w, lhs_bf, preferred_element_type=jnp.float32) + b

        def conv_cf(h, e):
            """Stride-1 causal conv (channels-first): (cin, T) -> (cout, T) f32."""
            K, d, cin, cout, T_out = e["K"], e["d"], e["cin"], e["cout"], e["T_out"]
            kc = K * cin
            col = col_refs[e["col"]]
            pad = d * (K - 1)                     # causal left padding
            zw = min(pad, T_out)                  # only these columns can read padding
            col[0:kc, 0:zw] = jnp.zeros((kc, zw), jnp.float32)
            for k in range(K):
                z = pad - k * d                   # first output column with a valid read
                n = T_out - z
                if n <= 0:
                    continue                      # this tap only ever reads padding
                col[k * cin:(k + 1) * cin, z:z + n] = h[:, 0:n]
            lhs = col[0:kc, 0:T_out].astype(_MXU_DTYPE)
            return cf_matmul(lhs, e["row"], e["b"], cout, kc)

        def conv_1x1(h, e):
            return cf_matmul(h.astype(_MXU_DTYPE), e["row2"], e["b2"], e["cout"], e["cin"])

        def conv_down(h, e):
            """Strided downsample conv (K = 2*stride): (cin, T_in) -> (cout, T_in//s)."""
            K, s, cin, cout = e["K"], e["s"], e["cin"], e["cout"]
            T_in, T_out = e["T_in"], e["T_out"]
            kc = K * cin
            col = col_refs[e["col"]]              # (T_out, K*cin) channels-last im2col
            act_ref[0:T_in, 0:cin] = h.T          # channels-last staging for strided reads
            pad = K - s                           # causal left padding (== s)
            col[0:1, 0:kc] = jnp.zeros((1, kc), jnp.float32)   # only row 0 can read padding
            for k in range(K):
                z = max(0, (pad - k + s - 1) // s)
                n = T_out - z
                if n <= 0:
                    continue
                src0 = z * s + k - pad
                if n == 1:
                    piece = act_ref[pl.ds(src0, 1), 0:cin]
                else:
                    piece = act_ref[pl.ds(src0, n, stride=s), 0:cin]
                col[z:z + n, k * cin:(k + 1) * cin] = piece
            lhs = col[0:T_out, 0:kc].astype(_MXU_DTYPE)
            w = wls_ref[e["row"]:e["row"] + kc, 0:cout]          # bf16 (K*cin, cout)
            b = bls_ref[e["b"]:e["b"] + 1, 0:cout]               # f32  (1, cout)
            y = _elu(jnp.dot(lhs, w, preferred_element_type=jnp.float32) + b)
            return y.T                                           # back to channels-first

        h = x_ref[0]                               # (1, T) f32, channels-first, lane-dense
        for e in plan:
            if e["kind"] == "down":
                h = conv_down(h, e)
            else:
                y = _elu(conv_cf(h, e))                          # conv + ELU
                if e["kind"] == "res":
                    y = _elu(conv_1x1(y, e))                     # 1x1 conv + ELU
                    y = y + h                                    # residual connection
                h = y
        # Final Rearrange('... embedding frames -> ... frames embedding') done in wrapper.
        o_ref[0] = h.astype(o_ref.dtype)           # (embedding, frames), lane-dense store

    # ------------------------------ VMEM budget + call -------------------------------- #
    def _tile_bytes(shape, itemsize, sub=8):
        return _ru(shape[0], sub) * _ru(shape[1], 128) * itemsize

    est = (_tile_bytes(act_shape, 4) + sum(_tile_bytes(s_, 4) for s_ in col_shapes)
           + 2 * (_tile_bytes(w_cf.shape, 2, 16) + _tile_bytes(w_ls.shape, 2, 16)
                  + _tile_bytes(b_cf.shape, 4) + _tile_bytes(b_ls.shape, 4)
                  + _ru(T, 128) * 4 + _tile_bytes((embedding_dim, n_frames), 4))
           + 16 * T * 4)                          # rough bound on live channels-first values
    try:
        phys = pltpu.get_tpu_info().vmem_capacity_bytes
    except Exception:                             # best-effort hardware query
        phys = 64 * 1024 * 1024
    vmem_limit = int(min(max(32 * 1024 * 1024, 2 * est),
                         phys - 16 * 1024 * 1024, 112 * 1024 * 1024))

    x3 = x.astype(jnp.float32).reshape(B, 1, T)

    out = pl.pallas_call(
        kernel,
        out_shape=jax.ShapeDtypeStruct((B, embedding_dim, n_frames), jnp.float32),
        grid=(B,),
        in_specs=[
            pl.BlockSpec((1, 1, T), lambda b: (b, 0, 0)),
            pl.BlockSpec(w_cf.shape, lambda b: (0, 0)),
            pl.BlockSpec(b_cf.shape, lambda b: (0, 0)),
            pl.BlockSpec(w_ls.shape, lambda b: (0, 0)),
            pl.BlockSpec(b_ls.shape, lambda b: (0, 0)),
        ],
        out_specs=pl.BlockSpec((1, embedding_dim, n_frames), lambda b: (b, 0, 0)),
        scratch_shapes=[pltpu.VMEM((_ru(act_shape[0], 8), _ru(act_shape[1], 128)),
                                   jnp.float32)]
                      + [pltpu.VMEM((_ru(r, 8), _ru(c, 128)), jnp.float32)
                         for (r, c) in col_shapes],
        compiler_params=pltpu.CompilerParams(
            dimension_semantics=("parallel",),     # batch across TensorCores (v7x megacore)
            vmem_limit_bytes=vmem_limit,
        ),
    )(x3, w_cf, b_cf, w_ls, b_ls)

    # Rearrange('... embedding frames -> ... frames embedding')
    return jnp.swapaxes(out, 1, 2)


# ------------------------------ pure-JAX f32 reference -------------------------------- #

def _ref_causal_conv(x, w, b, stride=1, dilation=1):
    K = w.shape[-1]
    pad = dilation * (K - 1) - (stride - 1)
    y = jax.lax.conv_general_dilated(
        x, w, window_strides=(stride,), padding=[(pad, 0)],
        rhs_dilation=(dilation,), dimension_numbers=("NCH", "OIH", "NCH"))
    return y + b[None, :, None]


def encoder_reference(params, x, scale, embedding_dim):
    cfgs = _layer_configs(scale, embedding_dim)
    h = x.astype(jnp.float32)[:, None, :]          # (B, 1, T)
    for cfg, p in zip(cfgs, params):
        kind, K, d, s, cin, cout = cfg
        if kind == "res":
            (w1, b1), (w2, b2) = p
            y = jax.nn.elu(_ref_causal_conv(h, w1, b1, 1, d))
            y = jax.nn.elu(_ref_causal_conv(y, w2, b2, 1, 1))
            h = y + h
        else:
            (w, b), = p
            h = jax.nn.elu(_ref_causal_conv(h, w, b, s, 1))
    return jnp.swapaxes(h, 1, 2)                   # (B, frames, embedding)


# -------------------------------------- main ------------------------------------------ #

if __name__ == "__main__":
    # TODO(synk): gradient_checkpointing is a training-time autograd rematerialization
    # feature; it has no effect on the forward pass and is intentionally omitted.
    scale, embedding_dim = 4, 16
    B, T = 2, 640                                   # 640 samples -> 2 output frames

    key = jax.random.PRNGKey(0)
    pkey, xkey = jax.random.split(key)
    params = init_encoder_params(pkey, scale, embedding_dim)
    x = jax.random.normal(xkey, (B, T), jnp.float32)

    fwd = jax.jit(encoder_forward, static_argnums=(2, 3))
    out = jax.block_until_ready(fwd(params, x, scale, embedding_dim))

    assert out.shape == (B, T // 320, embedding_dim), out.shape
    assert bool(jnp.all(jnp.isfinite(out)))

    # End-to-end check against an f32 XLA reference (bf16 MXU operands -> loose tolerance).
    ref = encoder_reference(params, x, scale, embedding_dim)
    assert bool(jnp.allclose(out, ref, atol=5e-2, rtol=5e-2)), \
        float(jnp.max(jnp.abs(out - ref)))
    print("KERNEL_OK")
</pallas_src>

<mosaic_0001>
module attributes {stable_mosaic.version = 11 : i64} {
  func.func @kernel(%arg0: i32, %arg1: memref<1x1x640xf32, #tpu.memory_space<vmem>>, %arg2: memref<512x256xbf16, #tpu.memory_space<vmem>>, %arg3: memref<32x26xf32, #tpu.memory_space<vmem>>, %arg4: memref<752x128xbf16, #tpu.memory_space<vmem>>, %arg5: memref<8x64xf32, #tpu.memory_space<vmem>>, %arg6: memref<1x16x2xf32, #tpu.memory_space<vmem>>, %arg7: memref<640x128xf32, #tpu.memory_space<vmem>>, %arg8: memref<8x640xf32, #tpu.memory_space<vmem>>, %arg9: memref<32x640xf32, #tpu.memory_space<vmem>>, %arg10: memref<320x128xf32, #tpu.memory_space<vmem>>, %arg11: memref<56x384xf32, #tpu.memory_space<vmem>>, %arg12: memref<80x128xf32, #tpu.memory_space<vmem>>, %arg13: memref<112x128xf32, #tpu.memory_space<vmem>>, %arg14: memref<16x256xf32, #tpu.memory_space<vmem>>, %arg15: memref<224x128xf32, #tpu.memory_space<vmem>>, %arg16: memref<8x512xf32, #tpu.memory_space<vmem>>, %arg17: memref<192x128xf32, #tpu.memory_space<vmem>>) attributes {dimension_semantics = [#tpu.dimension_semantics<parallel>], iteration_bounds = array<i64: 2>, scalar_prefetch = 0 : i64, scratch_operands = 11 : i64, tpu.core_type = #tpu.core_type<tc>, window_params = [{transform_indices = @transform_0, window_bounds = array<i64: 1, 1, 640>}, {pipeline_mode = #tpu.pipeline_mode<synchronous>, transform_indices = @transform_1, window_bounds = array<i64: 512, 256>}, {pipeline_mode = #tpu.pipeline_mode<synchronous>, transform_indices = @transform_2, window_bounds = array<i64: 32, 26>}, {pipeline_mode = #tpu.pipeline_mode<synchronous>, transform_indices = @transform_3, window_bounds = array<i64: 752, 128>}, {pipeline_mode = #tpu.pipeline_mode<synchronous>, transform_indices = @transform_4, window_bounds = array<i64: 8, 64>}, {transform_indices = @transform_5, window_bounds = array<i64: 1, 16, 2>}]} {
    %c0 = arith.constant 0 : index
    %c0_0 = arith.constant 0 : index
    %c0_1 = arith.constant 0 : index
    %0 = vector.load %arg1[%c0, %c0_0, %c0_1] : memref<1x1x640xf32, #tpu.memory_space<vmem>>, vector<1x1x640xf32>
    %1 = vector.shape_cast %0 : vector<1x1x640xf32> to vector<1x640xf32>
    %cst = arith.constant 0.000000e+00 : f32
    %2 = vector.broadcast %cst : f32 to vector<7x6xf32>
    %c0_2 = arith.constant 0 : index
    %c0_3 = arith.constant 0 : index
    %3 = vector.load %arg8[%c0_2, %c0_3] : memref<8x640xf32, #tpu.memory_space<vmem>>, vector<7x6xf32>
    tpu.vector_store %arg8[%c0_2, %c0_3], %2 {strides = array<i32>} : memref<8x640xf32, #tpu.memory_space<vmem>>, vector<7x6xf32>,
    %4 = vector.extract_strided_slice %1 {offsets = [0, 0], sizes = [1, 634], strides = [1, 1]} : vector<1x640xf32> to vector<1x634xf32>
    %c0_4 = arith.constant 0 : index
    %c6 = arith.constant 6 : index
    %5 = vector.load %arg8[%c0_4, %c6] : memref<8x640xf32, #tpu.memory_space<vmem>>, vector<1x634xf32>
    tpu.vector_store %arg8[%c0_4, %c6], %4 {strides = array<i32>} : memref<8x640xf32, #tpu.memory_space<vmem>>, vector<1x634xf32>,
    %6 = vector.extract_strided_slice %1 {offsets = [0, 0], sizes = [1, 635], strides = [1, 1]} : vector<1x640xf32> to vector<1x635xf32>
    %c1 = arith.constant 1 : index
    %c5 = arith.constant 5 : index
    %7 = vector.load %arg8[%c1, %c5] : memref<8x640xf32, #tpu.memory_space<vmem>>, vector<1x635xf32>
    tpu.vector_store %arg8[%c1, %c5], %6 {strides = array<i32>} : memref<8x640xf32, #tpu.memory_space<vmem>>, vector<1x635xf32>,
    %8 = vector.extract_strided_slice %1 {offsets = [0, 0], sizes = [1, 636], strides = [1, 1]} : vector<1x640xf32> to vector<1x636xf32>
    %c2 = arith.constant 2 : index
    %c4 = arith.constant 4 : index
    %9 = vector.load %arg8[%c2, %c4] : memref<8x640xf32, #tpu.memory_space<vmem>>, vector<1x636xf32>
    tpu.vector_store %arg8[%c2, %c4], %8 {strides = array<i32>} : memref<8x640xf32, #tpu.memory_space<vmem>>, vector<1x636xf32>,
    %10 = vector.extract_strided_slice %1 {offsets = [0, 0], sizes = [1, 637], strides = [1, 1]} : vector<1x640xf32> to vector<1x637xf32>
    %c3 = arith.constant 3 : index
    %c3_5 = arith.constant 3 : index
    %11 = vector.load %arg8[%c3, %c3_5] : memref<8x640xf32, #tpu.memory_space<vmem>>, vector<1x637xf32>
    tpu.vector_store %arg8[%c3, %c3_5], %10 {strides = array<i32>} : memref<8x640xf32, #tpu.memory_space<vmem>>, vector<1x637xf32>,
    %12 = vector.extract_strided_slice %1 {offsets = [0, 0], sizes = [1, 638], strides = [1, 1]} : vector<1x640xf32> to vector<1x638xf32>
    %c4_6 = arith.constant 4 : index
    %c2_7 = arith.constant 2 : index
    %13 = vector.load %arg8[%c4_6, %c2_7] : memref<8x640xf32, #tpu.memory_space<vmem>>, vector<1x638xf32>
    tpu.vector_store %arg8[%c4_6, %c2_7], %12 {strides = array<i32>} : memref<8x640xf32, #tpu.memory_space<vmem>>, vector<1x638xf32>,
    %14 = vector.extract_strided_slice %1 {offsets = [0, 0], sizes = [1, 639], strides = [1, 1]} : vector<1x640xf32> to vector<1x639xf32>
    %c5_8 = arith.constant 5 : index
    %c1_9 = arith.constant 1 : index
    %15 = vector.load %arg8[%c5_8, %c1_9] : memref<8x640xf32, #tpu.memory_space<vmem>>, vector<1x639xf32>
    tpu.vector_store %arg8[%c5_8, %c1_9], %14 {strides = array<i32>} : memref<8x640xf32, #tpu.memory_space<vmem>>, vector<1x639xf32>,
    %c6_10 = arith.constant 6 : index
    %c0_11 = arith.constant 0 : index
    %16 = vector.load %arg8[%c6_10, %c0_11] : memref<8x640xf32, #tpu.memory_space<vmem>>, vector<1x640xf32>
    tpu.vector_store %arg8[%c6_10, %c0_11], %1 {strides = array<i32>} : memref<8x640xf32, #tpu.memory_space<vmem>>, vector<1x640xf32>,
    %c0_12 = arith.constant 0 : index
    %c0_13 = arith.constant 0 : index
    %17 = vector.load %arg8[%c0_12, %c0_13] : memref<8x640xf32, #tpu.memory_space<vmem>>, vector<7x640xf32>
    %18 = arith.truncf %17 : vector<7x640xf32> to vector<7x640xbf16>
    %c0_14 = arith.constant 0 : index
    %c0_15 = arith.constant 0 : index
    %19 = vector.load %arg2[%c0_14, %c0_15] : memref<512x256xbf16, #tpu.memory_space<vmem>>, vector<4x7xbf16>
    %c0_16 = arith.constant 0 : index
    %c0_17 = arith.constant 0 : index
    %20 = vector.load %arg3[%c0_16, %c0_17] : memref<32x26xf32, #tpu.memory_space<vmem>>, vector<4x1xf32>
    %cst_18 = arith.constant dense<0.000000e+00> : vector<4x640xf32>
    %21 = tpu.matmul %19, %18, %cst_18 {dimension_numbers = #tpu.dot_dimension_numbers<[1], [0], [0], [1], [0, 0, 1, 1], [], []>} : vector<4x7xbf16>, vector<7x640xbf16>, vector<4x640xf32> -> vector<4x640xf32>
    %22 = vector.broadcast %20 : vector<4x1xf32> to vector<4x640xf32>
    %23 = arith.addf %21, %22 : vector<4x640xf32>
    %cst_19 = arith.constant 0.000000e+00 : f32
    %24 = vector.broadcast %cst_19 : f32 to vector<4x640xf32>
    %25 = arith.cmpf ogt, %23, %24 : vector<4x640xf32>
    %cst_20 = arith.constant 0.000000e+00 : f32
    %26 = vector.broadcast %cst_20 : f32 to vector<4x640xf32>
    %27 = arith.minimumf %23, %26 : vector<4x640xf32>
    %28 = math.exp %27 : vector<4x640xf32>
    %cst_21 = arith.constant 1.000000e+00 : f32
    %29 = vector.broadcast %cst_21 : f32 to vector<4x640xf32>
    %30 = arith.subf %28, %29 : vector<4x640xf32>
    %31 = arith.select %25, %23, %30 : vector<4x640xi1>, vector<4x640xf32>
    %cst_22 = arith.constant 0.000000e+00 : f32
    %32 = vector.broadcast %cst_22 : f32 to vector<28x6xf32>
    %c0_23 = arith.constant 0 : index
    %c0_24 = arith.constant 0 : index
    %33 = vector.load %arg9[%c0_23, %c0_24] : memref<32x640xf32, #tpu.memory_space<vmem>>, vector<28x6xf32>
    tpu.vector_store %arg9[%c0_23, %c0_24], %32 {strides = array<i32>} : memref<32x640xf32, #tpu.memory_space<vmem>>, vector<28x6xf32>,
    %34 = vector.extract_strided_slice %31 {offsets = [0, 0], sizes = [4, 634], strides = [1, 1]} : vector<4x640xf32> to vector<4x634xf32>
    %c0_25 = arith.constant 0 : index
    %c6_26 = arith.constant 6 : index
    %35 = vector.load %arg9[%c0_25, %c6_26] : memref<32x640xf32, #tpu.memory_space<vmem>>, vector<4x634xf32>
    tpu.vector_store %arg9[%c0_25, %c6_26], %34 {strides = array<i32>} : memref<32x640xf32, #tpu.memory_space<vmem>>, vector<4x634xf32>,
    %36 = vector.extract_strided_slice %31 {offsets = [0, 0], sizes = [4, 635], strides = [1, 1]} : vector<4x640xf32> to vector<4x635xf32>
    %c4_27 = arith.constant 4 : index
    %c5_28 = arith.constant 5 : index
    %37 = vector.load %arg9[%c4_27, %c5_28] : memref<32x640xf32, #tpu.memory_space<vmem>>, vector<4x635xf32>
    tpu.vector_store %arg9[%c4_27, %c5_28], %36 {strides = array<i32>} : memref<32x640xf32, #tpu.memory_space<vmem>>, vector<4x635xf32>,
    %38 = vector.extract_strided_slice %31 {offsets = [0, 0], sizes = [4, 636], strides = [1, 1]} : vector<4x640xf32> to vector<4x636xf32>
    %c8 = arith.constant 8 : index
    %c4_29 = arith.constant 4 : index
    %39 = vector.load %arg9[%c8, %c4_29] : memref<32x640xf32, #tpu.memory_space<vmem>>, vector<4x636xf32>
    tpu.vector_store %arg9[%c8, %c4_29], %38 {strides = array<i32>} : memref<32x640xf32, #tpu.memory_space<vmem>>, vector<4x636xf32>,
    %40 = vector.extract_strided_slice %31 {offsets = [0, 0], sizes = [4, 637], strides = [1, 1]} : vector<4x640xf32> to vector<4x637xf32>
    %c12 = arith.constant 12 : index
    %c3_30 = arith.constant 3 : index
    %41 = vector.load %arg9[%c12, %c3_30] : memref<32x640xf32, #tpu.memory_space<vmem>>, vector<4x637xf32>
    tpu.vector_store %arg9[%c12, %c3_30], %40 {strides = array<i32>} : memref<32x640xf32, #tpu.memory_space<vmem>>, vector<4x637xf32>,
    %42 = vector.extract_strided_slice %31 {offsets = [0, 0], sizes = [4, 638], strides = [1, 1]} : vector<4x640xf32> to vector<4x638xf32>
    %c16 = arith.constant 16 : index
    %c2_31 = arith.constant 2 : index
    %43 = vector.load %arg9[%c16, %c2_31] : memref<32x640xf32, #tpu.memory_space<vmem>>, vector<4x638xf32>
    tpu.vector_store %arg9[%c16, %c2_31], %42 {strides = array<i32>} : memref<32x640xf32, #tpu.memory_space<vmem>>, vector<4x638xf32>,
    %44 = vector.extract_strided_slice %31 {offsets = [0, 0], sizes = [4, 639], strides = [1, 1]} : vector<4x640xf32> to vector<4x639xf32>
    %c20 = arith.constant 20 : index
    %c1_32 = arith.constant 1 : index
    %45 = vector.load %arg9[%c20, %c1_32] : memref<32x640xf32, #tpu.memory_space<vmem>>, vector<4x639xf32>
    tpu.vector_store %arg9[%c20, %c1_32], %44 {strides = array<i32>} : memref<32x640xf32, #tpu.memory_space<vmem>>, vector<4x639xf32>,
    %c24 = arith.constant 24 : index
    %c0_33 = arith.constant 0 : index
    %46 = vector.load %arg9[%c24, %c0_33] : memref<32x640xf32, #tpu.memory_space<vmem>>, vector<4x640xf32>
    tpu.vector_store %arg9[%c24, %c0_33], %31 {strides = array<i32>} : memref<32x640xf32, #tpu.memory_space<vmem>>, vector<4x640xf32>,
    %c0_34 = arith.constant 0 : index
    %c0_35 = arith.constant 0 : index
    %47 = vector.load %arg9[%c0_34, %c0_35] : memref<32x640xf32, #tpu.memory_space<vmem>>, vector<28x640xf32>
    %48 = arith.truncf %47 : vector<28x640xf32> to vector<28x640xbf16>
    %c16_36 = arith.constant 16 : index
    %c0_37 = arith.constant 0 : index
    %49 = vector.load %arg2[%c16_36, %c0_37] : memref<512x256xbf16, #tpu.memory_space<vmem>>, vector<4x28xbf16>
    %c0_38 = arith.constant 0 : index
    %c1_39 = arith.constant 1 : index
    %50 = vector.load %arg3[%c0_38, %c1_39] : memref<32x26xf32, #tpu.memory_space<vmem>>, vector<4x1xf32>
    %cst_40 = arith.constant dense<0.000000e+00> : vector<4x640xf32>
    %51 = tpu.matmul %49, %48, %cst_40 {dimension_numbers = #tpu.dot_dimension_numbers<[1], [0], [0], [1], [0, 0, 1, 1], [], []>} : vector<4x28xbf16>, vector<28x640xbf16>, vector<4x640xf32> -> vector<4x640xf32>
    %52 = vector.broadcast %50 : vector<4x1xf32> to vector<4x640xf32>
    %53 = arith.addf %51, %52 : vector<4x640xf32>
    %cst_41 = arith.constant 0.000000e+00 : f32
    %54 = vector.broadcast %cst_41 : f32 to vector<4x640xf32>
    %55 = arith.cmpf ogt, %53, %54 : vector<4x640xf32>
    %cst_42 = arith.constant 0.000000e+00 : f32
    %56 = vector.broadcast %cst_42 : f32 to vector<4x640xf32>
    %57 = arith.minimumf %53, %56 : vector<4x640xf32>
    %58 = math.exp %57 : vector<4x640xf32>
    %cst_43 = arith.constant 1.000000e+00 : f32
    %59 = vector.broadcast %cst_43 : f32 to vector<4x640xf32>
    %60 = arith.subf %58, %59 : vector<4x640xf32>
    %61 = arith.select %55, %53, %60 : vector<4x640xi1>, vector<4x640xf32>
    %62 = arith.truncf %61 : vector<4x640xf32> to vector<4x640xbf16>
    %c32 = arith.constant 32 : index
    %c0_44 = arith.constant 0 : index
    %63 = vector.load %arg2[%c32, %c0_44] : memref<512x256xbf16, #tpu.memory_space<vmem>>, vector<4x4xbf16>
    %c0_45 = arith.constant 0 : index
    %c2_46 = arith.constant 2 : index
    %64 = vector.load %arg3[%c0_45, %c2_46] : memref<32x26xf32, #tpu.memory_space<vmem>>, vector<4x1xf32>
    %cst_47 = arith.constant dense<0.000000e+00> : vector<4x640xf32>
    %65 = tpu.matmul %63, %62, %cst_47 {dimension_numbers = #tpu.dot_dimension_numbers<[1], [0], [0], [1], [0, 0, 1, 1], [], []>} : vector<4x4xbf16>, vector<4x640xbf16>, vector<4x640xf32> -> vector<4x640xf32>
    %66 = vector.broadcast %64 : vector<4x1xf32> to vector<4x640xf32>
    %67 = arith.addf %65, %66 : vector<4x640xf32>
    %cst_48 = arith.constant 0.000000e+00 : f32
    %68 = vector.broadcast %cst_48 : f32 to vector<4x640xf32>
    %69 = arith.cmpf ogt, %67, %68 : vector<4x640xf32>
    %cst_49 = arith.constant 0.000000e+00 : f32
    %70 = vector.broadcast %cst_49 : f32 to vector<4x640xf32>
    %71 = arith.minimumf %67, %70 : vector<4x640xf32>
    %72 = math.exp %71 : vector<4x640xf32>
    %cst_50 = arith.constant 1.000000e+00 : f32
    %73 = vector.broadcast %cst_50 : f32 to vector<4x640xf32>
    %74 = arith.subf %72, %73 : vector<4x640xf32>
    %75 = arith.select %69, %67, %74 : vector<4x640xi1>, vector<4x640xf32>
    %76 = arith.addf %75, %31 : vector<4x640xf32>
    %cst_51 = arith.constant 0.000000e+00 : f32
    %77 = vector.broadcast %cst_51 : f32 to vector<28x18xf32>
    %c0_52 = arith.constant 0 : index
    %c0_53 = arith.constant 0 : index
    %78 = vector.load %arg9[%c0_52, %c0_53] : memref<32x640xf32, #tpu.memory_space<vmem>>, vector<28x18xf32>
    tpu.vector_store %arg9[%c0_52, %c0_53], %77 {strides = array<i32>} : memref<32x640xf32, #tpu.memory_space<vmem>>, vector<28x18xf32>,
    %79 = vector.extract_strided_slice %76 {offsets = [0, 0], sizes = [4, 622], strides = [1, 1]} : vector<4x640xf32> to vector<4x622xf32>
    %c0_54 = arith.constant 0 : index
    %c18 = arith.constant 18 : index
    %80 = vector.load %arg9[%c0_54, %c18] : memref<32x640xf32, #tpu.memory_space<vmem>>, vector<4x622xf32>
    tpu.vector_store %arg9[%c0_54, %c18], %79 {strides = array<i32>} : memref<32x640xf32, #tpu.memory_space<vmem>>, vector<4x622xf32>,
    %81 = vector.extract_strided_slice %76 {offsets = [0, 0], sizes = [4, 625], strides = [1, 1]} : vector<4x640xf32> to vector<4x625xf32>
    %c4_55 = arith.constant 4 : index
    %c15 = arith.constant 15 : index
    %82 = vector.load %arg9[%c4_55, %c15] : memref<32x640xf32, #tpu.memory_space<vmem>>, vector<4x625xf32>
    tpu.vector_store %arg9[%c4_55, %c15], %81 {strides = array<i32>} : memref<32x640xf32, #tpu.memory_space<vmem>>, vector<4x625xf32>,
    %83 = vector.extract_strided_slice %76 {offsets = [0, 0], sizes = [4, 628], strides = [1, 1]} : vector<4x640xf32> to vector<4x628xf32>
    %c8_56 = arith.constant 8 : index
    %c12_57 = arith.constant 12 : index
    %84 = vector.load %arg9[%c8_56, %c12_57] : memref<32x640xf32, #tpu.memory_space<vmem>>, vector<4x628xf32>
    tpu.vector_store %arg9[%c8_56, %c12_57], %83 {strides = array<i32>} : memref<32x640xf32, #tpu.memory_space<vmem>>, vector<4x628xf32>,
    %85 = vector.extract_strided_slice %76 {offsets = [0, 0], sizes = [4, 631], strides = [1, 1]} : vector<4x640xf32> to vector<4x631xf32>
    %c12_58 = arith.constant 12 : index
    %c9 = arith.constant 9 : index
    %86 = vector.load %arg9[%c12_58, %c9] : memref<32x640xf32, #tpu.memory_space<vmem>>, vector<4x631xf32>
    tpu.vector_store %arg9[%c12_58, %c9], %85 {strides = array<i32>} : memref<32x640xf32, #tpu.memory_space<vmem>>, vector<4x631xf32>,
    %87 = vector.extract_strided_slice %76 {offsets = [0, 0], sizes = [4, 634], strides = [1, 1]} : vector<4x640xf32> to vector<4x634xf32>
    %c16_59 = arith.constant 16 : index
    %c6_60 = arith.constant 6 : index
    %88 = vector.load %arg9[%c16_59, %c6_60] : memref<32x640xf32, #tpu.memory_space<vmem>>, vector<4x634xf32>
    tpu.vector_store %arg9[%c16_59, %c6_60], %87 {strides = array<i32>} : memref<32x640xf32, #tpu.memory_space<vmem>>, vector<4x634xf32>,
    %89 = vector.extract_strided_slice %76 {offsets = [0, 0], sizes = [4, 637], strides = [1, 1]} : vector<4x640xf32> to vector<4x637xf32>
    %c20_61 = arith.constant 20 : index
    %c3_62 = arith.constant 3 : index
    %90 = vector.load %arg9[%c20_61, %c3_62] : memref<32x640xf32, #tpu.memory_space<vmem>>, vector<4x637xf32>
    tpu.vector_store %arg9[%c20_61, %c3_62], %89 {strides = array<i32>} : memref<32x640xf32, #tpu.memory_space<vmem>>, vector<4x637xf32>,
    %c24_63 = arith.constant 24 : index
    %c0_64 = arith.constant 0 : index
    %91 = vector.load %arg9[%c24_63, %c0_64] : memref<32x640xf32, #tpu.memory_space<vmem>>, vector<4x640xf32>
    tpu.vector_store %arg9[%c24_63, %c0_64], %76 {strides = array<i32>} : memref<32x640xf32, #tpu.memory_space<vmem>>, vector<4x640xf32>,
    %c0_65 = arith.constant 0 : index
    %c0_66 = arith.constant 0 : index
    %92 = vector.load %arg9[%c0_65, %c0_66] : memref<32x640xf32, #tpu.memory_space<vmem>>, vector<28x640xf32>
    %93 = arith.truncf %92 : vector<28x640xf32> to vector<28x640xbf16>
    %c48 = arith.constant 48 : index
    %c0_67 = arith.constant 0 : index
    %94 = vector.load %arg2[%c48, %c0_67] : memref<512x256xbf16, #tpu.memory_space<vmem>>, vector<4x28xbf16>
    %c0_68 = arith.constant 0 : index
    %c3_69 = arith.constant 3 : index
    %95 = vector.load %arg3[%c0_68, %c3_69] : memref<32x26xf32, #tpu.memory_space<vmem>>, vector<4x1xf32>
    %cst_70 = arith.constant dense<0.000000e+00> : vector<4x640xf32>
    %96 = tpu.matmul %94, %93, %cst_70 {dimension_numbers = #tpu.dot_dimension_numbers<[1], [0], [0], [1], [0, 0, 1, 1], [], []>} : vector<4x28xbf16>, vector<28x640xbf16>, vector<4x640xf32> -> vector<4x640xf32>
    %97 = vector.broadcast %95 : vector<4x1xf32> to vector<4x640xf32>
    %98 = arith.addf %96, %97 : vector<4x640xf32>
    %cst_71 = arith.constant 0.000000e+00 : f32
    %99 = vector.broadcast %cst_71 : f32 to vector<4x640xf32>
    %100 = arith.cmpf ogt, %98, %99 : vector<4x640xf32>
    %cst_72 = arith.constant 0.000000e+00 : f32
    %101 = vector.broadcast %cst_72 : f32 to vector<4x640xf32>
    %102 = arith.minimumf %98, %101 : vector<4x640xf32>
    %103 = math.exp %102 : vector<4x640xf32>
    %cst_73 = arith.constant 1.000000e+00 : f32
    %104 = vector.broadcast %cst_73 : f32 to vector<4x640xf32>
    %105 = arith.subf %103, %104 : vector<4x640xf32>
    %106 = arith.select %100, %98, %105 : vector<4x640xi1>, vector<4x640xf32>
    %107 = arith.truncf %106 : vector<4x640xf32> to vector<4x640xbf16>
    %c64 = arith.constant 64 : index
    %c0_74 = arith.constant 0 : index
    %108 = vector.load %arg2[%c64, %c0_74] : memref<512x256xbf16, #tpu.memory_space<vmem>>, vector<4x4xbf16>
    %c0_75 = arith.constant 0 : index
    %c4_76 = arith.constant 4 : index
    %109 = vector.load %arg3[%c0_75, %c4_76] : memref<32x26xf32, #tpu.memory_space<vmem>>, vector<4x1xf32>
    %cst_77 = arith.constant dense<0.000000e+00> : vector<4x640xf32>
    %110 = tpu.matmul %108, %107, %cst_77 {dimension_numbers = #tpu.dot_dimension_numbers<[1], [0], [0], [1], [0, 0, 1, 1], [], []>} : vector<4x4xbf16>, vector<4x640xbf16>, vector<4x640xf32> -> vector<4x640xf32>
    %111 = vector.broadcast %109 : vector<4x1xf32> to vector<4x640xf32>
    %112 = arith.addf %110, %111 : vector<4x640xf32>
    %cst_78 = arith.constant 0.000000e+00 : f32
    %113 = vector.broadcast %cst_78 : f32 to vector<4x640xf32>
    %114 = arith.cmpf ogt, %112, %113 : vector<4x640xf32>
    %cst_79 = arith.constant 0.000000e+00 : f32
    %115 = vector.broadcast %cst_79 : f32 to vector<4x640xf32>
    %116 = arith.minimumf %112, %115 : vector<4x640xf32>
    %117 = math.exp %116 : vector<4x640xf32>
    %cst_80 = arith.constant 1.000000e+00 : f32
    %118 = vector.broadcast %cst_80 : f32 to vector<4x640xf32>
    %119 = arith.subf %117, %118 : vector<4x640xf32>
    %120 = arith.select %114, %112, %119 : vector<4x640xi1>, vector<4x640xf32>
    %121 = arith.addf %120, %76 : vector<4x640xf32>
    %cst_81 = arith.constant 0.000000e+00 : f32
    %122 = vector.broadcast %cst_81 : f32 to vector<28x54xf32>
    %c0_82 = arith.constant 0 : index
    %c0_83 = arith.constant 0 : index
    %123 = vector.load %arg9[%c0_82, %c0_83] : memref<32x640xf32, #tpu.memory_space<vmem>>, vector<28x54xf32>
    tpu.vector_store %arg9[%c0_82, %c0_83], %122 {strides = array<i32>} : memref<32x640xf32, #tpu.memory_space<vmem>>, vector<28x54xf32>,
    %124 = vector.extract_strided_slice %121 {offsets = [0, 0], sizes = [4, 586], strides = [1, 1]} : vector<4x640xf32> to vector<4x586xf32>
    %c0_84 = arith.constant 0 : index
    %c54 = arith.constant 54 : index
    %125 = vector.load %arg9[%c0_84, %c54] : memref<32x640xf32, #tpu.memory_space<vmem>>, vector<4x586xf32>
    tpu.vector_store %arg9[%c0_84, %c54], %124 {strides = array<i32>} : memref<32x640xf32, #tpu.memory_space<vmem>>, vector<4x586xf32>,
    %126 = vector.extract_strided_slice %121 {offsets = [0, 0], sizes = [4, 595], strides = [1, 1]} : vector<4x640xf32> to vector<4x595xf32>
    %c4_85 = arith.constant 4 : index
    %c45 = arith.constant 45 : index
    %127 = vector.load %arg9[%c4_85, %c45] : memref<32x640xf32, #tpu.memory_space<vmem>>, vector<4x595xf32>
    tpu.vector_store %arg9[%c4_85, %c45], %126 {strides = array<i32>} : memref<32x640xf32, #tpu.memory_space<vmem>>, vector<4x595xf32>,
    %128 = vector.extract_strided_slice %121 {offsets = [0, 0], sizes = [4, 604], strides = [1, 1]} : vector<4x640xf32> to vector<4x604xf32>
    %c8_86 = arith.constant 8 : index
    %c36 = arith.constant 36 : index
    %129 = vector.load %arg9[%c8_86, %c36] : memref<32x640xf32, #tpu.memory_space<vmem>>, vector<4x604xf32>
    tpu.vector_store %arg9[%c8_86, %c36], %128 {strides = array<i32>} : memref<32x640xf32, #tpu.memory_space<vmem>>, vector<4x604xf32>,
    %130 = vector.extract_strided_slice %121 {offsets = [0, 0], sizes = [4, 613], strides = [1, 1]} : vector<4x640xf32> to vector<4x613xf32>
    %c12_87 = arith.constant 12 : index
    %c27 = arith.constant 27 : index
    %131 = vector.load %arg9[%c12_87, %c27] : memref<32x640xf32, #tpu.memory_space<vmem>>, vector<4x613xf32>
    tpu.vector_store %arg9[%c12_87, %c27], %130 {strides = array<i32>} : memref<32x640xf32, #tpu.memory_space<vmem>>, vector<4x613xf32>,
    %132 = vector.extract_strided_slice %121 {offsets = [0, 0], sizes = [4, 622], strides = [1, 1]} : vector<4x640xf32> to vector<4x622xf32>
    %c16_88 = arith.constant 16 : index
    %c18_89 = arith.constant 18 : index
    %133 = vector.load %arg9[%c16_88, %c18_89] : memref<32x640xf32, #tpu.memory_space<vmem>>, vector<4x622xf32>
    tpu.vector_store %arg9[%c16_88, %c18_89], %132 {strides = array<i32>} : memref<32x640xf32, #tpu.memory_space<vmem>>, vector<4x622xf32>,
    %134 = vector.extract_strided_slice %121 {offsets = [0, 0], sizes = [4, 631], strides = [1, 1]} : vector<4x640xf32> to vector<4x631xf32>
    %c20_90 = arith.constant 20 : index
    %c9_91 = arith.constant 9 : index
    %135 = vector.load %arg9[%c20_90, %c9_91] : memref<32x640xf32, #tpu.memory_space<vmem>>, vector<4x631xf32>
    tpu.vector_store %arg9[%c20_90, %c9_91], %134 {strides = array<i32>} : memref<32x640xf32, #tpu.memory_space<vmem>>, vector<4x631xf32>,
    %c24_92 = arith.constant 24 : index
    %c0_93 = arith.constant 0 : index
    %136 = vector.load %arg9[%c24_92, %c0_93] : memref<32x640xf32, #tpu.memory_space<vmem>>, vector<4x640xf32>
    tpu.vector_store %arg9[%c24_92, %c0_93], %121 {strides = array<i32>} : memref<32x640xf32, #tpu.memory_space<vmem>>, vector<4x640xf32>,
    %c0_94 = arith.constant 0 : index
    %c0_95 = arith.constant 0 : index
    %137 = vector.load %arg9[%c0_94, %c0_95] : memref<32x640xf32, #tpu.memory_space<vmem>>, vector<28x640xf32>
    %138 = arith.truncf %137 : vector<28x640xf32> to vector<28x640xbf16>
    %c80 = arith.constant 80 : index
    %c0_96 = arith.constant 0 : index
    %139 = vector.load %arg2[%c80, %c0_96] : memref<512x256xbf16, #tpu.memory_space<vmem>>, vector<4x28xbf16>
    %c0_97 = arith.constant 0 : index
    %c5_98 = arith.constant 5 : index
    %140 = vector.load %arg3[%c0_97, %c5_98] : memref<32x26xf32, #tpu.memory_space<vmem>>, vector<4x1xf32>
    %cst_99 = arith.constant dense<0.000000e+00> : vector<4x640xf32>
    %141 = tpu.matmul %139, %138, %cst_99 {dimension_numbers = #tpu.dot_dimension_numbers<[1], [0], [0], [1], [0, 0, 1, 1], [], []>} : vector<4x28xbf16>, vector<28x640xbf16>, vector<4x640xf32> -> vector<4x640xf32>
    %142 = vector.broadcast %140 : vector<4x1xf32> to vector<4x640xf32>
    %143 = arith.addf %141, %142 : vector<4x640xf32>
    %cst_100 = arith.constant 0.000000e+00 : f32
    %144 = vector.broadcast %cst_100 : f32 to vector<4x640xf32>
    %145 = arith.cmpf ogt, %143, %144 : vector<4x640xf32>
    %cst_101 = arith.constant 0.000000e+00 : f32
    %146 = vector.broadcast %cst_101 : f32 to vector<4x640xf32>
    %147 = arith.minimumf %143, %146 : vector<4x640xf32>
    %148 = math.exp %147 : vector<4x640xf32>
    %cst_102 = arith.constant 1.000000e+00 : f32
    %149 = vector.broadcast %cst_102 : f32 to vector<4x640xf32>
    %150 = arith.subf %148, %149 : vector<4x640xf32>
    %151 = arith.select %145, %143, %150 : vector<4x640xi1>, vector<4x640xf32>
    %152 = arith.truncf %151 : vector<4x640xf32> to vector<4x640xbf16>
    %c96 = arith.constant 96 : index
    %c0_103 = arith.constant 0 : index
    %153 = vector.load %arg2[%c96, %c0_103] : memref<512x256xbf16, #tpu.memory_space<vmem>>, vector<4x4xbf16>
    %c0_104 = arith.constant 0 : index
    %c6_105 = arith.constant 6 : index
    %154 = vector.load %arg3[%c0_104, %c6_105] : memref<32x26xf32, #tpu.memory_space<vmem>>, vector<4x1xf32>
    %cst_106 = arith.constant dense<0.000000e+00> : vector<4x640xf32>
    %155 = tpu.matmul %153, %152, %cst_106 {dimension_numbers = #tpu.dot_dimension_numbers<[1], [0], [0], [1], [0, 0, 1, 1], [], []>} : vector<4x4xbf16>, vector<4x640xbf16>, vector<4x640xf32> -> vector<4x640xf32>
    %156 = vector.broadcast %154 : vector<4x1xf32> to vector<4x640xf32>
    %157 = arith.addf %155, %156 : vector<4x640xf32>
    %cst_107 = arith.constant 0.000000e+00 : f32
    %158 = vector.broadcast %cst_107 : f32 to vector<4x640xf32>
    %159 = arith.cmpf ogt, %157, %158 : vector<4x640xf32>
    %cst_108 = arith.constant 0.000000e+00 : f32
    %160 = vector.broadcast %cst_108 : f32 to vector<4x640xf32>
    %161 = arith.minimumf %157, %160 : vector<4x640xf32>
    %162 = math.exp %161 : vector<4x640xf32>
    %cst_109 = arith.constant 1.000000e+00 : f32
    %163 = vector.broadcast %cst_109 : f32 to vector<4x640xf32>
    %164 = arith.subf %162, %163 : vector<4x640xf32>
    %165 = arith.select %159, %157, %164 : vector<4x640xi1>, vector<4x640xf32>
    %166 = arith.addf %165, %121 : vector<4x640xf32>
    %167 = tpu.transpose %166, [1, 0] : vector<4x640xf32> -> vector<640x4xf32>
    %c0_110 = arith.constant 0 : index
    %c0_111 = arith.constant 0 : index
    %168 = vector.load %arg7[%c0_110, %c0_111] : memref<640x128xf32, #tpu.memory_space<vmem>>, vector<640x4xf32>
    tpu.vector_store %arg7[%c0_110, %c0_111], %167 {strides = array<i32>} : memref<640x128xf32, #tpu.memory_space<vmem>>, vector<640x4xf32>,
    %cst_112 = arith.constant 0.000000e+00 : f32
    %169 = vector.broadcast %cst_112 : f32 to vector<1x16xf32>
    %c0_113 = arith.constant 0 : index
    %c0_114 = arith.constant 0 : index
    %170 = vector.load %arg10[%c0_113, %c0_114] : memref<320x128xf32, #tpu.memory_space<vmem>>, vector<1x16xf32>
    tpu.vector_store %arg10[%c0_113, %c0_114], %169 {strides = array<i32>} : memref<320x128xf32, #tpu.memory_space<vmem>>, vector<1x16xf32>,
    %c0_115 = arith.constant 0 : index
    %c0_116 = arith.constant 0 : index
    %171 = tpu.strided_load %arg7[%c0_115, %c0_116] {strides = array<i32: 2, 1>} : memref<640x128xf32, #tpu.memory_space<vmem>>, vector<319x4xf32>
    %c1_117 = arith.constant 1 : index
    %c0_118 = arith.constant 0 : index
    %172 = vector.load %arg10[%c1_117, %c0_118] : memref<320x128xf32, #tpu.memory_space<vmem>>, vector<319x4xf32>
    tpu.vector_store %arg10[%c1_117, %c0_118], %171 {strides = array<i32>} : memref<320x128xf32, #tpu.memory_space<vmem>>, vector<319x4xf32>,
    %c1_119 = arith.constant 1 : index
    %c0_120 = arith.constant 0 : index
    %173 = tpu.strided_load %arg7[%c1_119, %c0_120] {strides = array<i32: 2, 1>} : memref<640x128xf32, #tpu.memory_space<vmem>>, vector<319x4xf32>
    %c1_121 = arith.constant 1 : index
    %c4_122 = arith.constant 4 : index
    %174 = vector.load %arg10[%c1_121, %c4_122] : memref<320x128xf32, #tpu.memory_space<vmem>>, vector<319x4xf32>
    tpu.vector_store %arg10[%c1_121, %c4_122], %173 {strides = array<i32>} : memref<320x128xf32, #tpu.memory_space<vmem>>, vector<319x4xf32>,
    %c0_123 = arith.constant 0 : index
    %c0_124 = arith.constant 0 : index
    %175 = tpu.strided_load %arg7[%c0_123, %c0_124] {strides = array<i32: 2, 1>} : memref<640x128xf32, #tpu.memory_space<vmem>>, vector<320x4xf32>
    %c0_125 = arith.constant 0 : index
    %c8_126 = arith.constant 8 : index
    %176 = vector.load %arg10[%c0_125, %c8_126] : memref<320x128xf32, #tpu.memory_space<vmem>>, vector<320x4xf32>
    tpu.vector_store %arg10[%c0_125, %c8_126], %175 {strides = array<i32>} : memref<320x128xf32, #tpu.memory_space<vmem>>, vector<320x4xf32>,
    %c1_127 = arith.constant 1 : index
    %c0_128 = arith.constant 0 : index
    %177 = tpu.strided_load %arg7[%c1_127, %c0_128] {strides = array<i32: 2, 1>} : memref<640x128xf32, #tpu.memory_space<vmem>>, vector<320x4xf32>
    %c0_129 = arith.constant 0 : index
    %c12_130 = arith.constant 12 : index
    %178 = vector.load %arg10[%c0_129, %c12_130] : memref<320x128xf32, #tpu.memory_space<vmem>>, vector<320x4xf32>
    tpu.vector_store %arg10[%c0_129, %c12_130], %177 {strides = array<i32>} : memref<320x128xf32, #tpu.memory_space<vmem>>, vector<320x4xf32>,
    %c0_131 = arith.constant 0 : index
    %c0_132 = arith.constant 0 : index
    %179 = vector.load %arg10[%c0_131, %c0_132] : memref<320x128xf32, #tpu.memory_space<vmem>>, vector<320x16xf32>
    %180 = arith.truncf %179 : vector<320x16xf32> to vector<320x16xbf16>
    %c0_133 = arith.constant 0 : index
    %c0_134 = arith.constant 0 : index
    %181 = vector.load %arg4[%c0_133, %c0_134] : memref<752x128xbf16, #tpu.memory_space<vmem>>, vector<16x8xbf16>
    %c0_135 = arith.constant 0 : index
    %c0_136 = arith.constant 0 : index
    %182 = vector.load %arg5[%c0_135, %c0_136] : memref<8x64xf32, #tpu.memory_space<vmem>>, vector<1x8xf32>
    %cst_137 = arith.constant dense<0.000000e+00> : vector<320x8xf32>
    %183 = tpu.matmul %180, %181, %cst_137 {dimension_numbers = #tpu.dot_dimension_numbers<[1], [0], [0], [1], [0, 0, 1, 1], [], []>} : vector<320x16xbf16>, vector<16x8xbf16>, vector<320x8xf32> -> vector<320x8xf32>
    %184 = vector.broadcast %182 : vector<1x8xf32> to vector<320x8xf32>
    %185 = arith.addf %183, %184 : vector<320x8xf32>
    %cst_138 = arith.constant 0.000000e+00 : f32
    %186 = vector.broadcast %cst_138 : f32 to vector<320x8xf32>
    %187 = arith.cmpf ogt, %185, %186 : vector<320x8xf32>
    %cst_139 = arith.constant 0.000000e+00 : f32
    %188 = vector.broadcast %cst_139 : f32 to vector<320x8xf32>
    %189 = arith.minimumf %185, %188 : vector<320x8xf32>
    %190 = math.exp %189 : vector<320x8xf32>
    %cst_140 = arith.constant 1.000000e+00 : f32
    %191 = vector.broadcast %cst_140 : f32 to vector<320x8xf32>
    %192 = arith.subf %190, %191 : vector<320x8xf32>
    %193 = arith.select %187, %185, %192 : vector<320x8xi1>, vector<320x8xf32>
    %194 = tpu.transpose %193, [1, 0] : vector<320x8xf32> -> vector<8x320xf32>
    %cst_141 = arith.constant 0.000000e+00 : f32
    %195 = vector.broadcast %cst_141 : f32 to vector<56x6xf32>
    %c0_142 = arith.constant 0 : index
    %c0_143 = arith.constant 0 : index
    %196 = vector.load %arg11[%c0_142, %c0_143] : memref<56x384xf32, #tpu.memory_space<vmem>>, vector<56x6xf32>
    tpu.vector_store %arg11[%c0_142, %c0_143], %195 {strides = array<i32>} : memref<56x384xf32, #tpu.memory_space<vmem>>, vector<56x6xf32>,
    %197 = vector.extract_strided_slice %194 {offsets = [0, 0], sizes = [8, 314], strides = [1, 1]} : vector<8x320xf32> to vector<8x314xf32>
    %c0_144 = arith.constant 0 : index
    %c6_145 = arith.constant 6 : index
    %198 = vector.load %arg11[%c0_144, %c6_145] : memref<56x384xf32, #tpu.memory_space<vmem>>, vector<8x314xf32>
    tpu.vector_store %arg11[%c0_144, %c6_145], %197 {strides = array<i32>} : memref<56x384xf32, #tpu.memory_space<vmem>>, vector<8x314xf32>,
    %199 = vector.extract_strided_slice %194 {offsets = [0, 0], sizes = [8, 315], strides = [1, 1]} : vector<8x320xf32> to vector<8x315xf32>
    %c8_146 = arith.constant 8 : index
    %c5_147 = arith.constant 5 : index
    %200 = vector.load %arg11[%c8_146, %c5_147] : memref<56x384xf32, #tpu.memory_space<vmem>>, vector<8x315xf32>
    tpu.vector_store %arg11[%c8_146, %c5_147], %199 {strides = array<i32>} : memref<56x384xf32, #tpu.memory_space<vmem>>, vector<8x315xf32>,
    %201 = vector.extract_strided_slice %194 {offsets = [0, 0], sizes = [8, 316], strides = [1, 1]} : vector<8x320xf32> to vector<8x316xf32>
    %c16_148 = arith.constant 16 : index
    %c4_149 = arith.constant 4 : index
    %202 = vector.load %arg11[%c16_148, %c4_149] : memref<56x384xf32, #tpu.memory_space<vmem>>, vector<8x316xf32>
    tpu.vector_store %arg11[%c16_148, %c4_149], %201 {strides = array<i32>} : memref<56x384xf32, #tpu.memory_space<vmem>>, vector<8x316xf32>,
    %203 = vector.extract_strided_slice %194 {offsets = [0, 0], sizes = [8, 317], strides = [1, 1]} : vector<8x320xf32> to vector<8x317xf32>
    %c24_150 = arith.constant 24 : index
    %c3_151 = arith.constant 3 : index
    %204 = vector.load %arg11[%c24_150, %c3_151] : memref<56x384xf32, #tpu.memory_space<vmem>>, vector<8x317xf32>
    tpu.vector_store %arg11[%c24_150, %c3_151], %203 {strides = array<i32>} : memref<56x384xf32, #tpu.memory_space<vmem>>, vector<8x317xf32>,
    %205 = vector.extract_strided_slice %194 {offsets = [0, 0], sizes = [8, 318], strides = [1, 1]} : vector<8x320xf32> to vector<8x318xf32>
    %c32_152 = arith.constant 32 : index
    %c2_153 = arith.constant 2 : index
    %206 = vector.load %arg11[%c32_152, %c2_153] : memref<56x384xf32, #tpu.memory_space<vmem>>, vector<8x318xf32>
    tpu.vector_store %arg11[%c32_152, %c2_153], %205 {strides = array<i32>} : memref<56x384xf32, #tpu.memory_space<vmem>>, vector<8x318xf32>,
    %207 = vector.extract_strided_slice %194 {offsets = [0, 0], sizes = [8, 319], strides = [1, 1]} : vector<8x320xf32> to vector<8x319xf32>
    %c40 = arith.constant 40 : index
    %c1_154 = arith.constant 1 : index
    %208 = vector.load %arg11[%c40, %c1_154] : memref<56x384xf32, #tpu.memory_space<vmem>>, vector<8x319xf32>
    tpu.vector_store %arg11[%c40, %c1_154], %207 {strides = array<i32>} : memref<56x384xf32, #tpu.memory_space<vmem>>, vector<8x319xf32>,
    %c48_155 = arith.constant 48 : index
    %c0_156 = arith.constant 0 : index
    %209 = vector.load %arg11[%c48_155, %c0_156] : memref<56x384xf32, #tpu.memory_space<vmem>>, vector<8x320xf32>
    tpu.vector_store %arg11[%c48_155, %c0_156], %194 {strides = array<i32>} : memref<56x384xf32, #tpu.memory_space<vmem>>, vector<8x320xf32>,
    %c0_157 = arith.constant 0 : index
    %c0_158 = arith.constant 0 : index
    %210 = vector.load %arg11[%c0_157, %c0_158] : memref<56x384xf32, #tpu.memory_space<vmem>>, vector<56x320xf32>
    %211 = arith.truncf %210 : vector<56x320xf32> to vector<56x320xbf16>
    %c112 = arith.constant 112 : index
    %c0_159 = arith.constant 0 : index
    %212 = vector.load %arg2[%c112, %c0_159] : memref<512x256xbf16, #tpu.memory_space<vmem>>, vector<8x56xbf16>
    %c0_160 = arith.constant 0 : index
    %c7 = arith.constant 7 : index
    %213 = vector.load %arg3[%c0_160, %c7] : memref<32x26xf32, #tpu.memory_space<vmem>>, vector<8x1xf32>
    %cst_161 = arith.constant dense<0.000000e+00> : vector<8x320xf32>
    %214 = tpu.matmul %212, %211, %cst_161 {dimension_numbers = #tpu.dot_dimension_numbers<[1], [0], [0], [1], [0, 0, 1, 1], [], []>} : vector<8x56xbf16>, vector<56x320xbf16>, vector<8x320xf32> -> vector<8x320xf32>
    %215 = vector.broadcast %213 : vector<8x1xf32> to vector<8x320xf32>
    %216 = arith.addf %214, %215 : vector<8x320xf32>
    %cst_162 = arith.constant 0.000000e+00 : f32
    %217 = vector.broadcast %cst_162 : f32 to vector<8x320xf32>
    %218 = arith.cmpf ogt, %216, %217 : vector<8x320xf32>
    %cst_163 = arith.constant 0.000000e+00 : f32
    %219 = vector.broadcast %cst_163 : f32 to vector<8x320xf32>
    %220 = arith.minimumf %216, %219 : vector<8x320xf32>
    %221 = math.exp %220 : vector<8x320xf32>
    %cst_164 = arith.constant 1.000000e+00 : f32
    %222 = vector.broadcast %cst_164 : f32 to vector<8x320xf32>
    %223 = arith.subf %221, %222 : vector<8x320xf32>
    %224 = arith.select %218, %216, %223 : vector<8x320xi1>, vector<8x320xf32>
    %225 = arith.truncf %224 : vector<8x320xf32> to vector<8x320xbf16>
    %c128 = arith.constant 128 : index
    %c0_165 = arith.constant 0 : index
    %226 = vector.load %arg2[%c128, %c0_165] : memref<512x256xbf16, #tpu.memory_space<vmem>>, vector<8x8xbf16>
    %c0_166 = arith.constant 0 : index
    %c8_167 = arith.constant 8 : index
    %227 = vector.load %arg3[%c0_166, %c8_167] : memref<32x26xf32, #tpu.memory_space<vmem>>, vector<8x1xf32>
    %cst_168 = arith.constant dense<0.000000e+00> : vector<8x320xf32>
    %228 = tpu.matmul %226, %225, %cst_168 {dimension_numbers = #tpu.dot_dimension_numbers<[1], [0], [0], [1], [0, 0, 1, 1], [], []>} : vector<8x8xbf16>, vector<8x320xbf16>, vector<8x320xf32> -> vector<8x320xf32>
    %229 = vector.broadcast %227 : vector<8x1xf32> to vector<8x320xf32>
    %230 = arith.addf %228, %229 : vector<8x320xf32>
    %cst_169 = arith.constant 0.000000e+00 : f32
    %231 = vector.broadcast %cst_169 : f32 to vector<8x320xf32>
    %232 = arith.cmpf ogt, %230, %231 : vector<8x320xf32>
    %cst_170 = arith.constant 0.000000e+00 : f32
    %233 = vector.broadcast %cst_170 : f32 to vector<8x320xf32>
    %234 = arith.minimumf %230, %233 : vector<8x320xf32>
    %235 = math.exp %234 : vector<8x320xf32>
    %cst_171 = arith.constant 1.000000e+00 : f32
    %236 = vector.broadcast %cst_171 : f32 to vector<8x320xf32>
    %237 = arith.subf %235, %236 : vector<8x320xf32>
    %238 = arith.select %232, %230, %237 : vector<8x320xi1>, vector<8x320xf32>
    %239 = arith.addf %238, %194 : vector<8x320xf32>
    %cst_172 = arith.constant 0.000000e+00 : f32
    %240 = vector.broadcast %cst_172 : f32 to vector<56x18xf32>
    %c0_173 = arith.constant 0 : index
    %c0_174 = arith.constant 0 : index
    %241 = vector.load %arg11[%c0_173, %c0_174] : memref<56x384xf32, #tpu.memory_space<vmem>>, vector<56x18xf32>
    tpu.vector_store %arg11[%c0_173, %c0_174], %240 {strides = array<i32>} : memref<56x384xf32, #tpu.memory_space<vmem>>, vector<56x18xf32>,
    %242 = vector.extract_strided_slice %239 {offsets = [0, 0], sizes = [8, 302], strides = [1, 1]} : vector<8x320xf32> to vector<8x302xf32>
    %c0_175 = arith.constant 0 : index
    %c18_176 = arith.constant 18 : index
    %243 = vector.load %arg11[%c0_175, %c18_176] : memref<56x384xf32, #tpu.memory_space<vmem>>, vector<8x302xf32>
    tpu.vector_store %arg11[%c0_175, %c18_176], %242 {strides = array<i32>} : memref<56x384xf32, #tpu.memory_space<vmem>>, vector<8x302xf32>,
    %244 = vector.extract_strided_slice %239 {offsets = [0, 0], sizes = [8, 305], strides = [1, 1]} : vector<8x320xf32> to vector<8x305xf32>
    %c8_177 = arith.constant 8 : index
    %c15_178 = arith.constant 15 : index
    %245 = vector.load %arg11[%c8_177, %c15_178] : memref<56x384xf32, #tpu.memory_space<vmem>>, vector<8x305xf32>
    tpu.vector_store %arg11[%c8_177, %c15_178], %244 {strides = array<i32>} : memref<56x384xf32, #tpu.memory_space<vmem>>, vector<8x305xf32>,
    %246 = vector.extract_strided_slice %239 {offsets = [0, 0], sizes = [8, 308], strides = [1, 1]} : vector<8x320xf32> to vector<8x308xf32>
    %c16_179 = arith.constant 16 : index
    %c12_180 = arith.constant 12 : index
    %247 = vector.load %arg11[%c16_179, %c12_180] : memref<56x384xf32, #tpu.memory_space<vmem>>, vector<8x308xf32>
    tpu.vector_store %arg11[%c16_179, %c12_180], %246 {strides = array<i32>} : memref<56x384xf32, #tpu.memory_space<vmem>>, vector<8x308xf32>,
    %248 = vector.extract_strided_slice %239 {offsets = [0, 0], sizes = [8, 311], strides = [1, 1]} : vector<8x320xf32> to vector<8x311xf32>
    %c24_181 = arith.constant 24 : index
    %c9_182 = arith.constant 9 : index
    %249 = vector.load %arg11[%c24_181, %c9_182] : memref<56x384xf32, #tpu.memory_space<vmem>>, vector<8x311xf32>
    tpu.vector_store %arg11[%c24_181, %c9_182], %248 {strides = array<i32>} : memref<56x384xf32, #tpu.memory_space<vmem>>, vector<8x311xf32>,
    %250 = vector.extract_strided_slice %239 {offsets = [0, 0], sizes = [8, 314], strides = [1, 1]} : vector<8x320xf32> to vector<8x314xf32>
    %c32_183 = arith.constant 32 : index
    %c6_184 = arith.constant 6 : index
    %251 = vector.load %arg11[%c32_183, %c6_184] : memref<56x384xf32, #tpu.memory_space<vmem>>, vector<8x314xf32>
    tpu.vector_store %arg11[%c32_183, %c6_184], %250 {strides = array<i32>} : memref<56x384xf32, #tpu.memory_space<vmem>>, vector<8x314xf32>,
    %252 = vector.extract_strided_slice %239 {offsets = [0, 0], sizes = [8, 317], strides = [1, 1]} : vector<8x320xf32> to vector<8x317xf32>
    %c40_185 = arith.constant 40 : index
    %c3_186 = arith.constant 3 : index
    %253 = vector.load %arg11[%c40_185, %c3_186] : memref<56x384xf32, #tpu.memory_space<vmem>>, vector<8x317xf32>
    tpu.vector_store %arg11[%c40_185, %c3_186], %252 {strides = array<i32>} : memref<56x384xf32, #tpu.memory_space<vmem>>, vector<8x317xf32>,
    %c48_187 = arith.constant 48 : index
    %c0_188 = arith.constant 0 : index
    %254 = vector.load %arg11[%c48_187, %c0_188] : memref<56x384xf32, #tpu.memory_space<vmem>>, vector<8x320xf32>
    tpu.vector_store %arg11[%c48_187, %c0_188], %239 {strides = array<i32>} : memref<56x384xf32, #tpu.memory_space<vmem>>, vector<8x320xf32>,
    %c0_189 = arith.constant 0 : index
    %c0_190 = arith.constant 0 : index
    %255 = vector.load %arg11[%c0_189, %c0_190] : memref<56x384xf32, #tpu.memory_space<vmem>>, vector<56x320xf32>
    %256 = arith.truncf %255 : vector<56x320xf32> to vector<56x320xbf16>
    %c144 = arith.constant 144 : index
    %c0_191 = arith.constant 0 : index
    %257 = vector.load %arg2[%c144, %c0_191] : memref<512x256xbf16, #tpu.memory_space<vmem>>, vector<8x56xbf16>
    %c0_192 = arith.constant 0 : index
    %c9_193 = arith.constant 9 : index
    %258 = vector.load %arg3[%c0_192, %c9_193] : memref<32x26xf32, #tpu.memory_space<vmem>>, vector<8x1xf32>
    %cst_194 = arith.constant dense<0.000000e+00> : vector<8x320xf32>
    %259 = tpu.matmul %257, %256, %cst_194 {dimension_numbers = #tpu.dot_dimension_numbers<[1], [0], [0], [1], [0, 0, 1, 1], [], []>} : vector<8x56xbf16>, vector<56x320xbf16>, vector<8x320xf32> -> vector<8x320xf32>
    %260 = vector.broadcast %258 : vector<8x1xf32> to vector<8x320xf32>
    %261 = arith.addf %259, %260 : vector<8x320xf32>
    %cst_195 = arith.constant 0.000000e+00 : f32
    %262 = vector.broadcast %cst_195 : f32 to vector<8x320xf32>
    %263 = arith.cmpf ogt, %261, %262 : vector<8x320xf32>
    %cst_196 = arith.constant 0.000000e+00 : f32
    %264 = vector.broadcast %cst_196 : f32 to vector<8x320xf32>
    %265 = arith.minimumf %261, %264 : vector<8x320xf32>
    %266 = math.exp %265 : vector<8x320xf32>
    %cst_197 = arith.constant 1.000000e+00 : f32
    %267 = vector.broadcast %cst_197 : f32 to vector<8x320xf32>
    %268 = arith.subf %266, %267 : vector<8x320xf32>
    %269 = arith.select %263, %261, %268 : vector<8x320xi1>, vector<8x320xf32>
    %270 = arith.truncf %269 : vector<8x320xf32> to vector<8x320xbf16>
    %c160 = arith.constant 160 : index
    %c0_198 = arith.constant 0 : index
    %271 = vector.load %arg2[%c160, %c0_198] : memref<512x256xbf16, #tpu.memory_space<vmem>>, vector<8x8xbf16>
    %c0_199 = arith.constant 0 : index
    %c10 = arith.constant 10 : index
    %272 = vector.load %arg3[%c0_199, %c10] : memref<32x26xf32, #tpu.memory_space<vmem>>, vector<8x1xf32>
    %cst_200 = arith.constant dense<0.000000e+00> : vector<8x320xf32>
    %273 = tpu.matmul %271, %270, %cst_200 {dimension_numbers = #tpu.dot_dimension_numbers<[1], [0], [0], [1], [0, 0, 1, 1], [], []>} : vector<8x8xbf16>, vector<8x320xbf16>, vector<8x320xf32> -> vector<8x320xf32>
    %274 = vector.broadcast %272 : vector<8x1xf32> to vector<8x320xf32>
    %275 = arith.addf %273, %274 : vector<8x320xf32>
    %cst_201 = arith.constant 0.000000e+00 : f32
    %276 = vector.broadcast %cst_201 : f32 to vector<8x320xf32>
    %277 = arith.cmpf ogt, %275, %276 : vector<8x320xf32>
    %cst_202 = arith.constant 0.000000e+00 : f32
    %278 = vector.broadcast %cst_202 : f32 to vector<8x320xf32>
    %279 = arith.minimumf %275, %278 : vector<8x320xf32>
    %280 = math.exp %279 : vector<8x320xf32>
    %cst_203 = arith.constant 1.000000e+00 : f32
    %281 = vector.broadcast %cst_203 : f32 to vector<8x320xf32>
    %282 = arith.subf %280, %281 : vector<8x320xf32>
    %283 = arith.select %277, %275, %282 : vector<8x320xi1>, vector<8x320xf32>
    %284 = arith.addf %283, %239 : vector<8x320xf32>
    %cst_204 = arith.constant 0.000000e+00 : f32
    %285 = vector.broadcast %cst_204 : f32 to vector<56x54xf32>
    %c0_205 = arith.constant 0 : index
    %c0_206 = arith.constant 0 : index
    %286 = vector.load %arg11[%c0_205, %c0_206] : memref<56x384xf32, #tpu.memory_space<vmem>>, vector<56x54xf32>
    tpu.vector_store %arg11[%c0_205, %c0_206], %285 {strides = array<i32>} : memref<56x384xf32, #tpu.memory_space<vmem>>, vector<56x54xf32>,
    %287 = vector.extract_strided_slice %284 {offsets = [0, 0], sizes = [8, 266], strides = [1, 1]} : vector<8x320xf32> to vector<8x266xf32>
    %c0_207 = arith.constant 0 : index
    %c54_208 = arith.constant 54 : index
    %288 = vector.load %arg11[%c0_207, %c54_208] : memref<56x384xf32, #tpu.memory_space<vmem>>, vector<8x266xf32>
    tpu.vector_store %arg11[%c0_207, %c54_208], %287 {strides = array<i32>} : memref<56x384xf32, #tpu.memory_space<vmem>>, vector<8x266xf32>,
    %289 = vector.extract_strided_slice %284 {offsets = [0, 0], sizes = [8, 275], strides = [1, 1]} : vector<8x320xf32> to vector<8x275xf32>
    %c8_209 = arith.constant 8 : index
    %c45_210 = arith.constant 45 : index
    %290 = vector.load %arg11[%c8_209, %c45_210] : memref<56x384xf32, #tpu.memory_space<vmem>>, vector<8x275xf32>
    tpu.vector_store %arg11[%c8_209, %c45_210], %289 {strides = array<i32>} : memref<56x384xf32, #tpu.memory_space<vmem>>, vector<8x275xf32>,
    %291 = vector.extract_strided_slice %284 {offsets = [0, 0], sizes = [8, 284], strides = [1, 1]} : vector<8x320xf32> to vector<8x284xf32>
    %c16_211 = arith.constant 16 : index
    %c36_212 = arith.constant 36 : index
    %292 = vector.load %arg11[%c16_211, %c36_212] : memref<56x384xf32, #tpu.memory_space<vmem>>, vector<8x284xf32>
    tpu.vector_store %arg11[%c16_211, %c36_212], %291 {strides = array<i32>} : memref<56x384xf32, #tpu.memory_space<vmem>>, vector<8x284xf32>,
    %293 = vector.extract_strided_slice %284 {offsets = [0, 0], sizes = [8, 293], strides = [1, 1]} : vector<8x320xf32> to vector<8x293xf32>
    %c24_213 = arith.constant 24 : index
    %c27_214 = arith.constant 27 : index
    %294 = vector.load %arg11[%c24_213, %c27_214] : memref<56x384xf32, #tpu.memory_space<vmem>>, vector<8x293xf32>
    tpu.vector_store %arg11[%c24_213, %c27_214], %293 {strides = array<i32>} : memref<56x384xf32, #tpu.memory_space<vmem>>, vector<8x293xf32>,
    %295 = vector.extract_strided_slice %284 {offsets = [0, 0], sizes = [8, 302], strides = [1, 1]} : vector<8x320xf32> to vector<8x302xf32>
    %c32_215 = arith.constant 32 : index
    %c18_216 = arith.constant 18 : index
    %296 = vector.load %arg11[%c32_215, %c18_216] : memref<56x384xf32, #tpu.memory_space<vmem>>, vector<8x302xf32>
    tpu.vector_store %arg11[%c32_215, %c18_216], %295 {strides = array<i32>} : memref<56x384xf32, #tpu.memory_space<vmem>>, vector<8x302xf32>,
    %297 = vector.extract_strided_slice %284 {offsets = [0, 0], sizes = [8, 311], strides = [1, 1]} : vector<8x320xf32> to vector<8x311xf32>
    %c40_217 = arith.constant 40 : index
    %c9_218 = arith.constant 9 : index
    %298 = vector.load %arg11[%c40_217, %c9_218] : memref<56x384xf32, #tpu.memory_space<vmem>>, vector<8x311xf32>
    tpu.vector_store %arg11[%c40_217, %c9_218], %297 {strides = array<i32>} : memref<56x384xf32, #tpu.memory_space<vmem>>, vector<8x311xf32>,
    %c48_219 = arith.constant 48 : index
    %c0_220 = arith.constant 0 : index
    %299 = vector.load %arg11[%c48_219, %c0_220] : memref<56x384xf32, #tpu.memory_space<vmem>>, vector<8x320xf32>
    tpu.vector_store %arg11[%c48_219, %c0_220], %284 {strides = array<i32>} : memref<56x384xf32, #tpu.memory_space<vmem>>, vector<8x320xf32>,
    %c0_221 = arith.constant 0 : index
    %c0_222 = arith.constant 0 : index
    %300 = vector.load %arg11[%c0_221, %c0_222] : memref<56x384xf32, #tpu.memory_space<vmem>>, vector<56x320xf32>
    %301 = arith.truncf %300 : vector<56x320xf32> to vector<56x320xbf16>
    %c176 = arith.constant 176 : index
    %c0_223 = arith.constant 0 : index
    %302 = vector.load %arg2[%c176, %c0_223] : memref<512x256xbf16, #tpu.memory_space<vmem>>, vector<8x56xbf16>
    %c0_224 = arith.constant 0 : index
    %c11 = arith.constant 11 : index
    %303 = vector.load %arg3[%c0_224, %c11] : memref<32x26xf32, #tpu.memory_space<vmem>>, vector<8x1xf32>
    %cst_225 = arith.constant dense<0.000000e+00> : vector<8x320xf32>
    %304 = tpu.matmul %302, %301, %cst_225 {dimension_numbers = #tpu.dot_dimension_numbers<[1], [0], [0], [1], [0, 0, 1, 1], [], []>} : vector<8x56xbf16>, vector<56x320xbf16>, vector<8x320xf32> -> vector<8x320xf32>
    %305 = vector.broadcast %303 : vector<8x1xf32> to vector<8x320xf32>
    %306 = arith.addf %304, %305 : vector<8x320xf32>
    %cst_226 = arith.constant 0.000000e+00 : f32
    %307 = vector.broadcast %cst_226 : f32 to vector<8x320xf32>
    %308 = arith.cmpf ogt, %306, %307 : vector<8x320xf32>
    %cst_227 = arith.constant 0.000000e+00 : f32
    %309 = vector.broadcast %cst_227 : f32 to vector<8x320xf32>
    %310 = arith.minimumf %306, %309 : vector<8x320xf32>
    %311 = math.exp %310 : vector<8x320xf32>
    %cst_228 = arith.constant 1.000000e+00 : f32
    %312 = vector.broadcast %cst_228 : f32 to vector<8x320xf32>
    %313 = arith.subf %311, %312 : vector<8x320xf32>
    %314 = arith.select %308, %306, %313 : vector<8x320xi1>, vector<8x320xf32>
    %315 = arith.truncf %314 : vector<8x320xf32> to vector<8x320xbf16>
    %c192 = arith.constant 192 : index
    %c0_229 = arith.constant 0 : index
    %316 = vector.load %arg2[%c192, %c0_229] : memref<512x256xbf16, #tpu.memory_space<vmem>>, vector<8x8xbf16>
    %c0_230 = arith.constant 0 : index
    %c12_231 = arith.constant 12 : index
    %317 = vector.load %arg3[%c0_230, %c12_231] : memref<32x26xf32, #tpu.memory_space<vmem>>, vector<8x1xf32>
    %cst_232 = arith.constant dense<0.000000e+00> : vector<8x320xf32>
    %318 = tpu.matmul %316, %315, %cst_232 {dimension_numbers = #tpu.dot_dimension_numbers<[1], [0], [0], [1], [0, 0, 1, 1], [], []>} : vector<8x8xbf16>, vector<8x320xbf16>, vector<8x320xf32> -> vector<8x320xf32>
    %319 = vector.broadcast %317 : vector<8x1xf32> to vector<8x320xf32>
    %320 = arith.addf %318, %319 : vector<8x320xf32>
    %cst_233 = arith.constant 0.000000e+00 : f32
    %321 = vector.broadcast %cst_233 : f32 to vector<8x320xf32>
    %322 = arith.cmpf ogt, %320, %321 : vector<8x320xf32>
    %cst_234 = arith.constant 0.000000e+00 : f32
    %323 = vector.broadcast %cst_234 : f32 to vector<8x320xf32>
    %324 = arith.minimumf %320, %323 : vector<8x320xf32>
    %325 = math.exp %324 : vector<8x320xf32>
    %cst_235 = arith.constant 1.000000e+00 : f32
    %326 = vector.broadcast %cst_235 : f32 to vector<8x320xf32>
    %327 = arith.subf %325, %326 : vector<8x320xf32>
    %328 = arith.select %322, %320, %327 : vector<8x320xi1>, vector<8x320xf32>
    %329 = arith.addf %328, %284 : vector<8x320xf32>
    %330 = tpu.transpose %329, [1, 0] : vector<8x320xf32> -> vector<320x8xf32>
    %c0_236 = arith.constant 0 : index
    %c0_237 = arith.constant 0 : index
    %331 = vector.load %arg7[%c0_236, %c0_237] : memref<640x128xf32, #tpu.memory_space<vmem>>, vector<320x8xf32>
    tpu.vector_store %arg7[%c0_236, %c0_237], %330 {strides = array<i32>} : memref<640x128xf32, #tpu.memory_space<vmem>>, vector<320x8xf32>,
    %cst_238 = arith.constant 0.000000e+00 : f32
    %332 = vector.broadcast %cst_238 : f32 to vector<1x64xf32>
    %c0_239 = arith.constant 0 : index
    %c0_240 = arith.constant 0 : index
    %333 = vector.load %arg12[%c0_239, %c0_240] : memref<80x128xf32, #tpu.memory_space<vmem>>, vector<1x64xf32>
    tpu.vector_store %arg12[%c0_239, %c0_240], %332 {strides = array<i32>} : memref<80x128xf32, #tpu.memory_space<vmem>>, vector<1x64xf32>,
    %c0_241 = arith.constant 0 : index
    %c0_242 = arith.constant 0 : index
    %334 = tpu.strided_load %arg7[%c0_241, %c0_242] {strides = array<i32: 4, 1>} : memref<640x128xf32, #tpu.memory_space<vmem>>, vector<79x8xf32>
    %c1_243 = arith.constant 1 : index
    %c0_244 = arith.constant 0 : index
    %335 = vector.load %arg12[%c1_243, %c0_244] : memref<80x128xf32, #tpu.memory_space<vmem>>, vector<79x8xf32>
    tpu.vector_store %arg12[%c1_243, %c0_244], %334 {strides = array<i32>} : memref<80x128xf32, #tpu.memory_space<vmem>>, vector<79x8xf32>,
    %c1_245 = arith.constant 1 : index
    %c0_246 = arith.constant 0 : index
    %336 = tpu.strided_load %arg7[%c1_245, %c0_246] {strides = array<i32: 4, 1>} : memref<640x128xf32, #tpu.memory_space<vmem>>, vector<79x8xf32>
    %c1_247 = arith.constant 1 : index
    %c8_248 = arith.constant 8 : index
    %337 = vector.load %arg12[%c1_247, %c8_248] : memref<80x128xf32, #tpu.memory_space<vmem>>, vector<79x8xf32>
    tpu.vector_store %arg12[%c1_247, %c8_248], %336 {strides = array<i32>} : memref<80x128xf32, #tpu.memory_space<vmem>>, vector<79x8xf32>,
    %c2_249 = arith.constant 2 : index
    %c0_250 = arith.constant 0 : index
    %338 = tpu.strided_load %arg7[%c2_249, %c0_250] {strides = array<i32: 4, 1>} : memref<640x128xf32, #tpu.memory_space<vmem>>, vector<79x8xf32>
    %c1_251 = arith.constant 1 : index
    %c16_252 = arith.constant 16 : index
    %339 = vector.load %arg12[%c1_251, %c16_252] : memref<80x128xf32, #tpu.memory_space<vmem>>, vector<79x8xf32>
    tpu.vector_store %arg12[%c1_251, %c16_252], %338 {strides = array<i32>} : memref<80x128xf32, #tpu.memory_space<vmem>>, vector<79x8xf32>,
    %c3_253 = arith.constant 3 : index
    %c0_254 = arith.constant 0 : index
    %340 = tpu.strided_load %arg7[%c3_253, %c0_254] {strides = array<i32: 4, 1>} : memref<640x128xf32, #tpu.memory_space<vmem>>, vector<79x8xf32>
    %c1_255 = arith.constant 1 : index
    %c24_256 = arith.constant 24 : index
    %341 = vector.load %arg12[%c1_255, %c24_256] : memref<80x128xf32, #tpu.memory_space<vmem>>, vector<79x8xf32>
    tpu.vector_store %arg12[%c1_255, %c24_256], %340 {strides = array<i32>} : memref<80x128xf32, #tpu.memory_space<vmem>>, vector<79x8xf32>,
    %c0_257 = arith.constant 0 : index
    %c0_258 = arith.constant 0 : index
    %342 = tpu.strided_load %arg7[%c0_257, %c0_258] {strides = array<i32: 4, 1>} : memref<640x128xf32, #tpu.memory_space<vmem>>, vector<80x8xf32>
    %c0_259 = arith.constant 0 : index
    %c32_260 = arith.constant 32 : index
    %343 = vector.load %arg12[%c0_259, %c32_260] : memref<80x128xf32, #tpu.memory_space<vmem>>, vector<80x8xf32>
    tpu.vector_store %arg12[%c0_259, %c32_260], %342 {strides = array<i32>} : memref<80x128xf32, #tpu.memory_space<vmem>>, vector<80x8xf32>,
    %c1_261 = arith.constant 1 : index
    %c0_262 = arith.constant 0 : index
    %344 = tpu.strided_load %arg7[%c1_261, %c0_262] {strides = array<i32: 4, 1>} : memref<640x128xf32, #tpu.memory_space<vmem>>, vector<80x8xf32>
    %c0_263 = arith.constant 0 : index
    %c40_264 = arith.constant 40 : index
    %345 = vector.load %arg12[%c0_263, %c40_264] : memref<80x128xf32, #tpu.memory_space<vmem>>, vector<80x8xf32>
    tpu.vector_store %arg12[%c0_263, %c40_264], %344 {strides = array<i32>} : memref<80x128xf32, #tpu.memory_space<vmem>>, vector<80x8xf32>,
    %c2_265 = arith.constant 2 : index
    %c0_266 = arith.constant 0 : index
    %346 = tpu.strided_load %arg7[%c2_265, %c0_266] {strides = array<i32: 4, 1>} : memref<640x128xf32, #tpu.memory_space<vmem>>, vector<80x8xf32>
    %c0_267 = arith.constant 0 : index
    %c48_268 = arith.constant 48 : index
    %347 = vector.load %arg12[%c0_267, %c48_268] : memref<80x128xf32, #tpu.memory_space<vmem>>, vector<80x8xf32>
    tpu.vector_store %arg12[%c0_267, %c48_268], %346 {strides = array<i32>} : memref<80x128xf32, #tpu.memory_space<vmem>>, vector<80x8xf32>,
    %c3_269 = arith.constant 3 : index
    %c0_270 = arith.constant 0 : index
    %348 = tpu.strided_load %arg7[%c3_269, %c0_270] {strides = array<i32: 4, 1>} : memref<640x128xf32, #tpu.memory_space<vmem>>, vector<80x8xf32>
    %c0_271 = arith.constant 0 : index
    %c56 = arith.constant 56 : index
    %349 = vector.load %arg12[%c0_271, %c56] : memref<80x128xf32, #tpu.memory_space<vmem>>, vector<80x8xf32>
    tpu.vector_store %arg12[%c0_271, %c56], %348 {strides = array<i32>} : memref<80x128xf32, #tpu.memory_space<vmem>>, vector<80x8xf32>,
    %c0_272 = arith.constant 0 : index
    %c0_273 = arith.constant 0 : index
    %350 = vector.load %arg12[%c0_272, %c0_273] : memref<80x128xf32, #tpu.memory_space<vmem>>, vector<80x64xf32>
    %351 = arith.truncf %350 : vector<80x64xf32> to vector<80x64xbf16>
    %c16_274 = arith.constant 16 : index
    %c0_275 = arith.constant 0 : index
    %352 = vector.load %arg4[%c16_274, %c0_275] : memref<752x128xbf16, #tpu.memory_space<vmem>>, vector<64x16xbf16>
    %c1_276 = arith.constant 1 : index
    %c0_277 = arith.constant 0 : index
    %353 = vector.load %arg5[%c1_276, %c0_277] : memref<8x64xf32, #tpu.memory_space<vmem>>, vector<1x16xf32>
    %cst_278 = arith.constant dense<0.000000e+00> : vector<80x16xf32>
    %354 = tpu.matmul %351, %352, %cst_278 {dimension_numbers = #tpu.dot_dimension_numbers<[1], [0], [0], [1], [0, 0, 1, 1], [], []>} : vector<80x64xbf16>, vector<64x16xbf16>, vector<80x16xf32> -> vector<80x16xf32>
    %355 = vector.broadcast %353 : vector<1x16xf32> to vector<80x16xf32>
    %356 = arith.addf %354, %355 : vector<80x16xf32>
    %cst_279 = arith.constant 0.000000e+00 : f32
    %357 = vector.broadcast %cst_279 : f32 to vector<80x16xf32>
    %358 = arith.cmpf ogt, %356, %357 : vector<80x16xf32>
    %cst_280 = arith.constant 0.000000e+00 : f32
    %359 = vector.broadcast %cst_280 : f32 to vector<80x16xf32>
    %360 = arith.minimumf %356, %359 : vector<80x16xf32>
    %361 = math.exp %360 : vector<80x16xf32>
    %cst_281 = arith.constant 1.000000e+00 : f32
    %362 = vector.broadcast %cst_281 : f32 to vector<80x16xf32>
    %363 = arith.subf %361, %362 : vector<80x16xf32>
    %364 = arith.select %358, %356, %363 : vector<80x16xi1>, vector<80x16xf32>
    %365 = tpu.transpose %364, [1, 0] : vector<80x16xf32> -> vector<16x80xf32>
    %cst_282 = arith.constant 0.000000e+00 : f32
    %366 = vector.broadcast %cst_282 : f32 to vector<112x6xf32>
    %c0_283 = arith.constant 0 : index
    %c0_284 = arith.constant 0 : index
    %367 = vector.load %arg13[%c0_283, %c0_284] : memref<112x128xf32, #tpu.memory_space<vmem>>, vector<112x6xf32>
    tpu.vector_store %arg13[%c0_283, %c0_284], %366 {strides = array<i32>} : memref<112x128xf32, #tpu.memory_space<vmem>>, vector<112x6xf32>,
    %368 = vector.extract_strided_slice %365 {offsets = [0, 0], sizes = [16, 74], strides = [1, 1]} : vector<16x80xf32> to vector<16x74xf32>
    %c0_285 = arith.constant 0 : index
    %c6_286 = arith.constant 6 : index
    %369 = vector.load %arg13[%c0_285, %c6_286] : memref<112x128xf32, #tpu.memory_space<vmem>>, vector<16x74xf32>
    tpu.vector_store %arg13[%c0_285, %c6_286], %368 {strides = array<i32>} : memref<112x128xf32, #tpu.memory_space<vmem>>, vector<16x74xf32>,
    %370 = vector.extract_strided_slice %365 {offsets = [0, 0], sizes = [16, 75], strides = [1, 1]} : vector<16x80xf32> to vector<16x75xf32>
    %c16_287 = arith.constant 16 : index
    %c5_288 = arith.constant 5 : index
    %371 = vector.load %arg13[%c16_287, %c5_288] : memref<112x128xf32, #tpu.memory_space<vmem>>, vector<16x75xf32>
    tpu.vector_store %arg13[%c16_287, %c5_288], %370 {strides = array<i32>} : memref<112x128xf32, #tpu.memory_space<vmem>>, vector<16x75xf32>,
    %372 = vector.extract_strided_slice %365 {offsets = [0, 0], sizes = [16, 76], strides = [1, 1]} : vector<16x80xf32> to vector<16x76xf32>
    %c32_289 = arith.constant 32 : index
    %c4_290 = arith.constant 4 : index
    %373 = vector.load %arg13[%c32_289, %c4_290] : memref<112x128xf32, #tpu.memory_space<vmem>>, vector<16x76xf32>
    tpu.vector_store %arg13[%c32_289, %c4_290], %372 {strides = array<i32>} : memref<112x128xf32, #tpu.memory_space<vmem>>, vector<16x76xf32>,
    %374 = vector.extract_strided_slice %365 {offsets = [0, 0], sizes = [16, 77], strides = [1, 1]} : vector<16x80xf32> to vector<16x77xf32>
    %c48_291 = arith.constant 48 : index
    %c3_292 = arith.constant 3 : index
    %375 = vector.load %arg13[%c48_291, %c3_292] : memref<112x128xf32, #tpu.memory_space<vmem>>, vector<16x77xf32>
    tpu.vector_store %arg13[%c48_291, %c3_292], %374 {strides = array<i32>} : memref<112x128xf32, #tpu.memory_space<vmem>>, vector<16x77xf32>,
    %376 = vector.extract_strided_slice %365 {offsets = [0, 0], sizes = [16, 78], strides = [1, 1]} : vector<16x80xf32> to vector<16x78xf32>
    %c64_293 = arith.constant 64 : index
    %c2_294 = arith.constant 2 : index
    %377 = vector.load %arg13[%c64_293, %c2_294] : memref<112x128xf32, #tpu.memory_space<vmem>>, vector<16x78xf32>
    tpu.vector_store %arg13[%c64_293, %c2_294], %376 {strides = array<i32>} : memref<112x128xf32, #tpu.memory_space<vmem>>, vector<16x78xf32>,
    %378 = vector.extract_strided_slice %365 {offsets = [0, 0], sizes = [16, 79], strides = [1, 1]} : vector<16x80xf32> to vector<16x79xf32>
    %c80_295 = arith.constant 80 : index
    %c1_296 = arith.constant 1 : index
    %379 = vector.load %arg13[%c80_295, %c1_296] : memref<112x128xf32, #tpu.memory_space<vmem>>, vector<16x79xf32>
    tpu.vector_store %arg13[%c80_295, %c1_296], %378 {strides = array<i32>} : memref<112x128xf32, #tpu.memory_space<vmem>>, vector<16x79xf32>,
    %c96_297 = arith.constant 96 : index
    %c0_298 = arith.constant 0 : index
    %380 = vector.load %arg13[%c96_297, %c0_298] : memref<112x128xf32, #tpu.memory_space<vmem>>, vector<16x80xf32>
    tpu.vector_store %arg13[%c96_297, %c0_298], %365 {strides = array<i32>} : memref<112x128xf32, #tpu.memory_space<vmem>>, vector<16x80xf32>,
    %c0_299 = arith.constant 0 : index
    %c0_300 = arith.constant 0 : index
    %381 = vector.load %arg13[%c0_299, %c0_300] : memref<112x128xf32, #tpu.memory_space<vmem>>, vector<112x80xf32>
    %382 = arith.truncf %381 : vector<112x80xf32> to vector<112x80xbf16>
    %c208 = arith.constant 208 : index
    %c0_301 = arith.constant 0 : index
    %383 = vector.load %arg2[%c208, %c0_301] : memref<512x256xbf16, #tpu.memory_space<vmem>>, vector<16x112xbf16>
    %c0_302 = arith.constant 0 : index
    %c13 = arith.constant 13 : index
    %384 = vector.load %arg3[%c0_302, %c13] : memref<32x26xf32, #tpu.memory_space<vmem>>, vector<16x1xf32>
    %cst_303 = arith.constant dense<0.000000e+00> : vector<16x80xf32>
    %385 = tpu.matmul %383, %382, %cst_303 {dimension_numbers = #tpu.dot_dimension_numbers<[1], [0], [0], [1], [0, 0, 1, 1], [], []>} : vector<16x112xbf16>, vector<112x80xbf16>, vector<16x80xf32> -> vector<16x80xf32>
    %386 = vector.broadcast %384 : vector<16x1xf32> to vector<16x80xf32>
    %387 = arith.addf %385, %386 : vector<16x80xf32>
    %cst_304 = arith.constant 0.000000e+00 : f32
    %388 = vector.broadcast %cst_304 : f32 to vector<16x80xf32>
    %389 = arith.cmpf ogt, %387, %388 : vector<16x80xf32>
    %cst_305 = arith.constant 0.000000e+00 : f32
    %390 = vector.broadcast %cst_305 : f32 to vector<16x80xf32>
    %391 = arith.minimumf %387, %390 : vector<16x80xf32>
    %392 = math.exp %391 : vector<16x80xf32>
    %cst_306 = arith.constant 1.000000e+00 : f32
    %393 = vector.broadcast %cst_306 : f32 to vector<16x80xf32>
    %394 = arith.subf %392, %393 : vector<16x80xf32>
    %395 = arith.select %389, %387, %394 : vector<16x80xi1>, vector<16x80xf32>
    %396 = arith.truncf %395 : vector<16x80xf32> to vector<16x80xbf16>
    %c224 = arith.constant 224 : index
    %c0_307 = arith.constant 0 : index
    %397 = vector.load %arg2[%c224, %c0_307] : memref<512x256xbf16, #tpu.memory_space<vmem>>, vector<16x16xbf16>
    %c0_308 = arith.constant 0 : index
    %c14 = arith.constant 14 : index
    %398 = vector.load %arg3[%c0_308, %c14] : memref<32x26xf32, #tpu.memory_space<vmem>>, vector<16x1xf32>
    %cst_309 = arith.constant dense<0.000000e+00> : vector<16x80xf32>
    %399 = tpu.matmul %397, %396, %cst_309 {dimension_numbers = #tpu.dot_dimension_numbers<[1], [0], [0], [1], [0, 0, 1, 1], [], []>} : vector<16x16xbf16>, vector<16x80xbf16>, vector<16x80xf32> -> vector<16x80xf32>
    %400 = vector.broadcast %398 : vector<16x1xf32> to vector<16x80xf32>
    %401 = arith.addf %399, %400 : vector<16x80xf32>
    %cst_310 = arith.constant 0.000000e+00 : f32
    %402 = vector.broadcast %cst_310 : f32 to vector<16x80xf32>
    %403 = arith.cmpf ogt, %401, %402 : vector<16x80xf32>
    %cst_311 = arith.constant 0.000000e+00 : f32
    %404 = vector.broadcast %cst_311 : f32 to vector<16x80xf32>
    %405 = arith.minimumf %401, %404 : vector<16x80xf32>
    %406 = math.exp %405 : vector<16x80xf32>
    %cst_312 = arith.constant 1.000000e+00 : f32
    %407 = vector.broadcast %cst_312 : f32 to vector<16x80xf32>
    %408 = arith.subf %406, %407 : vector<16x80xf32>
    %409 = arith.select %403, %401, %408 : vector<16x80xi1>, vector<16x80xf32>
    %410 = arith.addf %409, %365 : vector<16x80xf32>
    %cst_313 = arith.constant 0.000000e+00 : f32
    %411 = vector.broadcast %cst_313 : f32 to vector<112x18xf32>
    %c0_314 = arith.constant 0 : index
    %c0_315 = arith.constant 0 : index
    %412 = vector.load %arg13[%c0_314, %c0_315] : memref<112x128xf32, #tpu.memory_space<vmem>>, vector<112x18xf32>
    tpu.vector_store %arg13[%c0_314, %c0_315], %411 {strides = array<i32>} : memref<112x128xf32, #tpu.memory_space<vmem>>, vector<112x18xf32>,
    %413 = vector.extract_strided_slice %410 {offsets = [0, 0], sizes = [16, 62], strides = [1, 1]} : vector<16x80xf32> to vector<16x62xf32>
    %c0_316 = arith.constant 0 : index
    %c18_317 = arith.constant 18 : index
    %414 = vector.load %arg13[%c0_316, %c18_317] : memref<112x128xf32, #tpu.memory_space<vmem>>, vector<16x62xf32>
    tpu.vector_store %arg13[%c0_316, %c18_317], %413 {strides = array<i32>} : memref<112x128xf32, #tpu.memory_space<vmem>>, vector<16x62xf32>,
    %415 = vector.extract_strided_slice %410 {offsets = [0, 0], sizes = [16, 65], strides = [1, 1]} : vector<16x80xf32> to vector<16x65xf32>
    %c16_318 = arith.constant 16 : index
    %c15_319 = arith.constant 15 : index
    %416 = vector.load %arg13[%c16_318, %c15_319] : memref<112x128xf32, #tpu.memory_space<vmem>>, vector<16x65xf32>
    tpu.vector_store %arg13[%c16_318, %c15_319], %415 {strides = array<i32>} : memref<112x128xf32, #tpu.memory_space<vmem>>, vector<16x65xf32>,
    %417 = vector.extract_strided_slice %410 {offsets = [0, 0], sizes = [16, 68], strides = [1, 1]} : vector<16x80xf32> to vector<16x68xf32>
    %c32_320 = arith.constant 32 : index
    %c12_321 = arith.constant 12 : index
    %418 = vector.load %arg13[%c32_320, %c12_321] : memref<112x128xf32, #tpu.memory_space<vmem>>, vector<16x68xf32>
    tpu.vector_store %arg13[%c32_320, %c12_321], %417 {strides = array<i32>} : memref<112x128xf32, #tpu.memory_space<vmem>>, vector<16x68xf32>,
    %419 = vector.extract_strided_slice %410 {offsets = [0, 0], sizes = [16, 71], strides = [1, 1]} : vector<16x80xf32> to vector<16x71xf32>
    %c48_322 = arith.constant 48 : index
    %c9_323 = arith.constant 9 : index
    %420 = vector.load %arg13[%c48_322, %c9_323] : memref<112x128xf32, #tpu.memory_space<vmem>>, vector<16x71xf32>
    tpu.vector_store %arg13[%c48_322, %c9_323], %419 {strides = array<i32>} : memref<112x128xf32, #tpu.memory_space<vmem>>, vector<16x71xf32>,
    %421 = vector.extract_strided_slice %410 {offsets = [0, 0], sizes = [16, 74], strides = [1, 1]} : vector<16x80xf32> to vector<16x74xf32>
    %c64_324 = arith.constant 64 : index
    %c6_325 = arith.constant 6 : index
    %422 = vector.load %arg13[%c64_324, %c6_325] : memref<112x128xf32, #tpu.memory_space<vmem>>, vector<16x74xf32>
    tpu.vector_store %arg13[%c64_324, %c6_325], %421 {strides = array<i32>} : memref<112x128xf32, #tpu.memory_space<vmem>>, vector<16x74xf32>,
    %423 = vector.extract_strided_slice %410 {offsets = [0, 0], sizes = [16, 77], strides = [1, 1]} : vector<16x80xf32> to vector<16x77xf32>
    %c80_326 = arith.constant 80 : index
    %c3_327 = arith.constant 3 : index
    %424 = vector.load %arg13[%c80_326, %c3_327] : memref<112x128xf32, #tpu.memory_space<vmem>>, vector<16x77xf32>
    tpu.vector_store %arg13[%c80_326, %c3_327], %423 {strides = array<i32>} : memref<112x128xf32, #tpu.memory_space<vmem>>, vector<16x77xf32>,
    %c96_328 = arith.constant 96 : index
    %c0_329 = arith.constant 0 : index
    %425 = vector.load %arg13[%c96_328, %c0_329] : memref<112x128xf32, #tpu.memory_space<vmem>>, vector<16x80xf32>
    tpu.vector_store %arg13[%c96_328, %c0_329], %410 {strides = array<i32>} : memref<112x128xf32, #tpu.memory_space<vmem>>, vector<16x80xf32>,
    %c0_330 = arith.constant 0 : index
    %c0_331 = arith.constant 0 : index
    %426 = vector.load %arg13[%c0_330, %c0_331] : memref<112x128xf32, #tpu.memory_space<vmem>>, vector<112x80xf32>
    %427 = arith.truncf %426 : vector<112x80xf32> to vector<112x80xbf16>
    %c240 = arith.constant 240 : index
    %c0_332 = arith.constant 0 : index
    %428 = vector.load %arg2[%c240, %c0_332] : memref<512x256xbf16, #tpu.memory_space<vmem>>, vector<16x112xbf16>
    %c0_333 = arith.constant 0 : index
    %c15_334 = arith.constant 15 : index
    %429 = vector.load %arg3[%c0_333, %c15_334] : memref<32x26xf32, #tpu.memory_space<vmem>>, vector<16x1xf32>
    %cst_335 = arith.constant dense<0.000000e+00> : vector<16x80xf32>
    %430 = tpu.matmul %428, %427, %cst_335 {dimension_numbers = #tpu.dot_dimension_numbers<[1], [0], [0], [1], [0, 0, 1, 1], [], []>} : vector<16x112xbf16>, vector<112x80xbf16>, vector<16x80xf32> -> vector<16x80xf32>
    %431 = vector.broadcast %429 : vector<16x1xf32> to vector<16x80xf32>
    %432 = arith.addf %430, %431 : vector<16x80xf32>
    %cst_336 = arith.constant 0.000000e+00 : f32
    %433 = vector.broadcast %cst_336 : f32 to vector<16x80xf32>
    %434 = arith.cmpf ogt, %432, %433 : vector<16x80xf32>
    %cst_337 = arith.constant 0.000000e+00 : f32
    %435 = vector.broadcast %cst_337 : f32 to vector<16x80xf32>
    %436 = arith.minimumf %432, %435 : vector<16x80xf32>
    %437 = math.exp %436 : vector<16x80xf32>
    %cst_338 = arith.constant 1.000000e+00 : f32
    %438 = vector.broadcast %cst_338 : f32 to vector<16x80xf32>
    %439 = arith.subf %437, %438 : vector<16x80xf32>
    %440 = arith.select %434, %432, %439 : vector<16x80xi1>, vector<16x80xf32>
    %441 = arith.truncf %440 : vector<16x80xf32> to vector<16x80xbf16>
    %c256 = arith.constant 256 : index
    %c0_339 = arith.constant 0 : index
    %442 = vector.load %arg2[%c256, %c0_339] : memref<512x256xbf16, #tpu.memory_space<vmem>>, vector<16x16xbf16>
    %c0_340 = arith.constant 0 : index
    %c16_341 = arith.constant 16 : index
    %443 = vector.load %arg3[%c0_340, %c16_341] : memref<32x26xf32, #tpu.memory_space<vmem>>, vector<16x1xf32>
    %cst_342 = arith.constant dense<0.000000e+00> : vector<16x80xf32>
    %444 = tpu.matmul %442, %441, %cst_342 {dimension_numbers = #tpu.dot_dimension_numbers<[1], [0], [0], [1], [0, 0, 1, 1], [], []>} : vector<16x16xbf16>, vector<16x80xbf16>, vector<16x80xf32> -> vector<16x80xf32>
    %445 = vector.broadcast %443 : vector<16x1xf32> to vector<16x80xf32>
    %446 = arith.addf %444, %445 : vector<16x80xf32>
    %cst_343 = arith.constant 0.000000e+00 : f32
    %447 = vector.broadcast %cst_343 : f32 to vector<16x80xf32>
    %448 = arith.cmpf ogt, %446, %447 : vector<16x80xf32>
    %cst_344 = arith.constant 0.000000e+00 : f32
    %449 = vector.broadcast %cst_344 : f32 to vector<16x80xf32>
    %450 = arith.minimumf %446, %449 : vector<16x80xf32>
    %451 = math.exp %450 : vector<16x80xf32>
    %cst_345 = arith.constant 1.000000e+00 : f32
    %452 = vector.broadcast %cst_345 : f32 to vector<16x80xf32>
    %453 = arith.subf %451, %452 : vector<16x80xf32>
    %454 = arith.select %448, %446, %453 : vector<16x80xi1>, vector<16x80xf32>
    %455 = arith.addf %454, %410 : vector<16x80xf32>
    %cst_346 = arith.constant 0.000000e+00 : f32
    %456 = vector.broadcast %cst_346 : f32 to vector<112x54xf32>
    %c0_347 = arith.constant 0 : index
    %c0_348 = arith.constant 0 : index
    %457 = vector.load %arg13[%c0_347, %c0_348] : memref<112x128xf32, #tpu.memory_space<vmem>>, vector<112x54xf32>
    tpu.vector_store %arg13[%c0_347, %c0_348], %456 {strides = array<i32>} : memref<112x128xf32, #tpu.memory_space<vmem>>, vector<112x54xf32>,
    %458 = vector.extract_strided_slice %455 {offsets = [0, 0], sizes = [16, 26], strides = [1, 1]} : vector<16x80xf32> to vector<16x26xf32>
    %c0_349 = arith.constant 0 : index
    %c54_350 = arith.constant 54 : index
    %459 = vector.load %arg13[%c0_349, %c54_350] : memref<112x128xf32, #tpu.memory_space<vmem>>, vector<16x26xf32>
    tpu.vector_store %arg13[%c0_349, %c54_350], %458 {strides = array<i32>} : memref<112x128xf32, #tpu.memory_space<vmem>>, vector<16x26xf32>,
    %460 = vector.extract_strided_slice %455 {offsets = [0, 0], sizes = [16, 35], strides = [1, 1]} : vector<16x80xf32> to vector<16x35xf32>
    %c16_351 = arith.constant 16 : index
    %c45_352 = arith.constant 45 : index
    %461 = vector.load %arg13[%c16_351, %c45_352] : memref<112x128xf32, #tpu.memory_space<vmem>>, vector<16x35xf32>
    tpu.vector_store %arg13[%c16_351, %c45_352], %460 {strides = array<i32>} : memref<112x128xf32, #tpu.memory_space<vmem>>, vector<16x35xf32>,
    %462 = vector.extract_strided_slice %455 {offsets = [0, 0], sizes = [16, 44], strides = [1, 1]} : vector<16x80xf32> to vector<16x44xf32>
    %c32_353 = arith.constant 32 : index
    %c36_354 = arith.constant 36 : index
    %463 = vector.load %arg13[%c32_353, %c36_354] : memref<112x128xf32, #tpu.memory_space<vmem>>, vector<16x44xf32>
    tpu.vector_store %arg13[%c32_353, %c36_354], %462 {strides = array<i32>} : memref<112x128xf32, #tpu.memory_space<vmem>>, vector<16x44xf32>,
    %464 = vector.extract_strided_slice %455 {offsets = [0, 0], sizes = [16, 53], strides = [1, 1]} : vector<16x80xf32> to vector<16x53xf32>
    %c48_355 = arith.constant 48 : index
    %c27_356 = arith.constant 27 : index
    %465 = vector.load %arg13[%c48_355, %c27_356] : memref<112x128xf32, #tpu.memory_space<vmem>>, vector<16x53xf32>
    tpu.vector_store %arg13[%c48_355, %c27_356], %464 {strides = array<i32>} : memref<112x128xf32, #tpu.memory_space<vmem>>, vector<16x53xf32>,
    %466 = vector.extract_strided_slice %455 {offsets = [0, 0], sizes = [16, 62], strides = [1, 1]} : vector<16x80xf32> to vector<16x62xf32>
    %c64_357 = arith.constant 64 : index
    %c18_358 = arith.constant 18 : index
    %467 = vector.load %arg13[%c64_357, %c18_358] : memref<112x128xf32, #tpu.memory_space<vmem>>, vector<16x62xf32>
    tpu.vector_store %arg13[%c64_357, %c18_358], %466 {strides = array<i32>} : memref<112x128xf32, #tpu.memory_space<vmem>>, vector<16x62xf32>,
    %468 = vector.extract_strided_slice %455 {offsets = [0, 0], sizes = [16, 71], strides = [1, 1]} : vector<16x80xf32> to vector<16x71xf32>
    %c80_359 = arith.constant 80 : index
    %c9_360 = arith.constant 9 : index
    %469 = vector.load %arg13[%c80_359, %c9_360] : memref<112x128xf32, #tpu.memory_space<vmem>>, vector<16x71xf32>
    tpu.vector_store %arg13[%c80_359, %c9_360], %468 {strides = array<i32>} : memref<112x128xf32, #tpu.memory_space<vmem>>, vector<16x71xf32>,
    %c96_361 = arith.constant 96 : index
    %c0_362 = arith.constant 0 : index
    %470 = vector.load %arg13[%c96_361, %c0_362] : memref<112x128xf32, #tpu.memory_space<vmem>>, vector<16x80xf32>
    tpu.vector_store %arg13[%c96_361, %c0_362], %455 {strides = array<i32>} : memref<112x128xf32, #tpu.memory_space<vmem>>, vector<16x80xf32>,
    %c0_363 = arith.constant 0 : index
    %c0_364 = arith.constant 0 : index
    %471 = vector.load %arg13[%c0_363, %c0_364] : memref<112x128xf32, #tpu.memory_space<vmem>>, vector<112x80xf32>
    %472 = arith.truncf %471 : vector<112x80xf32> to vector<112x80xbf16>
    %c272 = arith.constant 272 : index
    %c0_365 = arith.constant 0 : index
    %473 = vector.load %arg2[%c272, %c0_365] : memref<512x256xbf16, #tpu.memory_space<vmem>>, vector<16x112xbf16>
    %c0_366 = arith.constant 0 : index
    %c17 = arith.constant 17 : index
    %474 = vector.load %arg3[%c0_366, %c17] : memref<32x26xf32, #tpu.memory_space<vmem>>, vector<16x1xf32>
    %cst_367 = arith.constant dense<0.000000e+00> : vector<16x80xf32>
    %475 = tpu.matmul %473, %472, %cst_367 {dimension_numbers = #tpu.dot_dimension_numbers<[1], [0], [0], [1], [0, 0, 1, 1], [], []>} : vector<16x112xbf16>, vector<112x80xbf16>, vector<16x80xf32> -> vector<16x80xf32>
    %476 = vector.broadcast %474 : vector<16x1xf32> to vector<16x80xf32>
    %477 = arith.addf %475, %476 : vector<16x80xf32>
    %cst_368 = arith.constant 0.000000e+00 : f32
    %478 = vector.broadcast %cst_368 : f32 to vector<16x80xf32>
    %479 = arith.cmpf ogt, %477, %478 : vector<16x80xf32>
    %cst_369 = arith.constant 0.000000e+00 : f32
    %480 = vector.broadcast %cst_369 : f32 to vector<16x80xf32>
    %481 = arith.minimumf %477, %480 : vector<16x80xf32>
    %482 = math.exp %481 : vector<16x80xf32>
    %cst_370 = arith.constant 1.000000e+00 : f32
    %483 = vector.broadcast %cst_370 : f32 to vector<16x80xf32>
    %484 = arith.subf %482, %483 : vector<16x80xf32>
    %485 = arith.select %479, %477, %484 : vector<16x80xi1>, vector<16x80xf32>
    %486 = arith.truncf %485 : vector<16x80xf32> to vector<16x80xbf16>
    %c288 = arith.constant 288 : index
    %c0_371 = arith.constant 0 : index
    %487 = vector.load %arg2[%c288, %c0_371] : memref<512x256xbf16, #tpu.memory_space<vmem>>, vector<16x16xbf16>
    %c0_372 = arith.constant 0 : index
    %c18_373 = arith.constant 18 : index
    %488 = vector.load %arg3[%c0_372, %c18_373] : memref<32x26xf32, #tpu.memory_space<vmem>>, vector<16x1xf32>
    %cst_374 = arith.constant dense<0.000000e+00> : vector<16x80xf32>
    %489 = tpu.matmul %487, %486, %cst_374 {dimension_numbers = #tpu.dot_dimension_numbers<[1], [0], [0], [1], [0, 0, 1, 1], [], []>} : vector<16x16xbf16>, vector<16x80xbf16>, vector<16x80xf32> -> vector<16x80xf32>
    %490 = vector.broadcast %488 : vector<16x1xf32> to vector<16x80xf32>
    %491 = arith.addf %489, %490 : vector<16x80xf32>
    %cst_375 = arith.constant 0.000000e+00 : f32
    %492 = vector.broadcast %cst_375 : f32 to vector<16x80xf32>
    %493 = arith.cmpf ogt, %491, %492 : vector<16x80xf32>
    %cst_376 = arith.constant 0.000000e+00 : f32
    %494 = vector.broadcast %cst_376 : f32 to vector<16x80xf32>
    %495 = arith.minimumf %491, %494 : vector<16x80xf32>
    %496 = math.exp %495 : vector<16x80xf32>
    %cst_377 = arith.constant 1.000000e+00 : f32
    %497 = vector.broadcast %cst_377 : f32 to vector<16x80xf32>
    %498 = arith.subf %496, %497 : vector<16x80xf32>
    %499 = arith.select %493, %491, %498 : vector<16x80xi1>, vector<16x80xf32>
    %500 = arith.addf %499, %455 : vector<16x80xf32>
    %501 = tpu.transpose %500, [1, 0] : vector<16x80xf32> -> vector<80x16xf32>
    %c0_378 = arith.constant 0 : index
    %c0_379 = arith.constant 0 : index
    %502 = vector.load %arg7[%c0_378, %c0_379] : memref<640x128xf32, #tpu.memory_space<vmem>>, vector<80x16xf32>
    tpu.vector_store %arg7[%c0_378, %c0_379], %501 {strides = array<i32>} : memref<640x128xf32, #tpu.memory_space<vmem>>, vector<80x16xf32>,
    %cst_380 = arith.constant 0.000000e+00 : f32
    %503 = vector.broadcast %cst_380 : f32 to vector<1x160xf32>
    %c0_381 = arith.constant 0 : index
    %c0_382 = arith.constant 0 : index
    %504 = vector.load %arg14[%c0_381, %c0_382] : memref<16x256xf32, #tpu.memory_space<vmem>>, vector<1x160xf32>
    tpu.vector_store %arg14[%c0_381, %c0_382], %503 {strides = array<i32>} : memref<16x256xf32, #tpu.memory_space<vmem>>, vector<1x160xf32>,
    %c0_383 = arith.constant 0 : index
    %c0_384 = arith.constant 0 : index
    %505 = tpu.strided_load %arg7[%c0_383, %c0_384] {strides = array<i32: 5, 1>} : memref<640x128xf32, #tpu.memory_space<vmem>>, vector<15x16xf32>
    %c1_385 = arith.constant 1 : index
    %c0_386 = arith.constant 0 : index
    %506 = vector.load %arg14[%c1_385, %c0_386] : memref<16x256xf32, #tpu.memory_space<vmem>>, vector<15x16xf32>
    tpu.vector_store %arg14[%c1_385, %c0_386], %505 {strides = array<i32>} : memref<16x256xf32, #tpu.memory_space<vmem>>, vector<15x16xf32>,
    %c1_387 = arith.constant 1 : index
    %c0_388 = arith.constant 0 : index
    %507 = tpu.strided_load %arg7[%c1_387, %c0_388] {strides = array<i32: 5, 1>} : memref<640x128xf32, #tpu.memory_space<vmem>>, vector<15x16xf32>
    %c1_389 = arith.constant 1 : index
    %c16_390 = arith.constant 16 : index
    %508 = vector.load %arg14[%c1_389, %c16_390] : memref<16x256xf32, #tpu.memory_space<vmem>>, vector<15x16xf32>
    tpu.vector_store %arg14[%c1_389, %c16_390], %507 {strides = array<i32>} : memref<16x256xf32, #tpu.memory_space<vmem>>, vector<15x16xf32>,
    %c2_391 = arith.constant 2 : index
    %c0_392 = arith.constant 0 : index
    %509 = tpu.strided_load %arg7[%c2_391, %c0_392] {strides = array<i32: 5, 1>} : memref<640x128xf32, #tpu.memory_space<vmem>>, vector<15x16xf32>
    %c1_393 = arith.constant 1 : index
    %c32_394 = arith.constant 32 : index
    %510 = vector.load %arg14[%c1_393, %c32_394] : memref<16x256xf32, #tpu.memory_space<vmem>>, vector<15x16xf32>
    tpu.vector_store %arg14[%c1_393, %c32_394], %509 {strides = array<i32>} : memref<16x256xf32, #tpu.memory_space<vmem>>, vector<15x16xf32>,
    %c3_395 = arith.constant 3 : index
    %c0_396 = arith.constant 0 : index
    %511 = tpu.strided_load %arg7[%c3_395, %c0_396] {strides = array<i32: 5, 1>} : memref<640x128xf32, #tpu.memory_space<vmem>>, vector<15x16xf32>
    %c1_397 = arith.constant 1 : index
    %c48_398 = arith.constant 48 : index
    %512 = vector.load %arg14[%c1_397, %c48_398] : memref<16x256xf32, #tpu.memory_space<vmem>>, vector<15x16xf32>
    tpu.vector_store %arg14[%c1_397, %c48_398], %511 {strides = array<i32>} : memref<16x256xf32, #tpu.memory_space<vmem>>, vector<15x16xf32>,
    %c4_399 = arith.constant 4 : index
    %c0_400 = arith.constant 0 : index
    %513 = tpu.strided_load %arg7[%c4_399, %c0_400] {strides = array<i32: 5, 1>} : memref<640x128xf32, #tpu.memory_space<vmem>>, vector<15x16xf32>
    %c1_401 = arith.constant 1 : index
    %c64_402 = arith.constant 64 : index
    %514 = vector.load %arg14[%c1_401, %c64_402] : memref<16x256xf32, #tpu.memory_space<vmem>>, vector<15x16xf32>
    tpu.vector_store %arg14[%c1_401, %c64_402], %513 {strides = array<i32>} : memref<16x256xf32, #tpu.memory_space<vmem>>, vector<15x16xf32>,
    %c0_403 = arith.constant 0 : index
    %c0_404 = arith.constant 0 : index
    %515 = tpu.strided_load %arg7[%c0_403, %c0_404] {strides = array<i32: 5, 1>} : memref<640x128xf32, #tpu.memory_space<vmem>>, vector<16x16xf32>
    %c0_405 = arith.constant 0 : index
    %c80_406 = arith.constant 80 : index
    %516 = vector.load %arg14[%c0_405, %c80_406] : memref<16x256xf32, #tpu.memory_space<vmem>>, vector<16x16xf32>
    tpu.vector_store %arg14[%c0_405, %c80_406], %515 {strides = array<i32>} : memref<16x256xf32, #tpu.memory_space<vmem>>, vector<16x16xf32>,
    %c1_407 = arith.constant 1 : index
    %c0_408 = arith.constant 0 : index
    %517 = tpu.strided_load %arg7[%c1_407, %c0_408] {strides = array<i32: 5, 1>} : memref<640x128xf32, #tpu.memory_space<vmem>>, vector<16x16xf32>
    %c0_409 = arith.constant 0 : index
    %c96_410 = arith.constant 96 : index
    %518 = vector.load %arg14[%c0_409, %c96_410] : memref<16x256xf32, #tpu.memory_space<vmem>>, vector<16x16xf32>
    tpu.vector_store %arg14[%c0_409, %c96_410], %517 {strides = array<i32>} : memref<16x256xf32, #tpu.memory_space<vmem>>, vector<16x16xf32>,
    %c2_411 = arith.constant 2 : index
    %c0_412 = arith.constant 0 : index
    %519 = tpu.strided_load %arg7[%c2_411, %c0_412] {strides = array<i32: 5, 1>} : memref<640x128xf32, #tpu.memory_space<vmem>>, vector<16x16xf32>
    %c0_413 = arith.constant 0 : index
    %c112_414 = arith.constant 112 : index
    %520 = vector.load %arg14[%c0_413, %c112_414] : memref<16x256xf32, #tpu.memory_space<vmem>>, vector<16x16xf32>
    tpu.vector_store %arg14[%c0_413, %c112_414], %519 {strides = array<i32>} : memref<16x256xf32, #tpu.memory_space<vmem>>, vector<16x16xf32>,
    %c3_415 = arith.constant 3 : index
    %c0_416 = arith.constant 0 : index
    %521 = tpu.strided_load %arg7[%c3_415, %c0_416] {strides = array<i32: 5, 1>} : memref<640x128xf32, #tpu.memory_space<vmem>>, vector<16x16xf32>
    %c0_417 = arith.constant 0 : index
    %c128_418 = arith.constant 128 : index
    %522 = vector.load %arg14[%c0_417, %c128_418] : memref<16x256xf32, #tpu.memory_space<vmem>>, vector<16x16xf32>
    tpu.vector_store %arg14[%c0_417, %c128_418], %521 {strides = array<i32>} : memref<16x256xf32, #tpu.memory_space<vmem>>, vector<16x16xf32>,
    %c4_419 = arith.constant 4 : index
    %c0_420 = arith.constant 0 : index
    %523 = tpu.strided_load %arg7[%c4_419, %c0_420] {strides = array<i32: 5, 1>} : memref<640x128xf32, #tpu.memory_space<vmem>>, vector<16x16xf32>
    %c0_421 = arith.constant 0 : index
    %c144_422 = arith.constant 144 : index
    %524 = vector.load %arg14[%c0_421, %c144_422] : memref<16x256xf32, #tpu.memory_space<vmem>>, vector<16x16xf32>
    tpu.vector_store %arg14[%c0_421, %c144_422], %523 {strides = array<i32>} : memref<16x256xf32, #tpu.memory_space<vmem>>, vector<16x16xf32>,
    %c0_423 = arith.constant 0 : index
    %c0_424 = arith.constant 0 : index
    %525 = vector.load %arg14[%c0_423, %c0_424] : memref<16x256xf32, #tpu.memory_space<vmem>>, vector<16x160xf32>
    %526 = arith.truncf %525 : vector<16x160xf32> to vector<16x160xbf16>
    %c80_425 = arith.constant 80 : index
    %c0_426 = arith.constant 0 : index
    %527 = vector.load %arg4[%c80_425, %c0_426] : memref<752x128xbf16, #tpu.memory_space<vmem>>, vector<160x32xbf16>
    %c2_427 = arith.constant 2 : index
    %c0_428 = arith.constant 0 : index
    %528 = vector.load %arg5[%c2_427, %c0_428] : memref<8x64xf32, #tpu.memory_space<vmem>>, vector<1x32xf32>
    %cst_429 = arith.constant dense<0.000000e+00> : vector<16x32xf32>
    %529 = tpu.matmul %526, %527, %cst_429 {dimension_numbers = #tpu.dot_dimension_numbers<[1], [0], [0], [1], [0, 0, 1, 1], [], []>} : vector<16x160xbf16>, vector<160x32xbf16>, vector<16x32xf32> -> vector<16x32xf32>
    %530 = vector.broadcast %528 : vector<1x32xf32> to vector<16x32xf32>
    %531 = arith.addf %529, %530 : vector<16x32xf32>
    %cst_430 = arith.constant 0.000000e+00 : f32
    %532 = vector.broadcast %cst_430 : f32 to vector<16x32xf32>
    %533 = arith.cmpf ogt, %531, %532 : vector<16x32xf32>
    %cst_431 = arith.constant 0.000000e+00 : f32
    %534 = vector.broadcast %cst_431 : f32 to vector<16x32xf32>
    %535 = arith.minimumf %531, %534 : vector<16x32xf32>
    %536 = math.exp %535 : vector<16x32xf32>
    %cst_432 = arith.constant 1.000000e+00 : f32
    %537 = vector.broadcast %cst_432 : f32 to vector<16x32xf32>
    %538 = arith.subf %536, %537 : vector<16x32xf32>
    %539 = arith.select %533, %531, %538 : vector<16x32xi1>, vector<16x32xf32>
    %540 = tpu.transpose %539, [1, 0] : vector<16x32xf32> -> vector<32x16xf32>
    %cst_433 = arith.constant 0.000000e+00 : f32
    %541 = vector.broadcast %cst_433 : f32 to vector<224x6xf32>
    %c0_434 = arith.constant 0 : index
    %c0_435 = arith.constant 0 : index
    %542 = vector.load %arg15[%c0_434, %c0_435] : memref<224x128xf32, #tpu.memory_space<vmem>>, vector<224x6xf32>
    tpu.vector_store %arg15[%c0_434, %c0_435], %541 {strides = array<i32>} : memref<224x128xf32, #tpu.memory_space<vmem>>, vector<224x6xf32>,
    %543 = vector.extract_strided_slice %540 {offsets = [0, 0], sizes = [32, 10], strides = [1, 1]} : vector<32x16xf32> to vector<32x10xf32>
    %c0_436 = arith.constant 0 : index
    %c6_437 = arith.constant 6 : index
    %544 = vector.load %arg15[%c0_436, %c6_437] : memref<224x128xf32, #tpu.memory_space<vmem>>, vector<32x10xf32>
    tpu.vector_store %arg15[%c0_436, %c6_437], %543 {strides = array<i32>} : memref<224x128xf32, #tpu.memory_space<vmem>>, vector<32x10xf32>,
    %545 = vector.extract_strided_slice %540 {offsets = [0, 0], sizes = [32, 11], strides = [1, 1]} : vector<32x16xf32> to vector<32x11xf32>
    %c32_438 = arith.constant 32 : index
    %c5_439 = arith.constant 5 : index
    %546 = vector.load %arg15[%c32_438, %c5_439] : memref<224x128xf32, #tpu.memory_space<vmem>>, vector<32x11xf32>
    tpu.vector_store %arg15[%c32_438, %c5_439], %545 {strides = array<i32>} : memref<224x128xf32, #tpu.memory_space<vmem>>, vector<32x11xf32>,
    %547 = vector.extract_strided_slice %540 {offsets = [0, 0], sizes = [32, 12], strides = [1, 1]} : vector<32x16xf32> to vector<32x12xf32>
    %c64_440 = arith.constant 64 : index
    %c4_441 = arith.constant 4 : index
    %548 = vector.load %arg15[%c64_440, %c4_441] : memref<224x128xf32, #tpu.memory_space<vmem>>, vector<32x12xf32>
    tpu.vector_store %arg15[%c64_440, %c4_441], %547 {strides = array<i32>} : memref<224x128xf32, #tpu.memory_space<vmem>>, vector<32x12xf32>,
    %549 = vector.extract_strided_slice %540 {offsets = [0, 0], sizes = [32, 13], strides = [1, 1]} : vector<32x16xf32> to vector<32x13xf32>
    %c96_442 = arith.constant 96 : index
    %c3_443 = arith.constant 3 : index
    %550 = vector.load %arg15[%c96_442, %c3_443] : memref<224x128xf32, #tpu.memory_space<vmem>>, vector<32x13xf32>
    tpu.vector_store %arg15[%c96_442, %c3_443], %549 {strides = array<i32>} : memref<224x128xf32, #tpu.memory_space<vmem>>, vector<32x13xf32>,
    %551 = vector.extract_strided_slice %540 {offsets = [0, 0], sizes = [32, 14], strides = [1, 1]} : vector<32x16xf32> to vector<32x14xf32>
    %c128_444 = arith.constant 128 : index
    %c2_445 = arith.constant 2 : index
    %552 = vector.load %arg15[%c128_444, %c2_445] : memref<224x128xf32, #tpu.memory_space<vmem>>, vector<32x14xf32>
    tpu.vector_store %arg15[%c128_444, %c2_445], %551 {strides = array<i32>} : memref<224x128xf32, #tpu.memory_space<vmem>>, vector<32x14xf32>,
    %553 = vector.extract_strided_slice %540 {offsets = [0, 0], sizes = [32, 15], strides = [1, 1]} : vector<32x16xf32> to vector<32x15xf32>
    %c160_446 = arith.constant 160 : index
    %c1_447 = arith.constant 1 : index
    %554 = vector.load %arg15[%c160_446, %c1_447] : memref<224x128xf32, #tpu.memory_space<vmem>>, vector<32x15xf32>
    tpu.vector_store %arg15[%c160_446, %c1_447], %553 {strides = array<i32>} : memref<224x128xf32, #tpu.memory_space<vmem>>, vector<32x15xf32>,
    %c192_448 = arith.constant 192 : index
    %c0_449 = arith.constant 0 : index
    %555 = vector.load %arg15[%c192_448, %c0_449] : memref<224x128xf32, #tpu.memory_space<vmem>>, vector<32x16xf32>
    tpu.vector_store %arg15[%c192_448, %c0_449], %540 {strides = array<i32>} : memref<224x128xf32, #tpu.memory_space<vmem>>, vector<32x16xf32>,
    %c0_450 = arith.constant 0 : index
    %c0_451 = arith.constant 0 : index
    %556 = vector.load %arg15[%c0_450, %c0_451] : memref<224x128xf32, #tpu.memory_space<vmem>>, vector<224x16xf32>
    %557 = arith.truncf %556 : vector<224x16xf32> to vector<224x16xbf16>
    %c304 = arith.constant 304 : index
    %c0_452 = arith.constant 0 : index
    %558 = vector.load %arg2[%c304, %c0_452] : memref<512x256xbf16, #tpu.memory_space<vmem>>, vector<32x224xbf16>
    %c0_453 = arith.constant 0 : index
    %c19 = arith.constant 19 : index
    %559 = vector.load %arg3[%c0_453, %c19] : memref<32x26xf32, #tpu.memory_space<vmem>>, vector<32x1xf32>
    %cst_454 = arith.constant dense<0.000000e+00> : vector<32x16xf32>
    %560 = tpu.matmul %558, %557, %cst_454 {dimension_numbers = #tpu.dot_dimension_numbers<[1], [0], [0], [1], [0, 0, 1, 1], [], []>} : vector<32x224xbf16>, vector<224x16xbf16>, vector<32x16xf32> -> vector<32x16xf32>
    %561 = vector.broadcast %559 : vector<32x1xf32> to vector<32x16xf32>
    %562 = arith.addf %560, %561 : vector<32x16xf32>
    %cst_455 = arith.constant 0.000000e+00 : f32
    %563 = vector.broadcast %cst_455 : f32 to vector<32x16xf32>
    %564 = arith.cmpf ogt, %562, %563 : vector<32x16xf32>
    %cst_456 = arith.constant 0.000000e+00 : f32
    %565 = vector.broadcast %cst_456 : f32 to vector<32x16xf32>
    %566 = arith.minimumf %562, %565 : vector<32x16xf32>
    %567 = math.exp %566 : vector<32x16xf32>
    %cst_457 = arith.constant 1.000000e+00 : f32
    %568 = vector.broadcast %cst_457 : f32 to vector<32x16xf32>
    %569 = arith.subf %567, %568 : vector<32x16xf32>
    %570 = arith.select %564, %562, %569 : vector<32x16xi1>, vector<32x16xf32>
    %571 = arith.truncf %570 : vector<32x16xf32> to vector<32x16xbf16>
    %c336 = arith.constant 336 : index
    %c0_458 = arith.constant 0 : index
    %572 = vector.load %arg2[%c336, %c0_458] : memref<512x256xbf16, #tpu.memory_space<vmem>>, vector<32x32xbf16>
    %c0_459 = arith.constant 0 : index
    %c20_460 = arith.constant 20 : index
    %573 = vector.load %arg3[%c0_459, %c20_460] : memref<32x26xf32, #tpu.memory_space<vmem>>, vector<32x1xf32>
    %cst_461 = arith.constant dense<0.000000e+00> : vector<32x16xf32>
    %574 = tpu.matmul %572, %571, %cst_461 {dimension_numbers = #tpu.dot_dimension_numbers<[1], [0], [0], [1], [0, 0, 1, 1], [], []>} : vector<32x32xbf16>, vector<32x16xbf16>, vector<32x16xf32> -> vector<32x16xf32>
    %575 = vector.broadcast %573 : vector<32x1xf32> to vector<32x16xf32>
    %576 = arith.addf %574, %575 : vector<32x16xf32>
    %cst_462 = arith.constant 0.000000e+00 : f32
    %577 = vector.broadcast %cst_462 : f32 to vector<32x16xf32>
    %578 = arith.cmpf ogt, %576, %577 : vector<32x16xf32>
    %cst_463 = arith.constant 0.000000e+00 : f32
    %579 = vector.broadcast %cst_463 : f32 to vector<32x16xf32>
    %580 = arith.minimumf %576, %579 : vector<32x16xf32>
    %581 = math.exp %580 : vector<32x16xf32>
    %cst_464 = arith.constant 1.000000e+00 : f32
    %582 = vector.broadcast %cst_464 : f32 to vector<32x16xf32>
    %583 = arith.subf %581, %582 : vector<32x16xf32>
    %584 = arith.select %578, %576, %583 : vector<32x16xi1>, vector<32x16xf32>
    %585 = arith.addf %584, %540 : vector<32x16xf32>
    %cst_465 = arith.constant 0.000000e+00 : f32
    %586 = vector.broadcast %cst_465 : f32 to vector<224x16xf32>
    %c0_466 = arith.constant 0 : index
    %c0_467 = arith.constant 0 : index
    %587 = vector.load %arg15[%c0_466, %c0_467] : memref<224x128xf32, #tpu.memory_space<vmem>>, vector<224x16xf32>
    tpu.vector_store %arg15[%c0_466, %c0_467], %586 {strides = array<i32>} : memref<224x128xf32, #tpu.memory_space<vmem>>, vector<224x16xf32>,
    %588 = vector.extract_strided_slice %585 {offsets = [0, 0], sizes = [32, 1], strides = [1, 1]} : vector<32x16xf32> to vector<32x1xf32>
    %c32_468 = arith.constant 32 : index
    %c15_469 = arith.constant 15 : index
    %589 = vector.load %arg15[%c32_468, %c15_469] : memref<224x128xf32, #tpu.memory_space<vmem>>, vector<32x1xf32>
    tpu.vector_store %arg15[%c32_468, %c15_469], %588 {strides = array<i32>} : memref<224x128xf32, #tpu.memory_space<vmem>>, vector<32x1xf32>,
    %590 = vector.extract_strided_slice %585 {offsets = [0, 0], sizes = [32, 4], strides = [1, 1]} : vector<32x16xf32> to vector<32x4xf32>
    %c64_470 = arith.constant 64 : index
    %c12_471 = arith.constant 12 : index
    %591 = vector.load %arg15[%c64_470, %c12_471] : memref<224x128xf32, #tpu.memory_space<vmem>>, vector<32x4xf32>
    tpu.vector_store %arg15[%c64_470, %c12_471], %590 {strides = array<i32>} : memref<224x128xf32, #tpu.memory_space<vmem>>, vector<32x4xf32>,
    %592 = vector.extract_strided_slice %585 {offsets = [0, 0], sizes = [32, 7], strides = [1, 1]} : vector<32x16xf32> to vector<32x7xf32>
    %c96_472 = arith.constant 96 : index
    %c9_473 = arith.constant 9 : index
    %593 = vector.load %arg15[%c96_472, %c9_473] : memref<224x128xf32, #tpu.memory_space<vmem>>, vector<32x7xf32>
    tpu.vector_store %arg15[%c96_472, %c9_473], %592 {strides = array<i32>} : memref<224x128xf32, #tpu.memory_space<vmem>>, vector<32x7xf32>,
    %594 = vector.extract_strided_slice %585 {offsets = [0, 0], sizes = [32, 10], strides = [1, 1]} : vector<32x16xf32> to vector<32x10xf32>
    %c128_474 = arith.constant 128 : index
    %c6_475 = arith.constant 6 : index
    %595 = vector.load %arg15[%c128_474, %c6_475] : memref<224x128xf32, #tpu.memory_space<vmem>>, vector<32x10xf32>
    tpu.vector_store %arg15[%c128_474, %c6_475], %594 {strides = array<i32>} : memref<224x128xf32, #tpu.memory_space<vmem>>, vector<32x10xf32>,
    %596 = vector.extract_strided_slice %585 {offsets = [0, 0], sizes = [32, 13], strides = [1, 1]} : vector<32x16xf32> to vector<32x13xf32>
    %c160_476 = arith.constant 160 : index
    %c3_477 = arith.constant 3 : index
    %597 = vector.load %arg15[%c160_476, %c3_477] : memref<224x128xf32, #tpu.memory_space<vmem>>, vector<32x13xf32>
    tpu.vector_store %arg15[%c160_476, %c3_477], %596 {strides = array<i32>} : memref<224x128xf32, #tpu.memory_space<vmem>>, vector<32x13xf32>,
    %c192_478 = arith.constant 192 : index
    %c0_479 = arith.constant 0 : index
    %598 = vector.load %arg15[%c192_478, %c0_479] : memref<224x128xf32, #tpu.memory_space<vmem>>, vector<32x16xf32>
    tpu.vector_store %arg15[%c192_478, %c0_479], %585 {strides = array<i32>} : memref<224x128xf32, #tpu.memory_space<vmem>>, vector<32x16xf32>,
    %c0_480 = arith.constant 0 : index
    %c0_481 = arith.constant 0 : index
    %599 = vector.load %arg15[%c0_480, %c0_481] : memref<224x128xf32, #tpu.memory_space<vmem>>, vector<224x16xf32>
    %600 = arith.truncf %599 : vector<224x16xf32> to vector<224x16xbf16>
    %c368 = arith.constant 368 : index
    %c0_482 = arith.constant 0 : index
    %601 = vector.load %arg2[%c368, %c0_482] : memref<512x256xbf16, #tpu.memory_space<vmem>>, vector<32x224xbf16>
    %c0_483 = arith.constant 0 : index
    %c21 = arith.constant 21 : index
    %602 = vector.load %arg3[%c0_483, %c21] : memref<32x26xf32, #tpu.memory_space<vmem>>, vector<32x1xf32>
    %cst_484 = arith.constant dense<0.000000e+00> : vector<32x16xf32>
    %603 = tpu.matmul %601, %600, %cst_484 {dimension_numbers = #tpu.dot_dimension_numbers<[1], [0], [0], [1], [0, 0, 1, 1], [], []>} : vector<32x224xbf16>, vector<224x16xbf16>, vector<32x16xf32> -> vector<32x16xf32>
    %604 = vector.broadcast %602 : vector<32x1xf32> to vector<32x16xf32>
    %605 = arith.addf %603, %604 : vector<32x16xf32>
    %cst_485 = arith.constant 0.000000e+00 : f32
    %606 = vector.broadcast %cst_485 : f32 to vector<32x16xf32>
    %607 = arith.cmpf ogt, %605, %606 : vector<32x16xf32>
    %cst_486 = arith.constant 0.000000e+00 : f32
    %608 = vector.broadcast %cst_486 : f32 to vector<32x16xf32>
    %609 = arith.minimumf %605, %608 : vector<32x16xf32>
    %610 = math.exp %609 : vector<32x16xf32>
    %cst_487 = arith.constant 1.000000e+00 : f32
    %611 = vector.broadcast %cst_487 : f32 to vector<32x16xf32>
    %612 = arith.subf %610, %611 : vector<32x16xf32>
    %613 = arith.select %607, %605, %612 : vector<32x16xi1>, vector<32x16xf32>
    %614 = arith.truncf %613 : vector<32x16xf32> to vector<32x16xbf16>
    %c400 = arith.constant 400 : index
    %c0_488 = arith.constant 0 : index
    %615 = vector.load %arg2[%c400, %c0_488] : memref<512x256xbf16, #tpu.memory_space<vmem>>, vector<32x32xbf16>
    %c0_489 = arith.constant 0 : index
    %c22 = arith.constant 22 : index
    %616 = vector.load %arg3[%c0_489, %c22] : memref<32x26xf32, #tpu.memory_space<vmem>>, vector<32x1xf32>
    %cst_490 = arith.constant dense<0.000000e+00> : vector<32x16xf32>
    %617 = tpu.matmul %615, %614, %cst_490 {dimension_numbers = #tpu.dot_dimension_numbers<[1], [0], [0], [1], [0, 0, 1, 1], [], []>} : vector<32x32xbf16>, vector<32x16xbf16>, vector<32x16xf32> -> vector<32x16xf32>
    %618 = vector.broadcast %616 : vector<32x1xf32> to vector<32x16xf32>
    %619 = arith.addf %617, %618 : vector<32x16xf32>
    %cst_491 = arith.constant 0.000000e+00 : f32
    %620 = vector.broadcast %cst_491 : f32 to vector<32x16xf32>
    %621 = arith.cmpf ogt, %619, %620 : vector<32x16xf32>
    %cst_492 = arith.constant 0.000000e+00 : f32
    %622 = vector.broadcast %cst_492 : f32 to vector<32x16xf32>
    %623 = arith.minimumf %619, %622 : vector<32x16xf32>
    %624 = math.exp %623 : vector<32x16xf32>
    %cst_493 = arith.constant 1.000000e+00 : f32
    %625 = vector.broadcast %cst_493 : f32 to vector<32x16xf32>
    %626 = arith.subf %624, %625 : vector<32x16xf32>
    %627 = arith.select %621, %619, %626 : vector<32x16xi1>, vector<32x16xf32>
    %628 = arith.addf %627, %585 : vector<32x16xf32>
    %cst_494 = arith.constant 0.000000e+00 : f32
    %629 = vector.broadcast %cst_494 : f32 to vector<224x16xf32>
    %c0_495 = arith.constant 0 : index
    %c0_496 = arith.constant 0 : index
    %630 = vector.load %arg15[%c0_495, %c0_496] : memref<224x128xf32, #tpu.memory_space<vmem>>, vector<224x16xf32>
    tpu.vector_store %arg15[%c0_495, %c0_496], %629 {strides = array<i32>} : memref<224x128xf32, #tpu.memory_space<vmem>>, vector<224x16xf32>,
    %631 = vector.extract_strided_slice %628 {offsets = [0, 0], sizes = [32, 7], strides = [1, 1]} : vector<32x16xf32> to vector<32x7xf32>
    %c160_497 = arith.constant 160 : index
    %c9_498 = arith.constant 9 : index
    %632 = vector.load %arg15[%c160_497, %c9_498] : memref<224x128xf32, #tpu.memory_space<vmem>>, vector<32x7xf32>
    tpu.vector_store %arg15[%c160_497, %c9_498], %631 {strides = array<i32>} : memref<224x128xf32, #tpu.memory_space<vmem>>, vector<32x7xf32>,
    %c192_499 = arith.constant 192 : index
    %c0_500 = arith.constant 0 : index
    %633 = vector.load %arg15[%c192_499, %c0_500] : memref<224x128xf32, #tpu.memory_space<vmem>>, vector<32x16xf32>
    tpu.vector_store %arg15[%c192_499, %c0_500], %628 {strides = array<i32>} : memref<224x128xf32, #tpu.memory_space<vmem>>, vector<32x16xf32>,
    %c0_501 = arith.constant 0 : index
    %c0_502 = arith.constant 0 : index
    %634 = vector.load %arg15[%c0_501, %c0_502] : memref<224x128xf32, #tpu.memory_space<vmem>>, vector<224x16xf32>
    %635 = arith.truncf %634 : vector<224x16xf32> to vector<224x16xbf16>
    %c432 = arith.constant 432 : index
    %c0_503 = arith.constant 0 : index
    %636 = vector.load %arg2[%c432, %c0_503] : memref<512x256xbf16, #tpu.memory_space<vmem>>, vector<32x224xbf16>
    %c0_504 = arith.constant 0 : index
    %c23 = arith.constant 23 : index
    %637 = vector.load %arg3[%c0_504, %c23] : memref<32x26xf32, #tpu.memory_space<vmem>>, vector<32x1xf32>
    %cst_505 = arith.constant dense<0.000000e+00> : vector<32x16xf32>
    %638 = tpu.matmul %636, %635, %cst_505 {dimension_numbers = #tpu.dot_dimension_numbers<[1], [0], [0], [1], [0, 0, 1, 1], [], []>} : vector<32x224xbf16>, vector<224x16xbf16>, vector<32x16xf32> -> vector<32x16xf32>
    %639 = vector.broadcast %637 : vector<32x1xf32> to vector<32x16xf32>
    %640 = arith.addf %638, %639 : vector<32x16xf32>
    %cst_506 = arith.constant 0.000000e+00 : f32
    %641 = vector.broadcast %cst_506 : f32 to vector<32x16xf32>
    %642 = arith.cmpf ogt, %640, %641 : vector<32x16xf32>
    %cst_507 = arith.constant 0.000000e+00 : f32
    %643 = vector.broadcast %cst_507 : f32 to vector<32x16xf32>
    %644 = arith.minimumf %640, %643 : vector<32x16xf32>
    %645 = math.exp %644 : vector<32x16xf32>
    %cst_508 = arith.constant 1.000000e+00 : f32
    %646 = vector.broadcast %cst_508 : f32 to vector<32x16xf32>
    %647 = arith.subf %645, %646 : vector<32x16xf32>
    %648 = arith.select %642, %640, %647 : vector<32x16xi1>, vector<32x16xf32>
    %649 = arith.truncf %648 : vector<32x16xf32> to vector<32x16xbf16>
    %c464 = arith.constant 464 : index
    %c0_509 = arith.constant 0 : index
    %650 = vector.load %arg2[%c464, %c0_509] : memref<512x256xbf16, #tpu.memory_space<vmem>>, vector<32x32xbf16>
    %c0_510 = arith.constant 0 : index
    %c24_511 = arith.constant 24 : index
    %651 = vector.load %arg3[%c0_510, %c24_511] : memref<32x26xf32, #tpu.memory_space<vmem>>, vector<32x1xf32>
    %cst_512 = arith.constant dense<0.000000e+00> : vector<32x16xf32>
    %652 = tpu.matmul %650, %649, %cst_512 {dimension_numbers = #tpu.dot_dimension_numbers<[1], [0], [0], [1], [0, 0, 1, 1], [], []>} : vector<32x32xbf16>, vector<32x16xbf16>, vector<32x16xf32> -> vector<32x16xf32>
    %653 = vector.broadcast %651 : vector<32x1xf32> to vector<32x16xf32>
    %654 = arith.addf %652, %653 : vector<32x16xf32>
    %cst_513 = arith.constant 0.000000e+00 : f32
    %655 = vector.broadcast %cst_513 : f32 to vector<32x16xf32>
    %656 = arith.cmpf ogt, %654, %655 : vector<32x16xf32>
    %cst_514 = arith.constant 0.000000e+00 : f32
    %657 = vector.broadcast %cst_514 : f32 to vector<32x16xf32>
    %658 = arith.minimumf %654, %657 : vector<32x16xf32>
    %659 = math.exp %658 : vector<32x16xf32>
    %cst_515 = arith.constant 1.000000e+00 : f32
    %660 = vector.broadcast %cst_515 : f32 to vector<32x16xf32>
    %661 = arith.subf %659, %660 : vector<32x16xf32>
    %662 = arith.select %656, %654, %661 : vector<32x16xi1>, vector<32x16xf32>
    %663 = arith.addf %662, %628 : vector<32x16xf32>
    %664 = tpu.transpose %663, [1, 0] : vector<32x16xf32> -> vector<16x32xf32>
    %c0_516 = arith.constant 0 : index
    %c0_517 = arith.constant 0 : index
    %665 = vector.load %arg7[%c0_516, %c0_517] : memref<640x128xf32, #tpu.memory_space<vmem>>, vector<16x32xf32>
    tpu.vector_store %arg7[%c0_516, %c0_517], %664 {strides = array<i32>} : memref<640x128xf32, #tpu.memory_space<vmem>>, vector<16x32xf32>,
    %cst_518 = arith.constant 0.000000e+00 : f32
    %666 = vector.broadcast %cst_518 : f32 to vector<1x512xf32>
    %c0_519 = arith.constant 0 : index
    %c0_520 = arith.constant 0 : index
    %667 = vector.load %arg16[%c0_519, %c0_520] : memref<8x512xf32, #tpu.memory_space<vmem>>, vector<1x512xf32>
    tpu.vector_store %arg16[%c0_519, %c0_520], %666 {strides = array<i32>} : memref<8x512xf32, #tpu.memory_space<vmem>>, vector<1x512xf32>,
    %c0_521 = arith.constant 0 : index
    %c0_522 = arith.constant 0 : index
    %668 = vector.load %arg7[%c0_521, %c0_522] : memref<640x128xf32, #tpu.memory_space<vmem>>, vector<1x32xf32>
    %c1_523 = arith.constant 1 : index
    %c0_524 = arith.constant 0 : index
    %669 = vector.load %arg16[%c1_523, %c0_524] : memref<8x512xf32, #tpu.memory_space<vmem>>, vector<1x32xf32>
    tpu.vector_store %arg16[%c1_523, %c0_524], %668 {strides = array<i32>} : memref<8x512xf32, #tpu.memory_space<vmem>>, vector<1x32xf32>,
    %c1_525 = arith.constant 1 : index
    %c0_526 = arith.constant 0 : index
    %670 = vector.load %arg7[%c1_525, %c0_526] : memref<640x128xf32, #tpu.memory_space<vmem>>, vector<1x32xf32>
    %c1_527 = arith.constant 1 : index
    %c32_528 = arith.constant 32 : index
    %671 = vector.load %arg16[%c1_527, %c32_528] : memref<8x512xf32, #tpu.memory_space<vmem>>, vector<1x32xf32>
    tpu.vector_store %arg16[%c1_527, %c32_528], %670 {strides = array<i32>} : memref<8x512xf32, #tpu.memory_space<vmem>>, vector<1x32xf32>,
    %c2_529 = arith.constant 2 : index
    %c0_530 = arith.constant 0 : index
    %672 = vector.load %arg7[%c2_529, %c0_530] : memref<640x128xf32, #tpu.memory_space<vmem>>, vector<1x32xf32>
    %c1_531 = arith.constant 1 : index
    %c64_532 = arith.constant 64 : index
    %673 = vector.load %arg16[%c1_531, %c64_532] : memref<8x512xf32, #tpu.memory_space<vmem>>, vector<1x32xf32>
    tpu.vector_store %arg16[%c1_531, %c64_532], %672 {strides = array<i32>} : memref<8x512xf32, #tpu.memory_space<vmem>>, vector<1x32xf32>,
    %c3_533 = arith.constant 3 : index
    %c0_534 = arith.constant 0 : index
    %674 = vector.load %arg7[%c3_533, %c0_534] : memref<640x128xf32, #tpu.memory_space<vmem>>, vector<1x32xf32>
    %c1_535 = arith.constant 1 : index
    %c96_536 = arith.constant 96 : index
    %675 = vector.load %arg16[%c1_535, %c96_536] : memref<8x512xf32, #tpu.memory_space<vmem>>, vector<1x32xf32>
    tpu.vector_store %arg16[%c1_535, %c96_536], %674 {strides = array<i32>} : memref<8x512xf32, #tpu.memory_space<vmem>>, vector<1x32xf32>,
    %c4_537 = arith.constant 4 : index
    %c0_538 = arith.constant 0 : index
    %676 = vector.load %arg7[%c4_537, %c0_538] : memref<640x128xf32, #tpu.memory_space<vmem>>, vector<1x32xf32>
    %c1_539 = arith.constant 1 : index
    %c128_540 = arith.constant 128 : index
    %677 = vector.load %arg16[%c1_539, %c128_540] : memref<8x512xf32, #tpu.memory_space<vmem>>, vector<1x32xf32>
    tpu.vector_store %arg16[%c1_539, %c128_540], %676 {strides = array<i32>} : memref<8x512xf32, #tpu.memory_space<vmem>>, vector<1x32xf32>,
    %c5_541 = arith.constant 5 : index
    %c0_542 = arith.constant 0 : index
    %678 = vector.load %arg7[%c5_541, %c0_542] : memref<640x128xf32, #tpu.memory_space<vmem>>, vector<1x32xf32>
    %c1_543 = arith.constant 1 : index
    %c160_544 = arith.constant 160 : index
    %679 = vector.load %arg16[%c1_543, %c160_544] : memref<8x512xf32, #tpu.memory_space<vmem>>, vector<1x32xf32>
    tpu.vector_store %arg16[%c1_543, %c160_544], %678 {strides = array<i32>} : memref<8x512xf32, #tpu.memory_space<vmem>>, vector<1x32xf32>,
    %c6_545 = arith.constant 6 : index
    %c0_546 = arith.constant 0 : index
    %680 = vector.load %arg7[%c6_545, %c0_546] : memref<640x128xf32, #tpu.memory_space<vmem>>, vector<1x32xf32>
    %c1_547 = arith.constant 1 : index
    %c192_548 = arith.constant 192 : index
    %681 = vector.load %arg16[%c1_547, %c192_548] : memref<8x512xf32, #tpu.memory_space<vmem>>, vector<1x32xf32>
    tpu.vector_store %arg16[%c1_547, %c192_548], %680 {strides = array<i32>} : memref<8x512xf32, #tpu.memory_space<vmem>>, vector<1x32xf32>,
    %c7_549 = arith.constant 7 : index
    %c0_550 = arith.constant 0 : index
    %682 = vector.load %arg7[%c7_549, %c0_550] : memref<640x128xf32, #tpu.memory_space<vmem>>, vector<1x32xf32>
    %c1_551 = arith.constant 1 : index
    %c224_552 = arith.constant 224 : index
    %683 = vector.load %arg16[%c1_551, %c224_552] : memref<8x512xf32, #tpu.memory_space<vmem>>, vector<1x32xf32>
    tpu.vector_store %arg16[%c1_551, %c224_552], %682 {strides = array<i32>} : memref<8x512xf32, #tpu.memory_space<vmem>>, vector<1x32xf32>,
    %c0_553 = arith.constant 0 : index
    %c0_554 = arith.constant 0 : index
    %684 = tpu.strided_load %arg7[%c0_553, %c0_554] {strides = array<i32: 8, 1>} : memref<640x128xf32, #tpu.memory_space<vmem>>, vector<2x32xf32>
    %c0_555 = arith.constant 0 : index
    %c256_556 = arith.constant 256 : index
    %685 = vector.load %arg16[%c0_555, %c256_556] : memref<8x512xf32, #tpu.memory_space<vmem>>, vector<2x32xf32>
    tpu.vector_store %arg16[%c0_555, %c256_556], %684 {strides = array<i32>} : memref<8x512xf32, #tpu.memory_space<vmem>>, vector<2x32xf32>,
    %c1_557 = arith.constant 1 : index
    %c0_558 = arith.constant 0 : index
    %686 = tpu.strided_load %arg7[%c1_557, %c0_558] {strides = array<i32: 8, 1>} : memref<640x128xf32, #tpu.memory_space<vmem>>, vector<2x32xf32>
    %c0_559 = arith.constant 0 : index
    %c288_560 = arith.constant 288 : index
    %687 = vector.load %arg16[%c0_559, %c288_560] : memref<8x512xf32, #tpu.memory_space<vmem>>, vector<2x32xf32>
    tpu.vector_store %arg16[%c0_559, %c288_560], %686 {strides = array<i32>} : memref<8x512xf32, #tpu.memory_space<vmem>>, vector<2x32xf32>,
    %c2_561 = arith.constant 2 : index
    %c0_562 = arith.constant 0 : index
    %688 = tpu.strided_load %arg7[%c2_561, %c0_562] {strides = array<i32: 8, 1>} : memref<640x128xf32, #tpu.memory_space<vmem>>, vector<2x32xf32>
    %c0_563 = arith.constant 0 : index
    %c320 = arith.constant 320 : index
    %689 = vector.load %arg16[%c0_563, %c320] : memref<8x512xf32, #tpu.memory_space<vmem>>, vector<2x32xf32>
    tpu.vector_store %arg16[%c0_563, %c320], %688 {strides = array<i32>} : memref<8x512xf32, #tpu.memory_space<vmem>>, vector<2x32xf32>,
    %c3_564 = arith.constant 3 : index
    %c0_565 = arith.constant 0 : index
    %690 = tpu.strided_load %arg7[%c3_564, %c0_565] {strides = array<i32: 8, 1>} : memref<640x128xf32, #tpu.memory_space<vmem>>, vector<2x32xf32>
    %c0_566 = arith.constant 0 : index
    %c352 = arith.constant 352 : index
    %691 = vector.load %arg16[%c0_566, %c352] : memref<8x512xf32, #tpu.memory_space<vmem>>, vector<2x32xf32>
    tpu.vector_store %arg16[%c0_566, %c352], %690 {strides = array<i32>} : memref<8x512xf32, #tpu.memory_space<vmem>>, vector<2x32xf32>,
    %c4_567 = arith.constant 4 : index
    %c0_568 = arith.constant 0 : index
    %692 = tpu.strided_load %arg7[%c4_567, %c0_568] {strides = array<i32: 8, 1>} : memref<640x128xf32, #tpu.memory_space<vmem>>, vector<2x32xf32>
    %c0_569 = arith.constant 0 : index
    %c384 = arith.constant 384 : index
    %693 = vector.load %arg16[%c0_569, %c384] : memref<8x512xf32, #tpu.memory_space<vmem>>, vector<2x32xf32>
    tpu.vector_store %arg16[%c0_569, %c384], %692 {strides = array<i32>} : memref<8x512xf32, #tpu.memory_space<vmem>>, vector<2x32xf32>,
    %c5_570 = arith.constant 5 : index
    %c0_571 = arith.constant 0 : index
    %694 = tpu.strided_load %arg7[%c5_570, %c0_571] {strides = array<i32: 8, 1>} : memref<640x128xf32, #tpu.memory_space<vmem>>, vector<2x32xf32>
    %c0_572 = arith.constant 0 : index
    %c416 = arith.constant 416 : index
    %695 = vector.load %arg16[%c0_572, %c416] : memref<8x512xf32, #tpu.memory_space<vmem>>, vector<2x32xf32>
    tpu.vector_store %arg16[%c0_572, %c416], %694 {strides = array<i32>} : memref<8x512xf32, #tpu.memory_space<vmem>>, vector<2x32xf32>,
    %c6_573 = arith.constant 6 : index
    %c0_574 = arith.constant 0 : index
    %696 = tpu.strided_load %arg7[%c6_573, %c0_574] {strides = array<i32: 8, 1>} : memref<640x128xf32, #tpu.memory_space<vmem>>, vector<2x32xf32>
    %c0_575 = arith.constant 0 : index
    %c448 = arith.constant 448 : index
    %697 = vector.load %arg16[%c0_575, %c448] : memref<8x512xf32, #tpu.memory_space<vmem>>, vector<2x32xf32>
    tpu.vector_store %arg16[%c0_575, %c448], %696 {strides = array<i32>} : memref<8x512xf32, #tpu.memory_space<vmem>>, vector<2x32xf32>,
    %c7_576 = arith.constant 7 : index
    %c0_577 = arith.constant 0 : index
    %698 = tpu.strided_load %arg7[%c7_576, %c0_577] {strides = array<i32: 8, 1>} : memref<640x128xf32, #tpu.memory_space<vmem>>, vector<2x32xf32>
    %c0_578 = arith.constant 0 : index
    %c480 = arith.constant 480 : index
    %699 = vector.load %arg16[%c0_578, %c480] : memref<8x512xf32, #tpu.memory_space<vmem>>, vector<2x32xf32>
    tpu.vector_store %arg16[%c0_578, %c480], %698 {strides = array<i32>} : memref<8x512xf32, #tpu.memory_space<vmem>>, vector<2x32xf32>,
    %c0_579 = arith.constant 0 : index
    %c0_580 = arith.constant 0 : index
    %700 = vector.load %arg16[%c0_579, %c0_580] : memref<8x512xf32, #tpu.memory_space<vmem>>, vector<2x512xf32>
    %701 = arith.truncf %700 : vector<2x512xf32> to vector<2x512xbf16>
    %c240_581 = arith.constant 240 : index
    %c0_582 = arith.constant 0 : index
    %702 = vector.load %arg4[%c240_581, %c0_582] : memref<752x128xbf16, #tpu.memory_space<vmem>>, vector<512x64xbf16>
    %c3_583 = arith.constant 3 : index
    %c0_584 = arith.constant 0 : index
    %703 = vector.load %arg5[%c3_583, %c0_584] : memref<8x64xf32, #tpu.memory_space<vmem>>, vector<1x64xf32>
    %cst_585 = arith.constant dense<0.000000e+00> : vector<2x64xf32>
    %704 = tpu.matmul %701, %702, %cst_585 {dimension_numbers = #tpu.dot_dimension_numbers<[1], [0], [0], [1], [0, 0, 1, 1], [], []>} : vector<2x512xbf16>, vector<512x64xbf16>, vector<2x64xf32> -> vector<2x64xf32>
    %705 = vector.broadcast %703 : vector<1x64xf32> to vector<2x64xf32>
    %706 = arith.addf %704, %705 : vector<2x64xf32>
    %cst_586 = arith.constant 0.000000e+00 : f32
    %707 = vector.broadcast %cst_586 : f32 to vector<2x64xf32>
    %708 = arith.cmpf ogt, %706, %707 : vector<2x64xf32>
    %cst_587 = arith.constant 0.000000e+00 : f32
    %709 = vector.broadcast %cst_587 : f32 to vector<2x64xf32>
    %710 = arith.minimumf %706, %709 : vector<2x64xf32>
    %711 = math.exp %710 : vector<2x64xf32>
    %cst_588 = arith.constant 1.000000e+00 : f32
    %712 = vector.broadcast %cst_588 : f32 to vector<2x64xf32>
    %713 = arith.subf %711, %712 : vector<2x64xf32>
    %714 = arith.select %708, %706, %713 : vector<2x64xi1>, vector<2x64xf32>
    %715 = tpu.transpose %714, [1, 0] : vector<2x64xf32> -> vector<64x2xf32>
    %cst_589 = arith.constant 0.000000e+00 : f32
    %716 = vector.broadcast %cst_589 : f32 to vector<192x2xf32>
    %c0_590 = arith.constant 0 : index
    %c0_591 = arith.constant 0 : index
    %717 = vector.load %arg17[%c0_590, %c0_591] : memref<192x128xf32, #tpu.memory_space<vmem>>, vector<192x2xf32>
    tpu.vector_store %arg17[%c0_590, %c0_591], %716 {strides = array<i32>} : memref<192x128xf32, #tpu.memory_space<vmem>>, vector<192x2xf32>,
    %718 = vector.extract_strided_slice %715 {offsets = [0, 0], sizes = [64, 1], strides = [1, 1]} : vector<64x2xf32> to vector<64x1xf32>
    %c64_592 = arith.constant 64 : index
    %c1_593 = arith.constant 1 : index
    %719 = vector.load %arg17[%c64_592, %c1_593] : memref<192x128xf32, #tpu.memory_space<vmem>>, vector<64x1xf32>
    tpu.vector_store %arg17[%c64_592, %c1_593], %718 {strides = array<i32>} : memref<192x128xf32, #tpu.memory_space<vmem>>, vector<64x1xf32>,
    %c128_594 = arith.constant 128 : index
    %c0_595 = arith.constant 0 : index
    %720 = vector.load %arg17[%c128_594, %c0_595] : memref<192x128xf32, #tpu.memory_space<vmem>>, vector<64x2xf32>
    tpu.vector_store %arg17[%c128_594, %c0_595], %715 {strides = array<i32>} : memref<192x128xf32, #tpu.memory_space<vmem>>, vector<64x2xf32>,
    %c0_596 = arith.constant 0 : index
    %c0_597 = arith.constant 0 : index
    %721 = vector.load %arg17[%c0_596, %c0_597] : memref<192x128xf32, #tpu.memory_space<vmem>>, vector<192x2xf32>
    %722 = arith.truncf %721 : vector<192x2xf32> to vector<192x2xbf16>
    %c496 = arith.constant 496 : index
    %c0_598 = arith.constant 0 : index
    %723 = vector.load %arg2[%c496, %c0_598] : memref<512x256xbf16, #tpu.memory_space<vmem>>, vector<16x192xbf16>
    %c0_599 = arith.constant 0 : index
    %c25 = arith.constant 25 : index
    %724 = vector.load %arg3[%c0_599, %c25] : memref<32x26xf32, #tpu.memory_space<vmem>>, vector<16x1xf32>
    %cst_600 = arith.constant dense<0.000000e+00> : vector<16x2xf32>
    %725 = tpu.matmul %723, %722, %cst_600 {dimension_numbers = #tpu.dot_dimension_numbers<[1], [0], [0], [1], [0, 0, 1, 1], [], []>} : vector<16x192xbf16>, vector<192x2xbf16>, vector<16x2xf32> -> vector<16x2xf32>
    %726 = vector.broadcast %724 : vector<16x1xf32> to vector<16x2xf32>
    %727 = arith.addf %725, %726 : vector<16x2xf32>
    %cst_601 = arith.constant 0.000000e+00 : f32
    %728 = vector.broadcast %cst_601 : f32 to vector<16x2xf32>
    %729 = arith.cmpf ogt, %727, %728 : vector<16x2xf32>
    %cst_602 = arith.constant 0.000000e+00 : f32
    %730 = vector.broadcast %cst_602 : f32 to vector<16x2xf32>
    %731 = arith.minimumf %727, %730 : vector<16x2xf32>
    %732 = math.exp %731 : vector<16x2xf32>
    %cst_603 = arith.constant 1.000000e+00 : f32
    %733 = vector.broadcast %cst_603 : f32 to vector<16x2xf32>
    %734 = arith.subf %732, %733 : vector<16x2xf32>
    %735 = arith.select %729, %727, %734 : vector<16x2xi1>, vector<16x2xf32>
    %c0_604 = arith.constant 0 : index
    %c0_605 = arith.constant 0 : index
    %c0_606 = arith.constant 0 : index
    %736 = vector.load %arg6[%c0_604, %c0_605, %c0_606] : memref<1x16x2xf32, #tpu.memory_space<vmem>>, vector<1x16x2xf32>
    %737 = vector.shape_cast %736 : vector<1x16x2xf32> to vector<16x2xf32>
    %738 = vector.shape_cast %735 : vector<16x2xf32> to vector<1x16x2xf32>
    tpu.vector_store %arg6[%c0_604, %c0_605, %c0_606], %738 {strides = array<i32>} : memref<1x16x2xf32, #tpu.memory_space<vmem>>, vector<1x16x2xf32>,
    return
  }
  func.func @transform_0(%arg0: i32) -> (i32, i32, i32) {
    %c0_i32 = arith.constant 0 : i32
    %c0_i32_0 = arith.constant 0 : i32
    %c0_i32_1 = arith.constant 0 : i32
    return %arg0, %c0_i32, %c0_i32_0 : i32, i32, i32
  }
  func.func @transform_1(%arg0: i32) -> (i32, i32) {
    %c0_i32 = arith.constant 0 : i32
    %c0_i32_0 = arith.constant 0 : i32
    %c0_i32_1 = arith.constant 0 : i32
    return %c0_i32, %c0_i32_0 : i32, i32
  }
  func.func @transform_2(%arg0: i32) -> (i32, i32) {
    %c0_i32 = arith.constant 0 : i32
    %c0_i32_0 = arith.constant 0 : i32
    %c0_i32_1 = arith.constant 0 : i32
    return %c0_i32, %c0_i32_0 : i32, i32
  }
  func.func @transform_3(%arg0: i32) -> (i32, i32) {
    %c0_i32 = arith.constant 0 : i32
    %c0_i32_0 = arith.constant 0 : i32
    %c0_i32_1 = arith.constant 0 : i32
    return %c0_i32, %c0_i32_0 : i32, i32
  }
  func.func @transform_4(%arg0: i32) -> (i32, i32) {
    %c0_i32 = arith.constant 0 : i32
    %c0_i32_0 = arith.constant 0 : i32
    %c0_i32_1 = arith.constant 0 : i32
    return %c0_i32, %c0_i32_0 : i32, i32
  }
  func.func @transform_5(%arg0: i32) -> (i32, i32, i32) {
    %c0_i32 = arith.constant 0 : i32
    %c0_i32_0 = arith.constant 0 : i32
    %c0_i32_1 = arith.constant 0 : i32
    return %arg0, %c0_i32, %c0_i32_0 : i32, i32, i32
  }
}

</mosaic_0001>

<llo_original>
// kernel: encoder_forward.1
$region0: #{encoder_forward.1}
  #allocation0 [shape = 'u32[]', space=smem, size = 0x4, offset = 0x4, fixed_abs, tag = 'smem constant byte address 0x4 - core index']
  #allocation1 [shape = 'u32[144,128]{1,0:T(1,128)}', space=vmem, size = 0x12000, scoped, tag = 'internal scratch']
  #allocation2 [shape = 'f32[640,128]{1,0:T(8,128)}', space=vmem, size = 0x50000, scoped, tag = 'scratch operand']
  #allocation3 [shape = 'f32[8,640]{1,0:T(8,128)}', space=vmem, size = 0x5000, scoped, tag = 'scratch operand']
  #allocation4 [shape = 'f32[32,640]{1,0:T(8,128)}', space=vmem, size = 0x14000, scoped, tag = 'scratch operand']
  #allocation5 [shape = 'f32[320,128]{1,0:T(8,128)}', space=vmem, size = 0x28000, scoped, tag = 'scratch operand']
  #allocation6 [shape = 'f32[56,384]{1,0:T(8,128)}', space=vmem, size = 0x15000, scoped, tag = 'scratch operand']
  #allocation7 [shape = 'f32[80,128]{1,0:T(8,128)}', space=vmem, size = 0xa000, scoped, tag = 'scratch operand']
  #allocation8 [shape = 'f32[112,128]{1,0:T(8,128)}', space=vmem, size = 0xe000, scoped, tag = 'scratch operand']
  #allocation9 [shape = 'f32[16,256]{1,0:T(8,128)}', space=vmem, size = 0x4000, scoped, tag = 'scratch operand']
  #allocation10 [shape = 'f32[224,128]{1,0:T(8,128)}', space=vmem, size = 0x1c000, scoped, tag = 'scratch operand']
  #allocation11 [shape = 'f32[8,512]{1,0:T(8,128)}', space=vmem, size = 0x4000, scoped, tag = 'scratch operand']
  #allocation12 [shape = 'f32[192,128]{1,0:T(8,128)}', space=vmem, size = 0x18000, scoped, tag = 'scratch operand']
  %s0 = inlined_call_operand.vmem [shape: f32[2,1,640], index: 0, kind: input, shape index: {}]
  %s1 = inlined_call_operand.vmem [shape: bf16[512,256], index: 1, kind: input, shape index: {}]
  %s2 = inlined_call_operand.vmem [shape: f32[32,26], index: 2, kind: input, shape index: {}]
  %s3 = inlined_call_operand.vmem [shape: bf16[752,128], index: 3, kind: input, shape index: {}]
  %s4 = inlined_call_operand.vmem [shape: f32[8,64], index: 4, kind: input, shape index: {}]
  %s5 = inlined_call_operand.vmem [shape: f32[2,16,2], index: 5, kind: output, shape index: {}]
  %s6 = sld [smem:[#allocation0]]
  $region53: #{encoder_forward.1} parent=0
    _
  %s8 = ssub.s32 1, %s6
  %s9 = scalar_select 0, %s8, %s6
  loop: start=0, step=1, limit=4
  $region2: #{encoder_forward.1} parent=0 // loop_pre_header
    _
  $region3: #{encoder_forward.1} parent=0 // loop_header
    %s11 = sphi 0, %s15
    %p12 = scmp.ge.s32.totalorder %s11, 4
    %s21 = sphi 0, %s23
    %s24 = sphi 0, %s21
    %s25 = sphi 0, %s24
    %s41 = sphi 0, %s25
    %s45 = sphi 0, %s45
    %s47 = sphi 0, %s45
    %s48 = sphi 0, %s47
    %s62 = sphi 0, %s48
    %s66 = sphi 0, %s66
    %s68 = sphi 0, %s66
    %s69 = sphi 0, %s68
    %s83 = sphi 0, %s69
    %s87 = sphi 0, %s87
    %s89 = sphi 0, %s87
    %s90 = sphi 0, %s89
    %s104 = sphi 0, %s90
    %s108 = sphi 0, %s108
    %s110 = sphi 0, %s108
    %s111 = sphi 0, %s110
    %s125 = sphi 0, %s111
    %s131 = sphi 0, %s133
    %s134 = sphi 0, %s131
    %s135 = sphi 0, %s134
    %s151 = sphi 0, %s135
  $region4: #{encoder_forward.1} parent=0 // loop_header_branch
    %14 = sbr.rel (%p12) target = $region8
  $region5: #{encoder_forward.1} parent=0 // loop_body
    %s16 = ssub.s32 %s11, 1
    %s17 = ssub.s32 %s11, 2
    %s18 = sadd.s32 %s11, 1
    %s19 = ssub.s32 %s11, %s18
    %p20 = scmp.eq.s32.totalorder %s19, 0
    %s22 = sadd.s32 %s21, 1
    %s23 = scalar_select %p20, %s21, %s22
    %p26 = pneg %p20
    %p27 = scmp.eq.s32.totalorder %s11, 1
    %p28 = por %p26, %p27
    %p29 = scmp.ne.s32.totalorder %s21, %s24
    %p30 = scmp.eq.s32.totalorder %s11, 0
    %p31 = por %p29, %p30
    %p32 = scmp.ne.s32.totalorder %s21, %s24
    %p33 = scmp.eq.s32.totalorder %s16, 1
    %p34 = por %p32, %p33
    %p35 = scmp.ne.s32.totalorder %s24, %s25
    %p36 = scmp.eq.s32.totalorder %s16, 0
    %p37 = por %p35, %p36
    %p38 = scmp.ne.s32.totalorder %s24, %s25
    %p39 = scmp.eq.s32.totalorder %s17, 1
    %p40 = por %p38, %p39
    %p42 = scmp.ne.s32.totalorder %s25, %s41
    %p43 = scmp.eq.s32.totalorder %s17, 0
    %p44 = por %p42, %p43
    %s46 = sadd.s32 %s45, 1
    %p49 = scmp.eq.s32.totalorder %s11, 1
    %p50 = scmp.ne.s32.totalorder %s45, %s47
    %p51 = scmp.eq.s32.totalorder %s11, 0
    %p52 = por %p50, %p51
    %p53 = scmp.ne.s32.totalorder %s45, %s47
    %p54 = scmp.eq.s32.totalorder %s16, 1
    %p55 = por %p53, %p54
    %p56 = scmp.ne.s32.totalorder %s47, %s48
    %p57 = scmp.eq.s32.totalorder %s16, 0
    %p58 = por %p56, %p57
    %p59 = scmp.ne.s32.totalorder %s47, %s48
    %p60 = scmp.eq.s32.totalorder %s17, 1
    %p61 = por %p59, %p60
    %p63 = scmp.ne.s32.totalorder %s48, %s62
    %p64 = scmp.eq.s32.totalorder %s17, 0
    %p65 = por %p63, %p64
    %s67 = sadd.s32 %s66, 1
    %p70 = scmp.eq.s32.totalorder %s11, 1
    %p71 = scmp.ne.s32.totalorder %s66, %s68
    %p72 = scmp.eq.s32.totalorder %s11, 0
    %p73 = por %p71, %p72
    %p74 = scmp.ne.s32.totalorder %s66, %s68
    %p75 = scmp.eq.s32.totalorder %s16, 1
    %p76 = por %p74, %p75
    %p77 = scmp.ne.s32.totalorder %s68, %s69
    %p78 = scmp.eq.s32.totalorder %s16, 0
    %p79 = por %p77, %p78
    %p80 = scmp.ne.s32.totalorder %s68, %s69
    %p81 = scmp.eq.s32.totalorder %s17, 1
    %p82 = por %p80, %p81
    %p84 = scmp.ne.s32.totalorder %s69, %s83
    %p85 = scmp.eq.s32.totalorder %s17, 0
    %p86 = por %p84, %p85
    %s88 = sadd.s32 %s87, 1
    %p91 = scmp.eq.s32.totalorder %s11, 1
    %p92 = scmp.ne.s32.totalorder %s87, %s89
    %p93 = scmp.eq.s32.totalorder %s11, 0
    %p94 = por %p92, %p93
    %p95 = scmp.ne.s32.totalorder %s87, %s89
    %p96 = scmp.eq.s32.totalorder %s16, 1
    %p97 = por %p95, %p96
    %p98 = scmp.ne.s32.totalorder %s89, %s90
    %p99 = scmp.eq.s32.totalorder %s16, 0
    %p100 = por %p98, %p99
    %p101 = scmp.ne.s32.totalorder %s89, %s90
    %p102 = scmp.eq.s32.totalorder %s17, 1
    %p103 = por %p101, %p102
    %p105 = scmp.ne.s32.totalorder %s90, %s104
    %p106 = scmp.eq.s32.totalorder %s17, 0
    %p107 = por %p105, %p106
    %s109 = sadd.s32 %s108, 1
    %p112 = scmp.eq.s32.totalorder %s11, 1
    %p113 = scmp.ne.s32.totalorder %s108, %s110
    %p114 = scmp.eq.s32.totalorder %s11, 0
    %p115 = por %p113, %p114
    %p116 = scmp.ne.s32.totalorder %s108, %s110
    %p117 = scmp.eq.s32.totalorder %s16, 1
    %p118 = por %p116, %p117
    %p119 = scmp.ne.s32.totalorder %s110, %s111
    %p120 = scmp.eq.s32.totalorder %s16, 0
    %p121 = por %p119, %p120
    %p122 = scmp.ne.s32.totalorder %s110, %s111
    %p123 = scmp.eq.s32.totalorder %s17, 1
    %p124 = por %p122, %p123
    %p126 = scmp.ne.s32.totalorder %s111, %s125
    %p127 = scmp.eq.s32.totalorder %s17, 0
    %p128 = por %p126, %p127
    %s129 = ssub.s32 %s11, %s18
    %p130 = scmp.eq.s32.totalorder %s129, 0
    %s132 = sadd.s32 %s131, 1
    %s133 = scalar_select %p130, %s131, %s132
    %p136 = pneg %p130
    %p137 = scmp.eq.s32.totalorder %s11, 1
    %p138 = por %p136, %p137
    %p139 = scmp.ne.s32.totalorder %s131, %s134
    %p140 = scmp.eq.s32.totalorder %s11, 0
    %p141 = por %p139, %p140
    %p142 = scmp.ne.s32.totalorder %s131, %s134
    %p143 = scmp.eq.s32.totalorder %s16, 1
    %p144 = por %p142, %p143
    %p145 = scmp.ne.s32.totalorder %s134, %s135
    %p146 = scmp.eq.s32.totalorder %s16, 0
    %p147 = por %p145, %p146
    %p148 = scmp.ne.s32.totalorder %s134, %s135
    %p149 = scmp.eq.s32.totalorder %s17, 1
    %p150 = por %p148, %p149
    %p152 = scmp.ne.s32.totalorder %s135, %s151
    %p153 = scmp.eq.s32.totalorder %s17, 0
    %p154 = por %p152, %p153
    %p155 = scmp.le.s32.totalorder 1, %s11
    %p156 = scmp.lt.s32.totalorder %s11, 3
    %p157 = pnand %p155, %p156
    %p158 = pneg %p157
    // Predicated region
    $region9: #{encoder_forward.1} parent=5 // pred_check
      _
    $region10: #{encoder_forward.1} parent=5 // pred_check_branch
      %160 = sbr.rel (%p157) target = $region12
    $region11: #{encoder_forward.1} parent=5 // pred_region
      %s161 = ssub.s32 %s11, 1
      // Predicated region
      $region13: #{encoder_forward.1} parent=11 // pred_check
        %p162 = pneg %p58
      $region14: #{encoder_forward.1} parent=11 // pred_check_branch
        %164 = sbr.rel (%p162) target = $region16
      $region15: #{encoder_forward.1} parent=11 // pred_region
        _
      $region16: #{encoder_forward.1} parent=11 // pred_fallthru
        _
      // Predicated region
      $region17: #{encoder_forward.1} parent=11 // pred_check
        %p165 = pneg %p79
      $region18: #{encoder_forward.1} parent=11 // pred_check_branch
        %167 = sbr.rel (%p165) target = $region20
      $region19: #{encoder_forward.1} parent=11 // pred_region
        _
      $region20: #{encoder_forward.1} parent=11 // pred_fallthru
        _
      // Predicated region
      $region21: #{encoder_forward.1} parent=11 // pred_check
        %p168 = pneg %p100
      $region22: #{encoder_forward.1} parent=11 // pred_check_branch
        %170 = sbr.rel (%p168) target = $region24
      $region23: #{encoder_forward.1} parent=11 // pred_region
        _
      $region24: #{encoder_forward.1} parent=11 // pred_fallthru
        _
      // Predicated region
      $region25: #{encoder_forward.1} parent=11 // pred_check
        %p171 = pneg %p121
      $region26: #{encoder_forward.1} parent=11 // pred_check_branch
        %173 = sbr.rel (%p171) target = $region28
      $region27: #{encoder_forward.1} parent=11 // pred_region
        _
      $region28: #{encoder_forward.1} parent=11 // pred_fallthru
        _
    $region12: #{encoder_forward.1} parent=5 // pred_fallthru
      _
    %p174 = scmp.lt.s32.totalorder %s11, 2
    // Predicated region
    $region29: #{encoder_forward.1} parent=5 // pred_check
      %p175 = pneg %p174
    $region30: #{encoder_forward.1} parent=5 // pred_check_branch
      %177 = sbr.rel (%p175) target = $region32
    $region31: #{encoder_forward.1} parent=5 // pred_region
      // Predicated region
      $region33: #{encoder_forward.1} parent=31 // pred_check
        %p178 = pneg %p31
      $region34: #{encoder_forward.1} parent=31 // pred_check_branch
        %180 = sbr.rel (%p178) target = $region36
      $region35: #{encoder_forward.1} parent=31 // pred_region
        %p181 = scmp.lt.s32.totalorder %s11, 1
        %s182 = scalar_select %p181, %s11, 1
        %s183 = smul.addr %s182, 5
        %s184 = scalar_lea.vmem %s0, %s183
      $region36: #{encoder_forward.1} parent=31 // pred_fallthru
        _
    $region32: #{encoder_forward.1} parent=5 // pred_fallthru
      _
    %p185 = scmp.le.s32.totalorder 1, %s11
    %p186 = scmp.lt.s32.totalorder %s11, 3
    %p187 = pnand %p185, %p186
    %p188 = pneg %p187
    // Predicated region
    $region37: #{encoder_forward.1} parent=5 // pred_check
      _
    $region38: #{encoder_forward.1} parent=5 // pred_check_branch
      %190 = sbr.rel (%p187) target = $region40
    $region39: #{encoder_forward.1} parent=5 // pred_region
      %s191 = ssub.s32 %s11, 1
      %p192 = scmp.lt.s32.totalorder %s16, 1
      %s193 = scalar_select %p192, %s16, 1
      %s194 = smul.addr %s193, 5
      %s195 = scalar_lea.vmem %s0, %s194
      %p196 = pneg %p37
      %p197 = pneg %p34
      %p198 = pneg %p58
      %p199 = pneg %p55
      %p200 = pneg %p79
      %p201 = pneg %p76
      %p202 = pneg %p100
      %p203 = pneg %p97
      %p204 = pneg %p121
      %p205 = pneg %p118
      %p206 = pneg %p147
      %p207 = pneg %p144
      %p208 = scmp.lt.s32.totalorder %s16, 1
      %s209 = scalar_select %p208, %s16, 1
      %s210 = smul.addr %s209, 2
      %s211 = smul.addr %s210, 8
      %s212 = scalar_lea.vmem %s5, %s211
      %p213 = scmp.lt.s32.totalorder %s16, 1
      %s214 = scalar_select %p213, %s16, 1
      %s215 = smul.addr %s214, 5
      %s216 = scalar_lea.vmem %s0, %s215
      %p217 = scmp.lt.s32.totalorder %s16, 1
      %s218 = scalar_select %p217, %s16, 1
      %s219 = smul.addr %s218, 2
      %s220 = smul.addr %s219, 8
      %s221 = scalar_lea.vmem %s5, %s220
      %v223 = vld [vmem:[%s216] sm:$0x1f]
      %vm224 = vcmask 47104
      %225 = vst.msk [vmem:[#allocation3] sm:$0x7f] %vm224, 0.0
      %227 = vrot.lane.b32.xlu0 %v223, 6
      %v228 = vpop.permute.xlu0 %227
      %v229 = vrot.slane %v228, 7
      %vm230 = vcmask 48128
      %v231 = vsel %vm230, %v229, %v228
      %v233 = vlaneseq
      %vm234 = vcmp.ge.s32.totalorder %v233, 6
      %vm235 = vcmp.lt.s32.totalorder %v233, 640
      %vm236 = vmand %vm234, %vm235
      %237 = vst.msk [vmem:[#allocation3] ss:$8 sm:$0xf] %vm236, %v231
      %238 = vst.msk [vmem:[#allocation3] ss:$8 sm:$0x10] %vm236, %v231
      %239 = vrot.lane.b32.xlu0 %v223, 5
      %v240 = vpop.permute.xlu0 %239
      %v241 = vrot.slane %v240, 7
      %vm242 = vcmask 39936
      %v243 = vsel %vm242, %v241, %v240
      %vm245 = vcmp.ge.s32.totalorder %v233, 5
      %vm246 = vmand %vm245, %vm235
      %s247 = scalar_lea.vmem [#allocation3], 1
      %248 = vst.msk [vmem:[%s247] ss:$8 sm:$0xf] %vm246, %v243
      %249 = vst.msk [vmem:[%s247] ss:$8 sm:$0x10] %vm246, %v243
      %250 = vrot.lane.b32.xlu0 %v223, 4
      %v251 = vpop.permute.xlu0 %250
      %v252 = vrot.slane %v251, 7
      %vm253 = vcmask 31744
      %v254 = vsel %vm253, %v252, %v251
      %vm256 = vcmp.ge.s32.totalorder %v233, 4
      %vm257 = vmand %vm256, %vm235
      %s258 = scalar_lea.vmem [#allocation3], 2
      %259 = vst.msk [vmem:[%s258] ss:$8 sm:$0xf] %vm257, %v254
      %260 = vst.msk [vmem:[%s258] ss:$8 sm:$0x10] %vm257, %v254
      %261 = vrot.lane.b32.xlu0 %v223, 3
      %v262 = vpop.permute.xlu0 %261
      %v263 = vrot.slane %v262, 7
      %vm264 = vcmask 23552
      %v265 = vsel %vm264, %v263, %v262
      %vm267 = vcmp.ge.s32.totalorder %v233, 3
      %vm268 = vmand %vm267, %vm235
      %s269 = scalar_lea.vmem [#allocation3], 3
      %270 = vst.msk [vmem:[%s269] ss:$8 sm:$0xf] %vm268, %v265
      %271 = vst.msk [vmem:[%s269] ss:$8 sm:$0x10] %vm268, %v265
      %272 = vrot.lane.b32.xlu0 %v223, 2
      %v273 = vpop.permute.xlu0 %272
      %v274 = vrot.slane %v273, 7
      %vm275 = vcmask 15360
      %v276 = vsel %vm275, %v274, %v273
      %vm278 = vcmp.ge.s32.totalorder %v233, 2
      %vm279 = vmand %vm278, %vm235
      %s280 = scalar_lea.vmem [#allocation3], 4
      %281 = vst.msk [vmem:[%s280] ss:$8 sm:$0xf] %vm279, %v276
      %282 = vst.msk [vmem:[%s280] ss:$8 sm:$0x10] %vm279, %v276
      %283 = vrot.lane.b32.xlu0 %v223, 1
      %v284 = vpop.permute.xlu0 %283
      %v285 = vrot.slane %v284, 7
      %vm286 = vcmask 7168
      %v287 = vsel %vm286, %v285, %v284
      %vm289 = vcmp.ge.s32.totalorder %v233, 1
      %vm290 = vmand %vm289, %vm235
      %s291 = scalar_lea.vmem [#allocation3], 5
      %292 = vst.msk [vmem:[%s291] ss:$8 sm:$0xf] %vm290, %v287
      %293 = vst.msk [vmem:[%s291] ss:$8 sm:$0x10] %vm290, %v287
      %vm294 = vcmp.ge.s32.totalorder %v233, 0
      %vm295 = vmand %vm294, %vm235
      %s296 = scalar_lea.vmem [#allocation3], 6
      %297 = vst.msk [vmem:[%s296] ss:$8 sm:$0xf] %vm295, %v223
      %298 = vst.msk [vmem:[%s296] ss:$8 sm:$0x10] %vm295, %v223
      %v299 = vld [vmem:[#allocation3] sm:$0x7f]
      %v300 = vld [vmem:[#allocation3 + $0x8] sm:$0x7f]
      %v301 = vld [vmem:[#allocation3 + $0x10] sm:$0x7f]
      %v302 = vld [vmem:[#allocation3 + $0x18] sm:$0x7f]
      %v303 = vld [vmem:[#allocation3 + $0x20] sm:$0x7f]
      %v304 = vpack.c.bf16 %v299, %v299
      %v305 = vpack.c.bf16 %v300, %v300
      %v306 = vpack.c.bf16 %v301, %v301
      %v307 = vpack.c.bf16 %v302, %v302
      %v308 = vpack.c.bf16 %v303, %v303
      %v309 = vld [vmem:[%s1] sm:$0x3]
      %v310 = vld [vmem:[%s2] sm:$0xf]
      %312 = vset.pattern.permute.xlu0 0
      %313 = vperm.xlu0 %312, %v310
      %v314 = vpop.permute.xlu0 %313
      %vm316 = vcmask 56320
      %v318 = vsel %vm316, %v309, 0
      %vm320 = vcmask 1042432
      %vm321 = vcmask 1043456
      %v322 = vsel %vm320, 4294967295, 65535
      %v323 = vsel %vm321, %v322, 0
      %v325 = vand.u32 %v304, %v323
      %v328 = vand.u32 %v305, %v323
      %v331 = vand.u32 %v306, %v323
      %v334 = vand.u32 %v307, %v323
      %v337 = vand.u32 %v308, %v323
      %339 = vmatprep.subr.bf16.mxu0 %v328
      %340 = vmatpush1.bf16.msra.mxu0 %v325
      %341 = vmatprep.subr.bf16.mxu0 0
      %342 = vmatpush1.bf16.msra.mxu0 0
      %343 = vmatprep.subr.bf16.mxu0 0
      %344 = vmatpush1.bf16.msra.mxu0 0
      %345 = vmatprep.subr.bf16.mxu0 0
      %346 = vmatpush1.bf16.msra.mxu0 0
      %347 = vmatprep.subr.bf16.mxu0 0
      %348 = vmatpush1.bf16.msra.mxu0 0
      %349 = vmatprep.subr.bf16.mxu0 0
      %350 = vmatpush1.bf16.msra.mxu0 0
      %351 = vmatprep.subr.bf16.mxu0 0
      %352 = vmatpush1.bf16.msra.mxu0 0
      %353 = vmatprep.subr.bf16.mxu0 0
      %354 = vmatpush1.bf16.msra.mxu0 0
      %355 = vmatprep.subr.bf16.mxu0 0
      %356 = vmatpush1.bf16.msra.mxu0 0
      %357 = vmatprep.subr.bf16.mxu0 0
      %358 = vmatpush1.bf16.msra.mxu0 0
      %359 = vmatprep.subr.bf16.mxu0 0
      %360 = vmatpush1.bf16.msra.mxu0 0
      %361 = vmatprep.subr.bf16.mxu0 0
      %362 = vmatpush1.bf16.msra.mxu0 0
      %363 = vmatprep.subr.bf16.mxu0 0
      %364 = vmatpush1.bf16.msra.mxu0 0
      %365 = vmatprep.subr.bf16.mxu0 0
      %366 = vmatpush1.bf16.msra.mxu0 0
      %367 = vmatprep.subr.bf16.mxu0 0
      %368 = vmatpush1.bf16.msra.mxu0 0
      %369 = vmatprep.subr.bf16.mxu0 0
      %370 = vmatpush1.bf16.msra.mxu0 0
      %371 = vmatprep.mubr.bf16.mxu0 0
      %372 = vmatmul.mubr.bf16.gmra.mrb[0].mxu0 %v318
      %v373 = vpop.f32.mrb[0].mxu0
      %v374 = vadd.f32 %v314, %v373
      %v375 = vpop.f32.mrb[0].mxu0
      %v376 = vadd.f32 %v314, %v375
      %v377 = vpop.f32.mrb[0].mxu0
      %v378 = vpop.f32.mrb[0].mxu0
      %379 = vdwg.mxu0
      %380 = vmatprep.subr.bf16.mxu0 %v334
      %381 = vmatpush1.bf16.msra.mxu0 %v331
      %382 = vmatprep.subr.bf16.mxu0 0
      %383 = vmatpush1.bf16.msra.mxu0 0
      %384 = vmatprep.subr.bf16.mxu0 0
      %385 = vmatpush1.bf16.msra.mxu0 0
      %386 = vmatprep.subr.bf16.mxu0 0
      %387 = vmatpush1.bf16.msra.mxu0 0
      %388 = vmatprep.subr.bf16.mxu0 0
      %389 = vmatpush1.bf16.msra.mxu0 0
      %390 = vmatprep.subr.bf16.mxu0 0
      %391 = vmatpush1.bf16.msra.mxu0 0
      %392 = vmatprep.subr.bf16.mxu0 0
      %393 = vmatpush1.bf16.msra.mxu0 0
      %394 = vmatprep.subr.bf16.mxu0 0
      %395 = vmatpush1.bf16.msra.mxu0 0
      %396 = vmatprep.subr.bf16.mxu0 0
      %397 = vmatpush1.bf16.msra.mxu0 0
      %398 = vmatprep.subr.bf16.mxu0 0
      %399 = vmatpush1.bf16.msra.mxu0 0
      %400 = vmatprep.subr.bf16.mxu0 0
      %401 = vmatpush1.bf16.msra.mxu0 0
      %402 = vmatprep.subr.bf16.mxu0 0
      %403 = vmatpush1.bf16.msra.mxu0 0
      %404 = vmatprep.subr.bf16.mxu0 0
      %405 = vmatpush1.bf16.msra.mxu0 0
      %406 = vmatprep.subr.bf16.mxu0 0
      %407 = vmatpush1.bf16.msra.mxu0 0
      %408 = vmatprep.subr.bf16.mxu0 0
      %409 = vmatpush1.bf16.msra.mxu0 0
      %410 = vmatprep.subr.bf16.mxu0 0
      %411 = vmatpush1.bf16.msra.mxu0 0
      %412 = vmatprep.mubr.bf16.mxu0 0
      %413 = vmatmul.mubr.bf16.gmra.mrb[0].mxu0 %v318
      %v414 = vpop.f32.mrb[0].mxu0
      %v415 = vadd.f32 %v314, %v414
      %v416 = vpop.f32.mrb[0].mxu0
      %v417 = vadd.f32 %v314, %v416
      %v418 = vpop.f32.mrb[0].mxu0
      %v419 = vpop.f32.mrb[0].mxu0
      %420 = vdwg.mxu0
      %421 = vmatprep.subr.bf16.mxu0 0
      %422 = vmatpush1.bf16.msra.mxu0 %v337
      %423 = vmatprep.subr.bf16.mxu0 0
      %424 = vmatpush1.bf16.msra.mxu0 0
      %425 = vmatprep.subr.bf16.mxu0 0
      %426 = vmatpush1.bf16.msra.mxu0 0
      %427 = vmatprep.subr.bf16.mxu0 0
      %428 = vmatpush1.bf16.msra.mxu0 0
      %429 = vmatprep.subr.bf16.mxu0 0
      %430 = vmatpush1.bf16.msra.mxu0 0
      %431 = vmatprep.subr.bf16.mxu0 0
      %432 = vmatpush1.bf16.msra.mxu0 0
      %433 = vmatprep.subr.bf16.mxu0 0
      %434 = vmatpush1.bf16.msra.mxu0 0
      %435 = vmatprep.subr.bf16.mxu0 0
      %436 = vmatpush1.bf16.msra.mxu0 0
      %437 = vmatprep.subr.bf16.mxu0 0
      %438 = vmatpush1.bf16.msra.mxu0 0
      %439 = vmatprep.subr.bf16.mxu0 0
      %440 = vmatpush1.bf16.msra.mxu0 0
      %441 = vmatprep.subr.bf16.mxu0 0
      %442 = vmatpush1.bf16.msra.mxu0 0
      %443 = vmatprep.subr.bf16.mxu0 0
      %444 = vmatpush1.bf16.msra.mxu0 0
      %445 = vmatprep.subr.bf16.mxu0 0
      %446 = vmatpush1.bf16.msra.mxu0 0
      %447 = vmatprep.subr.bf16.mxu0 0
      %448 = vmatpush1.bf16.msra.mxu0 0
      %449 = vmatprep.subr.bf16.mxu0 0
      %450 = vmatpush1.bf16.msra.mxu0 0
      %451 = vmatprep.subr.bf16.mxu0 0
      %452 = vmatpush1.bf16.msra.mxu0 0
      %453 = vmatprep.mubr.bf16.mxu0 0
      %454 = vmatmul.mubr.bf16.gmra.mrb[0].mxu0 %v318
      %v455 = vpop.f32.mrb[0].mxu0
      %v456 = vadd.f32 %v314, %v455
      %v457 = vpop.f32.mrb[0].mxu0
      %v458 = vpop.f32.mrb[0].mxu0
      %v459 = vpop.f32.mrb[0].mxu0
      %460 = vdwg.mxu0
      %vm461 = vcmp.gt.f32.partialorder %v374, 0.0
      %vm462 = vcmp.gt.f32.partialorder %v376, 0.0
      %vm463 = vcmp.gt.f32.partialorder %v415, 0.0
      %vm464 = vcmp.gt.f32.partialorder %v417, 0.0
      %vm465 = vcmp.gt.f32.partialorder %v456, 0.0
      %v466 = vmin.f32 %v374, 0.0
      %v467 = vmin.f32 %v376, 0.0
      %v468 = vmin.f32 %v415, 0.0
      %v469 = vmin.f32 %v417, 0.0
      %v470 = vmin.f32 %v456, 0.0
      %v471 = vmul.f32 %v466, 1.442695
      %v472 = vpow.pop %v471
      %v473 = vmul.f32 %v467, 1.442695
      %v474 = vpow.pop %v473
      %v475 = vmul.f32 %v468, 1.442695
      %v476 = vpow.pop %v475
      %v477 = vmul.f32 %v469, 1.442695
      %v478 = vpow.pop %v477
      %v479 = vmul.f32 %v470, 1.442695
      %v480 = vpow.pop %v479
      %v481 = vsub.f32 %v472, 1.0
      %v482 = vsub.f32 %v474, 1.0
      %v483 = vsub.f32 %v476, 1.0
      %v484 = vsub.f32 %v478, 1.0
      %v485 = vsub.f32 %v480, 1.0
      %v486 = vsel %vm461, %v374, %v481
      %v487 = vsel %vm462, %v376, %v482
      %v488 = vsel %vm463, %v415, %v483
      %v489 = vsel %vm464, %v417, %v484
      %v490 = vsel %vm465, %v456, %v485
      %491 = vst.msk [vmem:[#allocation4] sm:$0xff] %vm230, 0.0
      %492 = vst.msk [vmem:[#allocation4 + $0x28] sm:$0xff] %vm230, 0.0
      %493 = vst.msk [vmem:[#allocation4 + $0x50] sm:$0xff] %vm230, 0.0
      %vm494 = vcmask 44032
      %495 = vst.msk [vmem:[#allocation4 + $0x78] sm:$0xf] %vm494, 0.0
      %501 = vrot.lane.b32.xlu0 %v486, 6
      %v502 = vpop.permute.xlu0 %501
      %503 = vrot.lane.b32.xlu0 %v487, 6
      %v504 = vpop.permute.xlu0 %503
      %505 = vrot.lane.b32.xlu0 %v488, 6
      %v506 = vpop.permute.xlu0 %505
      %507 = vrot.lane.b32.xlu0 %v489, 6
      %v508 = vpop.permute.xlu0 %507
      %509 = vrot.lane.b32.xlu0 %v490, 6
      %v510 = vpop.permute.xlu0 %509
      %v511 = vsel %vm230, %v502, %v504
      %v512 = vsel %vm230, %v504, %v506
      %v513 = vsel %vm230, %v506, %v508
      %v514 = vsel %vm230, %v508, %v510
      %vm520 = vcmask 1043504
      %521 = vst.msk [vmem:[#allocation4] sm:$0xf] %vm520, %v502
      %522 = vst [vmem:[#allocation4 + $0x8] sm:$0xf] %v511
      %523 = vst [vmem:[#allocation4 + $0x10] sm:$0xf] %v512
      %524 = vst [vmem:[#allocation4 + $0x18] sm:$0xf] %v513
      %525 = vst [vmem:[#allocation4 + $0x20] sm:$0xf] %v514
      %v526 = vrot.slane %v486, 4
      %v527 = vrot.slane %v487, 4
      %v528 = vrot.slane %v488, 4
      %v529 = vrot.slane %v489, 4
      %v530 = vrot.slane %v490, 4
      %531 = vrot.lane.b32.xlu0 %v526, 5
      %v532 = vpop.permute.xlu0 %531
      %533 = vrot.lane.b32.xlu0 %v527, 5
      %v534 = vpop.permute.xlu0 %533
      %535 = vrot.lane.b32.xlu0 %v528, 5
      %v536 = vpop.permute.xlu0 %535
      %537 = vrot.lane.b32.xlu0 %v529, 5
      %v538 = vpop.permute.xlu0 %537
      %539 = vrot.lane.b32.xlu0 %v530, 5
      %v540 = vpop.permute.xlu0 %539
      %v541 = vsel %vm242, %v532, %v534
      %v542 = vsel %vm242, %v534, %v536
      %v543 = vsel %vm242, %v536, %v538
      %v544 = vsel %vm242, %v538, %v540
      %vm550 = vcmask 1047596
      %551 = vst.msk [vmem:[#allocation4] sm:$0xf0] %vm550, %v532
      %552 = vst [vmem:[#allocation4 + $0x8] sm:$0xf0] %v541
      %553 = vst [vmem:[#allocation4 + $0x10] sm:$0xf0] %v542
      %554 = vst [vmem:[#allocation4 + $0x18] sm:$0xf0] %v543
      %555 = vst [vmem:[#allocation4 + $0x20] sm:$0xf0] %v544
      %556 = vrot.lane.b32.xlu0 %v486, 4
      %v557 = vpop.permute.xlu0 %556
      %558 = vrot.lane.b32.xlu0 %v487, 4
      %v559 = vpop.permute.xlu0 %558
      %560 = vrot.lane.b32.xlu0 %v488, 4
      %v561 = vpop.permute.xlu0 %560
      %562 = vrot.lane.b32.xlu0 %v489, 4
      %v563 = vpop.permute.xlu0 %562
      %564 = vrot.lane.b32.xlu0 %v490, 4
      %v565 = vpop.permute.xlu0 %564
      %v566 = vsel %vm253, %v557, %v559
      %v567 = vsel %vm253, %v559, %v561
      %v568 = vsel %vm253, %v561, %v563
      %v569 = vsel %vm253, %v563, %v565
      %vm575 = vcmask 1043488
      %576 = vst.msk [vmem:[#allocation4 + $0x28] sm:$0xf] %vm575, %v557
      %577 = vst [vmem:[#allocation4 + $0x30] sm:$0xf] %v566
      %578 = vst [vmem:[#allocation4 + $0x38] sm:$0xf] %v567
      %579 = vst [vmem:[#allocation4 + $0x40] sm:$0xf] %v568
      %580 = vst [vmem:[#allocation4 + $0x48] sm:$0xf] %v569
      %581 = vrot.lane.b32.xlu0 %v526, 3
      %v582 = vpop.permute.xlu0 %581
      %583 = vrot.lane.b32.xlu0 %v527, 3
      %v584 = vpop.permute.xlu0 %583
      %585 = vrot.lane.b32.xlu0 %v528, 3
      %v586 = vpop.permute.xlu0 %585
      %587 = vrot.lane.b32.xlu0 %v529, 3
      %v588 = vpop.permute.xlu0 %587
      %589 = vrot.lane.b32.xlu0 %v530, 3
      %v590 = vpop.permute.xlu0 %589
      %v591 = vsel %vm264, %v582, %v584
      %v592 = vsel %vm264, %v584, %v586
      %v593 = vsel %vm264, %v586, %v588
      %v594 = vsel %vm264, %v588, %v590
      %vm600 = vcmask 1047580
      %601 = vst.msk [vmem:[#allocation4 + $0x28] sm:$0xf0] %vm600, %v582
      %602 = vst [vmem:[#allocation4 + $0x30] sm:$0xf0] %v591
      %603 = vst [vmem:[#allocation4 + $0x38] sm:$0xf0] %v592
      %604 = vst [vmem:[#allocation4 + $0x40] sm:$0xf0] %v593
      %605 = vst [vmem:[#allocation4 + $0x48] sm:$0xf0] %v594
      %606 = vrot.lane.b32.xlu0 %v486, 2
      %v607 = vpop.permute.xlu0 %606
      %608 = vrot.lane.b32.xlu0 %v487, 2
      %v609 = vpop.permute.xlu0 %608
      %610 = vrot.lane.b32.xlu0 %v488, 2
      %v611 = vpop.permute.xlu0 %610
      %612 = vrot.lane.b32.xlu0 %v489, 2
      %v613 = vpop.permute.xlu0 %612
      %614 = vrot.lane.b32.xlu0 %v490, 2
      %v615 = vpop.permute.xlu0 %614
      %v616 = vsel %vm275, %v607, %v609
      %v617 = vsel %vm275, %v609, %v611
      %v618 = vsel %vm275, %v611, %v613
      %v619 = vsel %vm275, %v613, %v615
      %vm625 = vcmask 1043472
      %626 = vst.msk [vmem:[#allocation4 + $0x50] sm:$0xf] %vm625, %v607
      %627 = vst [vmem:[#allocation4 + $0x58] sm:$0xf] %v616
      %628 = vst [vmem:[#allocation4 + $0x60] sm:$0xf] %v617
      %629 = vst [vmem:[#allocation4 + $0x68] sm:$0xf] %v618
      %630 = vst [vmem:[#allocation4 + $0x70] sm:$0xf] %v619
      %631 = vrot.lane.b32.xlu0 %v526, 1
      %v632 = vpop.permute.xlu0 %631
      %633 = vrot.lane.b32.xlu0 %v527, 1
      %v634 = vpop.permute.xlu0 %633
      %635 = vrot.lane.b32.xlu0 %v528, 1
      %v636 = vpop.permute.xlu0 %635
      %637 = vrot.lane.b32.xlu0 %v529, 1
      %v638 = vpop.permute.xlu0 %637
      %639 = vrot.lane.b32.xlu0 %v530, 1
      %v640 = vpop.permute.xlu0 %639
      %v641 = vsel %vm286, %v632, %v634
      %v642 = vsel %vm286, %v634, %v636
      %v643 = vsel %vm286, %v636, %v638
      %v644 = vsel %vm286, %v638, %v640
      %vm650 = vcmask 1047564
      %651 = vst.msk [vmem:[#allocation4 + $0x50] sm:$0xf0] %vm650, %v632
      %652 = vst [vmem:[#allocation4 + $0x58] sm:$0xf0] %v641
      %653 = vst [vmem:[#allocation4 + $0x60] sm:$0xf0] %v642
      %654 = vst [vmem:[#allocation4 + $0x68] sm:$0xf0] %v643
      %655 = vst [vmem:[#allocation4 + $0x70] sm:$0xf0] %v644
      %656 = vst [vmem:[#allocation4 + $0x78] sm:$0xf] %v486
      %657 = vst [vmem:[#allocation4 + $0x80] sm:$0xf] %v487
      %658 = vst [vmem:[#allocation4 + $0x88] sm:$0xf] %v488
      %659 = vst [vmem:[#allocation4 + $0x90] sm:$0xf] %v489
      %660 = vst [vmem:[#allocation4 + $0x98] sm:$0xf] %v490
      %v661 = vld [vmem:[#allocation4] sm:$0xff]
      %v662 = vld [vmem:[#allocation4 + $0x8] sm:$0xff]
      %v663 = vld [vmem:[#allocation4 + $0x10] sm:$0xff]
      %v664 = vld [vmem:[#allocation4 + $0x18] sm:$0xff]
      %v665 = vld [vmem:[#allocation4 + $0x20] sm:$0xff]
      %v666 = vld [vmem:[#allocation4 + $0x28] sm:$0xff]
      %v667 = vld [vmem:[#allocation4 + $0x30] sm:$0xff]
      %v668 = vld [vmem:[#allocation4 + $0x38] sm:$0xff]
      %v669 = vld [vmem:[#allocation4 + $0x40] sm:$0xff]
      %v670 = vld [vmem:[#allocation4 + $0x48] sm:$0xff]
      %v671 = vld [vmem:[#allocation4 + $0x50] sm:$0xff]
      %v672 = vld [vmem:[#allocation4 + $0x58] sm:$0xff]
      %v673 = vld [vmem:[#allocation4 + $0x60] sm:$0xff]
      %v674 = vld [vmem:[#allocation4 + $0x68] sm:$0xff]
      %v675 = vld [vmem:[#allocation4 + $0x70] sm:$0xff]
      %v676 = vld [vmem:[#allocation4 + $0x78] sm:$0xf]
      %v677 = vld [vmem:[#allocation4 + $0x80] sm:$0xf]
      %v678 = vld [vmem:[#allocation4 + $0x88] sm:$0xf]
      %v679 = vld [vmem:[#allocation4 + $0x90] sm:$0xf]
      %v680 = vld [vmem:[#allocation4 + $0x98] sm:$0xf]
      %v681 = vpack.c.bf16 %v666, %v661
      %v682 = vpack.c.bf16 %v667, %v662
      %v683 = vpack.c.bf16 %v668, %v663
      %v684 = vpack.c.bf16 %v669, %v664
      %v685 = vpack.c.bf16 %v670, %v665
      %v686 = vpack.c.bf16 %v676, %v671
      %v687 = vpack.c.bf16 %v677, %v672
      %v688 = vpack.c.bf16 %v678, %v673
      %v689 = vpack.c.bf16 %v679, %v674
      %v690 = vpack.c.bf16 %v680, %v675
      %v691 = vld [vmem:[%s1 + $0x10] sm:$0x3]
      %v692 = vld [vmem:[%s2] sm:$0xf]
      %694 = vset.pattern.permute.xlu0 1
      %695 = vperm.xlu0 %694, %v692
      %v696 = vpop.permute.xlu0 %695
      %vm698 = vcmask 228352
      %v700 = vsel %vm698, %v691, 0
      %vm702 = vcmask 1045504
      %v704 = vsel %vm702, %v686, 0
      %v707 = vsel %vm702, %v687, 0
      %v710 = vsel %vm702, %v688, 0
      %v713 = vsel %vm702, %v689, 0
      %v716 = vsel %vm702, %v690, 0
      %718 = vmatprep.subr.bf16.mxu0 %v682
      %719 = vmatpush1.bf16.msra.mxu0 %v681
      %720 = vmatprep.subr.bf16.mxu0 %v707
      %721 = vmatpush1.bf16.msra.mxu0 %v704
      %722 = vmatprep.subr.bf16.mxu0 0
      %723 = vmatpush1.bf16.msra.mxu0 0
      %724 = vmatprep.subr.bf16.mxu0 0
      %725 = vmatpush1.bf16.msra.mxu0 0
      %726 = vmatprep.subr.bf16.mxu0 0
      %727 = vmatpush1.bf16.msra.mxu0 0
      %728 = vmatprep.subr.bf16.mxu0 0
      %729 = vmatpush1.bf16.msra.mxu0 0
      %730 = vmatprep.subr.bf16.mxu0 0
      %731 = vmatpush1.bf16.msra.mxu0 0
      %732 = vmatprep.subr.bf16.mxu0 0
      %733 = vmatpush1.bf16.msra.mxu0 0
      %734 = vmatprep.subr.bf16.mxu0 0
      %735 = vmatpush1.bf16.msra.mxu0 0
      %736 = vmatprep.subr.bf16.mxu0 0
      %737 = vmatpush1.bf16.msra.mxu0 0
      %738 = vmatprep.subr.bf16.mxu0 0
      %739 = vmatpush1.bf16.msra.mxu0 0
      %740 = vmatprep.subr.bf16.mxu0 0
      %741 = vmatpush1.bf16.msra.mxu0 0
      %742 = vmatprep.subr.bf16.mxu0 0
      %743 = vmatpush1.bf16.msra.mxu0 0
      %744 = vmatprep.subr.bf16.mxu0 0
      %745 = vmatpush1.bf16.msra.mxu0 0
      %746 = vmatprep.subr.bf16.mxu0 0
      %747 = vmatpush1.bf16.msra.mxu0 0
      %748 = vmatprep.subr.bf16.mxu0 0
      %749 = vmatpush1.bf16.msra.mxu0 0
      %750 = vmatprep.mubr.bf16.mxu0 0
      %751 = vmatmul.mubr.bf16.gmra.mrb[0].mxu0 %v700
      %v752 = vpop.f32.mrb[0].mxu0
      %v753 = vadd.f32 %v696, %v752
      %v754 = vpop.f32.mrb[0].mxu0
      %v755 = vadd.f32 %v696, %v754
      %v756 = vpop.f32.mrb[0].mxu0
      %v757 = vpop.f32.mrb[0].mxu0
      %758 = vdwg.mxu0
      %759 = vmatprep.subr.bf16.mxu0 %v684
      %760 = vmatpush1.bf16.msra.mxu0 %v683
      %761 = vmatprep.subr.bf16.mxu0 %v713
      %762 = vmatpush1.bf16.msra.mxu0 %v710
      %763 = vmatprep.subr.bf16.mxu0 0
      %764 = vmatpush1.bf16.msra.mxu0 0
      %765 = vmatprep.subr.bf16.mxu0 0
      %766 = vmatpush1.bf16.msra.mxu0 0
      %767 = vmatprep.subr.bf16.mxu0 0
      %768 = vmatpush1.bf16.msra.mxu0 0
      %769 = vmatprep.subr.bf16.mxu0 0
      %770 = vmatpush1.bf16.msra.mxu0 0
      %771 = vmatprep.subr.bf16.mxu0 0
      %772 = vmatpush1.bf16.msra.mxu0 0
      %773 = vmatprep.subr.bf16.mxu0 0
      %774 = vmatpush1.bf16.msra.mxu0 0
      %775 = vmatprep.subr.bf16.mxu0 0
      %776 = vmatpush1.bf16.msra.mxu0 0
      %777 = vmatprep.subr.bf16.mxu0 0
      %778 = vmatpush1.bf16.msra.mxu0 0
      %779 = vmatprep.subr.bf16.mxu0 0
      %780 = vmatpush1.bf16.msra.mxu0 0
      %781 = vmatprep.subr.bf16.mxu0 0
      %782 = vmatpush1.bf16.msra.mxu0 0
      %783 = vmatprep.subr.bf16.mxu0 0
      %784 = vmatpush1.bf16.msra.mxu0 0
      %785 = vmatprep.subr.bf16.mxu0 0
      %786 = vmatpush1.bf16.msra.mxu0 0
      %787 = vmatprep.subr.bf16.mxu0 0
      %788 = vmatpush1.bf16.msra.mxu0 0
      %789 = vmatprep.subr.bf16.mxu0 0
      %790 = vmatpush1.bf16.msra.mxu0 0
      %791 = vmatprep.mubr.bf16.mxu0 0
      %792 = vmatmul.mubr.bf16.gmra.mrb[0].mxu0 %v700
      %v793 = vpop.f32.mrb[0].mxu0
      %v794 = vadd.f32 %v696, %v793
      %v795 = vpop.f32.mrb[0].mxu0
      %v796 = vadd.f32 %v696, %v795
      %v797 = vpop.f32.mrb[0].mxu0
      %v798 = vpop.f32.mrb[0].mxu0
      %799 = vdwg.mxu0
      %800 = vmatprep.subr.bf16.mxu0 0
      %801 = vmatpush1.bf16.msra.mxu0 %v685
      %802 = vmatprep.subr.bf16.mxu0 0
      %803 = vmatpush1.bf16.msra.mxu0 %v716
      %804 = vmatprep.subr.bf16.mxu0 0
      %805 = vmatpush1.bf16.msra.mxu0 0
      %806 = vmatprep.subr.bf16.mxu0 0
      %807 = vmatpush1.bf16.msra.mxu0 0
      %808 = vmatprep.subr.bf16.mxu0 0
      %809 = vmatpush1.bf16.msra.mxu0 0
      %810 = vmatprep.subr.bf16.mxu0 0
      %811 = vmatpush1.bf16.msra.mxu0 0
      %812 = vmatprep.subr.bf16.mxu0 0
      %813 = vmatpush1.bf16.msra.mxu0 0
      %814 = vmatprep.subr.bf16.mxu0 0
      %815 = vmatpush1.bf16.msra.mxu0 0
      %816 = vmatprep.subr.bf16.mxu0 0
      %817 = vmatpush1.bf16.msra.mxu0 0
      %818 = vmatprep.subr.bf16.mxu0 0
      %819 = vmatpush1.bf16.msra.mxu0 0
      %820 = vmatprep.subr.bf16.mxu0 0
      %821 = vmatpush1.bf16.msra.mxu0 0
      %822 = vmatprep.subr.bf16.mxu0 0
      %823 = vmatpush1.bf16.msra.mxu0 0
      %824 = vmatprep.subr.bf16.mxu0 0
      %825 = vmatpush1.bf16.msra.mxu0 0
      %826 = vmatprep.subr.bf16.mxu0 0
      %827 = vmatpush1.bf16.msra.mxu0 0
      %828 = vmatprep.subr.bf16.mxu0 0
      %829 = vmatpush1.bf16.msra.mxu0 0
      %830 = vmatprep.subr.bf16.mxu0 0
      %831 = vmatpush1.bf16.msra.mxu0 0
      %832 = vmatprep.mubr.bf16.mxu0 0
      %833 = vmatmul.mubr.bf16.gmra.mrb[0].mxu0 %v700
      %v834 = vpop.f32.mrb[0].mxu0
      %v835 = vadd.f32 %v696, %v834
      %v836 = vpop.f32.mrb[0].mxu0
      %v837 = vpop.f32.mrb[0].mxu0
      %v838 = vpop.f32.mrb[0].mxu0
      %839 = vdwg.mxu0
      %vm840 = vcmp.gt.f32.partialorder %v753, 0.0
      %vm841 = vcmp.gt.f32.partialorder %v755, 0.0
      %vm842 = vcmp.gt.f32.partialorder %v794, 0.0
      %vm843 = vcmp.gt.f32.partialorder %v796, 0.0
      %vm844 = vcmp.gt.f32.partialorder %v835, 0.0
      %v845 = vmin.f32 %v753, 0.0
      %v846 = vmin.f32 %v755, 0.0
      %v847 = vmin.f32 %v794, 0.0
      %v848 = vmin.f32 %v796, 0.0
      %v849 = vmin.f32 %v835, 0.0
      %v850 = vmul.f32 %v845, 1.442695
      %v851 = vpow.pop %v850
      %v852 = vmul.f32 %v846, 1.442695
      %v853 = vpow.pop %v852
      %v854 = vmul.f32 %v847, 1.442695
      %v855 = vpow.pop %v854
      %v856 = vmul.f32 %v848, 1.442695
      %v857 = vpow.pop %v856
      %v858 = vmul.f32 %v849, 1.442695
      %v859 = vpow.pop %v858
      %v860 = vsub.f32 %v851, 1.0
      %v861 = vsub.f32 %v853, 1.0
      %v862 = vsub.f32 %v855, 1.0
      %v863 = vsub.f32 %v857, 1.0
      %v864 = vsub.f32 %v859, 1.0
      %v865 = vsel %vm840, %v753, %v860
      %v866 = vsel %vm841, %v755, %v861
      %v867 = vsel %vm842, %v794, %v862
      %v868 = vsel %vm843, %v796, %v863
      %v869 = vsel %vm844, %v835, %v864
      %v870 = vpack.c.bf16 %v865, %v865
      %v871 = vpack.c.bf16 %v866, %v866
      %v872 = vpack.c.bf16 %v867, %v867
      %v873 = vpack.c.bf16 %v868, %v868
      %v874 = vpack.c.bf16 %v869, %v869
      %v875 = vld [vmem:[%s1 + $0x20] sm:$0x3]
      %876 = vset.pattern.permute.xlu0 2
      %877 = vperm.xlu0 %876, %v692
      %v878 = vpop.permute.xlu0 %877
      %v881 = vsel %vm253, %v875, 0
      %vm883 = vcmask 1041408
      %v885 = vsel %vm883, %v870, 0
      %v888 = vsel %vm883, %v871, 0
      %v891 = vsel %vm883, %v872, 0
      %v894 = vsel %vm883, %v873, 0
      %v897 = vsel %vm883, %v874, 0
      %899 = vmatprep.subr.bf16.mxu0 %v888
      %900 = vmatpush1.bf16.msra.mxu0 %v885
      %901 = vmatprep.subr.bf16.mxu0 0
      %902 = vmatpush1.bf16.msra.mxu0 0
      %903 = vmatprep.subr.bf16.mxu0 0
      %904 = vmatpush1.bf16.msra.mxu0 0
      %905 = vmatprep.subr.bf16.mxu0 0
      %906 = vmatpush1.bf16.msra.mxu0 0
      %907 = vmatprep.subr.bf16.mxu0 0
      %908 = vmatpush1.bf16.msra.mxu0 0
      %909 = vmatprep.subr.bf16.mxu0 0
      %910 = vmatpush1.bf16.msra.mxu0 0
      %911 = vmatprep.subr.bf16.mxu0 0
      %912 = vmatpush1.bf16.msra.mxu0 0
      %913 = vmatprep.subr.bf16.mxu0 0
      %914 = vmatpush1.bf16.msra.mxu0 0
      %915 = vmatprep.subr.bf16.mxu0 0
      %916 = vmatpush1.bf16.msra.mxu0 0
      %917 = vmatprep.subr.bf16.mxu0 0
      %918 = vmatpush1.bf16.msra.mxu0 0
      %919 = vmatprep.subr.bf16.mxu0 0
      %920 = vmatpush1.bf16.msra.mxu0 0
      %921 = vmatprep.subr.bf16.mxu0 0
      %922 = vmatpush1.bf16.msra.mxu0 0
      %923 = vmatprep.subr.bf16.mxu0 0
      %924 = vmatpush1.bf16.msra.mxu0 0
      %925 = vmatprep.subr.bf16.mxu0 0
      %926 = vmatpush1.bf16.msra.mxu0 0
      %927 = vmatprep.subr.bf16.mxu0 0
      %928 = vmatpush1.bf16.msra.mxu0 0
      %929 = vmatprep.subr.bf16.mxu0 0
      %930 = vmatpush1.bf16.msra.mxu0 0
      %931 = vmatprep.mubr.bf16.mxu0 0
      %932 = vmatmul.mubr.bf16.gmra.mrb[0].mxu0 %v881
      %v933 = vpop.f32.mrb[0].mxu0
      %v934 = vadd.f32 %v878, %v933
      %v935 = vpop.f32.mrb[0].mxu0
      %v936 = vadd.f32 %v878, %v935
      %v937 = vpop.f32.mrb[0].mxu0
      %v938 = vpop.f32.mrb[0].mxu0
      %939 = vdwg.mxu0
      %940 = vmatprep.subr.bf16.mxu0 %v894
      %941 = vmatpush1.bf16.msra.mxu0 %v891
      %942 = vmatprep.subr.bf16.mxu0 0
      %943 = vmatpush1.bf16.msra.mxu0 0
      %944 = vmatprep.subr.bf16.mxu0 0
      %945 = vmatpush1.bf16.msra.mxu0 0
      %946 = vmatprep.subr.bf16.mxu0 0
      %947 = vmatpush1.bf16.msra.mxu0 0
      %948 = vmatprep.subr.bf16.mxu0 0
      %949 = vmatpush1.bf16.msra.mxu0 0
      %950 = vmatprep.subr.bf16.mxu0 0
      %951 = vmatpush1.bf16.msra.mxu0 0
      %952 = vmatprep.subr.bf16.mxu0 0
      %953 = vmatpush1.bf16.msra.mxu0 0
      %954 = vmatprep.subr.bf16.mxu0 0
      %955 = vmatpush1.bf16.msra.mxu0 0
      %956 = vmatprep.subr.bf16.mxu0 0
      %957 = vmatpush1.bf16.msra.mxu0 0
      %958 = vmatprep.subr.bf16.mxu0 0
      %959 = vmatpush1.bf16.msra.mxu0 0
      %960 = vmatprep.subr.bf16.mxu0 0
      %961 = vmatpush1.bf16.msra.mxu0 0
      %962 = vmatprep.subr.bf16.mxu0 0
      %963 = vmatpush1.bf16.msra.mxu0 0
      %964 = vmatprep.subr.bf16.mxu0 0
      %965 = vmatpush1.bf16.msra.mxu0 0
      %966 = vmatprep.subr.bf16.mxu0 0
      %967 = vmatpush1.bf16.msra.mxu0 0
      %968 = vmatprep.subr.bf16.mxu0 0
      %969 = vmatpush1.bf16.msra.mxu0 0
      %970 = vmatprep.subr.bf16.mxu0 0
      %971 = vmatpush1.bf16.msra.mxu0 0
      %972 = vmatprep.mubr.bf16.mxu0 0
      %973 = vmatmul.mubr.bf16.gmra.mrb[0].mxu0 %v881
      %v974 = vpop.f32.mrb[0].mxu0
      %v975 = vadd.f32 %v878, %v974
      %v976 = vpop.f32.mrb[0].mxu0
      %v977 = vadd.f32 %v878, %v976
      %v978 = vpop.f32.mrb[0].mxu0
      %v979 = vpop.f32.mrb[0].mxu0
      %980 = vdwg.mxu0
      %981 = vmatprep.subr.bf16.mxu0 0
      %982 = vmatpush1.bf16.msra.mxu0 %v897
      %983 = vmatprep.subr.bf16.mxu0 0
      %984 = vmatpush1.bf16.msra.mxu0 0
      %985 = vmatprep.subr.bf16.mxu0 0
      %986 = vmatpush1.bf16.msra.mxu0 0
      %987 = vmatprep.subr.bf16.mxu0 0
      %988 = vmatpush1.bf16.msra.mxu0 0
      %989 = vmatprep.subr.bf16.mxu0 0
      %990 = vmatpush1.bf16.msra.mxu0 0
      %991 = vmatprep.subr.bf16.mxu0 0
      %992 = vmatpush1.bf16.msra.mxu0 0
      %993 = vmatprep.subr.bf16.mxu0 0
      %994 = vmatpush1.bf16.msra.mxu0 0
      %995 = vmatprep.subr.bf16.mxu0 0
      %996 = vmatpush1.bf16.msra.mxu0 0
      %997 = vmatprep.subr.bf16.mxu0 0
      %998 = vmatpush1.bf16.msra.mxu0 0
      %999 = vmatprep.subr.bf16.mxu0 0
      %1000 = vmatpush1.bf16.msra.mxu0 0
      %1001 = vmatprep.subr.bf16.mxu0 0
      %1002 = vmatpush1.bf16.msra.mxu0 0
      %1003 = vmatprep.subr.bf16.mxu0 0
      %1004 = vmatpush1.bf16.msra.mxu0 0
      %1005 = vmatprep.subr.bf16.mxu0 0
      %1006 = vmatpush1.bf16.msra.mxu0 0
      %1007 = vmatprep.subr.bf16.mxu0 0
      %1008 = vmatpush1.bf16.msra.mxu0 0
      %1009 = vmatprep.subr.bf16.mxu0 0
      %1010 = vmatpush1.bf16.msra.mxu0 0
      %1011 = vmatprep.subr.bf16.mxu0 0
      %1012 = vmatpush1.bf16.msra.mxu0 0
      %1013 = vmatprep.mubr.bf16.mxu0 0
      %1014 = vmatmul.mubr.bf16.gmra.mrb[0].mxu0 %v881
      %v1015 = vpop.f32.mrb[0].mxu0
      %v1016 = vadd.f32 %v878, %v1015
      %v1017 = vpop.f32.mrb[0].mxu0
      %v1018 = vpop.f32.mrb[0].mxu0
      %v1019 = vpop.f32.mrb[0].mxu0
      %1020 = vdwg.mxu0
      %vm1021 = vcmp.gt.f32.partialorder %v934, 0.0
      %vm1022 = vcmp.gt.f32.partialorder %v936, 0.0
      %vm1023 = vcmp.gt.f32.partialorder %v975, 0.0
      %vm1024 = vcmp.gt.f32.partialorder %v977, 0.0
      %vm1025 = vcmp.gt.f32.partialorder %v1016, 0.0
      %v1026 = vmin.f32 %v934, 0.0
      %v1027 = vmin.f32 %v936, 0.0
      %v1028 = vmin.f32 %v975, 0.0
      %v1029 = vmin.f32 %v977, 0.0
      %v1030 = vmin.f32 %v1016, 0.0
      %v1031 = vmul.f32 %v1026, 1.442695
      %v1032 = vpow.pop %v1031
      %v1033 = vmul.f32 %v1027, 1.442695
      %v1034 = vpow.pop %v1033
      %v1035 = vmul.f32 %v1028, 1.442695
      %v1036 = vpow.pop %v1035
      %v1037 = vmul.f32 %v1029, 1.442695
      %v1038 = vpow.pop %v1037
      %v1039 = vmul.f32 %v1030, 1.442695
      %v1040 = vpow.pop %v1039
      %v1041 = vsub.f32 %v1032, 1.0
      %v1042 = vsub.f32 %v1034, 1.0
      %v1043 = vsub.f32 %v1036, 1.0
      %v1044 = vsub.f32 %v1038, 1.0
      %v1045 = vsub.f32 %v1040, 1.0
      %v1046 = vsel %vm1021, %v934, %v1041
      %v1047 = vsel %vm1022, %v936, %v1042
      %v1048 = vsel %vm1023, %v975, %v1043
      %v1049 = vsel %vm1024, %v977, %v1044
      %v1050 = vsel %vm1025, %v1016, %v1045
      %v1051 = vadd.f32 %v1046, %v486
      %v1052 = vadd.f32 %v1047, %v487
      %v1053 = vadd.f32 %v1048, %v488
      %v1054 = vadd.f32 %v1049, %v489
      %v1055 = vadd.f32 %v1050, %v490
      %vm1056 = vcmask 146432
      %1057 = vst.msk [vmem:[#allocation4] sm:$0xff] %vm1056, 0.0
      %1058 = vst.msk [vmem:[#allocation4 + $0x28] sm:$0xff] %vm1056, 0.0
      %1059 = vst.msk [vmem:[#allocation4 + $0x50] sm:$0xff] %vm1056, 0.0
      %vm1060 = vcmask 142336
      %1061 = vst.msk [vmem:[#allocation4 + $0x78] sm:$0xf] %vm1060, 0.0
      %1067 = vrot.lane.b32.xlu0 %v1051, 18
      %v1068 = vpop.permute.xlu0 %1067
      %1069 = vrot.lane.b32.xlu0 %v1052, 18
      %v1070 = vpop.permute.xlu0 %1069
      %1071 = vrot.lane.b32.xlu0 %v1053, 18
      %v1072 = vpop.permute.xlu0 %1071
      %1073 = vrot.lane.b32.xlu0 %v1054, 18
      %v1074 = vpop.permute.xlu0 %1073
      %1075 = vrot.lane.b32.xlu0 %v1055, 18
      %v1076 = vpop.permute.xlu0 %1075
      %v1077 = vsel %vm1056, %v1068, %v1070
      %v1078 = vsel %vm1056, %v1070, %v1072
      %v1079 = vsel %vm1056, %v1072, %v1074
      %v1080 = vsel %vm1056, %v1074, %v1076
      %vm1086 = vcmask 1043600
      %1087 = vst.msk [vmem:[#allocation4] sm:$0xf] %vm1086, %v1068
      %1088 = vst [vmem:[#allocation4 + $0x8] sm:$0xf] %v1077
      %1089 = vst [vmem:[#allocation4 + $0x10] sm:$0xf] %v1078
      %1090 = vst [vmem:[#allocation4 + $0x18] sm:$0xf] %v1079
      %1091 = vst [vmem:[#allocation4 + $0x20] sm:$0xf] %v1080
      %v1092 = vrot.slane %v1051, 4
      %v1093 = vrot.slane %v1052, 4
      %v1094 = vrot.slane %v1053, 4
      %v1095 = vrot.slane %v1054, 4
      %v1096 = vrot.slane %v1055, 4
      %1097 = vrot.lane.b32.xlu0 %v1092, 15
      %v1098 = vpop.permute.xlu0 %1097
      %1099 = vrot.lane.b32.xlu0 %v1093, 15
      %v1100 = vpop.permute.xlu0 %1099
      %1101 = vrot.lane.b32.xlu0 %v1094, 15
      %v1102 = vpop.permute.xlu0 %1101
      %1103 = vrot.lane.b32.xlu0 %v1095, 15
      %v1104 = vpop.permute.xlu0 %1103
      %1105 = vrot.lane.b32.xlu0 %v1096, 15
      %v1106 = vpop.permute.xlu0 %1105
      %vm1107 = vcmask 121856
      %v1108 = vsel %vm1107, %v1098, %v1100
      %v1109 = vsel %vm1107, %v1100, %v1102
      %v1110 = vsel %vm1107, %v1102, %v1104
      %v1111 = vsel %vm1107, %v1104, %v1106
      %vm1117 = vcmask 1047676
      %1118 = vst.msk [vmem:[#allocation4] sm:$0xf0] %vm1117, %v1098
      %1119 = vst [vmem:[#allocation4 + $0x8] sm:$0xf0] %v1108
      %1120 = vst [vmem:[#allocation4 + $0x10] sm:$0xf0] %v1109
      %1121 = vst [vmem:[#allocation4 + $0x18] sm:$0xf0] %v1110
      %1122 = vst [vmem:[#allocation4 + $0x20] sm:$0xf0] %v1111
      %1123 = vrot.lane.b32.xlu0 %v1051, 12
      %v1124 = vpop.permute.xlu0 %1123
      %1125 = vrot.lane.b32.xlu0 %v1052, 12
      %v1126 = vpop.permute.xlu0 %1125
      %1127 = vrot.lane.b32.xlu0 %v1053, 12
      %v1128 = vpop.permute.xlu0 %1127
      %1129 = vrot.lane.b32.xlu0 %v1054, 12
      %v1130 = vpop.permute.xlu0 %1129
      %1131 = vrot.lane.b32.xlu0 %v1055, 12
      %v1132 = vpop.permute.xlu0 %1131
      %vm1133 = vcmask 97280
      %v1134 = vsel %vm1133, %v1124, %v1126
      %v1135 = vsel %vm1133, %v1126, %v1128
      %v1136 = vsel %vm1133, %v1128, %v1130
      %v1137 = vsel %vm1133, %v1130, %v1132
      %vm1143 = vcmask 1043552
      %1144 = vst.msk [vmem:[#allocation4 + $0x28] sm:$0xf] %vm1143, %v1124
      %1145 = vst [vmem:[#allocation4 + $0x30] sm:$0xf] %v1134
      %1146 = vst [vmem:[#allocation4 + $0x38] sm:$0xf] %v1135
      %1147 = vst [vmem:[#allocation4 + $0x40] sm:$0xf] %v1136
      %1148 = vst [vmem:[#allocation4 + $0x48] sm:$0xf] %v1137
      %1149 = vrot.lane.b32.xlu0 %v1092, 9
      %v1150 = vpop.permute.xlu0 %1149
      %1151 = vrot.lane.b32.xlu0 %v1093, 9
      %v1152 = vpop.permute.xlu0 %1151
      %1153 = vrot.lane.b32.xlu0 %v1094, 9
      %v1154 = vpop.permute.xlu0 %1153
      %1155 = vrot.lane.b32.xlu0 %v1095, 9
      %v1156 = vpop.permute.xlu0 %1155
      %1157 = vrot.lane.b32.xlu0 %v1096, 9
      %v1158 = vpop.permute.xlu0 %1157
      %vm1159 = vcmask 72704
      %v1160 = vsel %vm1159, %v1150, %v1152
      %v1161 = vsel %vm1159, %v1152, %v1154
      %v1162 = vsel %vm1159, %v1154, %v1156
      %v1163 = vsel %vm1159, %v1156, %v1158
      %vm1169 = vcmask 1047628
      %1170 = vst.msk [vmem:[#allocation4 + $0x28] sm:$0xf0] %vm1169, %v1150
      %1171 = vst [vmem:[#allocation4 + $0x30] sm:$0xf0] %v1160
      %1172 = vst [vmem:[#allocation4 + $0x38] sm:$0xf0] %v1161
      %1173 = vst [vmem:[#allocation4 + $0x40] sm:$0xf0] %v1162
      %1174 = vst [vmem:[#allocation4 + $0x48] sm:$0xf0] %v1163
      %1175 = vrot.lane.b32.xlu0 %v1051, 6
      %v1176 = vpop.permute.xlu0 %1175
      %1177 = vrot.lane.b32.xlu0 %v1052, 6
      %v1178 = vpop.permute.xlu0 %1177
      %1179 = vrot.lane.b32.xlu0 %v1053, 6
      %v1180 = vpop.permute.xlu0 %1179
      %1181 = vrot.lane.b32.xlu0 %v1054, 6
      %v1182 = vpop.permute.xlu0 %1181
      %1183 = vrot.lane.b32.xlu0 %v1055, 6
      %v1184 = vpop.permute.xlu0 %1183
      %v1185 = vsel %vm230, %v1176, %v1178
      %v1186 = vsel %vm230, %v1178, %v1180
      %v1187 = vsel %vm230, %v1180, %v1182
      %v1188 = vsel %vm230, %v1182, %v1184
      %1194 = vst.msk [vmem:[#allocation4 + $0x50] sm:$0xf] %vm520, %v1176
      %1195 = vst [vmem:[#allocation4 + $0x58] sm:$0xf] %v1185
      %1196 = vst [vmem:[#allocation4 + $0x60] sm:$0xf] %v1186
      %1197 = vst [vmem:[#allocation4 + $0x68] sm:$0xf] %v1187
      %1198 = vst [vmem:[#allocation4 + $0x70] sm:$0xf] %v1188
      %1199 = vrot.lane.b32.xlu0 %v1092, 3
      %v1200 = vpop.permute.xlu0 %1199
      %1201 = vrot.lane.b32.xlu0 %v1093, 3
      %v1202 = vpop.permute.xlu0 %1201
      %1203 = vrot.lane.b32.xlu0 %v1094, 3
      %v1204 = vpop.permute.xlu0 %1203
      %1205 = vrot.lane.b32.xlu0 %v1095, 3
      %v1206 = vpop.permute.xlu0 %1205
      %1207 = vrot.lane.b32.xlu0 %v1096, 3
      %v1208 = vpop.permute.xlu0 %1207
      %v1209 = vsel %vm264, %v1200, %v1202
      %v1210 = vsel %vm264, %v1202, %v1204
      %v1211 = vsel %vm264, %v1204, %v1206
      %v1212 = vsel %vm264, %v1206, %v1208
      %1218 = vst.msk [vmem:[#allocation4 + $0x50] sm:$0xf0] %vm600, %v1200
      %1219 = vst [vmem:[#allocation4 + $0x58] sm:$0xf0] %v1209
      %1220 = vst [vmem:[#allocation4 + $0x60] sm:$0xf0] %v1210
      %1221 = vst [vmem:[#allocation4 + $0x68] sm:$0xf0] %v1211
      %1222 = vst [vmem:[#allocation4 + $0x70] sm:$0xf0] %v1212
      %1223 = vst [vmem:[#allocation4 + $0x78] sm:$0xf] %v1051
      %1224 = vst [vmem:[#allocation4 + $0x80] sm:$0xf] %v1052
      %1225 = vst [vmem:[#allocation4 + $0x88] sm:$0xf] %v1053
      %1226 = vst [vmem:[#allocation4 + $0x90] sm:$0xf] %v1054
      %1227 = vst [vmem:[#allocation4 + $0x98] sm:$0xf] %v1055
      %v1228 = vld [vmem:[#allocation4] sm:$0xff]
      %v1229 = vld [vmem:[#allocation4 + $0x8] sm:$0xff]
      %v1230 = vld [vmem:[#allocation4 + $0x10] sm:$0xff]
      %v1231 = vld [vmem:[#allocation4 + $0x18] sm:$0xff]
      %v1232 = vld [vmem:[#allocation4 + $0x20] sm:$0xff]
      %v1233 = vld [vmem:[#allocation4 + $0x28] sm:$0xff]
      %v1234 = vld [vmem:[#allocation4 + $0x30] sm:$0xff]
      %v1235 = vld [vmem:[#allocation4 + $0x38] sm:$0xff]
      %v1236 = vld [vmem:[#allocation4 + $0x40] sm:$0xff]
      %v1237 = vld [vmem:[#allocation4 + $0x48] sm:$0xff]
      %v1238 = vld [vmem:[#allocation4 + $0x50] sm:$0xff]
      %v1239 = vld [vmem:[#allocation4 + $0x58] sm:$0xff]
      %v1240 = vld [vmem:[#allocation4 + $0x60] sm:$0xff]
      %v1241 = vld [vmem:[#allocation4 + $0x68] sm:$0xff]
      %v1242 = vld [vmem:[#allocation4 + $0x70] sm:$0xff]
      %v1243 = vld [vmem:[#allocation4 + $0x78] sm:$0xf]
      %v1244 = vld [vmem:[#allocation4 + $0x80] sm:$0xf]
      %v1245 = vld [vmem:[#allocation4 + $0x88] sm:$0xf]
      %v1246 = vld [vmem:[#allocation4 + $0x90] sm:$0xf]
      %v1247 = vld [vmem:[#allocation4 + $0x98] sm:$0xf]
      %v1248 = vpack.c.bf16 %v1233, %v1228
      %v1249 = vpack.c.bf16 %v1234, %v1229
      %v1250 = vpack.c.bf16 %v1235, %v1230
      %v1251 = vpack.c.bf16 %v1236, %v1231
      %v1252 = vpack.c.bf16 %v1237, %v1232
      %v1253 = vpack.c.bf16 %v1243, %v1238
      %v1254 = vpack.c.bf16 %v1244, %v1239
      %v1255 = vpack.c.bf16 %v1245, %v1240
      %v1256 = vpack.c.bf16 %v1246, %v1241
      %v1257 = vpack.c.bf16 %v1247, %v1242
      %v1258 = vld [vmem:[%s1 + $0x30] sm:$0x3]
      %v1259 = vld [vmem:[%s2] sm:$0xf]
      %1261 = vset.pattern.permute.xlu0 3
      %1262 = vperm.xlu0 %1261, %v1259
      %v1263 = vpop.permute.xlu0 %1262
      %v1266 = vsel %vm698, %v1258, 0
      %v1269 = vsel %vm702, %v1253, 0
      %v1272 = vsel %vm702, %v1254, 0
      %v1275 = vsel %vm702, %v1255, 0
      %v1278 = vsel %vm702, %v1256, 0
      %v1281 = vsel %vm702, %v1257, 0
      %1283 = vmatprep.subr.bf16.mxu0 %v1249
      %1284 = vmatpush1.bf16.msra.mxu0 %v1248
      %1285 = vmatprep.subr.bf16.mxu0 %v1272
      %1286 = vmatpush1.bf16.msra.mxu0 %v1269
      %1287 = vmatprep.subr.bf16.mxu0 0
      %1288 = vmatpush1.bf16.msra.mxu0 0
      %1289 = vmatprep.subr.bf16.mxu0 0
      %1290 = vmatpush1.bf16.msra.mxu0 0
      %1291 = vmatprep.subr.bf16.mxu0 0
      %1292 = vmatpush1.bf16.msra.mxu0 0
      %1293 = vmatprep.subr.bf16.mxu0 0
      %1294 = vmatpush1.bf16.msra.mxu0 0
      %1295 = vmatprep.subr.bf16.mxu0 0
      %1296 = vmatpush1.bf16.msra.mxu0 0
      %1297 = vmatprep.subr.bf16.mxu0 0
      %1298 = vmatpush1.bf16.msra.mxu0 0
      %1299 = vmatprep.subr.bf16.mxu0 0
      %1300 = vmatpush1.bf16.msra.mxu0 0
      %1301 = vmatprep.subr.bf16.mxu0 0
      %1302 = vmatpush1.bf16.msra.mxu0 0
      %1303 = vmatprep.subr.bf16.mxu0 0
      %1304 = vmatpush1.bf16.msra.mxu0 0
      %1305 = vmatprep.subr.bf16.mxu0 0
      %1306 = vmatpush1.bf16.msra.mxu0 0
      %1307 = vmatprep.subr.bf16.mxu0 0
      %1308 = vmatpush1.bf16.msra.mxu0 0
      %1309 = vmatprep.subr.bf16.mxu0 0
      %1310 = vmatpush1.bf16.msra.mxu0 0
      %1311 = vmatprep.subr.bf16.mxu0 0
      %1312 = vmatpush1.bf16.msra.mxu0 0
      %1313 = vmatprep.subr.bf16.mxu0 0
      %1314 = vmatpush1.bf16.msra.mxu0 0
      %1315 = vmatprep.mubr.bf16.mxu0 0
      %1316 = vmatmul.mubr.bf16.gmra.mrb[0].mxu0 %v1266
      %v1317 = vpop.f32.mrb[0].mxu0
      %v1318 = vadd.f32 %v1263, %v1317
      %v1319 = vpop.f32.mrb[0].mxu0
      %v1320 = vadd.f32 %v1263, %v1319
      %v1321 = vpop.f32.mrb[0].mxu0
      %v1322 = vpop.f32.mrb[0].mxu0
      %1323 = vdwg.mxu0
      %1324 = vmatprep.subr.bf16.mxu0 %v1251
      %1325 = vmatpush1.bf16.msra.mxu0 %v1250
      %1326 = vmatprep.subr.bf16.mxu0 %v1278
      %1327 = vmatpush1.bf16.msra.mxu0 %v1275
      %1328 = vmatprep.subr.bf16.mxu0 0
      %1329 = vmatpush1.bf16.msra.mxu0 0
      %1330 = vmatprep.subr.bf16.mxu0 0
      %1331 = vmatpush1.bf16.msra.mxu0 0
      %1332 = vmatprep.subr.bf16.mxu0 0
      %1333 = vmatpush1.bf16.msra.mxu0 0
      %1334 = vmatprep.subr.bf16.mxu0 0
      %1335 = vmatpush1.bf16.msra.mxu0 0
      %1336 = vmatprep.subr.bf16.mxu0 0
      %1337 = vmatpush1.bf16.msra.mxu0 0
      %1338 = vmatprep.subr.bf16.mxu0 0
      %1339 = vmatpush1.bf16.msra.mxu0 0
      %1340 = vmatprep.subr.bf16.mxu0 0
      %1341 = vmatpush1.bf16.msra.mxu0 0
      %1342 = vmatprep.subr.bf16.mxu0 0
      %1343 = vmatpush1.bf16.msra.mxu0 0
      %1344 = vmatprep.subr.bf16.mxu0 0
      %1345 = vmatpush1.bf16.msra.mxu0 0
      %1346 = vmatprep.subr.bf16.mxu0 0
      %1347 = vmatpush1.bf16.msra.mxu0 0
      %1348 = vmatprep.subr.bf16.mxu0 0
      %1349 = vmatpush1.bf16.msra.mxu0 0
      %1350 = vmatprep.subr.bf16.mxu0 0
      %1351 = vmatpush1.bf16.msra.mxu0 0
      %1352 = vmatprep.subr.bf16.mxu0 0
      %1353 = vmatpush1.bf16.msra.mxu0 0
      %1354 = vmatprep.subr.bf16.mxu0 0
      %1355 = vmatpush1.bf16.msra.mxu0 0
      %1356 = vmatprep.mubr.bf16.mxu0 0
      %1357 = vmatmul.mubr.bf16.gmra.mrb[0].mxu0 %v1266
      %v1358 = vpop.f32.mrb[0].mxu0
      %v1359 = vadd.f32 %v1263, %v1358
      %v1360 = vpop.f32.mrb[0].mxu0
      %v1361 = vadd.f32 %v1263, %v1360
      %v1362 = vpop.f32.mrb[0].mxu0
      %v1363 = vpop.f32.mrb[0].mxu0
      %1364 = vdwg.mxu0
      %1365 = vmatprep.subr.bf16.mxu0 0
      %1366 = vmatpush1.bf16.msra.mxu0 %v1252
      %1367 = vmatprep.subr.bf16.mxu0 0
      %1368 = vmatpush1.bf16.msra.mxu0 %v1281
      %1369 = vmatprep.subr.bf16.mxu0 0
      %1370 = vmatpush1.bf16.msra.mxu0 0
      %1371 = vmatprep.subr.bf16.mxu0 0
      %1372 = vmatpush1.bf16.msra.mxu0 0
      %1373 = vmatprep.subr.bf16.mxu0 0
      %1374 = vmatpush1.bf16.msra.mxu0 0
      %1375 = vmatprep.subr.bf16.mxu0 0
      %1376 = vmatpush1.bf16.msra.mxu0 0
      %1377 = vmatprep.subr.bf16.mxu0 0
      %1378 = vmatpush1.bf16.msra.mxu0 0
      %1379 = vmatprep.subr.bf16.mxu0 0
      %1380 = vmatpush1.bf16.msra.mxu0 0
      %1381 = vmatprep.subr.bf16.mxu0 0
      %1382 = vmatpush1.bf16.msra.mxu0 0
      %1383 = vmatprep.subr.bf16.mxu0 0
      %1384 = vmatpush1.bf16.msra.mxu0 0
      %1385 = vmatprep.subr.bf16.mxu0 0
      %1386 = vmatpush1.bf16.msra.mxu0 0
      %1387 = vmatprep.subr.bf16.mxu0 0
      %1388 = vmatpush1.bf16.msra.mxu0 0
      %1389 = vmatprep.subr.bf16.mxu0 0
      %1390 = vmatpush1.bf16.msra.mxu0 0
      %1391 = vmatprep.subr.bf16.mxu0 0
      %1392 = vmatpush1.bf16.msra.mxu0 0
      %1393 = vmatprep.subr.bf16.mxu0 0
      %1394 = vmatpush1.bf16.msra.mxu0 0
      %1395 = vmatprep.subr.bf16.mxu0 0
      %1396 = vmatpush1.bf16.msra.mxu0 0
      %1397 = vmatprep.mubr.bf16.mxu0 0
      %1398 = vmatmul.mubr.bf16.gmra.mrb[0].mxu0 %v1266
      %v1399 = vpop.f32.mrb[0].mxu0
      %v1400 = vadd.f32 %v1263, %v1399
      %v1401 = vpop.f32.mrb[0].mxu0
      %v1402 = vpop.f32.mrb[0].mxu0
      %v1403 = vpop.f32.mrb[0].mxu0
      %1404 = vdwg.mxu0
      %vm1405 = vcmp.gt.f32.partialorder %v1318, 0.0
      %vm1406 = vcmp.gt.f32.partialorder %v1320, 0.0
      %vm1407 = vcmp.gt.f32.partialorder %v1359, 0.0
      %vm1408 = vcmp.gt.f32.partialorder %v1361, 0.0
      %vm1409 = vcmp.gt.f32.partialorder %v1400, 0.0
      %v1410 = vmin.f32 %v1318, 0.0
      %v1411 = vmin.f32 %v1320, 0.0
      %v1412 = vmin.f32 %v1359, 0.0
      %v1413 = vmin.f32 %v1361, 0.0
      %v1414 = vmin.f32 %v1400, 0.0
      %v1415 = vmul.f32 %v1410, 1.442695
      %v1416 = vpow.pop %v1415
      %v1417 = vmul.f32 %v1411, 1.442695
      %v1418 = vpow.pop %v1417
      %v1419 = vmul.f32 %v1412, 1.442695
      %v1420 = vpow.pop %v1419
      %v1421 = vmul.f32 %v1413, 1.442695
      %v1422 = vpow.pop %v1421
      %v1423 = vmul.f32 %v1414, 1.442695
      %v1424 = vpow.pop %v1423
      %v1425 = vsub.f32 %v1416, 1.0
      %v1426 = vsub.f32 %v1418, 1.0
      %v1427 = vsub.f32 %v1420, 1.0
      %v1428 = vsub.f32 %v1422, 1.0
      %v1429 = vsub.f32 %v1424, 1.0
      %v1430 = vsel %vm1405, %v1318, %v1425
      %v1431 = vsel %vm1406, %v1320, %v1426
      %v1432 = vsel %vm1407, %v1359, %v1427
      %v1433 = vsel %vm1408, %v1361, %v1428
      %v1434 = vsel %vm1409, %v1400, %v1429
      %v1435 = vpack.c.bf16 %v1430, %v1430
      %v1436 = vpack.c.bf16 %v1431, %v1431
      %v1437 = vpack.c.bf16 %v1432, %v1432
      %v1438 = vpack.c.bf16 %v1433, %v1433
      %v1439 = vpack.c.bf16 %v1434, %v1434
      %v1440 = vld [vmem:[%s1 + $0x40] sm:$0x3]
      %1441 = vset.pattern.permute.xlu0 4
      %1442 = vperm.xlu0 %1441, %v1259
      %v1443 = vpop.permute.xlu0 %1442
      %v1446 = vsel %vm253, %v1440, 0
      %v1449 = vsel %vm883, %v1435, 0
      %v1452 = vsel %vm883, %v1436, 0
      %v1455 = vsel %vm883, %v1437, 0
      %v1458 = vsel %vm883, %v1438, 0
      %v1461 = vsel %vm883, %v1439, 0
      %1463 = vmatprep.subr.bf16.mxu0 %v1452
      %1464 = vmatpush1.bf16.msra.mxu0 %v1449
      %1465 = vmatprep.subr.bf16.mxu0 0
      %1466 = vmatpush1.bf16.msra.mxu0 0
      %1467 = vmatprep.subr.bf16.mxu0 0
      %1468 = vmatpush1.bf16.msra.mxu0 0
      %1469 = vmatprep.subr.bf16.mxu0 0
      %1470 = vmatpush1.bf16.msra.mxu0 0
      %1471 = vmatprep.subr.bf16.mxu0 0
      %1472 = vmatpush1.bf16.msra.mxu0 0
      %1473 = vmatprep.subr.bf16.mxu0 0
      %1474 = vmatpush1.bf16.msra.mxu0 0
      %1475 = vmatprep.subr.bf16.mxu0 0
      %1476 = vmatpush1.bf16.msra.mxu0 0
      %1477 = vmatprep.subr.bf16.mxu0 0
      %1478 = vmatpush1.bf16.msra.mxu0 0
      %1479 = vmatprep.subr.bf16.mxu0 0
      %1480 = vmatpush1.bf16.msra.mxu0 0
      %1481 = vmatprep.subr.bf16.mxu0 0
      %1482 = vmatpush1.bf16.msra.mxu0 0
      %1483 = vmatprep.subr.bf16.mxu0 0
      %1484 = vmatpush1.bf16.msra.mxu0 0
      %1485 = vmatprep.subr.bf16.mxu0 0
      %1486 = vmatpush1.bf16.msra.mxu0 0
      %1487 = vmatprep.subr.bf16.mxu0 0
      %1488 = vmatpush1.bf16.msra.mxu0 0
      %1489 = vmatprep.subr.bf16.mxu0 0
      %1490 = vmatpush1.bf16.msra.mxu0 0
      %1491 = vmatprep.subr.bf16.mxu0 0
      %1492 = vmatpush1.bf16.msra.mxu0 0
      %1493 = vmatprep.subr.bf16.mxu0 0
      %1494 = vmatpush1.bf16.msra.mxu0 0
      %1495 = vmatprep.mubr.bf16.mxu0 0
      %1496 = vmatmul.mubr.bf16.gmra.mrb[0].mxu0 %v1446
      %v1497 = vpop.f32.mrb[0].mxu0
      %v1498 = vadd.f32 %v1443, %v1497
      %v1499 = vpop.f32.mrb[0].mxu0
      %v1500 = vadd.f32 %v1443, %v1499
      %v1501 = vpop.f32.mrb[0].mxu0
      %v1502 = vpop.f32.mrb[0].mxu0
      %1503 = vdwg.mxu0
      %1504 = vmatprep.subr.bf16.mxu0 %v1458
      %1505 = vmatpush1.bf16.msra.mxu0 %v1455
      %1506 = vmatprep.subr.bf16.mxu0 0
      %1507 = vmatpush1.bf16.msra.mxu0 0
      %1508 = vmatprep.subr.bf16.mxu0 0
      %1509 = vmatpush1.bf16.msra.mxu0 0
      %1510 = vmatprep.subr.bf16.mxu0 0
      %1511 = vmatpush1.bf16.msra.mxu0 0
      %1512 = vmatprep.subr.bf16.mxu0 0
      %1513 = vmatpush1.bf16.msra.mxu0 0
      %1514 = vmatprep.subr.bf16.mxu0 0
      %1515 = vmatpush1.bf16.msra.mxu0 0
      %1516 = vmatprep.subr.bf16.mxu0 0
      %1517 = vmatpush1.bf16.msra.mxu0 0
      %1518 = vmatprep.subr.bf16.mxu0 0
      %1519 = vmatpush1.bf16.msra.mxu0 0
      %1520 = vmatprep.subr.bf16.mxu0 0
      %1521 = vmatpush1.bf16.msra.mxu0 0
      %1522 = vmatprep.subr.bf16.mxu0 0
      %1523 = vmatpush1.bf16.msra.mxu0 0
      %1524 = vmatprep.subr.bf16.mxu0 0
      %1525 = vmatpush1.bf16.msra.mxu0 0
      %1526 = vmatprep.subr.bf16.mxu0 0
      %1527 = vmatpush1.bf16.msra.mxu0 0
      %1528 = vmatprep.subr.bf16.mxu0 0
      %1529 = vmatpush1.bf16.msra.mxu0 0
      %1530 = vmatprep.subr.bf16.mxu0 0
      %1531 = vmatpush1.bf16.msra.mxu0 0
      %1532 = vmatprep.subr.bf16.mxu0 0
      %1533 = vmatpush1.bf16.msra.mxu0 0
      %1534 = vmatprep.subr.bf16.mxu0 0
      %1535 = vmatpush1.bf16.msra.mxu0 0
      %1536 = vmatprep.mubr.bf16.mxu0 0
      %1537 = vmatmul.mubr.bf16.gmra.mrb[0].mxu0 %v1446
      %v1538 = vpop.f32.mrb[0].mxu0
      %v1539 = vadd.f32 %v1443, %v1538
      %v1540 = vpop.f32.mrb[0].mxu0
      %v1541 = vadd.f32 %v1443, %v1540
      %v1542 = vpop.f32.mrb[0].mxu0
      %v1543 = vpop.f32.mrb[0].mxu0
      %1544 = vdwg.mxu0
      %1545 = vmatprep.subr.bf16.mxu0 0
      %1546 = vmatpush1.bf16.msra.mxu0 %v1461
      %1547 = vmatprep.subr.bf16.mxu0 0
      %1548 = vmatpush1.bf16.msra.mxu0 0
      %1549 = vmatprep.subr.bf16.mxu0 0
      %1550 = vmatpush1.bf16.msra.mxu0 0
      %1551 = vmatprep.subr.bf16.mxu0 0
      %1552 = vmatpush1.bf16.msra.mxu0 0
      %1553 = vmatprep.subr.bf16.mxu0 0
      %1554 = vmatpush1.bf16.msra.mxu0 0
      %1555 = vmatprep.subr.bf16.mxu0 0
      %1556 = vmatpush1.bf16.msra.mxu0 0
      %1557 = vmatprep.subr.bf16.mxu0 0
      %1558 = vmatpush1.bf16.msra.mxu0 0
      %1559 = vmatprep.subr.bf16.mxu0 0
      %1560 = vmatpush1.bf16.msra.mxu0 0
      %1561 = vmatprep.subr.bf16.mxu0 0
      %1562 = vmatpush1.bf16.msra.mxu0 0
      %1563 = vmatprep.subr.bf16.mxu0 0
      %1564 = vmatpush1.bf16.msra.mxu0 0
      %1565 = vmatprep.subr.bf16.mxu0 0
      %1566 = vmatpush1.bf16.msra.mxu0 0
      %1567 = vmatprep.subr.bf16.mxu0 0
      %1568 = vmatpush1.bf16.msra.mxu0 0
      %1569 = vmatprep.subr.bf16.mxu0 0
      %1570 = vmatpush1.bf16.msra.mxu0 0
      %1571 = vmatprep.subr.bf16.mxu0 0
      %1572 = vmatpush1.bf16.msra.mxu0 0
      %1573 = vmatprep.subr.bf16.mxu0 0
      %1574 = vmatpush1.bf16.msra.mxu0 0
      %1575 = vmatprep.subr.bf16.mxu0 0
      %1576 = vmatpush1.bf16.msra.mxu0 0
      %1577 = vmatprep.mubr.bf16.mxu0 0
      %1578 = vmatmul.mubr.bf16.gmra.mrb[0].mxu0 %v1446
      %v1579 = vpop.f32.mrb[0].mxu0
      %v1580 = vadd.f32 %v1443, %v1579
      %v1581 = vpop.f32.mrb[0].mxu0
      %v1582 = vpop.f32.mrb[0].mxu0
      %v1583 = vpop.f32.mrb[0].mxu0
      %1584 = vdwg.mxu0
      %vm1585 = vcmp.gt.f32.partialorder %v1498, 0.0
      %vm1586 = vcmp.gt.f32.partialorder %v1500, 0.0
      %vm1587 = vcmp.gt.f32.partialorder %v1539, 0.0
      %vm1588 = vcmp.gt.f32.partialorder %v1541, 0.0
      %vm1589 = vcmp.gt.f32.partialorder %v1580, 0.0
      %v1590 = vmin.f32 %v1498, 0.0
      %v1591 = vmin.f32 %v1500, 0.0
      %v1592 = vmin.f32 %v1539, 0.0
      %v1593 = vmin.f32 %v1541, 0.0
      %v1594 = vmin.f32 %v1580, 0.0
      %v1595 = vmul.f32 %v1590, 1.442695
      %v1596 = vpow.pop %v1595
      %v1597 = vmul.f32 %v1591, 1.442695
      %v1598 = vpow.pop %v1597
      %v1599 = vmul.f32 %v1592, 1.442695
      %v1600 = vpow.pop %v1599
      %v1601 = vmul.f32 %v1593, 1.442695
      %v1602 = vpow.pop %v1601
      %v1603 = vmul.f32 %v1594, 1.442695
      %v1604 = vpow.pop %v1603
      %v1605 = vsub.f32 %v1596, 1.0
      %v1606 = vsub.f32 %v1598, 1.0
      %v1607 = vsub.f32 %v1600, 1.0
      %v1608 = vsub.f32 %v1602, 1.0
      %v1609 = vsub.f32 %v1604, 1.0
      %v1610 = vsel %vm1585, %v1498, %v1605
      %v1611 = vsel %vm1586, %v1500, %v1606
      %v1612 = vsel %vm1587, %v1539, %v1607
      %v1613 = vsel %vm1588, %v1541, %v1608
      %v1614 = vsel %vm1589, %v1580, %v1609
      %v1615 = vadd.f32 %v1610, %v1051
      %v1616 = vadd.f32 %v1611, %v1052
      %v1617 = vadd.f32 %v1612, %v1053
      %v1618 = vadd.f32 %v1613, %v1054
      %v1619 = vadd.f32 %v1614, %v1055
      %vm1620 = vcmask 441344
      %1621 = vst.msk [vmem:[#allocation4] sm:$0xff] %vm1620, 0.0
      %1622 = vst.msk [vmem:[#allocation4 + $0x28] sm:$0xff] %vm1620, 0.0
      %1623 = vst.msk [vmem:[#allocation4 + $0x50] sm:$0xff] %vm1620, 0.0
      %vm1624 = vcmask 437248
      %1625 = vst.msk [vmem:[#allocation4 + $0x78] sm:$0xf] %vm1624, 0.0
      %1631 = vrot.lane.b32.xlu0 %v1615, 54
      %v1632 = vpop.permute.xlu0 %1631
      %1633 = vrot.lane.b32.xlu0 %v1616, 54
      %v1634 = vpop.permute.xlu0 %1633
      %1635 = vrot.lane.b32.xlu0 %v1617, 54
      %v1636 = vpop.permute.xlu0 %1635
      %1637 = vrot.lane.b32.xlu0 %v1618, 54
      %v1638 = vpop.permute.xlu0 %1637
      %1639 = vrot.lane.b32.xlu0 %v1619, 54
      %v1640 = vpop.permute.xlu0 %1639
      %v1641 = vsel %vm1620, %v1632, %v1634
      %v1642 = vsel %vm1620, %v1634, %v1636
      %v1643 = vsel %vm1620, %v1636, %v1638
      %v1644 = vsel %vm1620, %v1638, %v1640
      %vm1650 = vcmask 1043888
      %1651 = vst.msk [vmem:[#allocation4] sm:$0xf] %vm1650, %v1632
      %1652 = vst [vmem:[#allocation4 + $0x8] sm:$0xf] %v1641
      %1653 = vst [vmem:[#allocation4 + $0x10] sm:$0xf] %v1642
      %1654 = vst [vmem:[#allocation4 + $0x18] sm:$0xf] %v1643
      %1655 = vst [vmem:[#allocation4 + $0x20] sm:$0xf] %v1644
      %v1656 = vrot.slane %v1615, 4
      %v1657 = vrot.slane %v1616, 4
      %v1658 = vrot.slane %v1617, 4
      %v1659 = vrot.slane %v1618, 4
      %v1660 = vrot.slane %v1619, 4
      %1661 = vrot.lane.b32.xlu0 %v1656, 45
      %v1662 = vpop.permute.xlu0 %1661
      %1663 = vrot.lane.b32.xlu0 %v1657, 45
      %v1664 = vpop.permute.xlu0 %1663
      %1665 = vrot.lane.b32.xlu0 %v1658, 45
      %v1666 = vpop.permute.xlu0 %1665
      %1667 = vrot.lane.b32.xlu0 %v1659, 45
      %v1668 = vpop.permute.xlu0 %1667
      %1669 = vrot.lane.b32.xlu0 %v1660, 45
      %v1670 = vpop.permute.xlu0 %1669
      %vm1671 = vcmask 367616
      %v1672 = vsel %vm1671, %v1662, %v1664
      %v1673 = vsel %vm1671, %v1664, %v1666
      %v1674 = vsel %vm1671, %v1666, %v1668
      %v1675 = vsel %vm1671, %v1668, %v1670
      %vm1681 = vcmask 1047916
      %1682 = vst.msk [vmem:[#allocation4] sm:$0xf0] %vm1681, %v1662
      %1683 = vst [vmem:[#allocation4 + $0x8] sm:$0xf0] %v1672
      %1684 = vst [vmem:[#allocation4 + $0x10] sm:$0xf0] %v1673
      %1685 = vst [vmem:[#allocation4 + $0x18] sm:$0xf0] %v1674
      %1686 = vst [vmem:[#allocation4 + $0x20] sm:$0xf0] %v1675
      %1687 = vrot.lane.b32.xlu0 %v1615, 36
      %v1688 = vpop.permute.xlu0 %1687
      %1689 = vrot.lane.b32.xlu0 %v1616, 36
      %v1690 = vpop.permute.xlu0 %1689
      %1691 = vrot.lane.b32.xlu0 %v1617, 36
      %v1692 = vpop.permute.xlu0 %1691
      %1693 = vrot.lane.b32.xlu0 %v1618, 36
      %v1694 = vpop.permute.xlu0 %1693
      %1695 = vrot.lane.b32.xlu0 %v1619, 36
      %v1696 = vpop.permute.xlu0 %1695
      %vm1697 = vcmask 293888
      %v1698 = vsel %vm1697, %v1688, %v1690
      %v1699 = vsel %vm1697, %v1690, %v1692
      %v1700 = vsel %vm1697, %v1692, %v1694
      %v1701 = vsel %vm1697, %v1694, %v1696
      %vm1707 = vcmask 1043744
      %1708 = vst.msk [vmem:[#allocation4 + $0x28] sm:$0xf] %vm1707, %v1688
      %1709 = vst [vmem:[#allocation4 + $0x30] sm:$0xf] %v1698
      %1710 = vst [vmem:[#allocation4 + $0x38] sm:$0xf] %v1699
      %1711 = vst [vmem:[#allocation4 + $0x40] sm:$0xf] %v1700
      %1712 = vst [vmem:[#allocation4 + $0x48] sm:$0xf] %v1701
      %1713 = vrot.lane.b32.xlu0 %v1656, 27
      %v1714 = vpop.permute.xlu0 %1713
      %1715 = vrot.lane.b32.xlu0 %v1657, 27
      %v1716 = vpop.permute.xlu0 %1715
      %1717 = vrot.lane.b32.xlu0 %v1658, 27
      %v1718 = vpop.permute.xlu0 %1717
      %1719 = vrot.lane.b32.xlu0 %v1659, 27
      %v1720 = vpop.permute.xlu0 %1719
      %1721 = vrot.lane.b32.xlu0 %v1660, 27
      %v1722 = vpop.permute.xlu0 %1721
      %vm1723 = vcmask 220160
      %v1724 = vsel %vm1723, %v1714, %v1716
      %v1725 = vsel %vm1723, %v1716, %v1718
      %v1726 = vsel %vm1723, %v1718, %v1720
      %v1727 = vsel %vm1723, %v1720, %v1722
      %vm1733 = vcmask 1047772
      %1734 = vst.msk [vmem:[#allocation4 + $0x28] sm:$0xf0] %vm1733, %v1714
      %1735 = vst [vmem:[#allocation4 + $0x30] sm:$0xf0] %v1724
      %1736 = vst [vmem:[#allocation4 + $0x38] sm:$0xf0] %v1725
      %1737 = vst [vmem:[#allocation4 + $0x40] sm:$0xf0] %v1726
      %1738 = vst [vmem:[#allocation4 + $0x48] sm:$0xf0] %v1727
      %1739 = vrot.lane.b32.xlu0 %v1615, 18
      %v1740 = vpop.permute.xlu0 %1739
      %1741 = vrot.lane.b32.xlu0 %v1616, 18
      %v1742 = vpop.permute.xlu0 %1741
      %1743 = vrot.lane.b32.xlu0 %v1617, 18
      %v1744 = vpop.permute.xlu0 %1743
      %1745 = vrot.lane.b32.xlu0 %v1618, 18
      %v1746 = vpop.permute.xlu0 %1745
      %1747 = vrot.lane.b32.xlu0 %v1619, 18
      %v1748 = vpop.permute.xlu0 %1747
      %v1749 = vsel %vm1056, %v1740, %v1742
      %v1750 = vsel %vm1056, %v1742, %v1744
      %v1751 = vsel %vm1056, %v1744, %v1746
      %v1752 = vsel %vm1056, %v1746, %v1748
      %1758 = vst.msk [vmem:[#allocation4 + $0x50] sm:$0xf] %vm1086, %v1740
      %1759 = vst [vmem:[#allocation4 + $0x58] sm:$0xf] %v1749
      %1760 = vst [vmem:[#allocation4 + $0x60] sm:$0xf] %v1750
      %1761 = vst [vmem:[#allocation4 + $0x68] sm:$0xf] %v1751
      %1762 = vst [vmem:[#allocation4 + $0x70] sm:$0xf] %v1752
      %1763 = vrot.lane.b32.xlu0 %v1656, 9
      %v1764 = vpop.permute.xlu0 %1763
      %1765 = vrot.lane.b32.xlu0 %v1657, 9
      %v1766 = vpop.permute.xlu0 %1765
      %1767 = vrot.lane.b32.xlu0 %v1658, 9
      %v1768 = vpop.permute.xlu0 %1767
      %1769 = vrot.lane.b32.xlu0 %v1659, 9
      %v1770 = vpop.permute.xlu0 %1769
      %1771 = vrot.lane.b32.xlu0 %v1660, 9
      %v1772 = vpop.permute.xlu0 %1771
      %v1773 = vsel %vm1159, %v1764, %v1766
      %v1774 = vsel %vm1159, %v1766, %v1768
      %v1775 = vsel %vm1159, %v1768, %v1770
      %v1776 = vsel %vm1159, %v1770, %v1772
      %1782 = vst.msk [vmem:[#allocation4 + $0x50] sm:$0xf0] %vm1169, %v1764
      %1783 = vst [vmem:[#allocation4 + $0x58] sm:$0xf0] %v1773
      %1784 = vst [vmem:[#allocation4 + $0x60] sm:$0xf0] %v1774
      %1785 = vst [vmem:[#allocation4 + $0x68] sm:$0xf0] %v1775
      %1786 = vst [vmem:[#allocation4 + $0x70] sm:$0xf0] %v1776
      %1787 = vst [vmem:[#allocation4 + $0x78] sm:$0xf] %v1615
      %1788 = vst [vmem:[#allocation4 + $0x80] sm:$0xf] %v1616
      %1789 = vst [vmem:[#allocation4 + $0x88] sm:$0xf] %v1617
      %1790 = vst [vmem:[#allocation4 + $0x90] sm:$0xf] %v1618
      %1791 = vst [vmem:[#allocation4 + $0x98] sm:$0xf] %v1619
      %v1792 = vld [vmem:[#allocation4] sm:$0xff]
      %v1793 = vld [vmem:[#allocation4 + $0x8] sm:$0xff]
      %v1794 = vld [vmem:[#allocation4 + $0x10] sm:$0xff]
      %v1795 = vld [vmem:[#allocation4 + $0x18] sm:$0xff]
      %v1796 = vld [vmem:[#allocation4 + $0x20] sm:$0xff]
      %v1797 = vld [vmem:[#allocation4 + $0x28] sm:$0xff]
      %v1798 = vld [vmem:[#allocation4 + $0x30] sm:$0xff]
      %v1799 = vld [vmem:[#allocation4 + $0x38] sm:$0xff]
      %v1800 = vld [vmem:[#allocation4 + $0x40] sm:$0xff]
      %v1801 = vld [vmem:[#allocation4 + $0x48] sm:$0xff]
      %v1802 = vld [vmem:[#allocation4 + $0x50] sm:$0xff]
      %v1803 = vld [vmem:[#allocation4 + $0x58] sm:$0xff]
      %v1804 = vld [vmem:[#allocation4 + $0x60] sm:$0xff]
      %v1805 = vld [vmem:[#allocation4 + $0x68] sm:$0xff]
      %v1806 = vld [vmem:[#allocation4 + $0x70] sm:$0xff]
      %v1807 = vld [vmem:[#allocation4 + $0x78] sm:$0xf]
      %v1808 = vld [vmem:[#allocation4 + $0x80] sm:$0xf]
      %v1809 = vld [vmem:[#allocation4 + $0x88] sm:$0xf]
      %v1810 = vld [vmem:[#allocation4 + $0x90] sm:$0xf]
      %v1811 = vld [vmem:[#allocation4 + $0x98] sm:$0xf]
      %v1812 = vpack.c.bf16 %v1797, %v1792
      %v1813 = vpack.c.bf16 %v1798, %v1793
      %v1814 = vpack.c.bf16 %v1799, %v1794
      %v1815 = vpack.c.bf16 %v1800, %v1795
      %v1816 = vpack.c.bf16 %v1801, %v1796
      %v1817 = vpack.c.bf16 %v1807, %v1802
      %v1818 = vpack.c.bf16 %v1808, %v1803
      %v1819 = vpack.c.bf16 %v1809, %v1804
      %v1820 = vpack.c.bf16 %v1810, %v1805
      %v1821 = vpack.c.bf16 %v1811, %v1806
      %v1822 = vld [vmem:[%s1 + $0x50] sm:$0x3]
      %v1823 = vld [vmem:[%s2] sm:$0xf]
      %1825 = vset.pattern.permute.xlu0 5
      %1826 = vperm.xlu0 %1825, %v1823
      %v1827 = vpop.permute.xlu0 %1826
      %v1830 = vsel %vm698, %v1822, 0
      %v1833 = vsel %vm702, %v1817, 0
      %v1836 = vsel %vm702, %v1818, 0
      %v1839 = vsel %vm702, %v1819, 0
      %v1842 = vsel %vm702, %v1820, 0
      %v1845 = vsel %vm702, %v1821, 0
      %1847 = vmatprep.subr.bf16.mxu0 %v1813
      %1848 = vmatpush1.bf16.msra.mxu0 %v1812
      %1849 = vmatprep.subr.bf16.mxu0 %v1836
      %1850 = vmatpush1.bf16.msra.mxu0 %v1833
      %1851 = vmatprep.subr.bf16.mxu0 0
      %1852 = vmatpush1.bf16.msra.mxu0 0
      %1853 = vmatprep.subr.bf16.mxu0 0
      %1854 = vmatpush1.bf16.msra.mxu0 0
      %1855 = vmatprep.subr.bf16.mxu0 0
      %1856 = vmatpush1.bf16.msra.mxu0 0
      %1857 = vmatprep.subr.bf16.mxu0 0
      %1858 = vmatpush1.bf16.msra.mxu0 0
      %1859 = vmatprep.subr.bf16.mxu0 0
      %1860 = vmatpush1.bf16.msra.mxu0 0
      %1861 = vmatprep.subr.bf16.mxu0 0
      %1862 = vmatpush1.bf16.msra.mxu0 0
      %1863 = vmatprep.subr.bf16.mxu0 0
      %1864 = vmatpush1.bf16.msra.mxu0 0
      %1865 = vmatprep.subr.bf16.mxu0 0
      %1866 = vmatpush1.bf16.msra.mxu0 0
      %1867 = vmatprep.subr.bf16.mxu0 0
      %1868 = vmatpush1.bf16.msra.mxu0 0
      %1869 = vmatprep.subr.bf16.mxu0 0
      %1870 = vmatpush1.bf16.msra.mxu0 0
      %1871 = vmatprep.subr.bf16.mxu0 0
      %1872 = vmatpush1.bf16.msra.mxu0 0
      %1873 = vmatprep.subr.bf16.mxu0 0
      %1874 = vmatpush1.bf16.msra.mxu0 0
      %1875 = vmatprep.subr.bf16.mxu0 0
      %1876 = vmatpush1.bf16.msra.mxu0 0
      %1877 = vmatprep.subr.bf16.mxu0 0
      %1878 = vmatpush1.bf16.msra.mxu0 0
      %1879 = vmatprep.mubr.bf16.mxu0 0
      %1880 = vmatmul.mubr.bf16.gmra.mrb[0].mxu0 %v1830
      %v1881 = vpop.f32.mrb[0].mxu0
      %v1882 = vadd.f32 %v1827, %v1881
      %v1883 = vpop.f32.mrb[0].mxu0
      %v1884 = vadd.f32 %v1827, %v1883
      %v1885 = vpop.f32.mrb[0].mxu0
      %v1886 = vpop.f32.mrb[0].mxu0
      %1887 = vdwg.mxu0
      %1888 = vmatprep.subr.bf16.mxu0 %v1815
      %1889 = vmatpush1.bf16.msra.mxu0 %v1814
      %1890 = vmatprep.subr.bf16.mxu0 %v1842
      %1891 = vmatpush1.bf16.msra.mxu0 %v1839
      %1892 = vmatprep.subr.bf16.mxu0 0
      %1893 = vmatpush1.bf16.msra.mxu0 0
      %1894 = vmatprep.subr.bf16.mxu0 0
      %1895 = vmatpush1.bf16.msra.mxu0 0
      %1896 = vmatprep.subr.bf16.mxu0 0
      %1897 = vmatpush1.bf16.msra.mxu0 0
      %1898 = vmatprep.subr.bf16.mxu0 0
      %1899 = vmatpush1.bf16.msra.mxu0 0
      %1900 = vmatprep.subr.bf16.mxu0 0
      %1901 = vmatpush1.bf16.msra.mxu0 0
      %1902 = vmatprep.subr.bf16.mxu0 0
      %1903 = vmatpush1.bf16.msra.mxu0 0
      %1904 = vmatprep.subr.bf16.mxu0 0
      %1905 = vmatpush1.bf16.msra.mxu0 0
      %1906 = vmatprep.subr.bf16.mxu0 0
      %1907 = vmatpush1.bf16.msra.mxu0 0
      %1908 = vmatprep.subr.bf16.mxu0 0
      %1909 = vmatpush1.bf16.msra.mxu0 0
      %1910 = vmatprep.subr.bf16.mxu0 0
      %1911 = vmatpush1.bf16.msra.mxu0 0
      %1912 = vmatprep.subr.bf16.mxu0 0
      %1913 = vmatpush1.bf16.msra.mxu0 0
      %1914 = vmatprep.subr.bf16.mxu0 0
      %1915 = vmatpush1.bf16.msra.mxu0 0
      %1916 = vmatprep.subr.bf16.mxu0 0
      %1917 = vmatpush1.bf16.msra.mxu0 0
      %1918 = vmatprep.subr.bf16.mxu0 0
      %1919 = vmatpush1.bf16.msra.mxu0 0
      %1920 = vmatprep.mubr.bf16.mxu0 0
      %1921 = vmatmul.mubr.bf16.gmra.mrb[0].mxu0 %v1830
      %v1922 = vpop.f32.mrb[0].mxu0
      %v1923 = vadd.f32 %v1827, %v1922
      %v1924 = vpop.f32.mrb[0].mxu0
      %v1925 = vadd.f32 %v1827, %v1924
      %v1926 = vpop.f32.mrb[0].mxu0
      %v1927 = vpop.f32.mrb[0].mxu0
      %1928 = vdwg.mxu0
      %1929 = vmatprep.subr.bf16.mxu0 0
      %1930 = vmatpush1.bf16.msra.mxu0 %v1816
      %1931 = vmatprep.subr.bf16.mxu0 0
      %1932 = vmatpush1.bf16.msra.mxu0 %v1845
      %1933 = vmatprep.subr.bf16.mxu0 0
      %1934 = vmatpush1.bf16.msra.mxu0 0
      %1935 = vmatprep.subr.bf16.mxu0 0
      %1936 = vmatpush1.bf16.msra.mxu0 0
      %1937 = vmatprep.subr.bf16.mxu0 0
      %1938 = vmatpush1.bf16.msra.mxu0 0
      %1939 = vmatprep.subr.bf16.mxu0 0
      %1940 = vmatpush1.bf16.msra.mxu0 0
      %1941 = vmatprep.subr.bf16.mxu0 0
      %1942 = vmatpush1.bf16.msra.mxu0 0
      %1943 = vmatprep.subr.bf16.mxu0 0
      %1944 = vmatpush1.bf16.msra.mxu0 0
      %1945 = vmatprep.subr.bf16.mxu0 0
      %1946 = vmatpush1.bf16.msra.mxu0 0
      %1947 = vmatprep.subr.bf16.mxu0 0
      %1948 = vmatpush1.bf16.msra.mxu0 0
      %1949 = vmatprep.subr.bf16.mxu0 0
      %1950 = vmatpush1.bf16.msra.mxu0 0
      %1951 = vmatprep.subr.bf16.mxu0 0
      %1952 = vmatpush1.bf16.msra.mxu0 0
      %1953 = vmatprep.subr.bf16.mxu0 0
      %1954 = vmatpush1.bf16.msra.mxu0 0
      %1955 = vmatprep.subr.bf16.mxu0 0
      %1956 = vmatpush1.bf16.msra.mxu0 0
      %1957 = vmatprep.subr.bf16.mxu0 0
      %1958 = vmatpush1.bf16.msra.mxu0 0
      %1959 = vmatprep.subr.bf16.mxu0 0
      %1960 = vmatpush1.bf16.msra.mxu0 0
      %1961 = vmatprep.mubr.bf16.mxu0 0
      %1962 = vmatmul.mubr.bf16.gmra.mrb[0].mxu0 %v1830
      %v1963 = vpop.f32.mrb[0].mxu0
      %v1964 = vadd.f32 %v1827, %v1963
      %v1965 = vpop.f32.mrb[0].mxu0
      %v1966 = vpop.f32.mrb[0].mxu0
      %v1967 = vpop.f32.mrb[0].mxu0
      %1968 = vdwg.mxu0
      %vm1969 = vcmp.gt.f32.partialorder %v1882, 0.0
      %vm1970 = vcmp.gt.f32.partialorder %v1884, 0.0
      %vm1971 = vcmp.gt.f32.partialorder %v1923, 0.0
      %vm1972 = vcmp.gt.f32.partialorder %v1925, 0.0
      %vm1973 = vcmp.gt.f32.partialorder %v1964, 0.0
      %v1974 = vmin.f32 %v1882, 0.0
      %v1975 = vmin.f32 %v1884, 0.0
      %v1976 = vmin.f32 %v1923, 0.0
      %v1977 = vmin.f32 %v1925, 0.0
      %v1978 = vmin.f32 %v1964, 0.0
      %v1979 = vmul.f32 %v1974, 1.442695
      %v1980 = vpow.pop %v1979
      %v1981 = vmul.f32 %v1975, 1.442695
      %v1982 = vpow.pop %v1981
      %v1983 = vmul.f32 %v1976, 1.442695
      %v1984 = vpow.pop %v1983
      %v1985 = vmul.f32 %v1977, 1.442695
      %v1986 = vpow.pop %v1985
      %v1987 = vmul.f32 %v1978, 1.442695
      %v1988 = vpow.pop %v1987
      %v1989 = vsub.f32 %v1980, 1.0
      %v1990 = vsub.f32 %v1982, 1.0
      %v1991 = vsub.f32 %v1984, 1.0
      %v1992 = vsub.f32 %v1986, 1.0
      %v1993 = vsub.f32 %v1988, 1.0
      %v1994 = vsel %vm1969, %v1882, %v1989
      %v1995 = vsel %vm1970, %v1884, %v1990
      %v1996 = vsel %vm1971, %v1923, %v1991
      %v1997 = vsel %vm1972, %v1925, %v1992
      %v1998 = vsel %vm1973, %v1964, %v1993
      %v1999 = vpack.c.bf16 %v1994, %v1994
      %v2000 = vpack.c.bf16 %v1995, %v1995
      %v2001 = vpack.c.bf16 %v1996, %v1996
      %v2002 = vpack.c.bf16 %v1997, %v1997
      %v2003 = vpack.c.bf16 %v1998, %v1998
      %v2004 = vld [vmem:[%s1 + $0x60] sm:$0x3]
      %2005 = vset.pattern.permute.xlu0 6
      %2006 = vperm.xlu0 %2005, %v1823
      %v2007 = vpop.permute.xlu0 %2006
      %v2010 = vsel %vm253, %v2004, 0
      %v2013 = vsel %vm883, %v1999, 0
      %v2016 = vsel %vm883, %v2000, 0
      %v2019 = vsel %vm883, %v2001, 0
      %v2022 = vsel %vm883, %v2002, 0
      %v2025 = vsel %vm883, %v2003, 0
      %2027 = vmatprep.subr.bf16.mxu0 %v2016
      %2028 = vmatpush1.bf16.msra.mxu0 %v2013
      %2029 = vmatprep.subr.bf16.mxu0 0
      %2030 = vmatpush1.bf16.msra.mxu0 0
      %2031 = vmatprep.subr.bf16.mxu0 0
      %2032 = vmatpush1.bf16.msra.mxu0 0
      %2033 = vmatprep.subr.bf16.mxu0 0
      %2034 = vmatpush1.bf16.msra.mxu0 0
      %2035 = vmatprep.subr.bf16.mxu0 0
      %2036 = vmatpush1.bf16.msra.mxu0 0
      %2037 = vmatprep.subr.bf16.mxu0 0
      %2038 = vmatpush1.bf16.msra.mxu0 0
      %2039 = vmatprep.subr.bf16.mxu0 0
      %2040 = vmatpush1.bf16.msra.mxu0 0
      %2041 = vmatprep.subr.bf16.mxu0 0
      %2042 = vmatpush1.bf16.msra.mxu0 0
      %2043 = vmatprep.subr.bf16.mxu0 0
      %2044 = vmatpush1.bf16.msra.mxu0 0
      %2045 = vmatprep.subr.bf16.mxu0 0
      %2046 = vmatpush1.bf16.msra.mxu0 0
      %2047 = vmatprep.subr.bf16.mxu0 0
      %2048 = vmatpush1.bf16.msra.mxu0 0
      %2049 = vmatprep.subr.bf16.mxu0 0
      %2050 = vmatpush1.bf16.msra.mxu0 0
      %2051 = vmatprep.subr.bf16.mxu0 0
      %2052 = vmatpush1.bf16.msra.mxu0 0
      %2053 = vmatprep.subr.bf16.mxu0 0
      %2054 = vmatpush1.bf16.msra.mxu0 0
      %2055 = vmatprep.subr.bf16.mxu0 0
      %2056 = vmatpush1.bf16.msra.mxu0 0
      %2057 = vmatprep.subr.bf16.mxu0 0
      %2058 = vmatpush1.bf16.msra.mxu0 0
      %2059 = vmatprep.mubr.bf16.mxu0 0
      %2060 = vmatmul.mubr.bf16.gmra.mrb[0].mxu0 %v2010
      %v2061 = vpop.f32.mrb[0].mxu0
      %v2062 = vadd.f32 %v2007, %v2061
      %v2063 = vpop.f32.mrb[0].mxu0
      %v2064 = vadd.f32 %v2007, %v2063
      %v2065 = vpop.f32.mrb[0].mxu0
      %v2066 = vpop.f32.mrb[0].mxu0
      %2067 = vdwg.mxu0
      %2068 = vmatprep.subr.bf16.mxu0 %v2022
      %2069 = vmatpush1.bf16.msra.mxu0 %v2019
      %2070 = vmatprep.subr.bf16.mxu0 0
      %2071 = vmatpush1.bf16.msra.mxu0 0
      %2072 = vmatprep.subr.bf16.mxu0 0
      %2073 = vmatpush1.bf16.msra.mxu0 0
      %2074 = vmatprep.subr.bf16.mxu0 0
      %2075 = vmatpush1.bf16.msra.mxu0 0
      %2076 = vmatprep.subr.bf16.mxu0 0
      %2077 = vmatpush1.bf16.msra.mxu0 0
      %2078 = vmatprep.subr.bf16.mxu0 0
      %2079 = vmatpush1.bf16.msra.mxu0 0
      %2080 = vmatprep.subr.bf16.mxu0 0
      %2081 = vmatpush1.bf16.msra.mxu0 0
      %2082 = vmatprep.subr.bf16.mxu0 0
      %2083 = vmatpush1.bf16.msra.mxu0 0
      %2084 = vmatprep.subr.bf16.mxu0 0
      %2085 = vmatpush1.bf16.msra.mxu0 0
      %2086 = vmatprep.subr.bf16.mxu0 0
      %2087 = vmatpush1.bf16.msra.mxu0 0
      %2088 = vmatprep.subr.bf16.mxu0 0
      %2089 = vmatpush1.bf16.msra.mxu0 0
      %2090 = vmatprep.subr.bf16.mxu0 0
      %2091 = vmatpush1.bf16.msra.mxu0 0
      %2092 = vmatprep.subr.bf16.mxu0 0
      %2093 = vmatpush1.bf16.msra.mxu0 0
      %2094 = vmatprep.subr.bf16.mxu0 0
      %2095 = vmatpush1.bf16.msra.mxu0 0
      %2096 = vmatprep.subr.bf16.mxu0 0
      %2097 = vmatpush1.bf16.msra.mxu0 0
      %2098 = vmatprep.subr.bf16.mxu0 0
      %2099 = vmatpush1.bf16.msra.mxu0 0
      %2100 = vmatprep.mubr.bf16.mxu0 0
      %2101 = vmatmul.mubr.bf16.gmra.mrb[0].mxu0 %v2010
      %v2102 = vpop.f32.mrb[0].mxu0
      %v2103 = vadd.f32 %v2007, %v2102
      %v2104 = vpop.f32.mrb[0].mxu0
      %v2105 = vadd.f32 %v2007, %v2104
      %v2106 = vpop.f32.mrb[0].mxu0
      %v2107 = vpop.f32.mrb[0].mxu0
      %2108 = vdwg.mxu0
      %2109 = vmatprep.subr.bf16.mxu0 0
      %2110 = vmatpush1.bf16.msra.mxu0 %v2025
      %2111 = vmatprep.subr.bf16.mxu0 0
      %2112 = vmatpush1.bf16.msra.mxu0 0
      %2113 = vmatprep.subr.bf16.mxu0 0
      %2114 = vmatpush1.bf16.msra.mxu0 0
      %2115 = vmatprep.subr.bf16.mxu0 0
      %2116 = vmatpush1.bf16.msra.mxu0 0
      %2117 = vmatprep.subr.bf16.mxu0 0
      %2118 = vmatpush1.bf16.msra.mxu0 0
      %2119 = vmatprep.subr.bf16.mxu0 0
      %2120 = vmatpush1.bf16.msra.mxu0 0
      %2121 = vmatprep.subr.bf16.mxu0 0
      %2122 = vmatpush1.bf16.msra.mxu0 0
      %2123 = vmatprep.subr.bf16.mxu0 0
      %2124 = vmatpush1.bf16.msra.mxu0 0
      %2125 = vmatprep.subr.bf16.mxu0 0
      %2126 = vmatpush1.bf16.msra.mxu0 0
      %2127 = vmatprep.subr.bf16.mxu0 0
      %2128 = vmatpush1.bf16.msra.mxu0 0
      %2129 = vmatprep.subr.bf16.mxu0 0
      %2130 = vmatpush1.bf16.msra.mxu0 0
      %2131 = vmatprep.subr.bf16.mxu0 0
      %2132 = vmatpush1.bf16.msra.mxu0 0
      %2133 = vmatprep.subr.bf16.mxu0 0
      %2134 = vmatpush1.bf16.msra.mxu0 0
      %2135 = vmatprep.subr.bf16.mxu0 0
      %2136 = vmatpush1.bf16.msra.mxu0 0
      %2137 = vmatprep.subr.bf16.mxu0 0
      %2138 = vmatpush1.bf16.msra.mxu0 0
      %2139 = vmatprep.subr.bf16.mxu0 0
      %2140 = vmatpush1.bf16.msra.mxu0 0
      %2141 = vmatprep.mubr.bf16.mxu0 0
      %2142 = vmatmul.mubr.bf16.gmra.mrb[0].mxu0 %v2010
      %v2143 = vpop.f32.mrb[0].mxu0
      %v2144 = vadd.f32 %v2007, %v2143
      %v2145 = vpop.f32.mrb[0].mxu0
      %v2146 = vpop.f32.mrb[0].mxu0
      %v2147 = vpop.f32.mrb[0].mxu0
      %2148 = vdwg.mxu0
      %vm2149 = vcmp.gt.f32.partialorder %v2062, 0.0
      %vm2150 = vcmp.gt.f32.partialorder %v2064, 0.0
      %vm2151 = vcmp.gt.f32.partialorder %v2103, 0.0
      %vm2152 = vcmp.gt.f32.partialorder %v2105, 0.0
      %vm2153 = vcmp.gt.f32.partialorder %v2144, 0.0
      %v2154 = vmin.f32 %v2062, 0.0
      %v2155 = vmin.f32 %v2064, 0.0
      %v2156 = vmin.f32 %v2103, 0.0
      %v2157 = vmin.f32 %v2105, 0.0
      %v2158 = vmin.f32 %v2144, 0.0
      %v2159 = vmul.f32 %v2154, 1.442695
      %v2160 = vpow.pop %v2159
      %v2161 = vmul.f32 %v2155, 1.442695
      %v2162 = vpow.pop %v2161
      %v2163 = vmul.f32 %v2156, 1.442695
      %v2164 = vpow.pop %v2163
      %v2165 = vmul.f32 %v2157, 1.442695
      %v2166 = vpow.pop %v2165
      %v2167 = vmul.f32 %v2158, 1.442695
      %v2168 = vpow.pop %v2167
      %v2169 = vsub.f32 %v2160, 1.0
      %v2170 = vsub.f32 %v2162, 1.0
      %v2171 = vsub.f32 %v2164, 1.0
      %v2172 = vsub.f32 %v2166, 1.0
      %v2173 = vsub.f32 %v2168, 1.0
      %v2174 = vsel %vm2149, %v2062, %v2169
      %v2175 = vsel %vm2150, %v2064, %v2170
      %v2176 = vsel %vm2151, %v2103, %v2171
      %v2177 = vsel %vm2152, %v2105, %v2172
      %v2178 = vsel %vm2153, %v2144, %v2173
      %v2179 = vadd.f32 %v2174, %v1615
      %v2180 = vadd.f32 %v2175, %v1616
      %v2181 = vadd.f32 %v2176, %v1617
      %v2182 = vadd.f32 %v2177, %v1618
      %v2183 = vadd.f32 %v2178, %v1619
      %2184 = vxpose.xlu0.b32.start [1/16] %v2179, 128
      %2185 = vxpose.xlu0.b32.cont [2/16] 0.0, 128
      %2186 = vxpose.xlu0.b32.cont [3/16] 0.0, 128
      %2187 = vxpose.xlu0.b32.cont [4/16] 0.0, 128
      %2188 = vxpose.xlu0.b32.cont [5/16] 0.0, 128
      %2189 = vxpose.xlu0.b32.cont [6/16] 0.0, 128
      %2190 = vxpose.xlu0.b32.cont [7/16] 0.0, 128
      %2191 = vxpose.xlu0.b32.cont [8/16] 0.0, 128
      %2192 = vxpose.xlu0.b32.cont [9/16] 0.0, 128
      %2193 = vxpose.xlu0.b32.cont [10/16] 0.0, 128
      %2194 = vxpose.xlu0.b32.cont [11/16] 0.0, 128
      %2195 = vxpose.xlu0.b32.cont [12/16] 0.0, 128
      %2196 = vxpose.xlu0.b32.cont [13/16] 0.0, 128
      %2197 = vxpose.xlu0.b32.cont [14/16] 0.0, 128
      %2198 = vxpose.xlu0.b32.cont [15/16] 0.0, 128
      %2199 = vxpose.xlu0.b32.end [16/16] 0.0, 128
      %v2200 = vpop.trf.xlu0
      %v2201 = vpop.trf.xlu0
      %v2202 = vpop.trf.xlu0
      %v2203 = vpop.trf.xlu0
      %v2204 = vpop.trf.xlu0
      %v2205 = vpop.trf.xlu0
      %v2206 = vpop.trf.xlu0
      %v2207 = vpop.trf.xlu0
      %v2208 = vpop.trf.xlu0
      %v2209 = vpop.trf.xlu0
      %v2210 = vpop.trf.xlu0
      %v2211 = vpop.trf.xlu0
      %v2212 = vpop.trf.xlu0
      %v2213 = vpop.trf.xlu0
      %v2214 = vpop.trf.xlu0
      %v2215 = vpop.trf.xlu0
      %2216 = vxpose.xlu0.b32.start [1/16] %v2180, 128
      %2217 = vxpose.xlu0.b32.cont [2/16] 0.0, 128
      %2218 = vxpose.xlu0.b32.cont [3/16] 0.0, 128
      %2219 = vxpose.xlu0.b32.cont [4/16] 0.0, 128
      %2220 = vxpose.xlu0.b32.cont [5/16] 0.0, 128
      %2221 = vxpose.xlu0.b32.cont [6/16] 0.0, 128
      %2222 = vxpose.xlu0.b32.cont [7/16] 0.0, 128
      %2223 = vxpose.xlu0.b32.cont [8/16] 0.0, 128
      %2224 = vxpose.xlu0.b32.cont [9/16] 0.0, 128
      %2225 = vxpose.xlu0.b32.cont [10/16] 0.0, 128
      %2226 = vxpose.xlu0.b32.cont [11/16] 0.0, 128
      %2227 = vxpose.xlu0.b32.cont [12/16] 0.0, 128
      %2228 = vxpose.xlu0.b32.cont [13/16] 0.0, 128
      %2229 = vxpose.xlu0.b32.cont [14/16] 0.0, 128
      %2230 = vxpose.xlu0.b32.cont [15/16] 0.0, 128
      %2231 = vxpose.xlu0.b32.end [16/16] 0.0, 128
      %v2232 = vpop.trf.xlu0
      %v2233 = vpop.trf.xlu0
      %v2234 = vpop.trf.xlu0
      %v2235 = vpop.trf.xlu0
      %v2236 = vpop.trf.xlu0
      %v2237 = vpop.trf.xlu0
      %v2238 = vpop.trf.xlu0
      %v2239 = vpop.trf.xlu0
      %v2240 = vpop.trf.xlu0
      %v2241 = vpop.trf.xlu0
      %v2242 = vpop.trf.xlu0
      %v2243 = vpop.trf.xlu0
      %v2244 = vpop.trf.xlu0
      %v2245 = vpop.trf.xlu0
      %v2246 = vpop.trf.xlu0
      %v2247 = vpop.trf.xlu0
      %2248 = vxpose.xlu0.b32.start [1/16] %v2181, 128
      %2249 = vxpose.xlu0.b32.cont [2/16] 0.0, 128
      %2250 = vxpose.xlu0.b32.cont [3/16] 0.0, 128
      %2251 = vxpose.xlu0.b32.cont [4/16] 0.0, 128
      %2252 = vxpose.xlu0.b32.cont [5/16] 0.0, 128
      %2253 = vxpose.xlu0.b32.cont [6/16] 0.0, 128
      %2254 = vxpose.xlu0.b32.cont [7/16] 0.0, 128
      %2255 = vxpose.xlu0.b32.cont [8/16] 0.0, 128
      %2256 = vxpose.xlu0.b32.cont [9/16] 0.0, 128
      %2257 = vxpose.xlu0.b32.cont [10/16] 0.0, 128
      %2258 = vxpose.xlu0.b32.cont [11/16] 0.0, 128
      %2259 = vxpose.xlu0.b32.cont [12/16] 0.0, 128
      %2260 = vxpose.xlu0.b32.cont [13/16] 0.0, 128
      %2261 = vxpose.xlu0.b32.cont [14/16] 0.0, 128
      %2262 = vxpose.xlu0.b32.cont [15/16] 0.0, 128
      %2263 = vxpose.xlu0.b32.end [16/16] 0.0, 128
      %v2264 = vpop.trf.xlu0
      %v2265 = vpop.trf.xlu0
      %v2266 = vpop.trf.xlu0
      %v2267 = vpop.trf.xlu0
      %v2268 = vpop.trf.xlu0
      %v2269 = vpop.trf.xlu0
      %v2270 = vpop.trf.xlu0
      %v2271 = vpop.trf.xlu0
      %v2272 = vpop.trf.xlu0
      %v2273 = vpop.trf.xlu0
      %v2274 = vpop.trf.xlu0
      %v2275 = vpop.trf.xlu0
      %v2276 = vpop.trf.xlu0
      %v2277 = vpop.trf.xlu0
      %v2278 = vpop.trf.xlu0
      %v2279 = vpop.trf.xlu0
      %2280 = vxpose.xlu0.b32.start [1/16] %v2182, 128
      %2281 = vxpose.xlu0.b32.cont [2/16] 0.0, 128
      %2282 = vxpose.xlu0.b32.cont [3/16] 0.0, 128
      %2283 = vxpose.xlu0.b32.cont [4/16] 0.0, 128
      %2284 = vxpose.xlu0.b32.cont [5/16] 0.0, 128
      %2285 = vxpose.xlu0.b32.cont [6/16] 0.0, 128
      %2286 = vxpose.xlu0.b32.cont [7/16] 0.0, 128
      %2287 = vxpose.xlu0.b32.cont [8/16] 0.0, 128
      %2288 = vxpose.xlu0.b32.cont [9/16] 0.0, 128
      %2289 = vxpose.xlu0.b32.cont [10/16] 0.0, 128
      %2290 = vxpose.xlu0.b32.cont [11/16] 0.0, 128
      %2291 = vxpose.xlu0.b32.cont [12/16] 0.0, 128
      %2292 = vxpose.xlu0.b32.cont [13/16] 0.0, 128
      %2293 = vxpose.xlu0.b32.cont [14/16] 0.0, 128
      %2294 = vxpose.xlu0.b32.cont [15/16] 0.0, 128
      %2295 = vxpose.xlu0.b32.end [16/16] 0.0, 128
      %v2296 = vpop.trf.xlu0
      %v2297 = vpop.trf.xlu0
      %v2298 = vpop.trf.xlu0
      %v2299 = vpop.trf.xlu0
      %v2300 = vpop.trf.xlu0
      %v2301 = vpop.trf.xlu0
      %v2302 = vpop.trf.xlu0
      %v2303 = vpop.trf.xlu0
      %v2304 = vpop.trf.xlu0
      %v2305 = vpop.trf.xlu0
      %v2306 = vpop.trf.xlu0
      %v2307 = vpop.trf.xlu0
      %v2308 = vpop.trf.xlu0
      %v2309 = vpop.trf.xlu0
      %v2310 = vpop.trf.xlu0
      %v2311 = vpop.trf.xlu0
      %2312 = vxpose.xlu0.b32.start [1/16] %v2183, 128
      %2313 = vxpose.xlu0.b32.cont [2/16] 0.0, 128
      %2314 = vxpose.xlu0.b32.cont [3/16] 0.0, 128
      %2315 = vxpose.xlu0.b32.cont [4/16] 0.0, 128
      %2316 = vxpose.xlu0.b32.cont [5/16] 0.0, 128
      %2317 = vxpose.xlu0.b32.cont [6/16] 0.0, 128
      %2318 = vxpose.xlu0.b32.cont [7/16] 0.0, 128
      %2319 = vxpose.xlu0.b32.cont [8/16] 0.0, 128
      %2320 = vxpose.xlu0.b32.cont [9/16] 0.0, 128
      %2321 = vxpose.xlu0.b32.cont [10/16] 0.0, 128
      %2322 = vxpose.xlu0.b32.cont [11/16] 0.0, 128
      %2323 = vxpose.xlu0.b32.cont [12/16] 0.0, 128
      %2324 = vxpose.xlu0.b32.cont [13/16] 0.0, 128
      %2325 = vxpose.xlu0.b32.cont [14/16] 0.0, 128
      %2326 = vxpose.xlu0.b32.cont [15/16] 0.0, 128
      %2327 = vxpose.xlu0.b32.end [16/16] 0.0, 128
      %v2328 = vpop.trf.xlu0
      %v2329 = vpop.trf.xlu0
      %v2330 = vpop.trf.xlu0
      %v2331 = vpop.trf.xlu0
      %v2332 = vpop.trf.xlu0
      %v2333 = vpop.trf.xlu0
      %v2334 = vpop.trf.xlu0
      %v2335 = vpop.trf.xlu0
      %v2336 = vpop.trf.xlu0
      %v2337 = vpop.trf.xlu0
      %v2338 = vpop.trf.xlu0
      %v2339 = vpop.trf.xlu0
      %v2340 = vpop.trf.xlu0
      %v2341 = vpop.trf.xlu0
      %v2342 = vpop.trf.xlu0
      %v2343 = vpop.trf.xlu0
      %2344 = vst.msk [vmem:[#allocation2] sm:$0xff] %vm253, %v2200
      %2345 = vst.msk [vmem:[#allocation2 + $0x8] sm:$0xff] %vm253, %v2201
      %2346 = vst.msk [vmem:[#allocation2 + $0x10] sm:$0xff] %vm253, %v2202
      %2347 = vst.msk [vmem:[#allocation2 + $0x18] sm:$0xff] %vm253, %v2203
      %2348 = vst.msk [vmem:[#allocation2 + $0x20] sm:$0xff] %vm253, %v2204
      %2349 = vst.msk [vmem:[#allocation2 + $0x28] sm:$0xff] %vm253, %v2205
      %2350 = vst.msk [vmem:[#allocation2 + $0x30] sm:$0xff] %vm253, %v2206
      %2351 = vst.msk [vmem:[#allocation2 + $0x38] sm:$0xff] %vm253, %v2207
      %2352 = vst.msk [vmem:[#allocation2 + $0x40] sm:$0xff] %vm253, %v2208
      %2353 = vst.msk [vmem:[#allocation2 + $0x48] sm:$0xff] %vm253, %v2209
      %2354 = vst.msk [vmem:[#allocation2 + $0x50] sm:$0xff] %vm253, %v2210
      %2355 = vst.msk [vmem:[#allocation2 + $0x58] sm:$0xff] %vm253, %v2211
      %2356 = vst.msk [vmem:[#allocation2 + $0x60] sm:$0xff] %vm253, %v2212
      %2357 = vst.msk [vmem:[#allocation2 + $0x68] sm:$0xff] %vm253, %v2213
      %2358 = vst.msk [vmem:[#allocation2 + $0x70] sm:$0xff] %vm253, %v2214
      %2359 = vst.msk [vmem:[#allocation2 + $0x78] sm:$0xff] %vm253, %v2215
      %2360 = vst.msk [vmem:[#allocation2 + $0x80] sm:$0xff] %vm253, %v2232
      %2361 = vst.msk [vmem:[#allocation2 + $0x88] sm:$0xff] %vm253, %v2233
      %2362 = vst.msk [vmem:[#allocation2 + $0x90] sm:$0xff] %vm253, %v2234
      %2363 = vst.msk [vmem:[#allocation2 + $0x98] sm:$0xff] %vm253, %v2235
      %2364 = vst.msk [vmem:[#allocation2 + $0xa0] sm:$0xff] %vm253, %v2236
      %2365 = vst.msk [vmem:[#allocation2 + $0xa8] sm:$0xff] %vm253, %v2237
      %2366 = vst.msk [vmem:[#allocation2 + $0xb0] sm:$0xff] %vm253, %v2238
      %2367 = vst.msk [vmem:[#allocation2 + $0xb8] sm:$0xff] %vm253, %v2239
      %2368 = vst.msk [vmem:[#allocation2 + $0xc0] sm:$0xff] %vm253, %v2240
      %2369 = vst.msk [vmem:[#allocation2 + $0xc8] sm:$0xff] %vm253, %v2241
      %2370 = vst.msk [vmem:[#allocation2 + $0xd0] sm:$0xff] %vm253, %v2242
      %2371 = vst.msk [vmem:[#allocation2 + $0xd8] sm:$0xff] %vm253, %v2243
      %2372 = vst.msk [vmem:[#allocation2 + $0xe0] sm:$0xff] %vm253, %v2244
      %2373 = vst.msk [vmem:[#allocation2 + $0xe8] sm:$0xff] %vm253, %v2245
      %2374 = vst.msk [vmem:[#allocation2 + $0xf0] sm:$0xff] %vm253, %v2246
      %2375 = vst.msk [vmem:[#allocation2 + $0xf8] sm:$0xff] %vm253, %v2247
      %2376 = vst.msk [vmem:[#allocation2 + $0x100] sm:$0xff] %vm253, %v2264
      %2377 = vst.msk [vmem:[#allocation2 + $0x108] sm:$0xff] %vm253, %v2265
      %2378 = vst.msk [vmem:[#allocation2 + $0x110] sm:$0xff] %vm253, %v2266
      %2379 = vst.msk [vmem:[#allocation2 + $0x118] sm:$0xff] %vm253, %v2267
      %2380 = vst.msk [vmem:[#allocation2 + $0x120] sm:$0xff] %vm253, %v2268
      %2381 = vst.msk [vmem:[#allocation2 + $0x128] sm:$0xff] %vm253, %v2269
      %2382 = vst.msk [vmem:[#allocation2 + $0x130] sm:$0xff] %vm253, %v2270
      %2383 = vst.msk [vmem:[#allocation2 + $0x138] sm:$0xff] %vm253, %v2271
      %2384 = vst.msk [vmem:[#allocation2 + $0x140] sm:$0xff] %vm253, %v2272
      %2385 = vst.msk [vmem:[#allocation2 + $0x148] sm:$0xff] %vm253, %v2273
      %2386 = vst.msk [vmem:[#allocation2 + $0x150] sm:$0xff] %vm253, %v2274
      %2387 = vst.msk [vmem:[#allocation2 + $0x158] sm:$0xff] %vm253, %v2275
      %2388 = vst.msk [vmem:[#allocation2 + $0x160] sm:$0xff] %vm253, %v2276
      %2389 = vst.msk [vmem:[#allocation2 + $0x168] sm:$0xff] %vm253, %v2277
      %2390 = vst.msk [vmem:[#allocation2 + $0x170] sm:$0xff] %vm253, %v2278
      %2391 = vst.msk [vmem:[#allocation2 + $0x178] sm:$0xff] %vm253, %v2279
      %2392 = vst.msk [vmem:[#allocation2 + $0x180] sm:$0xff] %vm253, %v2296
      %2393 = vst.msk [vmem:[#allocation2 + $0x188] sm:$0xff] %vm253, %v2297
      %2394 = vst.msk [vmem:[#allocation2 + $0x190] sm:$0xff] %vm253, %v2298
      %2395 = vst.msk [vmem:[#allocation2 + $0x198] sm:$0xff] %vm253, %v2299
      %2396 = vst.msk [vmem:[#allocation2 + $0x1a0] sm:$0xff] %vm253, %v2300
      %2397 = vst.msk [vmem:[#allocation2 + $0x1a8] sm:$0xff] %vm253, %v2301
      %2398 = vst.msk [vmem:[#allocation2 + $0x1b0] sm:$0xff] %vm253, %v2302
      %2399 = vst.msk [vmem:[#allocation2 + $0x1b8] sm:$0xff] %vm253, %v2303
      %2400 = vst.msk [vmem:[#allocation2 + $0x1c0] sm:$0xff] %vm253, %v2304
      %2401 = vst.msk [vmem:[#allocation2 + $0x1c8] sm:$0xff] %vm253, %v2305
      %2402 = vst.msk [vmem:[#allocation2 + $0x1d0] sm:$0xff] %vm253, %v2306
      %2403 = vst.msk [vmem:[#allocation2 + $0x1d8] sm:$0xff] %vm253, %v2307
      %2404 = vst.msk [vmem:[#allocation2 + $0x1e0] sm:$0xff] %vm253, %v2308
      %2405 = vst.msk [vmem:[#allocation2 + $0x1e8] sm:$0xff] %vm253, %v2309
      %2406 = vst.msk [vmem:[#allocation2 + $0x1f0] sm:$0xff] %vm253, %v2310
      %2407 = vst.msk [vmem:[#allocation2 + $0x1f8] sm:$0xff] %vm253, %v2311
      %2408 = vst.msk [vmem:[#allocation2 + $0x200] sm:$0xff] %vm253, %v2328
      %2409 = vst.msk [vmem:[#allocation2 + $0x208] sm:$0xff] %vm253, %v2329
      %2410 = vst.msk [vmem:[#allocation2 + $0x210] sm:$0xff] %vm253, %v2330
      %2411 = vst.msk [vmem:[#allocation2 + $0x218] sm:$0xff] %vm253, %v2331
      %2412 = vst.msk [vmem:[#allocation2 + $0x220] sm:$0xff] %vm253, %v2332
      %2413 = vst.msk [vmem:[#allocation2 + $0x228] sm:$0xff] %vm253, %v2333
      %2414 = vst.msk [vmem:[#allocation2 + $0x230] sm:$0xff] %vm253, %v2334
      %2415 = vst.msk [vmem:[#allocation2 + $0x238] sm:$0xff] %vm253, %v2335
      %2416 = vst.msk [vmem:[#allocation2 + $0x240] sm:$0xff] %vm253, %v2336
      %2417 = vst.msk [vmem:[#allocation2 + $0x248] sm:$0xff] %vm253, %v2337
      %2418 = vst.msk [vmem:[#allocation2 + $0x250] sm:$0xff] %vm253, %v2338
      %2419 = vst.msk [vmem:[#allocation2 + $0x258] sm:$0xff] %vm253, %v2339
      %2420 = vst.msk [vmem:[#allocation2 + $0x260] sm:$0xff] %vm253, %v2340
      %2421 = vst.msk [vmem:[#allocation2 + $0x268] sm:$0xff] %vm253, %v2341
      %2422 = vst.msk [vmem:[#allocation2 + $0x270] sm:$0xff] %vm253, %v2342
      %2423 = vst.msk [vmem:[#allocation2 + $0x278] sm:$0xff] %vm253, %v2343
      %vm2424 = vcmask 122880
      %2425 = vst.msk [vmem:[#allocation5] sm:$0x1] %vm2424, 0.0
      %v2426 = vld [vmem:[#allocation2] ss:$2 sm:$0xff]
      %s2427 = scalar_lea.vmem [#allocation2], 16
      %v2428 = vld [vmem:[%s2427] ss:$2 sm:$0xff]
      %s2429 = scalar_lea.vmem [#allocation2], 32
      %v2430 = vld [vmem:[%s2429] ss:$2 sm:$0xff]
      %s2431 = scalar_lea.vmem [#allocation2], 48
      %v2432 = vld [vmem:[%s2431] ss:$2 sm:$0xff]
      %s2433 = scalar_lea.vmem [#allocation2], 64
      %v2434 = vld [vmem:[%s2433] ss:$2 sm:$0xff]
      %s2435 = scalar_lea.vmem [#allocation2], 80
      %v2436 = vld [vmem:[%s2435] ss:$2 sm:$0xff]
      %s2437 = scalar_lea.vmem [#allocation2], 96
      %v2438 = vld [vmem:[%s2437] ss:$2 sm:$0xff]
      %s2439 = scalar_lea.vmem [#allocation2], 112
      %v2440 = vld [vmem:[%s2439] ss:$2 sm:$0xff]
      %s2441 = scalar_lea.vmem [#allocation2], 128
      %v2442 = vld [vmem:[%s2441] ss:$2 sm:$0xff]
      %s2443 = scalar_lea.vmem [#allocation2], 144
      %v2444 = vld [vmem:[%s2443] ss:$2 sm:$0xff]
      %s2445 = scalar_lea.vmem [#allocation2], 160
      %v2446 = vld [vmem:[%s2445] ss:$2 sm:$0xff]
      %s2447 = scalar_lea.vmem [#allocation2], 176
      %v2448 = vld [vmem:[%s2447] ss:$2 sm:$0xff]
      %s2449 = scalar_lea.vmem [#allocation2], 192
      %v2450 = vld [vmem:[%s2449] ss:$2 sm:$0xff]
      %s2451 = scalar_lea.vmem [#allocation2], 208
      %v2452 = vld [vmem:[%s2451] ss:$2 sm:$0xff]
      %s2453 = scalar_lea.vmem [#allocation2], 224
      %v2454 = vld [vmem:[%s2453] ss:$2 sm:$0xff]
      %s2455 = scalar_lea.vmem [#allocation2], 240
      %v2456 = vld [vmem:[%s2455] ss:$2 sm:$0xff]
      %s2457 = scalar_lea.vmem [#allocation2], 256
      %v2458 = vld [vmem:[%s2457] ss:$2 sm:$0xff]
      %s2459 = scalar_lea.vmem [#allocation2], 272
      %v2460 = vld [vmem:[%s2459] ss:$2 sm:$0xff]
      %s2461 = scalar_lea.vmem [#allocation2], 288
      %v2462 = vld [vmem:[%s2461] ss:$2 sm:$0xff]
      %s2463 = scalar_lea.vmem [#allocation2], 304
      %v2464 = vld [vmem:[%s2463] ss:$2 sm:$0xff]
      %s2465 = scalar_lea.vmem [#allocation2], 320
      %v2466 = vld [vmem:[%s2465] ss:$2 sm:$0xff]
      %s2467 = scalar_lea.vmem [#allocation2], 336
      %v2468 = vld [vmem:[%s2467] ss:$2 sm:$0xff]
      %s2469 = scalar_lea.vmem [#allocation2], 352
      %v2470 = vld [vmem:[%s2469] ss:$2 sm:$0xff]
      %s2471 = scalar_lea.vmem [#allocation2], 368
      %v2472 = vld [vmem:[%s2471] ss:$2 sm:$0xff]
      %s2473 = scalar_lea.vmem [#allocation2], 384
      %v2474 = vld [vmem:[%s2473] ss:$2 sm:$0xff]
      %s2475 = scalar_lea.vmem [#allocation2], 400
      %v2476 = vld [vmem:[%s2475] ss:$2 sm:$0xff]
      %s2477 = scalar_lea.vmem [#allocation2], 416
      %v2478 = vld [vmem:[%s2477] ss:$2 sm:$0xff]
      %s2479 = scalar_lea.vmem [#allocation2], 432
      %v2480 = vld [vmem:[%s2479] ss:$2 sm:$0xff]
      %s2481 = scalar_lea.vmem [#allocation2], 448
      %v2482 = vld [vmem:[%s2481] ss:$2 sm:$0xff]
      %s2483 = scalar_lea.vmem [#allocation2], 464
      %v2484 = vld [vmem:[%s2483] ss:$2 sm:$0xff]
      %s2485 = scalar_lea.vmem [#allocation2], 480
      %v2486 = vld [vmem:[%s2485] ss:$2 sm:$0xff]
      %s2487 = scalar_lea.vmem [#allocation2], 496
      %v2488 = vld [vmem:[%s2487] ss:$2 sm:$0xff]
      %s2489 = scalar_lea.vmem [#allocation2], 512
      %v2490 = vld [vmem:[%s2489] ss:$2 sm:$0xff]
      %s2491 = scalar_lea.vmem [#allocation2], 528
      %v2492 = vld [vmem:[%s2491] ss:$2 sm:$0xff]
      %s2493 = scalar_lea.vmem [#allocation2], 544
      %v2494 = vld [vmem:[%s2493] ss:$2 sm:$0xff]
      %s2495 = scalar_lea.vmem [#allocation2], 560
      %v2496 = vld [vmem:[%s2495] ss:$2 sm:$0xff]
      %s2497 = scalar_lea.vmem [#allocation2], 576
      %v2498 = vld [vmem:[%s2497] ss:$2 sm:$0xff]
      %s2499 = scalar_lea.vmem [#allocation2], 592
      %v2500 = vld [vmem:[%s2499] ss:$2 sm:$0xff]
      %s2501 = scalar_lea.vmem [#allocation2], 608
      %v2502 = vld [vmem:[%s2501] ss:$2 sm:$0xff]
      %s2503 = scalar_lea.vmem [#allocation2], 624
      %v2504 = vld [vmem:[%s2503] ss:$2 sm:$0x7f]
      %2505 = vst.msk [vmem:[#allocation5 + $0x1] sm:$0xff] %vm253, %v2426
      %2506 = vst.msk [vmem:[#allocation5 + $0x9] sm:$0xff] %vm253, %v2428
      %2507 = vst.msk [vmem:[#allocation5 + $0x11] sm:$0xff] %vm253, %v2430
      %2508 = vst.msk [vmem:[#allocation5 + $0x19] sm:$0xff] %vm253, %v2432
      %2509 = vst.msk [vmem:[#allocation5 + $0x21] sm:$0xff] %vm253, %v2434
      %2510 = vst.msk [vmem:[#allocation5 + $0x29] sm:$0xff] %vm253, %v2436
      %2511 = vst.msk [vmem:[#allocation5 + $0x31] sm:$0xff] %vm253, %v2438
      %2512 = vst.msk [vmem:[#allocation5 + $0x39] sm:$0xff] %vm253, %v2440
      %2513 = vst.msk [vmem:[#allocation5 + $0x41] sm:$0xff] %vm253, %v2442
      %2514 = vst.msk [vmem:[#allocation5 + $0x49] sm:$0xff] %vm253, %v2444
      %2515 = vst.msk [vmem:[#allocation5 + $0x51] sm:$0xff] %vm253, %v2446
      %2516 = vst.msk [vmem:[#allocation5 + $0x59] sm:$0xff] %vm253, %v2448
      %2517 = vst.msk [vmem:[#allocation5 + $0x61] sm:$0xff] %vm253, %v2450
      %2518 = vst.msk [vmem:[#allocation5 + $0x69] sm:$0xff] %vm253, %v2452
      %2519 = vst.msk [vmem:[#allocation5 + $0x71] sm:$0xff] %vm253, %v2454
      %2520 = vst.msk [vmem:[#allocation5 + $0x79] sm:$0xff] %vm253, %v2456
      %2521 = vst.msk [vmem:[#allocation5 + $0x81] sm:$0xff] %vm253, %v2458
      %2522 = vst.msk [vmem:[#allocation5 + $0x89] sm:$0xff] %vm253, %v2460
      %2523 = vst.msk [vmem:[#allocation5 + $0x91] sm:$0xff] %vm253, %v2462
      %2524 = vst.msk [vmem:[#allocation5 + $0x99] sm:$0xff] %vm253, %v2464
      %2525 = vst.msk [vmem:[#allocation5 + $0xa1] sm:$0xff] %vm253, %v2466
      %2526 = vst.msk [vmem:[#allocation5 + $0xa9] sm:$0xff] %vm253, %v2468
      %2527 = vst.msk [vmem:[#allocation5 + $0xb1] sm:$0xff] %vm253, %v2470
      %2528 = vst.msk [vmem:[#allocation5 + $0xb9] sm:$0xff] %vm253, %v2472
      %2529 = vst.msk [vmem:[#allocation5 + $0xc1] sm:$0xff] %vm253, %v2474
      %2530 = vst.msk [vmem:[#allocation5 + $0xc9] sm:$0xff] %vm253, %v2476
      %2531 = vst.msk [vmem:[#allocation5 + $0xd1] sm:$0xff] %vm253, %v2478
      %2532 = vst.msk [vmem:[#allocation5 + $0xd9] sm:$0xff] %vm253, %v2480
      %2533 = vst.msk [vmem:[#allocation5 + $0xe1] sm:$0xff] %vm253, %v2482
      %2534 = vst.msk [vmem:[#allocation5 + $0xe9] sm:$0xff] %vm253, %v2484
      %2535 = vst.msk [vmem:[#allocation5 + $0xf1] sm:$0xff] %vm253, %v2486
      %2536 = vst.msk [vmem:[#allocation5 + $0xf9] sm:$0xff] %vm253, %v2488
      %2537 = vst.msk [vmem:[#allocation5 + $0x101] sm:$0xff] %vm253, %v2490
      %2538 = vst.msk [vmem:[#allocation5 + $0x109] sm:$0xff] %vm253, %v2492
      %2539 = vst.msk [vmem:[#allocation5 + $0x111] sm:$0xff] %vm253, %v2494
      %2540 = vst.msk [vmem:[#allocation5 + $0x119] sm:$0xff] %vm253, %v2496
      %2541 = vst.msk [vmem:[#allocation5 + $0x121] sm:$0xff] %vm253, %v2498
      %2542 = vst.msk [vmem:[#allocation5 + $0x129] sm:$0xff] %vm253, %v2500
      %2543 = vst.msk [vmem:[#allocation5 + $0x131] sm:$0xff] %vm253, %v2502
      %vm2544 = vcmask 30720
      %2545 = vst.msk [vmem:[#allocation5 + $0x139] sm:$0x7f] %vm2544, %v2504
      %s2546 = scalar_lea.vmem [#allocation2], 1
      %v2547 = vld [vmem:[%s2546] ss:$2 sm:$0xff]
      %s2548 = scalar_lea.vmem [#allocation2], 17
      %v2549 = vld [vmem:[%s2548] ss:$2 sm:$0xff]
      %s2550 = scalar_lea.vmem [#allocation2], 33
      %v2551 = vld [vmem:[%s2550] ss:$2 sm:$0xff]
      %s2552 = scalar_lea.vmem [#allocation2], 49
      %v2553 = vld [vmem:[%s2552] ss:$2 sm:$0xff]
      %s2554 = scalar_lea.vmem [#allocation2], 65
      %v2555 = vld [vmem:[%s2554] ss:$2 sm:$0xff]
      %s2556 = scalar_lea.vmem [#allocation2], 81
      %v2557 = vld [vmem:[%s2556] ss:$2 sm:$0xff]
      %s2558 = scalar_lea.vmem [#allocation2], 97
      %v2559 = vld [vmem:[%s2558] ss:$2 sm:$0xff]
      %s2560 = scalar_lea.vmem [#allocation2], 113
      %v2561 = vld [vmem:[%s2560] ss:$2 sm:$0xff]
      %s2562 = scalar_lea.vmem [#allocation2], 129
      %v2563 = vld [vmem:[%s2562] ss:$2 sm:$0xff]
      %s2564 = scalar_lea.vmem [#allocation2], 145
      %v2565 = vld [vmem:[%s2564] ss:$2 sm:$0xff]
      %s2566 = scalar_lea.vmem [#allocation2], 161
      %v2567 = vld [vmem:[%s2566] ss:$2 sm:$0xff]
      %s2568 = scalar_lea.vmem [#allocation2], 177
      %v2569 = vld [vmem:[%s2568] ss:$2 sm:$0xff]
      %s2570 = scalar_lea.vmem [#allocation2], 193
      %v2571 = vld [vmem:[%s2570] ss:$2 sm:$0xff]
      %s2572 = scalar_lea.vmem [#allocation2], 209
      %v2573 = vld [vmem:[%s2572] ss:$2 sm:$0xff]
      %s2574 = scalar_lea.vmem [#allocation2], 225
      %v2575 = vld [vmem:[%s2574] ss:$2 sm:$0xff]
      %s2576 = scalar_lea.vmem [#allocation2], 241
      %v2577 = vld [vmem:[%s2576] ss:$2 sm:$0xff]
      %s2578 = scalar_lea.vmem [#allocation2], 257
      %v2579 = vld [vmem:[%s2578] ss:$2 sm:$0xff]
      %s2580 = scalar_lea.vmem [#allocation2], 273
      %v2581 = vld [vmem:[%s2580] ss:$2 sm:$0xff]
      %s2582 = scalar_lea.vmem [#allocation2], 289
      %v2583 = vld [vmem:[%s2582] ss:$2 sm:$0xff]
      %s2584 = scalar_lea.vmem [#allocation2], 305
      %v2585 = vld [vmem:[%s2584] ss:$2 sm:$0xff]
      %s2586 = scalar_lea.vmem [#allocation2], 321
      %v2587 = vld [vmem:[%s2586] ss:$2 sm:$0xff]
      %s2588 = scalar_lea.vmem [#allocation2], 337
      %v2589 = vld [vmem:[%s2588] ss:$2 sm:$0xff]
      %s2590 = scalar_lea.vmem [#allocation2], 353
      %v2591 = vld [vmem:[%s2590] ss:$2 sm:$0xff]
      %s2592 = scalar_lea.vmem [#allocation2], 369
      %v2593 = vld [vmem:[%s2592] ss:$2 sm:$0xff]
      %s2594 = scalar_lea.vmem [#allocation2], 385
      %v2595 = vld [vmem:[%s2594] ss:$2 sm:$0xff]
      %s2596 = scalar_lea.vmem [#allocation2], 401
      %v2597 = vld [vmem:[%s2596] ss:$2 sm:$0xff]
      %s2598 = scalar_lea.vmem [#allocation2], 417
      %v2599 = vld [vmem:[%s2598] ss:$2 sm:$0xff]
      %s2600 = scalar_lea.vmem [#allocation2], 433
      %v2601 = vld [vmem:[%s2600] ss:$2 sm:$0xff]
      %s2602 = scalar_lea.vmem [#allocation2], 449
      %v2603 = vld [vmem:[%s2602] ss:$2 sm:$0xff]
      %s2604 = scalar_lea.vmem [#allocation2], 465
      %v2605 = vld [vmem:[%s2604] ss:$2 sm:$0xff]
      %s2606 = scalar_lea.vmem [#allocation2], 481
      %v2607 = vld [vmem:[%s2606] ss:$2 sm:$0xff]
      %s2608 = scalar_lea.vmem [#allocation2], 497
      %v2609 = vld [vmem:[%s2608] ss:$2 sm:$0xff]
      %s2610 = scalar_lea.vmem [#allocation2], 513
      %v2611 = vld [vmem:[%s2610] ss:$2 sm:$0xff]
      %s2612 = scalar_lea.vmem [#allocation2], 529
      %v2613 = vld [vmem:[%s2612] ss:$2 sm:$0xff]
      %s2614 = scalar_lea.vmem [#allocation2], 545
      %v2615 = vld [vmem:[%s2614] ss:$2 sm:$0xff]
      %s2616 = scalar_lea.vmem [#allocation2], 561
      %v2617 = vld [vmem:[%s2616] ss:$2 sm:$0xff]
      %s2618 = scalar_lea.vmem [#allocation2], 577
      %v2619 = vld [vmem:[%s2618] ss:$2 sm:$0xff]
      %s2620 = scalar_lea.vmem [#allocation2], 593
      %v2621 = vld [vmem:[%s2620] ss:$2 sm:$0xff]
      %s2622 = scalar_lea.vmem [#allocation2], 609
      %v2623 = vld [vmem:[%s2622] ss:$2 sm:$0xff]
      %s2624 = scalar_lea.vmem [#allocation2], 625
      %v2625 = vld [vmem:[%s2624] ss:$2 sm:$0x7f]
      %2666 = vrot.lane.b32.xlu0 %v2547, 4
      %v2667 = vpop.permute.xlu0 %2666
      %2668 = vrot.lane.b32.xlu0 %v2549, 4
      %v2669 = vpop.permute.xlu0 %2668
      %2670 = vrot.lane.b32.xlu0 %v2551, 4
      %v2671 = vpop.permute.xlu0 %2670
      %2672 = vrot.lane.b32.xlu0 %v2553, 4
      %v2673 = vpop.permute.xlu0 %2672
      %2674 = vrot.lane.b32.xlu0 %v2555, 4
      %v2675 = vpop.permute.xlu0 %2674
      %2676 = vrot.lane.b32.xlu0 %v2557, 4
      %v2677 = vpop.permute.xlu0 %2676
      %2678 = vrot.lane.b32.xlu0 %v2559, 4
      %v2679 = vpop.permute.xlu0 %2678
      %2680 = vrot.lane.b32.xlu0 %v2561, 4
      %v2681 = vpop.permute.xlu0 %2680
      %2682 = vrot.lane.b32.xlu0 %v2563, 4
      %v2683 = vpop.permute.xlu0 %2682
      %2684 = vrot.lane.b32.xlu0 %v2565, 4
      %v2685 = vpop.permute.xlu0 %2684
      %2686 = vrot.lane.b32.xlu0 %v2567, 4
      %v2687 = vpop.permute.xlu0 %2686
      %2688 = vrot.lane.b32.xlu0 %v2569, 4
      %v2689 = vpop.permute.xlu0 %2688
      %2690 = vrot.lane.b32.xlu0 %v2571, 4
      %v2691 = vpop.permute.xlu0 %2690
      %2692 = vrot.lane.b32.xlu0 %v2573, 4
      %v2693 = vpop.permute.xlu0 %2692
      %2694 = vrot.lane.b32.xlu0 %v2575, 4
      %v2695 = vpop.permute.xlu0 %2694
      %2696 = vrot.lane.b32.xlu0 %v2577, 4
      %v2697 = vpop.permute.xlu0 %2696
      %2698 = vrot.lane.b32.xlu0 %v2579, 4
      %v2699 = vpop.permute.xlu0 %2698
      %2700 = vrot.lane.b32.xlu0 %v2581, 4
      %v2701 = vpop.permute.xlu0 %2700
      %2702 = vrot.lane.b32.xlu0 %v2583, 4
      %v2703 = vpop.permute.xlu0 %2702
      %2704 = vrot.lane.b32.xlu0 %v2585, 4
      %v2705 = vpop.permute.xlu0 %2704
      %2706 = vrot.lane.b32.xlu0 %v2587, 4
      %v2707 = vpop.permute.xlu0 %2706
      %2708 = vrot.lane.b32.xlu0 %v2589, 4
      %v2709 = vpop.permute.xlu0 %2708
      %2710 = vrot.lane.b32.xlu0 %v2591, 4
      %v2711 = vpop.permute.xlu0 %2710
      %2712 = vrot.lane.b32.xlu0 %v2593, 4
      %v2713 = vpop.permute.xlu0 %2712
      %2714 = vrot.lane.b32.xlu0 %v2595, 4
      %v2715 = vpop.permute.xlu0 %2714
      %2716 = vrot.lane.b32.xlu0 %v2597, 4
      %v2717 = vpop.permute.xlu0 %2716
      %2718 = vrot.lane.b32.xlu0 %v2599, 4
      %v2719 = vpop.permute.xlu0 %2718
      %2720 = vrot.lane.b32.xlu0 %v2601, 4
      %v2721 = vpop.permute.xlu0 %2720
      %2722 = vrot.lane.b32.xlu0 %v2603, 4
      %v2723 = vpop.permute.xlu0 %2722
      %2724 = vrot.lane.b32.xlu0 %v2605, 4
      %v2725 = vpop.permute.xlu0 %2724
      %2726 = vrot.lane.b32.xlu0 %v2607, 4
      %v2727 = vpop.permute.xlu0 %2726
      %2728 = vrot.lane.b32.xlu0 %v2609, 4
      %v2729 = vpop.permute.xlu0 %2728
      %2730 = vrot.lane.b32.xlu0 %v2611, 4
      %v2731 = vpop.permute.xlu0 %2730
      %2732 = vrot.lane.b32.xlu0 %v2613, 4
      %v2733 = vpop.permute.xlu0 %2732
      %2734 = vrot.lane.b32.xlu0 %v2615, 4
      %v2735 = vpop.permute.xlu0 %2734
      %2736 = vrot.lane.b32.xlu0 %v2617, 4
      %v2737 = vpop.permute.xlu0 %2736
      %2738 = vrot.lane.b32.xlu0 %v2619, 4
      %v2739 = vpop.permute.xlu0 %2738
      %2740 = vrot.lane.b32.xlu0 %v2621, 4
      %v2741 = vpop.permute.xlu0 %2740
      %2742 = vrot.lane.b32.xlu0 %v2623, 4
      %v2743 = vpop.permute.xlu0 %2742
      %2744 = vrot.lane.b32.xlu0 %v2625, 4
      %v2745 = vpop.permute.xlu0 %2744
      %vm2786 = vcmask 64544
      %2787 = vst.msk [vmem:[#allocation5 + $0x1] sm:$0xff] %vm2786, %v2667
      %2788 = vst.msk [vmem:[#allocation5 + $0x9] sm:$0xff] %vm2786, %v2669
      %2789 = vst.msk [vmem:[#allocation5 + $0x11] sm:$0xff] %vm2786, %v2671
      %2790 = vst.msk [vmem:[#allocation5 + $0x19] sm:$0xff] %vm2786, %v2673
      %2791 = vst.msk [vmem:[#allocation5 + $0x21] sm:$0xff] %vm2786, %v2675
      %2792 = vst.msk [vmem:[#allocation5 + $0x29] sm:$0xff] %vm2786, %v2677
      %2793 = vst.msk [vmem:[#allocation5 + $0x31] sm:$0xff] %vm2786, %v2679
      %2794 = vst.msk [vmem:[#allocation5 + $0x39] sm:$0xff] %vm2786, %v2681
      %2795 = vst.msk [vmem:[#allocation5 + $0x41] sm:$0xff] %vm2786, %v2683
      %2796 = vst.msk [vmem:[#allocation5 + $0x49] sm:$0xff] %vm2786, %v2685
      %2797 = vst.msk [vmem:[#allocation5 + $0x51] sm:$0xff] %vm2786, %v2687
      %2798 = vst.msk [vmem:[#allocation5 + $0x59] sm:$0xff] %vm2786, %v2689
      %2799 = vst.msk [vmem:[#allocation5 + $0x61] sm:$0xff] %vm2786, %v2691
      %2800 = vst.msk [vmem:[#allocation5 + $0x69] sm:$0xff] %vm2786, %v2693
      %2801 = vst.msk [vmem:[#allocation5 + $0x71] sm:$0xff] %vm2786, %v2695
      %2802 = vst.msk [vmem:[#allocation5 + $0x79] sm:$0xff] %vm2786, %v2697
      %2803 = vst.msk [vmem:[#allocation5 + $0x81] sm:$0xff] %vm2786, %v2699
      %2804 = vst.msk [vmem:[#allocation5 + $0x89] sm:$0xff] %vm2786, %v2701
      %2805 = vst.msk [vmem:[#allocation5 + $0x91] sm:$0xff] %vm2786, %v2703
      %2806 = vst.msk [vmem:[#allocation5 + $0x99] sm:$0xff] %vm2786, %v2705
      %2807 = vst.msk [vmem:[#allocation5 + $0xa1] sm:$0xff] %vm2786, %v2707
      %2808 = vst.msk [vmem:[#allocation5 + $0xa9] sm:$0xff] %vm2786, %v2709
      %2809 = vst.msk [vmem:[#allocation5 + $0xb1] sm:$0xff] %vm2786, %v2711
      %2810 = vst.msk [vmem:[#allocation5 + $0xb9] sm:$0xff] %vm2786, %v2713
      %2811 = vst.msk [vmem:[#allocation5 + $0xc1] sm:$0xff] %vm2786, %v2715
      %2812 = vst.msk [vmem:[#allocation5 + $0xc9] sm:$0xff] %vm2786, %v2717
      %2813 = vst.msk [vmem:[#allocation5 + $0xd1] sm:$0xff] %vm2786, %v2719
      %2814 = vst.msk [vmem:[#allocation5 + $0xd9] sm:$0xff] %vm2786, %v2721
      %2815 = vst.msk [vmem:[#allocation5 + $0xe1] sm:$0xff] %vm2786, %v2723
      %2816 = vst.msk [vmem:[#allocation5 + $0xe9] sm:$0xff] %vm2786, %v2725
      %2817 = vst.msk [vmem:[#allocation5 + $0xf1] sm:$0xff] %vm2786, %v2727
      %2818 = vst.msk [vmem:[#allocation5 + $0xf9] sm:$0xff] %vm2786, %v2729
      %2819 = vst.msk [vmem:[#allocation5 + $0x101] sm:$0xff] %vm2786, %v2731
      %2820 = vst.msk [vmem:[#allocation5 + $0x109] sm:$0xff] %vm2786, %v2733
      %2821 = vst.msk [vmem:[#allocation5 + $0x111] sm:$0xff] %vm2786, %v2735
      %2822 = vst.msk [vmem:[#allocation5 + $0x119] sm:$0xff] %vm2786, %v2737
      %2823 = vst.msk [vmem:[#allocation5 + $0x121] sm:$0xff] %vm2786, %v2739
      %2824 = vst.msk [vmem:[#allocation5 + $0x129] sm:$0xff] %vm2786, %v2741
      %2825 = vst.msk [vmem:[#allocation5 + $0x131] sm:$0xff] %vm2786, %v2743
      %vm2826 = vcmask 63520
      %2827 = vst.msk [vmem:[#allocation5 + $0x139] sm:$0x7f] %vm2826, %v2745
      %v2828 = vld [vmem:[#allocation2] ss:$2 sm:$0xff]
      %s2829 = scalar_lea.vmem [#allocation2], 16
      %v2830 = vld [vmem:[%s2829] ss:$2 sm:$0xff]
      %s2831 = scalar_lea.vmem [#allocation2], 32
      %v2832 = vld [vmem:[%s2831] ss:$2 sm:$0xff]
      %s2833 = scalar_lea.vmem [#allocation2], 48
      %v2834 = vld [vmem:[%s2833] ss:$2 sm:$0xff]
      %s2835 = scalar_lea.vmem [#allocation2], 64
      %v2836 = vld [vmem:[%s2835] ss:$2 sm:$0xff]
      %s2837 = scalar_lea.vmem [#allocation2], 80
      %v2838 = vld [vmem:[%s2837] ss:$2 sm:$0xff]
      %s2839 = scalar_lea.vmem [#allocation2], 96
      %v2840 = vld [vmem:[%s2839] ss:$2 sm:$0xff]
      %s2841 = scalar_lea.vmem [#allocation2], 112
      %v2842 = vld [vmem:[%s2841] ss:$2 sm:$0xff]
      %s2843 = scalar_lea.vmem [#allocation2], 128
      %v2844 = vld [vmem:[%s2843] ss:$2 sm:$0xff]
      %s2845 = scalar_lea.vmem [#allocation2], 144
      %v2846 = vld [vmem:[%s2845] ss:$2 sm:$0xff]
      %s2847 = scalar_lea.vmem [#allocation2], 160
      %v2848 = vld [vmem:[%s2847] ss:$2 sm:$0xff]
      %s2849 = scalar_lea.vmem [#allocation2], 176
      %v2850 = vld [vmem:[%s2849] ss:$2 sm:$0xff]
      %s2851 = scalar_lea.vmem [#allocation2], 192
      %v2852 = vld [vmem:[%s2851] ss:$2 sm:$0xff]
      %s2853 = scalar_lea.vmem [#allocation2], 208
      %v2854 = vld [vmem:[%s2853] ss:$2 sm:$0xff]
      %s2855 = scalar_lea.vmem [#allocation2], 224
      %v2856 = vld [vmem:[%s2855] ss:$2 sm:$0xff]
      %s2857 = scalar_lea.vmem [#allocation2], 240
      %v2858 = vld [vmem:[%s2857] ss:$2 sm:$0xff]
      %s2859 = scalar_lea.vmem [#allocation2], 256
      %v2860 = vld [vmem:[%s2859] ss:$2 sm:$0xff]
      %s2861 = scalar_lea.vmem [#allocation2], 272
      %v2862 = vld [vmem:[%s2861] ss:$2 sm:$0xff]
      %s2863 = scalar_lea.vmem [#allocation2], 288
      %v2864 = vld [vmem:[%s2863] ss:$2 sm:$0xff]
      %s2865 = scalar_lea.vmem [#allocation2], 304
      %v2866 = vld [vmem:[%s2865] ss:$2 sm:$0xff]
      %s2867 = scalar_lea.vmem [#allocation2], 320
      %v2868 = vld [vmem:[%s2867] ss:$2 sm:$0xff]
      %s2869 = scalar_lea.vmem [#allocation2], 336
      %v2870 = vld [vmem:[%s2869] ss:$2 sm:$0xff]
      %s2871 = scalar_lea.vmem [#allocation2], 352
      %v2872 = vld [vmem:[%s2871] ss:$2 sm:$0xff]
      %s2873 = scalar_lea.vmem [#allocation2], 368
      %v2874 = vld [vmem:[%s2873] ss:$2 sm:$0xff]
      %s2875 = scalar_lea.vmem [#allocation2], 384
      %v2876 = vld [vmem:[%s2875] ss:$2 sm:$0xff]
      %s2877 = scalar_lea.vmem [#allocation2], 400
      %v2878 = vld [vmem:[%s2877] ss:$2 sm:$0xff]
      %s2879 = scalar_lea.vmem [#allocation2], 416
      %v2880 = vld [vmem:[%s2879] ss:$2 sm:$0xff]
      %s2881 = scalar_lea.vmem [#allocation2], 432
      %v2882 = vld [vmem:[%s2881] ss:$2 sm:$0xff]
      %s2883 = scalar_lea.vmem [#allocation2], 448
      %v2884 = vld [vmem:[%s2883] ss:$2 sm:$0xff]
      %s2885 = scalar_lea.vmem [#allocation2], 464
      %v2886 = vld [vmem:[%s2885] ss:$2 sm:$0xff]
      %s2887 = scalar_lea.vmem [#allocation2], 480
      %v2888 = vld [vmem:[%s2887] ss:$2 sm:$0xff]
      %s2889 = scalar_lea.vmem [#allocation2], 496
      %v2890 = vld [vmem:[%s2889] ss:$2 sm:$0xff]
      %s2891 = scalar_lea.vmem [#allocation2], 512
      %v2892 = vld [vmem:[%s2891] ss:$2 sm:$0xff]
      %s2893 = scalar_lea.vmem [#allocation2], 528
      %v2894 = vld [vmem:[%s2893] ss:$2 sm:$0xff]
      %s2895 = scalar_lea.vmem [#allocation2], 544
      %v2896 = vld [vmem:[%s2895] ss:$2 sm:$0xff]
      %s2897 = scalar_lea.vmem [#allocation2], 560
      %v2898 = vld [vmem:[%s2897] ss:$2 sm:$0xff]
      %s2899 = scalar_lea.vmem [#allocation2], 576
      %v2900 = vld [vmem:[%s2899] ss:$2 sm:$0xff]
      %s2901 = scalar_lea.vmem [#allocation2], 592
      %v2902 = vld [vmem:[%s2901] ss:$2 sm:$0xff]
      %s2903 = scalar_lea.vmem [#allocation2], 608
      %v2904 = vld [vmem:[%s2903] ss:$2 sm:$0xff]
      %s2905 = scalar_lea.vmem [#allocation2], 624
      %v2906 = vld [vmem:[%s2905] ss:$2 sm:$0xff]
      %2947 = vrot.lane.b32.xlu0 %v2828, 8
      %v2948 = vpop.permute.xlu0 %2947
      %2949 = vrot.lane.b32.xlu0 %v2830, 8
      %v2950 = vpop.permute.xlu0 %2949
      %2951 = vrot.lane.b32.xlu0 %v2832, 8
      %v2952 = vpop.permute.xlu0 %2951
      %2953 = vrot.lane.b32.xlu0 %v2834, 8
      %v2954 = vpop.permute.xlu0 %2953
      %2955 = vrot.lane.b32.xlu0 %v2836, 8
      %v2956 = vpop.permute.xlu0 %2955
      %2957 = vrot.lane.b32.xlu0 %v2838, 8
      %v2958 = vpop.permute.xlu0 %2957
      %2959 = vrot.lane.b32.xlu0 %v2840, 8
      %v2960 = vpop.permute.xlu0 %2959
      %2961 = vrot.lane.b32.xlu0 %v2842, 8
      %v2962 = vpop.permute.xlu0 %2961
      %2963 = vrot.lane.b32.xlu0 %v2844, 8
      %v2964 = vpop.permute.xlu0 %2963
      %2965 = vrot.lane.b32.xlu0 %v2846, 8
      %v2966 = vpop.permute.xlu0 %2965
      %2967 = vrot.lane.b32.xlu0 %v2848, 8
      %v2968 = vpop.permute.xlu0 %2967
      %2969 = vrot.lane.b32.xlu0 %v2850, 8
      %v2970 = vpop.permute.xlu0 %2969
      %2971 = vrot.lane.b32.xlu0 %v2852, 8
      %v2972 = vpop.permute.xlu0 %2971
      %2973 = vrot.lane.b32.xlu0 %v2854, 8
      %v2974 = vpop.permute.xlu0 %2973
      %2975 = vrot.lane.b32.xlu0 %v2856, 8
      %v2976 = vpop.permute.xlu0 %2975
      %2977 = vrot.lane.b32.xlu0 %v2858, 8
      %v2978 = vpop.permute.xlu0 %2977
      %2979 = vrot.lane.b32.xlu0 %v2860, 8
      %v2980 = vpop.permute.xlu0 %2979
      %2981 = vrot.lane.b32.xlu0 %v2862, 8
      %v2982 = vpop.permute.xlu0 %2981
      %2983 = vrot.lane.b32.xlu0 %v2864, 8
      %v2984 = vpop.permute.xlu0 %2983
      %2985 = vrot.lane.b32.xlu0 %v2866, 8
      %v2986 = vpop.permute.xlu0 %2985
      %2987 = vrot.lane.b32.xlu0 %v2868, 8
      %v2988 = vpop.permute.xlu0 %2987
      %2989 = vrot.lane.b32.xlu0 %v2870, 8
      %v2990 = vpop.permute.xlu0 %2989
      %2991 = vrot.lane.b32.xlu0 %v2872, 8
      %v2992 = vpop.permute.xlu0 %2991
      %2993 = vrot.lane.b32.xlu0 %v2874, 8
      %v2994 = vpop.permute.xlu0 %2993
      %2995 = vrot.lane.b32.xlu0 %v2876, 8
      %v2996 = vpop.permute.xlu0 %2995
      %2997 = vrot.lane.b32.xlu0 %v2878, 8
      %v2998 = vpop.permute.xlu0 %2997
      %2999 = vrot.lane.b32.xlu0 %v2880, 8
      %v3000 = vpop.permute.xlu0 %2999
      %3001 = vrot.lane.b32.xlu0 %v2882, 8
      %v3002 = vpop.permute.xlu0 %3001
      %3003 = vrot.lane.b32.xlu0 %v2884, 8
      %v3004 = vpop.permute.xlu0 %3003
      %3005 = vrot.lane.b32.xlu0 %v2886, 8
      %v3006 = vpop.permute.xlu0 %3005
      %3007 = vrot.lane.b32.xlu0 %v2888, 8
      %v3008 = vpop.permute.xlu0 %3007
      %3009 = vrot.lane.b32.xlu0 %v2890, 8
      %v3010 = vpop.permute.xlu0 %3009
      %3011 = vrot.lane.b32.xlu0 %v2892, 8
      %v3012 = vpop.permute.xlu0 %3011
      %3013 = vrot.lane.b32.xlu0 %v2894, 8
      %v3014 = vpop.permute.xlu0 %3013
      %3015 = vrot.lane.b32.xlu0 %v2896, 8
      %v3016 = vpop.permute.xlu0 %3015
      %3017 = vrot.lane.b32.xlu0 %v2898, 8
      %v3018 = vpop.permute.xlu0 %3017
      %3019 = vrot.lane.b32.xlu0 %v2900, 8
      %v3020 = vpop.permute.xlu0 %3019
      %3021 = vrot.lane.b32.xlu0 %v2902, 8
      %v3022 = vpop.permute.xlu0 %3021
      %3023 = vrot.lane.b32.xlu0 %v2904, 8
      %v3024 = vpop.permute.xlu0 %3023
      %3025 = vrot.lane.b32.xlu0 %v2906, 8
      %v3026 = vpop.permute.xlu0 %3025
      %vm3067 = vcmask 97344
      %3068 = vst.msk [vmem:[#allocation5] sm:$0xff] %vm3067, %v2948
      %3069 = vst.msk [vmem:[#allocation5 + $0x8] sm:$0xff] %vm3067, %v2950
      %3070 = vst.msk [vmem:[#allocation5 + $0x10] sm:$0xff] %vm3067, %v2952
      %3071 = vst.msk [vmem:[#allocation5 + $0x18] sm:$0xff] %vm3067, %v2954
      %3072 = vst.msk [vmem:[#allocation5 + $0x20] sm:$0xff] %vm3067, %v2956
      %3073 = vst.msk [vmem:[#allocation5 + $0x28] sm:$0xff] %vm3067, %v2958
      %3074 = vst.msk [vmem:[#allocation5 + $0x30] sm:$0xff] %vm3067, %v2960
      %3075 = vst.msk [vmem:[#allocation5 + $0x38] sm:$0xff] %vm3067, %v2962
      %3076 = vst.msk [vmem:[#allocation5 + $0x40] sm:$0xff] %vm3067, %v2964
      %3077 = vst.msk [vmem:[#allocation5 + $0x48] sm:$0xff] %vm3067, %v2966
      %3078 = vst.msk [vmem:[#allocation5 + $0x50] sm:$0xff] %vm3067, %v2968
      %3079 = vst.msk [vmem:[#allocation5 + $0x58] sm:$0xff] %vm3067, %v2970
      %3080 = vst.msk [vmem:[#allocation5 + $0x60] sm:$0xff] %vm3067, %v2972
      %3081 = vst.msk [vmem:[#allocation5 + $0x68] sm:$0xff] %vm3067, %v2974
      %3082 = vst.msk [vmem:[#allocation5 + $0x70] sm:$0xff] %vm3067, %v2976
      %3083 = vst.msk [vmem:[#allocation5 + $0x78] sm:$0xff] %vm3067, %v2978
      %3084 = vst.msk [vmem:[#allocation5 + $0x80] sm:$0xff] %vm3067, %v2980
      %3085 = vst.msk [vmem:[#allocation5 + $0x88] sm:$0xff] %vm3067, %v2982
      %3086 = vst.msk [vmem:[#allocation5 + $0x90] sm:$0xff] %vm3067, %v2984
      %3087 = vst.msk [vmem:[#allocation5 + $0x98] sm:$0xff] %vm3067, %v2986
      %3088 = vst.msk [vmem:[#allocation5 + $0xa0] sm:$0xff] %vm3067, %v2988
      %3089 = vst.msk [vmem:[#allocation5 + $0xa8] sm:$0xff] %vm3067, %v2990
      %3090 = vst.msk [vmem:[#allocation5 + $0xb0] sm:$0xff] %vm3067, %v2992
      %3091 = vst.msk [vmem:[#allocation5 + $0xb8] sm:$0xff] %vm3067, %v2994
      %3092 = vst.msk [vmem:[#allocation5 + $0xc0] sm:$0xff] %vm3067, %v2996
      %3093 = vst.msk [vmem:[#allocation5 + $0xc8] sm:$0xff] %vm3067, %v2998
      %3094 = vst.msk [vmem:[#allocation5 + $0xd0] sm:$0xff] %vm3067, %v3000
      %3095 = vst.msk [vmem:[#allocation5 + $0xd8] sm:$0xff] %vm3067, %v3002
      %3096 = vst.msk [vmem:[#allocation5 + $0xe0] sm:$0xff] %vm3067, %v3004
      %3097 = vst.msk [vmem:[#allocation5 + $0xe8] sm:$0xff] %vm3067, %v3006
      %3098 = vst.msk [vmem:[#allocation5 + $0xf0] sm:$0xff] %vm3067, %v3008
      %3099 = vst.msk [vmem:[#allocation5 + $0xf8] sm:$0xff] %vm3067, %v3010
      %3100 = vst.msk [vmem:[#allocation5 + $0x100] sm:$0xff] %vm3067, %v3012
      %3101 = vst.msk [vmem:[#allocation5 + $0x108] sm:$0xff] %vm3067, %v3014
      %3102 = vst.msk [vmem:[#allocation5 + $0x110] sm:$0xff] %vm3067, %v3016
      %3103 = vst.msk [vmem:[#allocation5 + $0x118] sm:$0xff] %vm3067, %v3018
      %3104 = vst.msk [vmem:[#allocation5 + $0x120] sm:$0xff] %vm3067, %v3020
      %3105 = vst.msk [vmem:[#allocation5 + $0x128] sm:$0xff] %vm3067, %v3022
      %3106 = vst.msk [vmem:[#allocation5 + $0x130] sm:$0xff] %vm3067, %v3024
      %3107 = vst.msk [vmem:[#allocation5 + $0x138] sm:$0xff] %vm3067, %v3026
      %v3108 = vld [vmem:[%s2546] ss:$2 sm:$0xff]
      %v3109 = vld [vmem:[%s2548] ss:$2 sm:$0xff]
      %v3110 = vld [vmem:[%s2550] ss:$2 sm:$0xff]
      %v3111 = vld [vmem:[%s2552] ss:$2 sm:$0xff]
      %v3112 = vld [vmem:[%s2554] ss:$2 sm:$0xff]
      %v3113 = vld [vmem:[%s2556] ss:$2 sm:$0xff]
      %v3114 = vld [vmem:[%s2558] ss:$2 sm:$0xff]
      %v3115 = vld [vmem:[%s2560] ss:$2 sm:$0xff]
      %v3116 = vld [vmem:[%s2562] ss:$2 sm:$0xff]
      %v3117 = vld [vmem:[%s2564] ss:$2 sm:$0xff]
      %v3118 = vld [vmem:[%s2566] ss:$2 sm:$0xff]
      %v3119 = vld [vmem:[%s2568] ss:$2 sm:$0xff]
      %v3120 = vld [vmem:[%s2570] ss:$2 sm:$0xff]
      %v3121 = vld [vmem:[%s2572] ss:$2 sm:$0xff]
      %v3122 = vld [vmem:[%s2574] ss:$2 sm:$0xff]
      %v3123 = vld [vmem:[%s2576] ss:$2 sm:$0xff]
      %v3124 = vld [vmem:[%s2578] ss:$2 sm:$0xff]
      %v3125 = vld [vmem:[%s2580] ss:$2 sm:$0xff]
      %v3126 = vld [vmem:[%s2582] ss:$2 sm:$0xff]
      %v3127 = vld [vmem:[%s2584] ss:$2 sm:$0xff]
      %v3128 = vld [vmem:[%s2586] ss:$2 sm:$0xff]
      %v3129 = vld [vmem:[%s2588] ss:$2 sm:$0xff]
      %v3130 = vld [vmem:[%s2590] ss:$2 sm:$0xff]
      %v3131 = vld [vmem:[%s2592] ss:$2 sm:$0xff]
      %v3132 = vld [vmem:[%s2594] ss:$2 sm:$0xff]
      %v3133 = vld [vmem:[%s2596] ss:$2 sm:$0xff]
      %v3134 = vld [vmem:[%s2598] ss:$2 sm:$0xff]
      %v3135 = vld [vmem:[%s2600] ss:$2 sm:$0xff]
      %v3136 = vld [vmem:[%s2602] ss:$2 sm:$0xff]
      %v3137 = vld [vmem:[%s2604] ss:$2 sm:$0xff]
      %v3138 = vld [vmem:[%s2606] ss:$2 sm:$0xff]
      %v3139 = vld [vmem:[%s2608] ss:$2 sm:$0xff]
      %v3140 = vld [vmem:[%s2610] ss:$2 sm:$0xff]
      %v3141 = vld [vmem:[%s2612] ss:$2 sm:$0xff]
      %v3142 = vld [vmem:[%s2614] ss:$2 sm:$0xff]
      %v3143 = vld [vmem:[%s2616] ss:$2 sm:$0xff]
      %v3144 = vld [vmem:[%s2618] ss:$2 sm:$0xff]
      %v3145 = vld [vmem:[%s2620] ss:$2 sm:$0xff]
      %v3146 = vld [vmem:[%s2622] ss:$2 sm:$0xff]
      %v3147 = vld [vmem:[%s2624] ss:$2 sm:$0xff]
      %3188 = vrot.lane.b32.xlu0 %v3108, 12
      %v3189 = vpop.permute.xlu0 %3188
      %3190 = vrot.lane.b32.xlu0 %v3109, 12
      %v3191 = vpop.permute.xlu0 %3190
      %3192 = vrot.lane.b32.xlu0 %v3110, 12
      %v3193 = vpop.permute.xlu0 %3192
      %3194 = vrot.lane.b32.xlu0 %v3111, 12
      %v3195 = vpop.permute.xlu0 %3194
      %3196 = vrot.lane.b32.xlu0 %v3112, 12
      %v3197 = vpop.permute.xlu0 %3196
      %3198 = vrot.lane.b32.xlu0 %v3113, 12
      %v3199 = vpop.permute.xlu0 %3198
      %3200 = vrot.lane.b32.xlu0 %v3114, 12
      %v3201 = vpop.permute.xlu0 %3200
      %3202 = vrot.lane.b32.xlu0 %v3115, 12
      %v3203 = vpop.permute.xlu0 %3202
      %3204 = vrot.lane.b32.xlu0 %v3116, 12
      %v3205 = vpop.permute.xlu0 %3204
      %3206 = vrot.lane.b32.xlu0 %v3117, 12
      %v3207 = vpop.permute.xlu0 %3206
      %3208 = vrot.lane.b32.xlu0 %v3118, 12
      %v3209 = vpop.permute.xlu0 %3208
      %3210 = vrot.lane.b32.xlu0 %v3119, 12
      %v3211 = vpop.permute.xlu0 %3210
      %3212 = vrot.lane.b32.xlu0 %v3120, 12
      %v3213 = vpop.permute.xlu0 %3212
      %3214 = vrot.lane.b32.xlu0 %v3121, 12
      %v3215 = vpop.permute.xlu0 %3214
      %3216 = vrot.lane.b32.xlu0 %v3122, 12
      %v3217 = vpop.permute.xlu0 %3216
      %3218 = vrot.lane.b32.xlu0 %v3123, 12
      %v3219 = vpop.permute.xlu0 %3218
      %3220 = vrot.lane.b32.xlu0 %v3124, 12
      %v3221 = vpop.permute.xlu0 %3220
      %3222 = vrot.lane.b32.xlu0 %v3125, 12
      %v3223 = vpop.permute.xlu0 %3222
      %3224 = vrot.lane.b32.xlu0 %v3126, 12
      %v3225 = vpop.permute.xlu0 %3224
      %3226 = vrot.lane.b32.xlu0 %v3127, 12
      %v3227 = vpop.permute.xlu0 %3226
      %3228 = vrot.lane.b32.xlu0 %v3128, 12
      %v3229 = vpop.permute.xlu0 %3228
      %3230 = vrot.lane.b32.xlu0 %v3129, 12
      %v3231 = vpop.permute.xlu0 %3230
      %3232 = vrot.lane.b32.xlu0 %v3130, 12
      %v3233 = vpop.permute.xlu0 %3232
      %3234 = vrot.lane.b32.xlu0 %v3131, 12
      %v3235 = vpop.permute.xlu0 %3234
      %3236 = vrot.lane.b32.xlu0 %v3132, 12
      %v3237 = vpop.permute.xlu0 %3236
      %3238 = vrot.lane.b32.xlu0 %v3133, 12
      %v3239 = vpop.permute.xlu0 %3238
      %3240 = vrot.lane.b32.xlu0 %v3134, 12
      %v3241 = vpop.permute.xlu0 %3240
      %3242 = vrot.lane.b32.xlu0 %v3135, 12
      %v3243 = vpop.permute.xlu0 %3242
      %3244 = vrot.lane.b32.xlu0 %v3136, 12
      %v3245 = vpop.permute.xlu0 %3244
      %3246 = vrot.lane.b32.xlu0 %v3137, 12
      %v3247 = vpop.permute.xlu0 %3246
      %3248 = vrot.lane.b32.xlu0 %v3138, 12
      %v3249 = vpop.permute.xlu0 %3248
      %3250 = vrot.lane.b32.xlu0 %v3139, 12
      %v3251 = vpop.permute.xlu0 %3250
      %3252 = vrot.lane.b32.xlu0 %v3140, 12
      %v3253 = vpop.permute.xlu0 %3252
      %3254 = vrot.lane.b32.xlu0 %v3141, 12
      %v3255 = vpop.permute.xlu0 %3254
      %3256 = vrot.lane.b32.xlu0 %v3142, 12
      %v3257 = vpop.permute.xlu0 %3256
      %3258 = vrot.lane.b32.xlu0 %v3143, 12
      %v3259 = vpop.permute.xlu0 %3258
      %3260 = vrot.lane.b32.xlu0 %v3144, 12
      %v3261 = vpop.permute.xlu0 %3260
      %3262 = vrot.lane.b32.xlu0 %v3145, 12
      %v3263 = vpop.permute.xlu0 %3262
      %3264 = vrot.lane.b32.xlu0 %v3146, 12
      %v3265 = vpop.permute.xlu0 %3264
      %3266 = vrot.lane.b32.xlu0 %v3147, 12
      %v3267 = vpop.permute.xlu0 %3266
      %vm3308 = vcmask 130144
      %3309 = vst.msk [vmem:[#allocation5] sm:$0xff] %vm3308, %v3189
      %3310 = vst.msk [vmem:[#allocation5 + $0x8] sm:$0xff] %vm3308, %v3191
      %3311 = vst.msk [vmem:[#allocation5 + $0x10] sm:$0xff] %vm3308, %v3193
      %3312 = vst.msk [vmem:[#allocation5 + $0x18] sm:$0xff] %vm3308, %v3195
      %3313 = vst.msk [vmem:[#allocation5 + $0x20] sm:$0xff] %vm3308, %v3197
      %3314 = vst.msk [vmem:[#allocation5 + $0x28] sm:$0xff] %vm3308, %v3199
      %3315 = vst.msk [vmem:[#allocation5 + $0x30] sm:$0xff] %vm3308, %v3201
      %3316 = vst.msk [vmem:[#allocation5 + $0x38] sm:$0xff] %vm3308, %v3203
      %3317 = vst.msk [vmem:[#allocation5 + $0x40] sm:$0xff] %vm3308, %v3205
      %3318 = vst.msk [vmem:[#allocation5 + $0x48] sm:$0xff] %vm3308, %v3207
      %3319 = vst.msk [vmem:[#allocation5 + $0x50] sm:$0xff] %vm3308, %v3209
      %3320 = vst.msk [vmem:[#allocation5 + $0x58] sm:$0xff] %vm3308, %v3211
      %3321 = vst.msk [vmem:[#allocation5 + $0x60] sm:$0xff] %vm3308, %v3213
      %3322 = vst.msk [vmem:[#allocation5 + $0x68] sm:$0xff] %vm3308, %v3215
      %3323 = vst.msk [vmem:[#allocation5 + $0x70] sm:$0xff] %vm3308, %v3217
      %3324 = vst.msk [vmem:[#allocation5 + $0x78] sm:$0xff] %vm3308, %v3219
      %3325 = vst.msk [vmem:[#allocation5 + $0x80] sm:$0xff] %vm3308, %v3221
      %3326 = vst.msk [vmem:[#allocation5 + $0x88] sm:$0xff] %vm3308, %v3223
      %3327 = vst.msk [vmem:[#allocation5 + $0x90] sm:$0xff] %vm3308, %v3225
      %3328 = vst.msk [vmem:[#allocation5 + $0x98] sm:$0xff] %vm3308, %v3227
      %3329 = vst.msk [vmem:[#allocation5 + $0xa0] sm:$0xff] %vm3308, %v3229
      %3330 = vst.msk [vmem:[#allocation5 + $0xa8] sm:$0xff] %vm3308, %v3231
      %3331 = vst.msk [vmem:[#allocation5 + $0xb0] sm:$0xff] %vm3308, %v3233
      %3332 = vst.msk [vmem:[#allocation5 + $0xb8] sm:$0xff] %vm3308, %v3235
      %3333 = vst.msk [vmem:[#allocation5 + $0xc0] sm:$0xff] %vm3308, %v3237
      %3334 = vst.msk [vmem:[#allocation5 + $0xc8] sm:$0xff] %vm3308, %v3239
      %3335 = vst.msk [vmem:[#allocation5 + $0xd0] sm:$0xff] %vm3308, %v3241
      %3336 = vst.msk [vmem:[#allocation5 + $0xd8] sm:$0xff] %vm3308, %v3243
      %3337 = vst.msk [vmem:[#allocation5 + $0xe0] sm:$0xff] %vm3308, %v3245
      %3338 = vst.msk [vmem:[#allocation5 + $0xe8] sm:$0xff] %vm3308, %v3247
      %3339 = vst.msk [vmem:[#allocation5 + $0xf0] sm:$0xff] %vm3308, %v3249
      %3340 = vst.msk [vmem:[#allocation5 + $0xf8] sm:$0xff] %vm3308, %v3251
      %3341 = vst.msk [vmem:[#allocation5 + $0x100] sm:$0xff] %vm3308, %v3253
      %3342 = vst.msk [vmem:[#allocation5 + $0x108] sm:$0xff] %vm3308, %v3255
      %3343 = vst.msk [vmem:[#allocation5 + $0x110] sm:$0xff] %vm3308, %v3257
      %3344 = vst.msk [vmem:[#allocation5 + $0x118] sm:$0xff] %vm3308, %v3259
      %3345 = vst.msk [vmem:[#allocation5 + $0x120] sm:$0xff] %vm3308, %v3261
      %3346 = vst.msk [vmem:[#allocation5 + $0x128] sm:$0xff] %vm3308, %v3263
      %3347 = vst.msk [vmem:[#allocation5 + $0x130] sm:$0xff] %vm3308, %v3265
      %3348 = vst.msk [vmem:[#allocation5 + $0x138] sm:$0xff] %vm3308, %v3267
      %v3349 = vld [vmem:[#allocation5] sm:$0xff]
      %v3350 = vld [vmem:[#allocation5 + $0x8] sm:$0xff]
      %v3351 = vld [vmem:[#allocation5 + $0x10] sm:$0xff]
      %v3352 = vld [vmem:[#allocation5 + $0x18] sm:$0xff]
      %v3353 = vld [vmem:[#allocation5 + $0x20] sm:$0xff]
      %v3354 = vld [vmem:[#allocation5 + $0x28] sm:$0xff]
      %v3355 = vld [vmem:[#allocation5 + $0x30] sm:$0xff]
      %v3356 = vld [vmem:[#allocation5 + $0x38] sm:$0xff]
      %v3357 = vld [vmem:[#allocation5 + $0x40] sm:$0xff]
      %v3358 = vld [vmem:[#allocation5 + $0x48] sm:$0xff]
      %v3359 = vld [vmem:[#allocation5 + $0x50] sm:$0xff]
      %v3360 = vld [vmem:[#allocation5 + $0x58] sm:$0xff]
      %v3361 = vld [vmem:[#allocation5 + $0x60] sm:$0xff]
      %v3362 = vld [vmem:[#allocation5 + $0x68] sm:$0xff]
      %v3363 = vld [vmem:[#allocation5 + $0x70] sm:$0xff]
      %v3364 = vld [vmem:[#allocation5 + $0x78] sm:$0xff]
      %v3365 = vld [vmem:[#allocation5 + $0x80] sm:$0xff]
      %v3366 = vld [vmem:[#allocation5 + $0x88] sm:$0xff]
      %v3367 = vld [vmem:[#allocation5 + $0x90] sm:$0xff]
      %v3368 = vld [vmem:[#allocation5 + $0x98] sm:$0xff]
      %v3369 = vld [vmem:[#allocation5 + $0xa0] sm:$0xff]
      %v3370 = vld [vmem:[#allocation5 + $0xa8] sm:$0xff]
      %v3371 = vld [vmem:[#allocation5 + $0xb0] sm:$0xff]
      %v3372 = vld [vmem:[#allocation5 + $0xb8] sm:$0xff]
      %v3373 = vld [vmem:[#allocation5 + $0xc0] sm:$0xff]
      %v3374 = vld [vmem:[#allocation5 + $0xc8] sm:$0xff]
      %v3375 = vld [vmem:[#allocation5 + $0xd0] sm:$0xff]
      %v3376 = vld [vmem:[#allocation5 + $0xd8] sm:$0xff]
      %v3377 = vld [vmem:[#allocation5 + $0xe0] sm:$0xff]
      %v3378 = vld [vmem:[#allocation5 + $0xe8] sm:$0xff]
      %v3379 = vld [vmem:[#allocation5 + $0xf0] sm:$0xff]
      %v3380 = vld [vmem:[#allocation5 + $0xf8] sm:$0xff]
      %v3381 = vld [vmem:[#allocation5 + $0x100] sm:$0xff]
      %v3382 = vld [vmem:[#allocation5 + $0x108] sm:$0xff]
      %v3383 = vld [vmem:[#allocation5 + $0x110] sm:$0xff]
      %v3384 = vld [vmem:[#allocation5 + $0x118] sm:$0xff]
      %v3385 = vld [vmem:[#allocation5 + $0x120] sm:$0xff]
      %v3386 = vld [vmem:[#allocation5 + $0x128] sm:$0xff]
      %v3387 = vld [vmem:[#allocation5 + $0x130] sm:$0xff]
      %v3388 = vld [vmem:[#allocation5 + $0x138] sm:$0xff]
      %v3389 = vpack.c.bf16 %v3350, %v3349
      %v3390 = vpack.c.bf16 %v3352, %v3351
      %v3391 = vpack.c.bf16 %v3354, %v3353
      %v3392 = vpack.c.bf16 %v3356, %v3355
      %v3393 = vpack.c.bf16 %v3358, %v3357
      %v3394 = vpack.c.bf16 %v3360, %v3359
      %v3395 = vpack.c.bf16 %v3362, %v3361
      %v3396 = vpack.c.bf16 %v3364, %v3363
      %v3397 = vpack.c.bf16 %v3366, %v3365
      %v3398 = vpack.c.bf16 %v3368, %v3367
      %v3399 = vpack.c.bf16 %v3370, %v3369
      %v3400 = vpack.c.bf16 %v3372, %v3371
      %v3401 = vpack.c.bf16 %v3374, %v3373
      %v3402 = vpack.c.bf16 %v3376, %v3375
      %v3403 = vpack.c.bf16 %v3378, %v3377
      %v3404 = vpack.c.bf16 %v3380, %v3379
      %v3405 = vpack.c.bf16 %v3382, %v3381
      %v3406 = vpack.c.bf16 %v3384, %v3383
      %v3407 = vpack.c.bf16 %v3386, %v3385
      %v3408 = vpack.c.bf16 %v3388, %v3387
      %v3409 = vld [vmem:[%s3] sm:$0xf]
      %v3410 = vld [vmem:[%s3 + $0x4] sm:$0xf]
      %v3411 = vld [vmem:[%s4] sm:$0x1]
      %v3412 = vlaneseq
      %v3413 = vshrl.u32 %v3412, 7
      %v3414 = vsub.s32 0, %v3413
      %v3415 = vrot.slane %v3411, %v3414
      %v3418 = vunpack.c.l.b16 %v3409
      %v3419 = vunpack.c.l.b16 %v3410
      %v3420 = vpack.c.b16 %v3419, %v3418
      %vm3422 = vcmask 130048
      %v3424 = vsel %vm3422, %v3389, 0
      %v3427 = vsel %vm3422, %v3390, 0
      %v3430 = vsel %vm3422, %v3391, 0
      %v3433 = vsel %vm3422, %v3392, 0
      %v3436 = vsel %vm3422, %v3393, 0
      %v3439 = vsel %vm3422, %v3394, 0
      %v3442 = vsel %vm3422, %v3395, 0
      %v3445 = vsel %vm3422, %v3396, 0
      %v3448 = vsel %vm3422, %v3397, 0
      %v3451 = vsel %vm3422, %v3398, 0
      %v3454 = vsel %vm3422, %v3399, 0
      %v3457 = vsel %vm3422, %v3400, 0
      %v3460 = vsel %vm3422, %v3401, 0
      %v3463 = vsel %vm3422, %v3402, 0
      %v3466 = vsel %vm3422, %v3403, 0
      %v3469 = vsel %vm3422, %v3404, 0
      %v3472 = vsel %vm3422, %v3405, 0
      %v3475 = vsel %vm3422, %v3406, 0
      %v3478 = vsel %vm3422, %v3407, 0
      %v3481 = vsel %vm3422, %v3408, 0
      %3483 = vmatprep.subr.bf16.mxu0 0
      %3484 = vmatpush1.bf16.msra.mxu0 %v3420
      %3485 = vmatprep.subr.bf16.mxu0 0
      %3486 = vmatpush1.bf16.msra.mxu0 0
      %3487 = vmatprep.subr.bf16.mxu0 0
      %3488 = vmatpush1.bf16.msra.mxu0 0
      %3489 = vmatprep.subr.bf16.mxu0 0
      %3490 = vmatpush1.bf16.msra.mxu0 0
      %3491 = vmatprep.subr.bf16.mxu0 0
      %3492 = vmatpush1.bf16.msra.mxu0 0
      %3493 = vmatprep.subr.bf16.mxu0 0
      %3494 = vmatpush1.bf16.msra.mxu0 0
      %3495 = vmatprep.subr.bf16.mxu0 0
      %3496 = vmatpush1.bf16.msra.mxu0 0
      %3497 = vmatprep.subr.bf16.mxu0 0
      %3498 = vmatpush1.bf16.msra.mxu0 0
      %3499 = vmatprep.subr.bf16.mxu0 0
      %3500 = vmatpush1.bf16.msra.mxu0 0
      %3501 = vmatprep.subr.bf16.mxu0 0
      %3502 = vmatpush1.bf16.msra.mxu0 0
      %3503 = vmatprep.subr.bf16.mxu0 0
      %3504 = vmatpush1.bf16.msra.mxu0 0
      %3505 = vmatprep.subr.bf16.mxu0 0
      %3506 = vmatpush1.bf16.msra.mxu0 0
      %3507 = vmatprep.subr.bf16.mxu0 0
      %3508 = vmatpush1.bf16.msra.mxu0 0
      %3509 = vmatprep.subr.bf16.mxu0 0
      %3510 = vmatpush1.bf16.msra.mxu0 0
      %3511 = vmatprep.subr.bf16.mxu0 0
      %3512 = vmatpush1.bf16.msra.mxu0 0
      %3513 = vmatprep.subr.bf16.mxu0 0
      %3514 = vmatpush1.bf16.msra.mxu0 0
      %3515 = vmatprep.mubr.bf16.mxu0 0
      %3516 = vmatmul.mubr.bf16.gmra.mrb[0].mxu0 %v3424
      %v3517 = vpop.f32.mrb[0].mxu0
      %v3518 = vadd.f32 %v3415, %v3517
      %v3519 = vpop.f32.mrb[0].mxu0
      %v3520 = vpop.f32.mrb[0].mxu0
      %v3521 = vadd.f32 %v3415, %v3520
      %v3522 = vpop.f32.mrb[0].mxu0
      %3523 = vmatprep.mubr.bf16.mxu0 0
      %3524 = vmatmul.mubr.bf16.gmra.mrb[0].mxu0 %v3427
      %v3525 = vpop.f32.mrb[0].mxu0
      %v3526 = vadd.f32 %v3415, %v3525
      %v3527 = vpop.f32.mrb[0].mxu0
      %v3528 = vpop.f32.mrb[0].mxu0
      %v3529 = vadd.f32 %v3415, %v3528
      %v3530 = vpop.f32.mrb[0].mxu0
      %3531 = vmatprep.mubr.bf16.mxu0 0
      %3532 = vmatmul.mubr.bf16.gmra.mrb[0].mxu0 %v3430
      %v3533 = vpop.f32.mrb[0].mxu0
      %v3534 = vadd.f32 %v3415, %v3533
      %v3535 = vpop.f32.mrb[0].mxu0
      %v3536 = vpop.f32.mrb[0].mxu0
      %v3537 = vadd.f32 %v3415, %v3536
      %v3538 = vpop.f32.mrb[0].mxu0
      %3539 = vmatprep.mubr.bf16.mxu0 0
      %3540 = vmatmul.mubr.bf16.gmra.mrb[0].mxu0 %v3433
      %v3541 = vpop.f32.mrb[0].mxu0
      %v3542 = vadd.f32 %v3415, %v3541
      %v3543 = vpop.f32.mrb[0].mxu0
      %v3544 = vpop.f32.mrb[0].mxu0
      %v3545 = vadd.f32 %v3415, %v3544
      %v3546 = vpop.f32.mrb[0].mxu0
      %3547 = vmatprep.mubr.bf16.mxu0 0
      %3548 = vmatmul.mubr.bf16.gmra.mrb[0].mxu0 %v3436
      %v3549 = vpop.f32.mrb[0].mxu0
      %v3550 = vadd.f32 %v3415, %v3549
      %v3551 = vpop.f32.mrb[0].mxu0
      %v3552 = vpop.f32.mrb[0].mxu0
      %v3553 = vadd.f32 %v3415, %v3552
      %v3554 = vpop.f32.mrb[0].mxu0
      %3555 = vmatprep.mubr.bf16.mxu0 0
      %3556 = vmatmul.mubr.bf16.gmra.mrb[0].mxu0 %v3439
      %v3557 = vpop.f32.mrb[0].mxu0
      %v3558 = vadd.f32 %v3415, %v3557
      %v3559 = vpop.f32.mrb[0].mxu0
      %v3560 = vpop.f32.mrb[0].mxu0
      %v3561 = vadd.f32 %v3415, %v3560
      %v3562 = vpop.f32.mrb[0].mxu0
      %3563 = vmatprep.mubr.bf16.mxu0 0
      %3564 = vmatmul.mubr.bf16.gmra.mrb[0].mxu0 %v3442
      %v3565 = vpop.f32.mrb[0].mxu0
      %v3566 = vadd.f32 %v3415, %v3565
      %v3567 = vpop.f32.mrb[0].mxu0
      %v3568 = vpop.f32.mrb[0].mxu0
      %v3569 = vadd.f32 %v3415, %v3568
      %v3570 = vpop.f32.mrb[0].mxu0
      %3571 = vmatprep.mubr.bf16.mxu0 0
      %3572 = vmatmul.mubr.bf16.gmra.mrb[0].mxu0 %v3445
      %v3573 = vpop.f32.mrb[0].mxu0
      %v3574 = vadd.f32 %v3415, %v3573
      %v3575 = vpop.f32.mrb[0].mxu0
      %v3576 = vpop.f32.mrb[0].mxu0
      %v3577 = vadd.f32 %v3415, %v3576
      %v3578 = vpop.f32.mrb[0].mxu0
      %3579 = vmatprep.mubr.bf16.mxu0 0
      %3580 = vmatmul.mubr.bf16.gmra.mrb[0].mxu0 %v3448
      %v3581 = vpop.f32.mrb[0].mxu0
      %v3582 = vadd.f32 %v3415, %v3581
      %v3583 = vpop.f32.mrb[0].mxu0
      %v3584 = vpop.f32.mrb[0].mxu0
      %v3585 = vadd.f32 %v3415, %v3584
      %v3586 = vpop.f32.mrb[0].mxu0
      %3587 = vmatprep.mubr.bf16.mxu0 0
      %3588 = vmatmul.mubr.bf16.gmra.mrb[0].mxu0 %v3451
      %v3589 = vpop.f32.mrb[0].mxu0
      %v3590 = vadd.f32 %v3415, %v3589
      %v3591 = vpop.f32.mrb[0].mxu0
      %v3592 = vpop.f32.mrb[0].mxu0
      %v3593 = vadd.f32 %v3415, %v3592
      %v3594 = vpop.f32.mrb[0].mxu0
      %3595 = vmatprep.mubr.bf16.mxu0 0
      %3596 = vmatmul.mubr.bf16.gmra.mrb[0].mxu0 %v3454
      %v3597 = vpop.f32.mrb[0].mxu0
      %v3598 = vadd.f32 %v3415, %v3597
      %v3599 = vpop.f32.mrb[0].mxu0
      %v3600 = vpop.f32.mrb[0].mxu0
      %v3601 = vadd.f32 %v3415, %v3600
      %v3602 = vpop.f32.mrb[0].mxu0
      %3603 = vmatprep.mubr.bf16.mxu0 0
      %3604 = vmatmul.mubr.bf16.gmra.mrb[0].mxu0 %v3457
      %v3605 = vpop.f32.mrb[0].mxu0
      %v3606 = vadd.f32 %v3415, %v3605
      %v3607 = vpop.f32.mrb[0].mxu0
      %v3608 = vpop.f32.mrb[0].mxu0
      %v3609 = vadd.f32 %v3415, %v3608
      %v3610 = vpop.f32.mrb[0].mxu0
      %3611 = vmatprep.mubr.bf16.mxu0 0
      %3612 = vmatmul.mubr.bf16.gmra.mrb[0].mxu0 %v3460
      %v3613 = vpop.f32.mrb[0].mxu0
      %v3614 = vadd.f32 %v3415, %v3613
      %v3615 = vpop.f32.mrb[0].mxu0
      %v3616 = vpop.f32.mrb[0].mxu0
      %v3617 = vadd.f32 %v3415, %v3616
      %v3618 = vpop.f32.mrb[0].mxu0
      %3619 = vmatprep.mubr.bf16.mxu0 0
      %3620 = vmatmul.mubr.bf16.gmra.mrb[0].mxu0 %v3463
      %v3621 = vpop.f32.mrb[0].mxu0
      %v3622 = vadd.f32 %v3415, %v3621
      %v3623 = vpop.f32.mrb[0].mxu0
      %v3624 = vpop.f32.mrb[0].mxu0
      %v3625 = vadd.f32 %v3415, %v3624
      %v3626 = vpop.f32.mrb[0].mxu0
      %3627 = vmatprep.mubr.bf16.mxu0 0
      %3628 = vmatmul.mubr.bf16.gmra.mrb[0].mxu0 %v3466
      %v3629 = vpop.f32.mrb[0].mxu0
      %v3630 = vadd.f32 %v3415, %v3629
      %v3631 = vpop.f32.mrb[0].mxu0
      %v3632 = vpop.f32.mrb[0].mxu0
      %v3633 = vadd.f32 %v3415, %v3632
      %v3634 = vpop.f32.mrb[0].mxu0
      %3635 = vmatprep.mubr.bf16.mxu0 0
      %3636 = vmatmul.mubr.bf16.gmra.mrb[0].mxu0 %v3469
      %v3637 = vpop.f32.mrb[0].mxu0
      %v3638 = vadd.f32 %v3415, %v3637
      %v3639 = vpop.f32.mrb[0].mxu0
      %v3640 = vpop.f32.mrb[0].mxu0
      %v3641 = vadd.f32 %v3415, %v3640
      %v3642 = vpop.f32.mrb[0].mxu0
      %3643 = vmatprep.mubr.bf16.mxu0 0
      %3644 = vmatmul.mubr.bf16.gmra.mrb[0].mxu0 %v3472
      %v3645 = vpop.f32.mrb[0].mxu0
      %v3646 = vadd.f32 %v3415, %v3645
      %v3647 = vpop.f32.mrb[0].mxu0
      %v3648 = vpop.f32.mrb[0].mxu0
      %v3649 = vadd.f32 %v3415, %v3648
      %v3650 = vpop.f32.mrb[0].mxu0
      %3651 = vmatprep.mubr.bf16.mxu0 0
      %3652 = vmatmul.mubr.bf16.gmra.mrb[0].mxu0 %v3475
      %v3653 = vpop.f32.mrb[0].mxu0
      %v3654 = vadd.f32 %v3415, %v3653
      %v3655 = vpop.f32.mrb[0].mxu0
      %v3656 = vpop.f32.mrb[0].mxu0
      %v3657 = vadd.f32 %v3415, %v3656
      %v3658 = vpop.f32.mrb[0].mxu0
      %3659 = vmatprep.mubr.bf16.mxu0 0
      %3660 = vmatmul.mubr.bf16.gmra.mrb[0].mxu0 %v3478
      %v3661 = vpop.f32.mrb[0].mxu0
      %v3662 = vadd.f32 %v3415, %v3661
      %v3663 = vpop.f32.mrb[0].mxu0
      %v3664 = vpop.f32.mrb[0].mxu0
      %v3665 = vadd.f32 %v3415, %v3664
      %v3666 = vpop.f32.mrb[0].mxu0
      %3667 = vmatprep.mubr.bf16.mxu0 0
      %3668 = vmatmul.mubr.bf16.gmra.mrb[0].mxu0 %v3481
      %v3669 = vpop.f32.mrb[0].mxu0
      %v3670 = vadd.f32 %v3415, %v3669
      %v3671 = vpop.f32.mrb[0].mxu0
      %v3672 = vpop.f32.mrb[0].mxu0
      %v3673 = vadd.f32 %v3415, %v3672
      %v3674 = vpop.f32.mrb[0].mxu0
      %3675 = vdwg.mxu0
      %vm3676 = vcmp.gt.f32.partialorder %v3518, 0.0
      %vm3677 = vcmp.gt.f32.partialorder %v3521, 0.0
      %vm3678 = vcmp.gt.f32.partialorder %v3526, 0.0
      %vm3679 = vcmp.gt.f32.partialorder %v3529, 0.0
      %vm3680 = vcmp.gt.f32.partialorder %v3534, 0.0
      %vm3681 = vcmp.gt.f32.partialorder %v3537, 0.0
      %vm3682 = vcmp.gt.f32.partialorder %v3542, 0.0
      %vm3683 = vcmp.gt.f32.partialorder %v3545, 0.0
      %vm3684 = vcmp.gt.f32.partialorder %v3550, 0.0
      %vm3685 = vcmp.gt.f32.partialorder %v3553, 0.0
      %vm3686 = vcmp.gt.f32.partialorder %v3558, 0.0
      %vm3687 = vcmp.gt.f32.partialorder %v3561, 0.0
      %vm3688 = vcmp.gt.f32.partialorder %v3566, 0.0
      %vm3689 = vcmp.gt.f32.partialorder %v3569, 0.0
      %vm3690 = vcmp.gt.f32.partialorder %v3574, 0.0
      %vm3691 = vcmp.gt.f32.partialorder %v3577, 0.0
      %vm3692 = vcmp.gt.f32.partialorder %v3582, 0.0
      %vm3693 = vcmp.gt.f32.partialorder %v3585, 0.0
      %vm3694 = vcmp.gt.f32.partialorder %v3590, 0.0
      %vm3695 = vcmp.gt.f32.partialorder %v3593, 0.0
      %vm3696 = vcmp.gt.f32.partialorder %v3598, 0.0
      %vm3697 = vcmp.gt.f32.partialorder %v3601, 0.0
      %vm3698 = vcmp.gt.f32.partialorder %v3606, 0.0
      %vm3699 = vcmp.gt.f32.partialorder %v3609, 0.0
      %vm3700 = vcmp.gt.f32.partialorder %v3614, 0.0
      %vm3701 = vcmp.gt.f32.partialorder %v3617, 0.0
      %vm3702 = vcmp.gt.f32.partialorder %v3622, 0.0
      %vm3703 = vcmp.gt.f32.partialorder %v3625, 0.0
      %vm3704 = vcmp.gt.f32.partialorder %v3630, 0.0
      %vm3705 = vcmp.gt.f32.partialorder %v3633, 0.0
      %vm3706 = vcmp.gt.f32.partialorder %v3638, 0.0
      %vm3707 = vcmp.gt.f32.partialorder %v3641, 0.0
      %vm3708 = vcmp.gt.f32.partialorder %v3646, 0.0
      %vm3709 = vcmp.gt.f32.partialorder %v3649, 0.0
      %vm3710 = vcmp.gt.f32.partialorder %v3654, 0.0
      %vm3711 = vcmp.gt.f32.partialorder %v3657, 0.0
      %vm3712 = vcmp.gt.f32.partialorder %v3662, 0.0
      %vm3713 = vcmp.gt.f32.partialorder %v3665, 0.0
      %vm3714 = vcmp.gt.f32.partialorder %v3670, 0.0
      %vm3715 = vcmp.gt.f32.partialorder %v3673, 0.0
      %v3716 = vmin.f32 %v3518, 0.0
      %v3717 = vmin.f32 %v3521, 0.0
      %v3718 = vmin.f32 %v3526, 0.0
      %v3719 = vmin.f32 %v3529, 0.0
      %v3720 = vmin.f32 %v3534, 0.0
      %v3721 = vmin.f32 %v3537, 0.0
      %v3722 = vmin.f32 %v3542, 0.0
      %v3723 = vmin.f32 %v3545, 0.0
      %v3724 = vmin.f32 %v3550, 0.0
      %v3725 = vmin.f32 %v3553, 0.0
      %v3726 = vmin.f32 %v3558, 0.0
      %v3727 = vmin.f32 %v3561, 0.0
      %v3728 = vmin.f32 %v3566, 0.0
      %v3729 = vmin.f32 %v3569, 0.0
      %v3730 = vmin.f32 %v3574, 0.0
      %v3731 = vmin.f32 %v3577, 0.0
      %v3732 = vmin.f32 %v3582, 0.0
      %v3733 = vmin.f32 %v3585, 0.0
      %v3734 = vmin.f32 %v3590, 0.0
      %v3735 = vmin.f32 %v3593, 0.0
      %v3736 = vmin.f32 %v3598, 0.0
      %v3737 = vmin.f32 %v3601, 0.0
      %v3738 = vmin.f32 %v3606, 0.0
      %v3739 = vmin.f32 %v3609, 0.0
      %v3740 = vmin.f32 %v3614, 0.0
      %v3741 = vmin.f32 %v3617, 0.0
      %v3742 = vmin.f32 %v3622, 0.0
      %v3743 = vmin.f32 %v3625, 0.0
      %v3744 = vmin.f32 %v3630, 0.0
      %v3745 = vmin.f32 %v3633, 0.0
      %v3746 = vmin.f32 %v3638, 0.0
      %v3747 = vmin.f32 %v3641, 0.0
      %v3748 = vmin.f32 %v3646, 0.0
      %v3749 = vmin.f32 %v3649, 0.0
      %v3750 = vmin.f32 %v3654, 0.0
      %v3751 = vmin.f32 %v3657, 0.0
      %v3752 = vmin.f32 %v3662, 0.0
      %v3753 = vmin.f32 %v3665, 0.0
      %v3754 = vmin.f32 %v3670, 0.0
      %v3755 = vmin.f32 %v3673, 0.0
      %v3756 = vmul.f32 %v3716, 1.442695
      %v3757 = vpow.pop %v3756
      %v3758 = vmul.f32 %v3717, 1.442695
      %v3759 = vpow.pop %v3758
      %v3760 = vmul.f32 %v3718, 1.442695
      %v3761 = vpow.pop %v3760
      %v3762 = vmul.f32 %v3719, 1.442695
      %v3763 = vpow.pop %v3762
      %v3764 = vmul.f32 %v3720, 1.442695
      %v3765 = vpow.pop %v3764
      %v3766 = vmul.f32 %v3721, 1.442695
      %v3767 = vpow.pop %v3766
      %v3768 = vmul.f32 %v3722, 1.442695
      %v3769 = vpow.pop %v3768
      %v3770 = vmul.f32 %v3723, 1.442695
      %v3771 = vpow.pop %v3770
      %v3772 = vmul.f32 %v3724, 1.442695
      %v3773 = vpow.pop %v3772
      %v3774 = vmul.f32 %v3725, 1.442695
      %v3775 = vpow.pop %v3774
      %v3776 = vmul.f32 %v3726, 1.442695
      %v3777 = vpow.pop %v3776
      %v3778 = vmul.f32 %v3727, 1.442695
      %v3779 = vpow.pop %v3778
      %v3780 = vmul.f32 %v3728, 1.442695
      %v3781 = vpow.pop %v3780
      %v3782 = vmul.f32 %v3729, 1.442695
      %v3783 = vpow.pop %v3782
      %v3784 = vmul.f32 %v3730, 1.442695
      %v3785 = vpow.pop %v3784
      %v3786 = vmul.f32 %v3731, 1.442695
      %v3787 = vpow.pop %v3786
      %v3788 = vmul.f32 %v3732, 1.442695
      %v3789 = vpow.pop %v3788
      %v3790 = vmul.f32 %v3733, 1.442695
      %v3791 = vpow.pop %v3790
      %v3792 = vmul.f32 %v3734, 1.442695
      %v3793 = vpow.pop %v3792
      %v3794 = vmul.f32 %v3735, 1.442695
      %v3795 = vpow.pop %v3794
      %v3796 = vmul.f32 %v3736, 1.442695
      %v3797 = vpow.pop %v3796
      %v3798 = vmul.f32 %v3737, 1.442695
      %v3799 = vpow.pop %v3798
      %v3800 = vmul.f32 %v3738, 1.442695
      %v3801 = vpow.pop %v3800
      %v3802 = vmul.f32 %v3739, 1.442695
      %v3803 = vpow.pop %v3802
      %v3804 = vmul.f32 %v3740, 1.442695
      %v3805 = vpow.pop %v3804
      %v3806 = vmul.f32 %v3741, 1.442695
      %v3807 = vpow.pop %v3806
      %v3808 = vmul.f32 %v3742, 1.442695
      %v3809 = vpow.pop %v3808
      %v3810 = vmul.f32 %v3743, 1.442695
      %v3811 = vpow.pop %v3810
      %v3812 = vmul.f32 %v3744, 1.442695
      %v3813 = vpow.pop %v3812
      %v3814 = vmul.f32 %v3745, 1.442695
      %v3815 = vpow.pop %v3814
      %v3816 = vmul.f32 %v3746, 1.442695
      %v3817 = vpow.pop %v3816
      %v3818 = vmul.f32 %v3747, 1.442695
      %v3819 = vpow.pop %v3818
      %v3820 = vmul.f32 %v3748, 1.442695
      %v3821 = vpow.pop %v3820
      %v3822 = vmul.f32 %v3749, 1.442695
      %v3823 = vpow.pop %v3822
      %v3824 = vmul.f32 %v3750, 1.442695
      %v3825 = vpow.pop %v3824
      %v3826 = vmul.f32 %v3751, 1.442695
      %v3827 = vpow.pop %v3826
      %v3828 = vmul.f32 %v3752, 1.442695
      %v3829 = vpow.pop %v3828
      %v3830 = vmul.f32 %v3753, 1.442695
      %v3831 = vpow.pop %v3830
      %v3832 = vmul.f32 %v3754, 1.442695
      %v3833 = vpow.pop %v3832
      %v3834 = vmul.f32 %v3755, 1.442695
      %v3835 = vpow.pop %v3834
      %v3836 = vsub.f32 %v3757, 1.0
      %v3837 = vsub.f32 %v3759, 1.0
      %v3838 = vsub.f32 %v3761, 1.0
      %v3839 = vsub.f32 %v3763, 1.0
      %v3840 = vsub.f32 %v3765, 1.0
      %v3841 = vsub.f32 %v3767, 1.0
      %v3842 = vsub.f32 %v3769, 1.0
      %v3843 = vsub.f32 %v3771, 1.0
      %v3844 = vsub.f32 %v3773, 1.0
      %v3845 = vsub.f32 %v3775, 1.0
      %v3846 = vsub.f32 %v3777, 1.0
      %v3847 = vsub.f32 %v3779, 1.0
      %v3848 = vsub.f32 %v3781, 1.0
      %v3849 = vsub.f32 %v3783, 1.0
      %v3850 = vsub.f32 %v3785, 1.0
      %v3851 = vsub.f32 %v3787, 1.0
      %v3852 = vsub.f32 %v3789, 1.0
      %v3853 = vsub.f32 %v3791, 1.0
      %v3854 = vsub.f32 %v3793, 1.0
      %v3855 = vsub.f32 %v3795, 1.0
      %v3856 = vsub.f32 %v3797, 1.0
      %v3857 = vsub.f32 %v3799, 1.0
      %v3858 = vsub.f32 %v3801, 1.0
      %v3859 = vsub.f32 %v3803, 1.0
      %v3860 = vsub.f32 %v3805, 1.0
      %v3861 = vsub.f32 %v3807, 1.0
      %v3862 = vsub.f32 %v3809, 1.0
      %v3863 = vsub.f32 %v3811, 1.0
      %v3864 = vsub.f32 %v3813, 1.0
      %v3865 = vsub.f32 %v3815, 1.0
      %v3866 = vsub.f32 %v3817, 1.0
      %v3867 = vsub.f32 %v3819, 1.0
      %v3868 = vsub.f32 %v3821, 1.0
      %v3869 = vsub.f32 %v3823, 1.0
      %v3870 = vsub.f32 %v3825, 1.0
      %v3871 = vsub.f32 %v3827, 1.0
      %v3872 = vsub.f32 %v3829, 1.0
      %v3873 = vsub.f32 %v3831, 1.0
      %v3874 = vsub.f32 %v3833, 1.0
      %v3875 = vsub.f32 %v3835, 1.0
      %v3876 = vsel %vm3676, %v3518, %v3836
      %v3877 = vsel %vm3677, %v3521, %v3837
      %v3878 = vsel %vm3678, %v3526, %v3838
      %v3879 = vsel %vm3679, %v3529, %v3839
      %v3880 = vsel %vm3680, %v3534, %v3840
      %v3881 = vsel %vm3681, %v3537, %v3841
      %v3882 = vsel %vm3682, %v3542, %v3842
      %v3883 = vsel %vm3683, %v3545, %v3843
      %v3884 = vsel %vm3684, %v3550, %v3844
      %v3885 = vsel %vm3685, %v3553, %v3845
      %v3886 = vsel %vm3686, %v3558, %v3846
      %v3887 = vsel %vm3687, %v3561, %v3847
      %v3888 = vsel %vm3688, %v3566, %v3848
      %v3889 = vsel %vm3689, %v3569, %v3849
      %v3890 = vsel %vm3690, %v3574, %v3850
      %v3891 = vsel %vm3691, %v3577, %v3851
      %v3892 = vsel %vm3692, %v3582, %v3852
      %v3893 = vsel %vm3693, %v3585, %v3853
      %v3894 = vsel %vm3694, %v3590, %v3854
      %v3895 = vsel %vm3695, %v3593, %v3855
      %v3896 = vsel %vm3696, %v3598, %v3856
      %v3897 = vsel %vm3697, %v3601, %v3857
      %v3898 = vsel %vm3698, %v3606, %v3858
      %v3899 = vsel %vm3699, %v3609, %v3859
      %v3900 = vsel %vm3700, %v3614, %v3860
      %v3901 = vsel %vm3701, %v3617, %v3861
      %v3902 = vsel %vm3702, %v3622, %v3862
      %v3903 = vsel %vm3703, %v3625, %v3863
      %v3904 = vsel %vm3704, %v3630, %v3864
      %v3905 = vsel %vm3705, %v3633, %v3865
      %v3906 = vsel %vm3706, %v3638, %v3866
      %v3907 = vsel %vm3707, %v3641, %v3867
      %v3908 = vsel %vm3708, %v3646, %v3868
      %v3909 = vsel %vm3709, %v3649, %v3869
      %v3910 = vsel %vm3710, %v3654, %v3870
      %v3911 = vsel %vm3711, %v3657, %v3871
      %v3912 = vsel %vm3712, %v3662, %v3872
      %v3913 = vsel %vm3713, %v3665, %v3873
      %v3914 = vsel %vm3714, %v3670, %v3874
      %v3915 = vsel %vm3715, %v3673, %v3875
      %3916 = vxpose.xlu0.b32.start [1/16] %v3876, 128
      %3917 = vxpose.xlu0.b32.cont [2/16] %v3877, 128
      %3918 = vxpose.xlu0.b32.cont [3/16] %v3878, 128
      %3919 = vxpose.xlu0.b32.cont [4/16] %v3879, 128
      %3920 = vxpose.xlu0.b32.cont [5/16] %v3880, 128
      %3921 = vxpose.xlu0.b32.cont [6/16] %v3881, 128
      %3922 = vxpose.xlu0.b32.cont [7/16] %v3882, 128
      %3923 = vxpose.xlu0.b32.cont [8/16] %v3883, 128
      %3924 = vxpose.xlu0.b32.cont [9/16] %v3884, 128
      %3925 = vxpose.xlu0.b32.cont [10/16] %v3885, 128
      %3926 = vxpose.xlu0.b32.cont [11/16] %v3886, 128
      %3927 = vxpose.xlu0.b32.cont [12/16] %v3887, 128
      %3928 = vxpose.xlu0.b32.cont [13/16] %v3888, 128
      %3929 = vxpose.xlu0.b32.cont [14/16] %v3889, 128
      %3930 = vxpose.xlu0.b32.cont [15/16] %v3890, 128
      %3931 = vxpose.xlu0.b32.end [16/16] %v3891, 128
      %v3932 = vpop.trf.xlu0
      %v3933 = vpop.trf.xlu0
      %v3934 = vpop.trf.xlu0
      %v3935 = vpop.trf.xlu0
      %v3936 = vpop.trf.xlu0
      %v3937 = vpop.trf.xlu0
      %v3938 = vpop.trf.xlu0
      %v3939 = vpop.trf.xlu0
      %v3940 = vpop.trf.xlu0
      %v3941 = vpop.trf.xlu0
      %v3942 = vpop.trf.xlu0
      %v3943 = vpop.trf.xlu0
      %v3944 = vpop.trf.xlu0
      %v3945 = vpop.trf.xlu0
      %v3946 = vpop.trf.xlu0
      %v3947 = vpop.trf.xlu0
      %3948 = vxpose.xlu0.b32.start [1/16] %v3892, 128
      %3949 = vxpose.xlu0.b32.cont [2/16] %v3893, 128
      %3950 = vxpose.xlu0.b32.cont [3/16] %v3894, 128
      %3951 = vxpose.xlu0.b32.cont [4/16] %v3895, 128
      %3952 = vxpose.xlu0.b32.cont [5/16] %v3896, 128
      %3953 = vxpose.xlu0.b32.cont [6/16] %v3897, 128
      %3954 = vxpose.xlu0.b32.cont [7/16] %v3898, 128
      %3955 = vxpose.xlu0.b32.cont [8/16] %v3899, 128
      %3956 = vxpose.xlu0.b32.cont [9/16] %v3900, 128
      %3957 = vxpose.xlu0.b32.cont [10/16] %v3901, 128
      %3958 = vxpose.xlu0.b32.cont [11/16] %v3902, 128
      %3959 = vxpose.xlu0.b32.cont [12/16] %v3903, 128
      %3960 = vxpose.xlu0.b32.cont [13/16] %v3904, 128
      %3961 = vxpose.xlu0.b32.cont [14/16] %v3905, 128
      %3962 = vxpose.xlu0.b32.cont [15/16] %v3906, 128
      %3963 = vxpose.xlu0.b32.end [16/16] %v3907, 128
      %v3964 = vpop.trf.xlu0
      %v3965 = vpop.trf.xlu0
      %v3966 = vpop.trf.xlu0
      %v3967 = vpop.trf.xlu0
      %v3968 = vpop.trf.xlu0
      %v3969 = vpop.trf.xlu0
      %v3970 = vpop.trf.xlu0
      %v3971 = vpop.trf.xlu0
      %v3972 = vpop.trf.xlu0
      %v3973 = vpop.trf.xlu0
      %v3974 = vpop.trf.xlu0
      %v3975 = vpop.trf.xlu0
      %v3976 = vpop.trf.xlu0
      %v3977 = vpop.trf.xlu0
      %v3978 = vpop.trf.xlu0
      %v3979 = vpop.trf.xlu0
      %3980 = vxpose.xlu0.b32.start [1/16] %v3908, 128
      %3981 = vxpose.xlu0.b32.cont [2/16] %v3909, 128
      %3982 = vxpose.xlu0.b32.cont [3/16] %v3910, 128
      %3983 = vxpose.xlu0.b32.cont [4/16] %v3911, 128
      %3984 = vxpose.xlu0.b32.cont [5/16] %v3912, 128
      %3985 = vxpose.xlu0.b32.cont [6/16] %v3913, 128
      %3986 = vxpose.xlu0.b32.cont [7/16] %v3914, 128
      %3987 = vxpose.xlu0.b32.cont [8/16] %v3915, 128
      %3988 = vxpose.xlu0.b32.cont [9/16] 0.0, 128
      %3989 = vxpose.xlu0.b32.cont [10/16] 0.0, 128
      %3990 = vxpose.xlu0.b32.cont [11/16] 0.0, 128
      %3991 = vxpose.xlu0.b32.cont [12/16] 0.0, 128
      %3992 = vxpose.xlu0.b32.cont [13/16] 0.0, 128
      %3993 = vxpose.xlu0.b32.cont [14/16] 0.0, 128
      %3994 = vxpose.xlu0.b32.cont [15/16] 0.0, 128
      %3995 = vxpose.xlu0.b32.end [16/16] 0.0, 128
      %v3996 = vpop.trf.xlu0
      %v3997 = vpop.trf.xlu0
      %v3998 = vpop.trf.xlu0
      %v3999 = vpop.trf.xlu0
      %v4000 = vpop.trf.xlu0
      %v4001 = vpop.trf.xlu0
      %v4002 = vpop.trf.xlu0
      %v4003 = vpop.trf.xlu0
      %v4004 = vpop.trf.xlu0
      %v4005 = vpop.trf.xlu0
      %v4006 = vpop.trf.xlu0
      %v4007 = vpop.trf.xlu0
      %v4008 = vpop.trf.xlu0
      %v4009 = vpop.trf.xlu0
      %v4010 = vpop.trf.xlu0
      %v4011 = vpop.trf.xlu0
      %4012 = vst.msk [vmem:[#allocation6] sm:$0xff] %vm230, 0.0
      %4013 = vst.msk [vmem:[#allocation6 + $0x18] sm:$0xff] %vm230, 0.0
      %4014 = vst.msk [vmem:[#allocation6 + $0x30] sm:$0xff] %vm230, 0.0
      %4015 = vst.msk [vmem:[#allocation6 + $0x48] sm:$0xff] %vm230, 0.0
      %4016 = vst.msk [vmem:[#allocation6 + $0x60] sm:$0xff] %vm230, 0.0
      %4017 = vst.msk [vmem:[#allocation6 + $0x78] sm:$0xff] %vm230, 0.0
      %4018 = vst.msk [vmem:[#allocation6 + $0x90] sm:$0xff] %vm230, 0.0
      %4022 = vrot.lane.b32.xlu0 %v3932, 6
      %v4023 = vpop.permute.xlu0 %4022
      %4024 = vrot.lane.b32.xlu0 %v3964, 6
      %v4025 = vpop.permute.xlu0 %4024
      %4026 = vrot.lane.b32.xlu0 %v3996, 6
      %v4027 = vpop.permute.xlu0 %4026
      %v4028 = vsel %vm230, %v4023, %v4025
      %v4029 = vsel %vm230, %v4025, %v4027
      %vm4033 = vcmask 1047600
      %4034 = vst.msk [vmem:[#allocation6] sm:$0xff] %vm4033, %v4023
      %4035 = vst [vmem:[#allocation6 + $0x8] sm:$0xff] %v4028
      %vm4036 = vcmask 523264
      %4037 = vst.msk [vmem:[#allocation6 + $0x10] sm:$0xff] %vm4036, %v4029
      %4038 = vrot.lane.b32.xlu0 %v3932, 5
      %v4039 = vpop.permute.xlu0 %4038
      %4040 = vrot.lane.b32.xlu0 %v3964, 5
      %v4041 = vpop.permute.xlu0 %4040
      %4042 = vrot.lane.b32.xlu0 %v3996, 5
      %v4043 = vpop.permute.xlu0 %4042
      %v4044 = vsel %vm242, %v4039, %v4041
      %v4045 = vsel %vm242, %v4041, %v4043
      %vm4049 = vcmask 1047592
      %4050 = vst.msk [vmem:[#allocation6 + $0x18] sm:$0xff] %vm4049, %v4039
      %4051 = vst [vmem:[#allocation6 + $0x20] sm:$0xff] %v4044
      %4052 = vst.msk [vmem:[#allocation6 + $0x28] sm:$0xff] %vm4036, %v4045
      %4053 = vrot.lane.b32.xlu0 %v3932, 4
      %v4054 = vpop.permute.xlu0 %4053
      %4055 = vrot.lane.b32.xlu0 %v3964, 4
      %v4056 = vpop.permute.xlu0 %4055
      %4057 = vrot.lane.b32.xlu0 %v3996, 4
      %v4058 = vpop.permute.xlu0 %4057
      %v4059 = vsel %vm253, %v4054, %v4056
      %v4060 = vsel %vm253, %v4056, %v4058
      %vm4064 = vcmask 1047584
      %4065 = vst.msk [vmem:[#allocation6 + $0x30] sm:$0xff] %vm4064, %v4054
      %4066 = vst [vmem:[#allocation6 + $0x38] sm:$0xff] %v4059
      %4067 = vst.msk [vmem:[#allocation6 + $0x40] sm:$0xff] %vm4036, %v4060
      %4068 = vrot.lane.b32.xlu0 %v3932, 3
      %v4069 = vpop.permute.xlu0 %4068
      %4070 = vrot.lane.b32.xlu0 %v3964, 3
      %v4071 = vpop.permute.xlu0 %4070
      %4072 = vrot.lane.b32.xlu0 %v3996, 3
      %v4073 = vpop.permute.xlu0 %4072
      %v4074 = vsel %vm264, %v4069, %v4071
      %v4075 = vsel %vm264, %v4071, %v4073
      %vm4079 = vcmask 1047576
      %4080 = vst.msk [vmem:[#allocation6 + $0x48] sm:$0xff] %vm4079, %v4069
      %4081 = vst [vmem:[#allocation6 + $0x50] sm:$0xff] %v4074
      %4082 = vst.msk [vmem:[#allocation6 + $0x58] sm:$0xff] %vm4036, %v4075
      %4083 = vrot.lane.b32.xlu0 %v3932, 2
      %v4084 = vpop.permute.xlu0 %4083
      %4085 = vrot.lane.b32.xlu0 %v3964, 2
      %v4086 = vpop.permute.xlu0 %4085
      %4087 = vrot.lane.b32.xlu0 %v3996, 2
      %v4088 = vpop.permute.xlu0 %4087
      %v4089 = vsel %vm275, %v4084, %v4086
      %v4090 = vsel %vm275, %v4086, %v4088
      %vm4094 = vcmask 1047568
      %4095 = vst.msk [vmem:[#allocation6 + $0x60] sm:$0xff] %vm4094, %v4084
      %4096 = vst [vmem:[#allocation6 + $0x68] sm:$0xff] %v4089
      %4097 = vst.msk [vmem:[#allocation6 + $0x70] sm:$0xff] %vm4036, %v4090
      %4098 = vrot.lane.b32.xlu0 %v3932, 1
      %v4099 = vpop.permute.xlu0 %4098
      %4100 = vrot.lane.b32.xlu0 %v3964, 1
      %v4101 = vpop.permute.xlu0 %4100
      %4102 = vrot.lane.b32.xlu0 %v3996, 1
      %v4103 = vpop.permute.xlu0 %4102
      %v4104 = vsel %vm286, %v4099, %v4101
      %v4105 = vsel %vm286, %v4101, %v4103
      %vm4109 = vcmask 1047560
      %4110 = vst.msk [vmem:[#allocation6 + $0x78] sm:$0xff] %vm4109, %v4099
      %4111 = vst [vmem:[#allocation6 + $0x80] sm:$0xff] %v4104
      %4112 = vst.msk [vmem:[#allocation6 + $0x88] sm:$0xff] %vm4036, %v4105
      %4113 = vst [vmem:[#allocation6 + $0x90] sm:$0xff] %v3932
      %4114 = vst [vmem:[#allocation6 + $0x98] sm:$0xff] %v3964
      %4115 = vst.msk [vmem:[#allocation6 + $0xa0] sm:$0xff] %vm4036, %v3996
      %v4116 = vld [vmem:[#allocation6] sm:$0xff]
      %v4117 = vld [vmem:[#allocation6 + $0x8] sm:$0xff]
      %v4118 = vld [vmem:[#allocation6 + $0x10] sm:$0xff]
      %v4119 = vld [vmem:[#allocation6 + $0x18] sm:$0xff]
      %v4120 = vld [vmem:[#allocation6 + $0x20] sm:$0xff]
      %v4121 = vld [vmem:[#allocation6 + $0x28] sm:$0xff]
      %v4122 = vld [vmem:[#allocation6 + $0x30] sm:$0xff]
      %v4123 = vld [vmem:[#allocation6 + $0x38] sm:$0xff]
      %v4124 = vld [vmem:[#allocation6 + $0x40] sm:$0xff]
      %v4125 = vld [vmem:[#allocation6 + $0x48] sm:$0xff]
      %v4126 = vld [vmem:[#allocation6 + $0x50] sm:$0xff]
      %v4127 = vld [vmem:[#allocation6 + $0x58] sm:$0xff]
      %v4128 = vld [vmem:[#allocation6 + $0x60] sm:$0xff]
      %v4129 = vld [vmem:[#allocation6 + $0x68] sm:$0xff]
      %v4130 = vld [vmem:[#allocation6 + $0x70] sm:$0xff]
      %v4131 = vld [vmem:[#allocation6 + $0x78] sm:$0xff]
      %v4132 = vld [vmem:[#allocation6 + $0x80] sm:$0xff]
      %v4133 = vld [vmem:[#allocation6 + $0x88] sm:$0xff]
      %v4134 = vld [vmem:[#allocation6 + $0x90] sm:$0xff]
      %v4135 = vld [vmem:[#allocation6 + $0x98] sm:$0xff]
      %v4136 = vld [vmem:[#allocation6 + $0xa0] sm:$0xff]
      %v4137 = vpack.c.bf16 %v4119, %v4116
      %v4138 = vpack.c.bf16 %v4120, %v4117
      %v4139 = vpack.c.bf16 %v4121, %v4118
      %v4140 = vpack.c.bf16 %v4125, %v4122
      %v4141 = vpack.c.bf16 %v4126, %v4123
      %v4142 = vpack.c.bf16 %v4127, %v4124
      %v4143 = vpack.c.bf16 %v4131, %v4128
      %v4144 = vpack.c.bf16 %v4132, %v4129
      %v4145 = vpack.c.bf16 %v4133, %v4130
      %v4146 = vpack.c.bf16 %v4134, %v4134
      %v4147 = vpack.c.bf16 %v4135, %v4135
      %v4148 = vpack.c.bf16 %v4136, %v4136
      %v4149 = vld [vmem:[%s1 + $0x70] sm:$0xf]
      %v4150 = vld [vmem:[%s2] sm:$0xff]
      %4152 = vset.pattern.permute.xlu0 7
      %4153 = vperm.xlu0 %4152, %v4150
      %v4154 = vpop.permute.xlu0 %4153
      %vm4156 = vcmask 457728
      %v4158 = vsel %vm4156, %v4149, 0
      %v4161 = vsel %vm321, %v4146, 0
      %v4164 = vsel %vm321, %v4147, 0
      %v4167 = vsel %vm321, %v4148, 0
      %4169 = vmatprep.subr.bf16.mxu0 %v4138
      %4170 = vmatpush1.bf16.msra.mxu0 %v4137
      %4171 = vmatprep.subr.bf16.mxu0 %v4141
      %4172 = vmatpush1.bf16.msra.mxu0 %v4140
      %4173 = vmatprep.subr.bf16.mxu0 %v4144
      %4174 = vmatpush1.bf16.msra.mxu0 %v4143
      %4175 = vmatprep.subr.bf16.mxu0 %v4164
      %4176 = vmatpush1.bf16.msra.mxu0 %v4161
      %4177 = vmatprep.subr.bf16.mxu0 0
      %4178 = vmatpush1.bf16.msra.mxu0 0
      %4179 = vmatprep.subr.bf16.mxu0 0
      %4180 = vmatpush1.bf16.msra.mxu0 0
      %4181 = vmatprep.subr.bf16.mxu0 0
      %4182 = vmatpush1.bf16.msra.mxu0 0
      %4183 = vmatprep.subr.bf16.mxu0 0
      %4184 = vmatpush1.bf16.msra.mxu0 0
      %4185 = vmatprep.subr.bf16.mxu0 0
      %4186 = vmatpush1.bf16.msra.mxu0 0
      %4187 = vmatprep.subr.bf16.mxu0 0
      %4188 = vmatpush1.bf16.msra.mxu0 0
      %4189 = vmatprep.subr.bf16.mxu0 0
      %4190 = vmatpush1.bf16.msra.mxu0 0
      %4191 = vmatprep.subr.bf16.mxu0 0
      %4192 = vmatpush1.bf16.msra.mxu0 0
      %4193 = vmatprep.subr.bf16.mxu0 0
      %4194 = vmatpush1.bf16.msra.mxu0 0
      %4195 = vmatprep.subr.bf16.mxu0 0
      %4196 = vmatpush1.bf16.msra.mxu0 0
      %4197 = vmatprep.subr.bf16.mxu0 0
      %4198 = vmatpush1.bf16.msra.mxu0 0
      %4199 = vmatprep.subr.bf16.mxu0 0
      %4200 = vmatpush1.bf16.msra.mxu0 0
      %4201 = vmatprep.mubr.bf16.mxu0 0
      %4202 = vmatmul.mubr.bf16.gmra.mrb[0].mxu0 %v4158
      %v4203 = vpop.f32.mrb[0].mxu0
      %v4204 = vadd.f32 %v4154, %v4203
      %v4205 = vpop.f32.mrb[0].mxu0
      %v4206 = vadd.f32 %v4154, %v4205
      %v4207 = vpop.f32.mrb[0].mxu0
      %v4208 = vpop.f32.mrb[0].mxu0
      %4209 = vdwg.mxu0
      %4210 = vmatprep.subr.bf16.mxu0 0
      %4211 = vmatpush1.bf16.msra.mxu0 %v4139
      %4212 = vmatprep.subr.bf16.mxu0 0
      %4213 = vmatpush1.bf16.msra.mxu0 %v4142
      %4214 = vmatprep.subr.bf16.mxu0 0
      %4215 = vmatpush1.bf16.msra.mxu0 %v4145
      %4216 = vmatprep.subr.bf16.mxu0 0
      %4217 = vmatpush1.bf16.msra.mxu0 %v4167
      %4218 = vmatprep.subr.bf16.mxu0 0
      %4219 = vmatpush1.bf16.msra.mxu0 0
      %4220 = vmatprep.subr.bf16.mxu0 0
      %4221 = vmatpush1.bf16.msra.mxu0 0
      %4222 = vmatprep.subr.bf16.mxu0 0
      %4223 = vmatpush1.bf16.msra.mxu0 0
      %4224 = vmatprep.subr.bf16.mxu0 0
      %4225 = vmatpush1.bf16.msra.mxu0 0
      %4226 = vmatprep.subr.bf16.mxu0 0
      %4227 = vmatpush1.bf16.msra.mxu0 0
      %4228 = vmatprep.subr.bf16.mxu0 0
      %4229 = vmatpush1.bf16.msra.mxu0 0
      %4230 = vmatprep.subr.bf16.mxu0 0
      %4231 = vmatpush1.bf16.msra.mxu0 0
      %4232 = vmatprep.subr.bf16.mxu0 0
      %4233 = vmatpush1.bf16.msra.mxu0 0
      %4234 = vmatprep.subr.bf16.mxu0 0
      %4235 = vmatpush1.bf16.msra.mxu0 0
      %4236 = vmatprep.subr.bf16.mxu0 0
      %4237 = vmatpush1.bf16.msra.mxu0 0
      %4238 = vmatprep.subr.bf16.mxu0 0
      %4239 = vmatpush1.bf16.msra.mxu0 0
      %4240 = vmatprep.subr.bf16.mxu0 0
      %4241 = vmatpush1.bf16.msra.mxu0 0
      %4242 = vmatprep.mubr.bf16.mxu0 0
      %4243 = vmatmul.mubr.bf16.gmra.mrb[0].mxu0 %v4158
      %v4244 = vpop.f32.mrb[0].mxu0
      %v4245 = vadd.f32 %v4154, %v4244
      %v4246 = vpop.f32.mrb[0].mxu0
      %v4247 = vpop.f32.mrb[0].mxu0
      %v4248 = vpop.f32.mrb[0].mxu0
      %4249 = vdwg.mxu0
      %vm4250 = vcmp.gt.f32.partialorder %v4204, 0.0
      %vm4251 = vcmp.gt.f32.partialorder %v4206, 0.0
      %vm4252 = vcmp.gt.f32.partialorder %v4245, 0.0
      %v4253 = vmin.f32 %v4204, 0.0
      %v4254 = vmin.f32 %v4206, 0.0
      %v4255 = vmin.f32 %v4245, 0.0
      %v4256 = vmul.f32 %v4253, 1.442695
      %v4257 = vpow.pop %v4256
      %v4258 = vmul.f32 %v4254, 1.442695
      %v4259 = vpow.pop %v4258
      %v4260 = vmul.f32 %v4255, 1.442695
      %v4261 = vpow.pop %v4260
      %v4262 = vsub.f32 %v4257, 1.0
      %v4263 = vsub.f32 %v4259, 1.0
      %v4264 = vsub.f32 %v4261, 1.0
      %v4265 = vsel %vm4250, %v4204, %v4262
      %v4266 = vsel %vm4251, %v4206, %v4263
      %v4267 = vsel %vm4252, %v4245, %v4264
      %v4268 = vpack.c.bf16 %v4265, %v4265
      %v4269 = vpack.c.bf16 %v4266, %v4266
      %v4270 = vpack.c.bf16 %v4267, %v4267
      %v4271 = vld [vmem:[%s1 + $0x80] sm:$0xf]
      %4272 = vset.pattern.permute.xlu0 8
      %4273 = vperm.xlu0 %4272, %v4150
      %v4274 = vpop.permute.xlu0 %4273
      %vm4276 = vcmask 64512
      %v4278 = vsel %vm4276, %v4271, 0
      %v4281 = vsel %vm321, %v4268, 0
      %v4284 = vsel %vm321, %v4269, 0
      %v4287 = vsel %vm321, %v4270, 0
      %4289 = vmatprep.subr.bf16.mxu0 %v4284
      %4290 = vmatpush1.bf16.msra.mxu0 %v4281
      %4291 = vmatprep.subr.bf16.mxu0 0
      %4292 = vmatpush1.bf16.msra.mxu0 0
      %4293 = vmatprep.subr.bf16.mxu0 0
      %4294 = vmatpush1.bf16.msra.mxu0 0
      %4295 = vmatprep.subr.bf16.mxu0 0
      %4296 = vmatpush1.bf16.msra.mxu0 0
      %4297 = vmatprep.subr.bf16.mxu0 0
      %4298 = vmatpush1.bf16.msra.mxu0 0
      %4299 = vmatprep.subr.bf16.mxu0 0
      %4300 = vmatpush1.bf16.msra.mxu0 0
      %4301 = vmatprep.subr.bf16.mxu0 0
      %4302 = vmatpush1.bf16.msra.mxu0 0
      %4303 = vmatprep.subr.bf16.mxu0 0
      %4304 = vmatpush1.bf16.msra.mxu0 0
      %4305 = vmatprep.subr.bf16.mxu0 0
      %4306 = vmatpush1.bf16.msra.mxu0 0
      %4307 = vmatprep.subr.bf16.mxu0 0
      %4308 = vmatpush1.bf16.msra.mxu0 0
      %4309 = vmatprep.subr.bf16.mxu0 0
      %4310 = vmatpush1.bf16.msra.mxu0 0
      %4311 = vmatprep.subr.bf16.mxu0 0
      %4312 = vmatpush1.bf16.msra.mxu0 0
      %4313 = vmatprep.subr.bf16.mxu0 0
      %4314 = vmatpush1.bf16.msra.mxu0 0
      %4315 = vmatprep.subr.bf16.mxu0 0
      %4316 = vmatpush1.bf16.msra.mxu0 0
      %4317 = vmatprep.subr.bf16.mxu0 0
      %4318 = vmatpush1.bf16.msra.mxu0 0
      %4319 = vmatprep.subr.bf16.mxu0 0
      %4320 = vmatpush1.bf16.msra.mxu0 0
      %4321 = vmatprep.mubr.bf16.mxu0 0
      %4322 = vmatmul.mubr.bf16.gmra.mrb[0].mxu0 %v4278
      %v4323 = vpop.f32.mrb[0].mxu0
      %v4324 = vadd.f32 %v4274, %v4323
      %v4325 = vpop.f32.mrb[0].mxu0
      %v4326 = vadd.f32 %v4274, %v4325
      %v4327 = vpop.f32.mrb[0].mxu0
      %v4328 = vpop.f32.mrb[0].mxu0
      %4329 = vdwg.mxu0
      %4330 = vmatprep.subr.bf16.mxu0 0
      %4331 = vmatpush1.bf16.msra.mxu0 %v4287
      %4332 = vmatprep.subr.bf16.mxu0 0
      %4333 = vmatpush1.bf16.msra.mxu0 0
      %4334 = vmatprep.subr.bf16.mxu0 0
      %4335 = vmatpush1.bf16.msra.mxu0 0
      %4336 = vmatprep.subr.bf16.mxu0 0
      %4337 = vmatpush1.bf16.msra.mxu0 0
      %4338 = vmatprep.subr.bf16.mxu0 0
      %4339 = vmatpush1.bf16.msra.mxu0 0
      %4340 = vmatprep.subr.bf16.mxu0 0
      %4341 = vmatpush1.bf16.msra.mxu0 0
      %4342 = vmatprep.subr.bf16.mxu0 0
      %4343 = vmatpush1.bf16.msra.mxu0 0
      %4344 = vmatprep.subr.bf16.mxu0 0
      %4345 = vmatpush1.bf16.msra.mxu0 0
      %4346 = vmatprep.subr.bf16.mxu0 0
      %4347 = vmatpush1.bf16.msra.mxu0 0
      %4348 = vmatprep.subr.bf16.mxu0 0
      %4349 = vmatpush1.bf16.msra.mxu0 0
      %4350 = vmatprep.subr.bf16.mxu0 0
      %4351 = vmatpush1.bf16.msra.mxu0 0
      %4352 = vmatprep.subr.bf16.mxu0 0
      %4353 = vmatpush1.bf16.msra.mxu0 0
      %4354 = vmatprep.subr.bf16.mxu0 0
      %4355 = vmatpush1.bf16.msra.mxu0 0
      %4356 = vmatprep.subr.bf16.mxu0 0
      %4357 = vmatpush1.bf16.msra.mxu0 0
      %4358 = vmatprep.subr.bf16.mxu0 0
      %4359 = vmatpush1.bf16.msra.mxu0 0
      %4360 = vmatprep.subr.bf16.mxu0 0
      %4361 = vmatpush1.bf16.msra.mxu0 0
      %4362 = vmatprep.mubr.bf16.mxu0 0
      %4363 = vmatmul.mubr.bf16.gmra.mrb[0].mxu0 %v4278
      %v4364 = vpop.f32.mrb[0].mxu0
      %v4365 = vadd.f32 %v4274, %v4364
      %v4366 = vpop.f32.mrb[0].mxu0
      %v4367 = vpop.f32.mrb[0].mxu0
      %v4368 = vpop.f32.mrb[0].mxu0
      %4369 = vdwg.mxu0
      %vm4370 = vcmp.gt.f32.partialorder %v4324, 0.0
      %vm4371 = vcmp.gt.f32.partialorder %v4326, 0.0
      %vm4372 = vcmp.gt.f32.partialorder %v4365, 0.0
      %v4373 = vmin.f32 %v4324, 0.0
      %v4374 = vmin.f32 %v4326, 0.0
      %v4375 = vmin.f32 %v4365, 0.0
      %v4376 = vmul.f32 %v4373, 1.442695
      %v4377 = vpow.pop %v4376
      %v4378 = vmul.f32 %v4374, 1.442695
      %v4379 = vpow.pop %v4378
      %v4380 = vmul.f32 %v4375, 1.442695
      %v4381 = vpow.pop %v4380
      %v4382 = vsub.f32 %v4377, 1.0
      %v4383 = vsub.f32 %v4379, 1.0
      %v4384 = vsub.f32 %v4381, 1.0
      %v4385 = vsel %vm4370, %v4324, %v4382
      %v4386 = vsel %vm4371, %v4326, %v4383
      %v4387 = vsel %vm4372, %v4365, %v4384
      %v4388 = vadd.f32 %v4385, %v3932
      %v4389 = vadd.f32 %v4386, %v3964
      %v4390 = vadd.f32 %v4387, %v3996
      %4391 = vst.msk [vmem:[#allocation6] sm:$0xff] %vm1056, 0.0
      %4392 = vst.msk [vmem:[#allocation6 + $0x18] sm:$0xff] %vm1056, 0.0
      %4393 = vst.msk [vmem:[#allocation6 + $0x30] sm:$0xff] %vm1056, 0.0
      %4394 = vst.msk [vmem:[#allocation6 + $0x48] sm:$0xff] %vm1056, 0.0
      %4395 = vst.msk [vmem:[#allocation6 + $0x60] sm:$0xff] %vm1056, 0.0
      %4396 = vst.msk [vmem:[#allocation6 + $0x78] sm:$0xff] %vm1056, 0.0
      %4397 = vst.msk [vmem:[#allocation6 + $0x90] sm:$0xff] %vm1056, 0.0
      %4401 = vrot.lane.b32.xlu0 %v4388, 18
      %v4402 = vpop.permute.xlu0 %4401
      %4403 = vrot.lane.b32.xlu0 %v4389, 18
      %v4404 = vpop.permute.xlu0 %4403
      %4405 = vrot.lane.b32.xlu0 %v4390, 18
      %v4406 = vpop.permute.xlu0 %4405
      %v4407 = vsel %vm1056, %v4402, %v4404
      %v4408 = vsel %vm1056, %v4404, %v4406
      %vm4412 = vcmask 1047696
      %4413 = vst.msk [vmem:[#allocation6] sm:$0xff] %vm4412, %v4402
      %4414 = vst [vmem:[#allocation6 + $0x8] sm:$0xff] %v4407
      %4415 = vst.msk [vmem:[#allocation6 + $0x10] sm:$0xff] %vm4036, %v4408
      %4416 = vrot.lane.b32.xlu0 %v4388, 15
      %v4417 = vpop.permute.xlu0 %4416
      %4418 = vrot.lane.b32.xlu0 %v4389, 15
      %v4419 = vpop.permute.xlu0 %4418
      %4420 = vrot.lane.b32.xlu0 %v4390, 15
      %v4421 = vpop.permute.xlu0 %4420
      %v4422 = vsel %vm1107, %v4417, %v4419
      %v4423 = vsel %vm1107, %v4419, %v4421
      %vm4427 = vcmask 1047672
      %4428 = vst.msk [vmem:[#allocation6 + $0x18] sm:$0xff] %vm4427, %v4417
      %4429 = vst [vmem:[#allocation6 + $0x20] sm:$0xff] %v4422
      %4430 = vst.msk [vmem:[#allocation6 + $0x28] sm:$0xff] %vm4036, %v4423
      %4431 = vrot.lane.b32.xlu0 %v4388, 12
      %v4432 = vpop.permute.xlu0 %4431
      %4433 = vrot.lane.b32.xlu0 %v4389, 12
      %v4434 = vpop.permute.xlu0 %4433
      %4435 = vrot.lane.b32.xlu0 %v4390, 12
      %v4436 = vpop.permute.xlu0 %4435
      %v4437 = vsel %vm1133, %v4432, %v4434
      %v4438 = vsel %vm1133, %v4434, %v4436
      %vm4442 = vcmask 1047648
      %4443 = vst.msk [vmem:[#allocation6 + $0x30] sm:$0xff] %vm4442, %v4432
      %4444 = vst [vmem:[#allocation6 + $0x38] sm:$0xff] %v4437
      %4445 = vst.msk [vmem:[#allocation6 + $0x40] sm:$0xff] %vm4036, %v4438
      %4446 = vrot.lane.b32.xlu0 %v4388, 9
      %v4447 = vpop.permute.xlu0 %4446
      %4448 = vrot.lane.b32.xlu0 %v4389, 9
      %v4449 = vpop.permute.xlu0 %4448
      %4450 = vrot.lane.b32.xlu0 %v4390, 9
      %v4451 = vpop.permute.xlu0 %4450
      %v4452 = vsel %vm1159, %v4447, %v4449
      %v4453 = vsel %vm1159, %v4449, %v4451
      %vm4457 = vcmask 1047624
      %4458 = vst.msk [vmem:[#allocation6 + $0x48] sm:$0xff] %vm4457, %v4447
      %4459 = vst [vmem:[#allocation6 + $0x50] sm:$0xff] %v4452
      %4460 = vst.msk [vmem:[#allocation6 + $0x58] sm:$0xff] %vm4036, %v4453
      %4461 = vrot.lane.b32.xlu0 %v4388, 6
      %v4462 = vpop.permute.xlu0 %4461
      %4463 = vrot.lane.b32.xlu0 %v4389, 6
      %v4464 = vpop.permute.xlu0 %4463
      %4465 = vrot.lane.b32.xlu0 %v4390, 6
      %v4466 = vpop.permute.xlu0 %4465
      %v4467 = vsel %vm230, %v4462, %v4464
      %v4468 = vsel %vm230, %v4464, %v4466
      %4472 = vst.msk [vmem:[#allocation6 + $0x60] sm:$0xff] %vm4033, %v4462
      %4473 = vst [vmem:[#allocation6 + $0x68] sm:$0xff] %v4467
      %4474 = vst.msk [vmem:[#allocation6 + $0x70] sm:$0xff] %vm4036, %v4468
      %4475 = vrot.lane.b32.xlu0 %v4388, 3
      %v4476 = vpop.permute.xlu0 %4475
      %4477 = vrot.lane.b32.xlu0 %v4389, 3
      %v4478 = vpop.permute.xlu0 %4477
      %4479 = vrot.lane.b32.xlu0 %v4390, 3
      %v4480 = vpop.permute.xlu0 %4479
      %v4481 = vsel %vm264, %v4476, %v4478
      %v4482 = vsel %vm264, %v4478, %v4480
      %4486 = vst.msk [vmem:[#allocation6 + $0x78] sm:$0xff] %vm4079, %v4476
      %4487 = vst [vmem:[#allocation6 + $0x80] sm:$0xff] %v4481
      %4488 = vst.msk [vmem:[#allocation6 + $0x88] sm:$0xff] %vm4036, %v4482
      %4489 = vst [vmem:[#allocation6 + $0x90] sm:$0xff] %v4388
      %4490 = vst [vmem:[#allocation6 + $0x98] sm:$0xff] %v4389
      %4491 = vst.msk [vmem:[#allocation6 + $0xa0] sm:$0xff] %vm4036, %v4390
      %v4492 = vld [vmem:[#allocation6] sm:$0xff]
      %v4493 = vld [vmem:[#allocation6 + $0x8] sm:$0xff]
      %v4494 = vld [vmem:[#allocation6 + $0x10] sm:$0xff]
      %v4495 = vld [vmem:[#allocation6 + $0x18] sm:$0xff]
      %v4496 = vld [vmem:[#allocation6 + $0x20] sm:$0xff]
      %v4497 = vld [vmem:[#allocation6 + $0x28] sm:$0xff]
      %v4498 = vld [vmem:[#allocation6 + $0x30] sm:$0xff]
      %v4499 = vld [vmem:[#allocation6 + $0x38] sm:$0xff]
      %v4500 = vld [vmem:[#allocation6 + $0x40] sm:$0xff]
      %v4501 = vld [vmem:[#allocation6 + $0x48] sm:$0xff]
      %v4502 = vld [vmem:[#allocation6 + $0x50] sm:$0xff]
      %v4503 = vld [vmem:[#allocation6 + $0x58] sm:$0xff]
      %v4504 = vld [vmem:[#allocation6 + $0x60] sm:$0xff]
      %v4505 = vld [vmem:[#allocation6 + $0x68] sm:$0xff]
      %v4506 = vld [vmem:[#allocation6 + $0x70] sm:$0xff]
      %v4507 = vld [vmem:[#allocation6 + $0x78] sm:$0xff]
      %v4508 = vld [vmem:[#allocation6 + $0x80] sm:$0xff]
      %v4509 = vld [vmem:[#allocation6 + $0x88] sm:$0xff]
      %v4510 = vld [vmem:[#allocation6 + $0x90] sm:$0xff]
      %v4511 = vld [vmem:[#allocation6 + $0x98] sm:$0xff]
      %v4512 = vld [vmem:[#allocation6 + $0xa0] sm:$0xff]
      %v4513 = vpack.c.bf16 %v4495, %v4492
      %v4514 = vpack.c.bf16 %v4496, %v4493
      %v4515 = vpack.c.bf16 %v4497, %v4494
      %v4516 = vpack.c.bf16 %v4501, %v4498
      %v4517 = vpack.c.bf16 %v4502, %v4499
      %v4518 = vpack.c.bf16 %v4503, %v4500
      %v4519 = vpack.c.bf16 %v4507, %v4504
      %v4520 = vpack.c.bf16 %v4508, %v4505
      %v4521 = vpack.c.bf16 %v4509, %v4506
      %v4522 = vpack.c.bf16 %v4510, %v4510
      %v4523 = vpack.c.bf16 %v4511, %v4511
      %v4524 = vpack.c.bf16 %v4512, %v4512
      %v4525 = vld [vmem:[%s1 + $0x90] sm:$0xf]
      %v4526 = vld [vmem:[%s2] sm:$0xff]
      %4528 = vset.pattern.permute.xlu0 9
      %4529 = vperm.xlu0 %4528, %v4526
      %v4530 = vpop.permute.xlu0 %4529
      %v4533 = vsel %vm4156, %v4525, 0
      %v4536 = vsel %vm321, %v4522, 0
      %v4539 = vsel %vm321, %v4523, 0
      %v4542 = vsel %vm321, %v4524, 0
      %4544 = vmatprep.subr.bf16.mxu0 %v4514
      %4545 = vmatpush1.bf16.msra.mxu0 %v4513
      %4546 = vmatprep.subr.bf16.mxu0 %v4517
      %4547 = vmatpush1.bf16.msra.mxu0 %v4516
      %4548 = vmatprep.subr.bf16.mxu0 %v4520
      %4549 = vmatpush1.bf16.msra.mxu0 %v4519
      %4550 = vmatprep.subr.bf16.mxu0 %v4539
      %4551 = vmatpush1.bf16.msra.mxu0 %v4536
      %4552 = vmatprep.subr.bf16.mxu0 0
      %4553 = vmatpush1.bf16.msra.mxu0 0
      %4554 = vmatprep.subr.bf16.mxu0 0
      %4555 = vmatpush1.bf16.msra.mxu0 0
      %4556 = vmatprep.subr.bf16.mxu0 0
      %4557 = vmatpush1.bf16.msra.mxu0 0
      %4558 = vmatprep.subr.bf16.mxu0 0
      %4559 = vmatpush1.bf16.msra.mxu0 0
      %4560 = vmatprep.subr.bf16.mxu0 0
      %4561 = vmatpush1.bf16.msra.mxu0 0
      %4562 = vmatprep.subr.bf16.mxu0 0
      %4563 = vmatpush1.bf16.msra.mxu0 0
      %4564 = vmatprep.subr.bf16.mxu0 0
      %4565 = vmatpush1.bf16.msra.mxu0 0
      %4566 = vmatprep.subr.bf16.mxu0 0
      %4567 = vmatpush1.bf16.msra.mxu0 0
      %4568 = vmatprep.subr.bf16.mxu0 0
      %4569 = vmatpush1.bf16.msra.mxu0 0
      %4570 = vmatprep.subr.bf16.mxu0 0
      %4571 = vmatpush1.bf16.msra.mxu0 0
      %4572 = vmatprep.subr.bf16.mxu0 0
      %4573 = vmatpush1.bf16.msra.mxu0 0
      %4574 = vmatprep.subr.bf16.mxu0 0
      %4575 = vmatpush1.bf16.msra.mxu0 0
      %4576 = vmatprep.mubr.bf16.mxu0 0
      %4577 = vmatmul.mubr.bf16.gmra.mrb[0].mxu0 %v4533
      %v4578 = vpop.f32.mrb[0].mxu0
      %v4579 = vadd.f32 %v4530, %v4578
      %v4580 = vpop.f32.mrb[0].mxu0
      %v4581 = vadd.f32 %v4530, %v4580
      %v4582 = vpop.f32.mrb[0].mxu0
      %v4583 = vpop.f32.mrb[0].mxu0
      %4584 = vdwg.mxu0
      %4585 = vmatprep.subr.bf16.mxu0 0
      %4586 = vmatpush1.bf16.msra.mxu0 %v4515
      %4587 = vmatprep.subr.bf16.mxu0 0
      %4588 = vmatpush1.bf16.msra.mxu0 %v4518
      %4589 = vmatprep.subr.bf16.mxu0 0
      %4590 = vmatpush1.bf16.msra.mxu0 %v4521
      %4591 = vmatprep.subr.bf16.mxu0 0
      %4592 = vmatpush1.bf16.msra.mxu0 %v4542
      %4593 = vmatprep.subr.bf16.mxu0 0
      %4594 = vmatpush1.bf16.msra.mxu0 0
      %4595 = vmatprep.subr.bf16.mxu0 0
      %4596 = vmatpush1.bf16.msra.mxu0 0
      %4597 = vmatprep.subr.bf16.mxu0 0
      %4598 = vmatpush1.bf16.msra.mxu0 0
      %4599 = vmatprep.subr.bf16.mxu0 0
      %4600 = vmatpush1.bf16.msra.mxu0 0
      %4601 = vmatprep.subr.bf16.mxu0 0
      %4602 = vmatpush1.bf16.msra.mxu0 0
      %4603 = vmatprep.subr.bf16.mxu0 0
      %4604 = vmatpush1.bf16.msra.mxu0 0
      %4605 = vmatprep.subr.bf16.mxu0 0
      %4606 = vmatpush1.bf16.msra.mxu0 0
      %4607 = vmatprep.subr.bf16.mxu0 0
      %4608 = vmatpush1.bf16.msra.mxu0 0
      %4609 = vmatprep.subr.bf16.mxu0 0
      %4610 = vmatpush1.bf16.msra.mxu0 0
      %4611 = vmatprep.subr.bf16.mxu0 0
      %4612 = vmatpush1.bf16.msra.mxu0 0
      %4613 = vmatprep.subr.bf16.mxu0 0
      %4614 = vmatpush1.bf16.msra.mxu0 0
      %4615 = vmatprep.subr.bf16.mxu0 0
      %4616 = vmatpush1.bf16.msra.mxu0 0
      %4617 = vmatprep.mubr.bf16.mxu0 0
      %4618 = vmatmul.mubr.bf16.gmra.mrb[0].mxu0 %v4533
      %v4619 = vpop.f32.mrb[0].mxu0
      %v4620 = vadd.f32 %v4530, %v4619
      %v4621 = vpop.f32.mrb[0].mxu0
      %v4622 = vpop.f32.mrb[0].mxu0
      %v4623 = vpop.f32.mrb[0].mxu0
      %4624 = vdwg.mxu0
      %vm4625 = vcmp.gt.f32.partialorder %v4579, 0.0
      %vm4626 = vcmp.gt.f32.partialorder %v4581, 0.0
      %vm4627 = vcmp.gt.f32.partialorder %v4620, 0.0
      %v4628 = vmin.f32 %v4579, 0.0
      %v4629 = vmin.f32 %v4581, 0.0
      %v4630 = vmin.f32 %v4620, 0.0
      %v4631 = vmul.f32 %v4628, 1.442695
      %v4632 = vpow.pop %v4631
      %v4633 = vmul.f32 %v4629, 1.442695
      %v4634 = vpow.pop %v4633
      %v4635 = vmul.f32 %v4630, 1.442695
      %v4636 = vpow.pop %v4635
      %v4637 = vsub.f32 %v4632, 1.0
      %v4638 = vsub.f32 %v4634, 1.0
      %v4639 = vsub.f32 %v4636, 1.0
      %v4640 = vsel %vm4625, %v4579, %v4637
      %v4641 = vsel %vm4626, %v4581, %v4638
      %v4642 = vsel %vm4627, %v4620, %v4639
      %v4643 = vpack.c.bf16 %v4640, %v4640
      %v4644 = vpack.c.bf16 %v4641, %v4641
      %v4645 = vpack.c.bf16 %v4642, %v4642
      %v4646 = vld [vmem:[%s1 + $0xa0] sm:$0xf]
      %4647 = vset.pattern.permute.xlu0 10
      %4648 = vperm.xlu0 %4647, %v4526
      %v4649 = vpop.permute.xlu0 %4648
      %v4652 = vsel %vm4276, %v4646, 0
      %v4655 = vsel %vm321, %v4643, 0
      %v4658 = vsel %vm321, %v4644, 0
      %v4661 = vsel %vm321, %v4645, 0
      %4663 = vmatprep.subr.bf16.mxu0 %v4658
      %4664 = vmatpush1.bf16.msra.mxu0 %v4655
      %4665 = vmatprep.subr.bf16.mxu0 0
      %4666 = vmatpush1.bf16.msra.mxu0 0
      %4667 = vmatprep.subr.bf16.mxu0 0
      %4668 = vmatpush1.bf16.msra.mxu0 0
      %4669 = vmatprep.subr.bf16.mxu0 0
      %4670 = vmatpush1.bf16.msra.mxu0 0
      %4671 = vmatprep.subr.bf16.mxu0 0
      %4672 = vmatpush1.bf16.msra.mxu0 0
      %4673 = vmatprep.subr.bf16.mxu0 0
      %4674 = vmatpush1.bf16.msra.mxu0 0
      %4675 = vmatprep.subr.bf16.mxu0 0
      %4676 = vmatpush1.bf16.msra.mxu0 0
      %4677 = vmatprep.subr.bf16.mxu0 0
      %4678 = vmatpush1.bf16.msra.mxu0 0
      %4679 = vmatprep.subr.bf16.mxu0 0
      %4680 = vmatpush1.bf16.msra.mxu0 0
      %4681 = vmatprep.subr.bf16.mxu0 0
      %4682 = vmatpush1.bf16.msra.mxu0 0
      %4683 = vmatprep.subr.bf16.mxu0 0
      %4684 = vmatpush1.bf16.msra.mxu0 0
      %4685 = vmatprep.subr.bf16.mxu0 0
      %4686 = vmatpush1.bf16.msra.mxu0 0
      %4687 = vmatprep.subr.bf16.mxu0 0
      %4688 = vmatpush1.bf16.msra.mxu0 0
      %4689 = vmatprep.subr.bf16.mxu0 0
      %4690 = vmatpush1.bf16.msra.mxu0 0
      %4691 = vmatprep.subr.bf16.mxu0 0
      %4692 = vmatpush1.bf16.msra.mxu0 0
      %4693 = vmatprep.subr.bf16.mxu0 0
      %4694 = vmatpush1.bf16.msra.mxu0 0
      %4695 = vmatprep.mubr.bf16.mxu0 0
      %4696 = vmatmul.mubr.bf16.gmra.mrb[0].mxu0 %v4652
      %v4697 = vpop.f32.mrb[0].mxu0
      %v4698 = vadd.f32 %v4649, %v4697
      %v4699 = vpop.f32.mrb[0].mxu0
      %v4700 = vadd.f32 %v4649, %v4699
      %v4701 = vpop.f32.mrb[0].mxu0
      %v4702 = vpop.f32.mrb[0].mxu0
      %4703 = vdwg.mxu0
      %4704 = vmatprep.subr.bf16.mxu0 0
      %4705 = vmatpush1.bf16.msra.mxu0 %v4661
      %4706 = vmatprep.subr.bf16.mxu0 0
      %4707 = vmatpush1.bf16.msra.mxu0 0
      %4708 = vmatprep.subr.bf16.mxu0 0
      %4709 = vmatpush1.bf16.msra.mxu0 0
      %4710 = vmatprep.subr.bf16.mxu0 0
      %4711 = vmatpush1.bf16.msra.mxu0 0
      %4712 = vmatprep.subr.bf16.mxu0 0
      %4713 = vmatpush1.bf16.msra.mxu0 0
      %4714 = vmatprep.subr.bf16.mxu0 0
      %4715 = vmatpush1.bf16.msra.mxu0 0
      %4716 = vmatprep.subr.bf16.mxu0 0
      %4717 = vmatpush1.bf16.msra.mxu0 0
      %4718 = vmatprep.subr.bf16.mxu0 0
      %4719 = vmatpush1.bf16.msra.mxu0 0
      %4720 = vmatprep.subr.bf16.mxu0 0
      %4721 = vmatpush1.bf16.msra.mxu0 0
      %4722 = vmatprep.subr.bf16.mxu0 0
      %4723 = vmatpush1.bf16.msra.mxu0 0
      %4724 = vmatprep.subr.bf16.mxu0 0
      %4725 = vmatpush1.bf16.msra.mxu0 0
      %4726 = vmatprep.subr.bf16.mxu0 0
      %4727 = vmatpush1.bf16.msra.mxu0 0
      %4728 = vmatprep.subr.bf16.mxu0 0
      %4729 = vmatpush1.bf16.msra.mxu0 0
      %4730 = vmatprep.subr.bf16.mxu0 0
      %4731 = vmatpush1.bf16.msra.mxu0 0
      %4732 = vmatprep.subr.bf16.mxu0 0
      %4733 = vmatpush1.bf16.msra.mxu0 0
      %4734 = vmatprep.subr.bf16.mxu0 0
      %4735 = vmatpush1.bf16.msra.mxu0 0
      %4736 = vmatprep.mubr.bf16.mxu0 0
      %4737 = vmatmul.mubr.bf16.gmra.mrb[0].mxu0 %v4652
      %v4738 = vpop.f32.mrb[0].mxu0
      %v4739 = vadd.f32 %v4649, %v4738
      %v4740 = vpop.f32.mrb[0].mxu0
      %v4741 = vpop.f32.mrb[0].mxu0
      %v4742 = vpop.f32.mrb[0].mxu0
      %4743 = vdwg.mxu0
      %vm4744 = vcmp.gt.f32.partialorder %v4698, 0.0
      %vm4745 = vcmp.gt.f32.partialorder %v4700, 0.0
      %vm4746 = vcmp.gt.f32.partialorder %v4739, 0.0
      %v4747 = vmin.f32 %v4698, 0.0
      %v4748 = vmin.f32 %v4700, 0.0
      %v4749 = vmin.f32 %v4739, 0.0
      %v4750 = vmul.f32 %v4747, 1.442695
      %v4751 = vpow.pop %v4750
      %v4752 = vmul.f32 %v4748, 1.442695
      %v4753 = vpow.pop %v4752
      %v4754 = vmul.f32 %v4749, 1.442695
      %v4755 = vpow.pop %v4754
      %v4756 = vsub.f32 %v4751, 1.0
      %v4757 = vsub.f32 %v4753, 1.0
      %v4758 = vsub.f32 %v4755, 1.0
      %v4759 = vsel %vm4744, %v4698, %v4756
      %v4760 = vsel %vm4745, %v4700, %v4757
      %v4761 = vsel %vm4746, %v4739, %v4758
      %v4762 = vadd.f32 %v4759, %v4388
      %v4763 = vadd.f32 %v4760, %v4389
      %v4764 = vadd.f32 %v4761, %v4390
      %4765 = vst.msk [vmem:[#allocation6] sm:$0xff] %vm1620, 0.0
      %4766 = vst.msk [vmem:[#allocation6 + $0x18] sm:$0xff] %vm1620, 0.0
      %4767 = vst.msk [vmem:[#allocation6 + $0x30] sm:$0xff] %vm1620, 0.0
      %4768 = vst.msk [vmem:[#allocation6 + $0x48] sm:$0xff] %vm1620, 0.0
      %4769 = vst.msk [vmem:[#allocation6 + $0x60] sm:$0xff] %vm1620, 0.0
      %4770 = vst.msk [vmem:[#allocation6 + $0x78] sm:$0xff] %vm1620, 0.0
      %4771 = vst.msk [vmem:[#allocation6 + $0x90] sm:$0xff] %vm1620, 0.0
      %4775 = vrot.lane.b32.xlu0 %v4762, 54
      %v4776 = vpop.permute.xlu0 %4775
      %4777 = vrot.lane.b32.xlu0 %v4763, 54
      %v4778 = vpop.permute.xlu0 %4777
      %4779 = vrot.lane.b32.xlu0 %v4764, 54
      %v4780 = vpop.permute.xlu0 %4779
      %v4781 = vsel %vm1620, %v4776, %v4778
      %v4782 = vsel %vm1620, %v4778, %v4780
      %vm4786 = vcmask 1047984
      %4787 = vst.msk [vmem:[#allocation6] sm:$0xff] %vm4786, %v4776
      %4788 = vst [vmem:[#allocation6 + $0x8] sm:$0xff] %v4781
      %4789 = vst.msk [vmem:[#allocation6 + $0x10] sm:$0xff] %vm4036, %v4782
      %4790 = vrot.lane.b32.xlu0 %v4762, 45
      %v4791 = vpop.permute.xlu0 %4790
      %4792 = vrot.lane.b32.xlu0 %v4763, 45
      %v4793 = vpop.permute.xlu0 %4792
      %4794 = vrot.lane.b32.xlu0 %v4764, 45
      %v4795 = vpop.permute.xlu0 %4794
      %v4796 = vsel %vm1671, %v4791, %v4793
      %v4797 = vsel %vm1671, %v4793, %v4795
      %vm4801 = vcmask 1047912
      %4802 = vst.msk [vmem:[#allocation6 + $0x18] sm:$0xff] %vm4801, %v4791
      %4803 = vst [vmem:[#allocation6 + $0x20] sm:$0xff] %v4796
      %4804 = vst.msk [vmem:[#allocation6 + $0x28] sm:$0xff] %vm4036, %v4797
      %4805 = vrot.lane.b32.xlu0 %v4762, 36
      %v4806 = vpop.permute.xlu0 %4805
      %4807 = vrot.lane.b32.xlu0 %v4763, 36
      %v4808 = vpop.permute.xlu0 %4807
      %4809 = vrot.lane.b32.xlu0 %v4764, 36
      %v4810 = vpop.permute.xlu0 %4809
      %v4811 = vsel %vm1697, %v4806, %v4808
      %v4812 = vsel %vm1697, %v4808, %v4810
      %vm4816 = vcmask 1047840
      %4817 = vst.msk [vmem:[#allocation6 + $0x30] sm:$0xff] %vm4816, %v4806
      %4818 = vst [vmem:[#allocation6 + $0x38] sm:$0xff] %v4811
      %4819 = vst.msk [vmem:[#allocation6 + $0x40] sm:$0xff] %vm4036, %v4812
      %4820 = vrot.lane.b32.xlu0 %v4762, 27
      %v4821 = vpop.permute.xlu0 %4820
      %4822 = vrot.lane.b32.xlu0 %v4763, 27
      %v4823 = vpop.permute.xlu0 %4822
      %4824 = vrot.lane.b32.xlu0 %v4764, 27
      %v4825 = vpop.permute.xlu0 %4824
      %v4826 = vsel %vm1723, %v4821, %v4823
      %v4827 = vsel %vm1723, %v4823, %v4825
      %vm4831 = vcmask 1047768
      %4832 = vst.msk [vmem:[#allocation6 + $0x48] sm:$0xff] %vm4831, %v4821
      %4833 = vst [vmem:[#allocation6 + $0x50] sm:$0xff] %v4826
      %4834 = vst.msk [vmem:[#allocation6 + $0x58] sm:$0xff] %vm4036, %v4827
      %4835 = vrot.lane.b32.xlu0 %v4762, 18
      %v4836 = vpop.permute.xlu0 %4835
      %4837 = vrot.lane.b32.xlu0 %v4763, 18
      %v4838 = vpop.permute.xlu0 %4837
      %4839 = vrot.lane.b32.xlu0 %v4764, 18
      %v4840 = vpop.permute.xlu0 %4839
      %v4841 = vsel %vm1056, %v4836, %v4838
      %v4842 = vsel %vm1056, %v4838, %v4840
      %4846 = vst.msk [vmem:[#allocation6 + $0x60] sm:$0xff] %vm4412, %v4836
      %4847 = vst [vmem:[#allocation6 + $0x68] sm:$0xff] %v4841
      %4848 = vst.msk [vmem:[#allocation6 + $0x70] sm:$0xff] %vm4036, %v4842
      %4849 = vrot.lane.b32.xlu0 %v4762, 9
      %v4850 = vpop.permute.xlu0 %4849
      %4851 = vrot.lane.b32.xlu0 %v4763, 9
      %v4852 = vpop.permute.xlu0 %4851
      %4853 = vrot.lane.b32.xlu0 %v4764, 9
      %v4854 = vpop.permute.xlu0 %4853
      %v4855 = vsel %vm1159, %v4850, %v4852
      %v4856 = vsel %vm1159, %v4852, %v4854
      %4860 = vst.msk [vmem:[#allocation6 + $0x78] sm:$0xff] %vm4457, %v4850
      %4861 = vst [vmem:[#allocation6 + $0x80] sm:$0xff] %v4855
      %4862 = vst.msk [vmem:[#allocation6 + $0x88] sm:$0xff] %vm4036, %v4856
      %4863 = vst [vmem:[#allocation6 + $0x90] sm:$0xff] %v4762
      %4864 = vst [vmem:[#allocation6 + $0x98] sm:$0xff] %v4763
      %4865 = vst.msk [vmem:[#allocation6 + $0xa0] sm:$0xff] %vm4036, %v4764
      %v4866 = vld [vmem:[#allocation6] sm:$0xff]
      %v4867 = vld [vmem:[#allocation6 + $0x8] sm:$0xff]
      %v4868 = vld [vmem:[#allocation6 + $0x10] sm:$0xff]
      %v4869 = vld [vmem:[#allocation6 + $0x18] sm:$0xff]
      %v4870 = vld [vmem:[#allocation6 + $0x20] sm:$0xff]
      %v4871 = vld [vmem:[#allocation6 + $0x28] sm:$0xff]
      %v4872 = vld [vmem:[#allocation6 + $0x30] sm:$0xff]
      %v4873 = vld [vmem:[#allocation6 + $0x38] sm:$0xff]
      %v4874 = vld [vmem:[#allocation6 + $0x40] sm:$0xff]
      %v4875 = vld [vmem:[#allocation6 + $0x48] sm:$0xff]
      %v4876 = vld [vmem:[#allocation6 + $0x50] sm:$0xff]
      %v4877 = vld [vmem:[#allocation6 + $0x58] sm:$0xff]
      %v4878 = vld [vmem:[#allocation6 + $0x60] sm:$0xff]
      %v4879 = vld [vmem:[#allocation6 + $0x68] sm:$0xff]
      %v4880 = vld [vmem:[#allocation6 + $0x70] sm:$0xff]
      %v4881 = vld [vmem:[#allocation6 + $0x78] sm:$0xff]
      %v4882 = vld [vmem:[#allocation6 + $0x80] sm:$0xff]
      %v4883 = vld [vmem:[#allocation6 + $0x88] sm:$0xff]
      %v4884 = vld [vmem:[#allocation6 + $0x90] sm:$0xff]
      %v4885 = vld [vmem:[#allocation6 + $0x98] sm:$0xff]
      %v4886 = vld [vmem:[#allocation6 + $0xa0] sm:$0xff]
      %v4887 = vpack.c.bf16 %v4869, %v4866
      %v4888 = vpack.c.bf16 %v4870, %v4867
      %v4889 = vpack.c.bf16 %v4871, %v4868
      %v4890 = vpack.c.bf16 %v4875, %v4872
      %v4891 = vpack.c.bf16 %v4876, %v4873
      %v4892 = vpack.c.bf16 %v4877, %v4874
      %v4893 = vpack.c.bf16 %v4881, %v4878
      %v4894 = vpack.c.bf16 %v4882, %v4879
      %v4895 = vpack.c.bf16 %v4883, %v4880
      %v4896 = vpack.c.bf16 %v4884, %v4884
      %v4897 = vpack.c.bf16 %v4885, %v4885
      %v4898 = vpack.c.bf16 %v4886, %v4886
      %v4899 = vld [vmem:[%s1 + $0xb0] sm:$0xf]
      %v4900 = vld [vmem:[%s2] sm:$0xff]
      %4902 = vset.pattern.permute.xlu0 11
      %4903 = vperm.xlu0 %4902, %v4900
      %v4904 = vpop.permute.xlu0 %4903
      %v4907 = vsel %vm4156, %v4899, 0
      %v4910 = vsel %vm321, %v4896, 0
      %v4913 = vsel %vm321, %v4897, 0
      %v4916 = vsel %vm321, %v4898, 0
      %4918 = vmatprep.subr.bf16.mxu0 %v4888
      %4919 = vmatpush1.bf16.msra.mxu0 %v4887
      %4920 = vmatprep.subr.bf16.mxu0 %v4891
      %4921 = vmatpush1.bf16.msra.mxu0 %v4890
      %4922 = vmatprep.subr.bf16.mxu0 %v4894
      %4923 = vmatpush1.bf16.msra.mxu0 %v4893
      %4924 = vmatprep.subr.bf16.mxu0 %v4913
      %4925 = vmatpush1.bf16.msra.mxu0 %v4910
      %4926 = vmatprep.subr.bf16.mxu0 0
      %4927 = vmatpush1.bf16.msra.mxu0 0
      %4928 = vmatprep.subr.bf16.mxu0 0
      %4929 = vmatpush1.bf16.msra.mxu0 0
      %4930 = vmatprep.subr.bf16.mxu0 0
      %4931 = vmatpush1.bf16.msra.mxu0 0
      %4932 = vmatprep.subr.bf16.mxu0 0
      %4933 = vmatpush1.bf16.msra.mxu0 0
      %4934 = vmatprep.subr.bf16.mxu0 0
      %4935 = vmatpush1.bf16.msra.mxu0 0
      %4936 = vmatprep.subr.bf16.mxu0 0
      %4937 = vmatpush1.bf16.msra.mxu0 0
      %4938 = vmatprep.subr.bf16.mxu0 0
      %4939 = vmatpush1.bf16.msra.mxu0 0
      %4940 = vmatprep.subr.bf16.mxu0 0
      %4941 = vmatpush1.bf16.msra.mxu0 0
      %4942 = vmatprep.subr.bf16.mxu0 0
      %4943 = vmatpush1.bf16.msra.mxu0 0
      %4944 = vmatprep.subr.bf16.mxu0 0
      %4945 = vmatpush1.bf16.msra.mxu0 0
      %4946 = vmatprep.subr.bf16.mxu0 0
      %4947 = vmatpush1.bf16.msra.mxu0 0
      %4948 = vmatprep.subr.bf16.mxu0 0
      %4949 = vmatpush1.bf16.msra.mxu0 0
      %4950 = vmatprep.mubr.bf16.mxu0 0
      %4951 = vmatmul.mubr.bf16.gmra.mrb[0].mxu0 %v4907
      %v4952 = vpop.f32.mrb[0].mxu0
      %v4953 = vadd.f32 %v4904, %v4952
      %v4954 = vpop.f32.mrb[0].mxu0
      %v4955 = vadd.f32 %v4904, %v4954
      %v4956 = vpop.f32.mrb[0].mxu0
      %v4957 = vpop.f32.mrb[0].mxu0
      %4958 = vdwg.mxu0
      %4959 = vmatprep.subr.bf16.mxu0 0
      %4960 = vmatpush1.bf16.msra.mxu0 %v4889
      %4961 = vmatprep.subr.bf16.mxu0 0
      %4962 = vmatpush1.bf16.msra.mxu0 %v4892
      %4963 = vmatprep.subr.bf16.mxu0 0
      %4964 = vmatpush1.bf16.msra.mxu0 %v4895
      %4965 = vmatprep.subr.bf16.mxu0 0
      %4966 = vmatpush1.bf16.msra.mxu0 %v4916
      %4967 = vmatprep.subr.bf16.mxu0 0
      %4968 = vmatpush1.bf16.msra.mxu0 0
      %4969 = vmatprep.subr.bf16.mxu0 0
      %4970 = vmatpush1.bf16.msra.mxu0 0
      %4971 = vmatprep.subr.bf16.mxu0 0
      %4972 = vmatpush1.bf16.msra.mxu0 0
      %4973 = vmatprep.subr.bf16.mxu0 0
      %4974 = vmatpush1.bf16.msra.mxu0 0
      %4975 = vmatprep.subr.bf16.mxu0 0
      %4976 = vmatpush1.bf16.msra.mxu0 0
      %4977 = vmatprep.subr.bf16.mxu0 0
      %4978 = vmatpush1.bf16.msra.mxu0 0
      %4979 = vmatprep.subr.bf16.mxu0 0
      %4980 = vmatpush1.bf16.msra.mxu0 0
      %4981 = vmatprep.subr.bf16.mxu0 0
      %4982 = vmatpush1.bf16.msra.mxu0 0
      %4983 = vmatprep.subr.bf16.mxu0 0
      %4984 = vmatpush1.bf16.msra.mxu0 0
      %4985 = vmatprep.subr.bf16.mxu0 0
      %4986 = vmatpush1.bf16.msra.mxu0 0
      %4987 = vmatprep.subr.bf16.mxu0 0
      %4988 = vmatpush1.bf16.msra.mxu0 0
      %4989 = vmatprep.subr.bf16.mxu0 0
      %4990 = vmatpush1.bf16.msra.mxu0 0
      %4991 = vmatprep.mubr.bf16.mxu0 0
      %4992 = vmatmul.mubr.bf16.gmra.mrb[0].mxu0 %v4907
      %v4993 = vpop.f32.mrb[0].mxu0
      %v4994 = vadd.f32 %v4904, %v4993
      %v4995 = vpop.f32.mrb[0].mxu0
      %v4996 = vpop.f32.mrb[0].mxu0
      %v4997 = vpop.f32.mrb[0].mxu0
      %4998 = vdwg.mxu0
      %vm4999 = vcmp.gt.f32.partialorder %v4953, 0.0
      %vm5000 = vcmp.gt.f32.partialorder %v4955, 0.0
      %vm5001 = vcmp.gt.f32.partialorder %v4994, 0.0
      %v5002 = vmin.f32 %v4953, 0.0
      %v5003 = vmin.f32 %v4955, 0.0
      %v5004 = vmin.f32 %v4994, 0.0
      %v5005 = vmul.f32 %v5002, 1.442695
      %v5006 = vpow.pop %v5005
      %v5007 = vmul.f32 %v5003, 1.442695
      %v5008 = vpow.pop %v5007
      %v5009 = vmul.f32 %v5004, 1.442695
      %v5010 = vpow.pop %v5009
      %v5011 = vsub.f32 %v5006, 1.0
      %v5012 = vsub.f32 %v5008, 1.0
      %v5013 = vsub.f32 %v5010, 1.0
      %v5014 = vsel %vm4999, %v4953, %v5011
      %v5015 = vsel %vm5000, %v4955, %v5012
      %v5016 = vsel %vm5001, %v4994, %v5013
      %v5017 = vpack.c.bf16 %v5014, %v5014
      %v5018 = vpack.c.bf16 %v5015, %v5015
      %v5019 = vpack.c.bf16 %v5016, %v5016
      %v5020 = vld [vmem:[%s1 + $0xc0] sm:$0xf]
      %5021 = vset.pattern.permute.xlu0 12
      %5022 = vperm.xlu0 %5021, %v4900
      %v5023 = vpop.permute.xlu0 %5022
      %v5026 = vsel %vm4276, %v5020, 0
      %v5029 = vsel %vm321, %v5017, 0
      %v5032 = vsel %vm321, %v5018, 0
      %v5035 = vsel %vm321, %v5019, 0
      %5037 = vmatprep.subr.bf16.mxu0 %v5032
      %5038 = vmatpush1.bf16.msra.mxu0 %v5029
      %5039 = vmatprep.subr.bf16.mxu0 0
      %5040 = vmatpush1.bf16.msra.mxu0 0
      %5041 = vmatprep.subr.bf16.mxu0 0
      %5042 = vmatpush1.bf16.msra.mxu0 0
      %5043 = vmatprep.subr.bf16.mxu0 0
      %5044 = vmatpush1.bf16.msra.mxu0 0
      %5045 = vmatprep.subr.bf16.mxu0 0
      %5046 = vmatpush1.bf16.msra.mxu0 0
      %5047 = vmatprep.subr.bf16.mxu0 0
      %5048 = vmatpush1.bf16.msra.mxu0 0
      %5049 = vmatprep.subr.bf16.mxu0 0
      %5050 = vmatpush1.bf16.msra.mxu0 0
      %5051 = vmatprep.subr.bf16.mxu0 0
      %5052 = vmatpush1.bf16.msra.mxu0 0
      %5053 = vmatprep.subr.bf16.mxu0 0
      %5054 = vmatpush1.bf16.msra.mxu0 0
      %5055 = vmatprep.subr.bf16.mxu0 0
      %5056 = vmatpush1.bf16.msra.mxu0 0
      %5057 = vmatprep.subr.bf16.mxu0 0
      %5058 = vmatpush1.bf16.msra.mxu0 0
      %5059 = vmatprep.subr.bf16.mxu0 0
      %5060 = vmatpush1.bf16.msra.mxu0 0
      %5061 = vmatprep.subr.bf16.mxu0 0
      %5062 = vmatpush1.bf16.msra.mxu0 0
      %5063 = vmatprep.subr.bf16.mxu0 0
      %5064 = vmatpush1.bf16.msra.mxu0 0
      %5065 = vmatprep.subr.bf16.mxu0 0
      %5066 = vmatpush1.bf16.msra.mxu0 0
      %5067 = vmatprep.subr.bf16.mxu0 0
      %5068 = vmatpush1.bf16.msra.mxu0 0
      %5069 = vmatprep.mubr.bf16.mxu0 0
      %5070 = vmatmul.mubr.bf16.gmra.mrb[0].mxu0 %v5026
      %v5071 = vpop.f32.mrb[0].mxu0
      %v5072 = vadd.f32 %v5023, %v5071
      %v5073 = vpop.f32.mrb[0].mxu0
      %v5074 = vadd.f32 %v5023, %v5073
      %v5075 = vpop.f32.mrb[0].mxu0
      %v5076 = vpop.f32.mrb[0].mxu0
      %5077 = vdwg.mxu0
      %5078 = vmatprep.subr.bf16.mxu0 0
      %5079 = vmatpush1.bf16.msra.mxu0 %v5035
      %5080 = vmatprep.subr.bf16.mxu0 0
      %5081 = vmatpush1.bf16.msra.mxu0 0
      %5082 = vmatprep.subr.bf16.mxu0 0
      %5083 = vmatpush1.bf16.msra.mxu0 0
      %5084 = vmatprep.subr.bf16.mxu0 0
      %5085 = vmatpush1.bf16.msra.mxu0 0
      %5086 = vmatprep.subr.bf16.mxu0 0
      %5087 = vmatpush1.bf16.msra.mxu0 0
      %5088 = vmatprep.subr.bf16.mxu0 0
      %5089 = vmatpush1.bf16.msra.mxu0 0
      %5090 = vmatprep.subr.bf16.mxu0 0
      %5091 = vmatpush1.bf16.msra.mxu0 0
      %5092 = vmatprep.subr.bf16.mxu0 0
      %5093 = vmatpush1.bf16.msra.mxu0 0
      %5094 = vmatprep.subr.bf16.mxu0 0
      %5095 = vmatpush1.bf16.msra.mxu0 0
      %5096 = vmatprep.subr.bf16.mxu0 0
      %5097 = vmatpush1.bf16.msra.mxu0 0
      %5098 = vmatprep.subr.bf16.mxu0 0
      %5099 = vmatpush1.bf16.msra.mxu0 0
      %5100 = vmatprep.subr.bf16.mxu0 0
      %5101 = vmatpush1.bf16.msra.mxu0 0
      %5102 = vmatprep.subr.bf16.mxu0 0
      %5103 = vmatpush1.bf16.msra.mxu0 0
      %5104 = vmatprep.subr.bf16.mxu0 0
      %5105 = vmatpush1.bf16.msra.mxu0 0
      %5106 = vmatprep.subr.bf16.mxu0 0
      %5107 = vmatpush1.bf16.msra.mxu0 0
      %5108 = vmatprep.subr.bf16.mxu0 0
      %5109 = vmatpush1.bf16.msra.mxu0 0
      %5110 = vmatprep.mubr.bf16.mxu0 0
      %5111 = vmatmul.mubr.bf16.gmra.mrb[0].mxu0 %v5026
      %v5112 = vpop.f32.mrb[0].mxu0
      %v5113 = vadd.f32 %v5023, %v5112
      %v5114 = vpop.f32.mrb[0].mxu0
      %v5115 = vpop.f32.mrb[0].mxu0
      %v5116 = vpop.f32.mrb[0].mxu0
      %5117 = vdwg.mxu0
      %vm5118 = vcmp.gt.f32.partialorder %v5072, 0.0
      %vm5119 = vcmp.gt.f32.partialorder %v5074, 0.0
      %vm5120 = vcmp.gt.f32.partialorder %v5113, 0.0
      %v5121 = vmin.f32 %v5072, 0.0
      %v5122 = vmin.f32 %v5074, 0.0
      %v5123 = vmin.f32 %v5113, 0.0
      %v5124 = vmul.f32 %v5121, 1.442695
      %v5125 = vpow.pop %v5124
      %v5126 = vmul.f32 %v5122, 1.442695
      %v5127 = vpow.pop %v5126
      %v5128 = vmul.f32 %v5123, 1.442695
      %v5129 = vpow.pop %v5128
      %v5130 = vsub.f32 %v5125, 1.0
      %v5131 = vsub.f32 %v5127, 1.0
      %v5132 = vsub.f32 %v5129, 1.0
      %v5133 = vsel %vm5118, %v5072, %v5130
      %v5134 = vsel %vm5119, %v5074, %v5131
      %v5135 = vsel %vm5120, %v5113, %v5132
      %v5136 = vadd.f32 %v5133, %v4762
      %v5137 = vadd.f32 %v5134, %v4763
      %v5138 = vadd.f32 %v5135, %v4764
      %5139 = vxpose.xlu0.b32.start [1/16] %v5136, 128
      %5140 = vxpose.xlu0.b32.cont [2/16] 0.0, 128
      %5141 = vxpose.xlu0.b32.cont [3/16] 0.0, 128
      %5142 = vxpose.xlu0.b32.cont [4/16] 0.0, 128
      %5143 = vxpose.xlu0.b32.cont [5/16] 0.0, 128
      %5144 = vxpose.xlu0.b32.cont [6/16] 0.0, 128
      %5145 = vxpose.xlu0.b32.cont [7/16] 0.0, 128
      %5146 = vxpose.xlu0.b32.cont [8/16] 0.0, 128
      %5147 = vxpose.xlu0.b32.cont [9/16] 0.0, 128
      %5148 = vxpose.xlu0.b32.cont [10/16] 0.0, 128
      %5149 = vxpose.xlu0.b32.cont [11/16] 0.0, 128
      %5150 = vxpose.xlu0.b32.cont [12/16] 0.0, 128
      %5151 = vxpose.xlu0.b32.cont [13/16] 0.0, 128
      %5152 = vxpose.xlu0.b32.cont [14/16] 0.0, 128
      %5153 = vxpose.xlu0.b32.cont [15/16] 0.0, 128
      %5154 = vxpose.xlu0.b32.end [16/16] 0.0, 128
      %v5155 = vpop.trf.xlu0
      %v5156 = vpop.trf.xlu0
      %v5157 = vpop.trf.xlu0
      %v5158 = vpop.trf.xlu0
      %v5159 = vpop.trf.xlu0
      %v5160 = vpop.trf.xlu0
      %v5161 = vpop.trf.xlu0
      %v5162 = vpop.trf.xlu0
      %v5163 = vpop.trf.xlu0
      %v5164 = vpop.trf.xlu0
      %v5165 = vpop.trf.xlu0
      %v5166 = vpop.trf.xlu0
      %v5167 = vpop.trf.xlu0
      %v5168 = vpop.trf.xlu0
      %v5169 = vpop.trf.xlu0
      %v5170 = vpop.trf.xlu0
      %5171 = vxpose.xlu0.b32.start [1/16] %v5137, 128
      %5172 = vxpose.xlu0.b32.cont [2/16] 0.0, 128
      %5173 = vxpose.xlu0.b32.cont [3/16] 0.0, 128
      %5174 = vxpose.xlu0.b32.cont [4/16] 0.0, 128
      %5175 = vxpose.xlu0.b32.cont [5/16] 0.0, 128
      %5176 = vxpose.xlu0.b32.cont [6/16] 0.0, 128
      %5177 = vxpose.xlu0.b32.cont [7/16] 0.0, 128
      %5178 = vxpose.xlu0.b32.cont [8/16] 0.0, 128
      %5179 = vxpose.xlu0.b32.cont [9/16] 0.0, 128
      %5180 = vxpose.xlu0.b32.cont [10/16] 0.0, 128
      %5181 = vxpose.xlu0.b32.cont [11/16] 0.0, 128
      %5182 = vxpose.xlu0.b32.cont [12/16] 0.0, 128
      %5183 = vxpose.xlu0.b32.cont [13/16] 0.0, 128
      %5184 = vxpose.xlu0.b32.cont [14/16] 0.0, 128
      %5185 = vxpose.xlu0.b32.cont [15/16] 0.0, 128
      %5186 = vxpose.xlu0.b32.end [16/16] 0.0, 128
      %v5187 = vpop.trf.xlu0
      %v5188 = vpop.trf.xlu0
      %v5189 = vpop.trf.xlu0
      %v5190 = vpop.trf.xlu0
      %v5191 = vpop.trf.xlu0
      %v5192 = vpop.trf.xlu0
      %v5193 = vpop.trf.xlu0
      %v5194 = vpop.trf.xlu0
      %v5195 = vpop.trf.xlu0
      %v5196 = vpop.trf.xlu0
      %v5197 = vpop.trf.xlu0
      %v5198 = vpop.trf.xlu0
      %v5199 = vpop.trf.xlu0
      %v5200 = vpop.trf.xlu0
      %v5201 = vpop.trf.xlu0
      %v5202 = vpop.trf.xlu0
      %5203 = vxpose.xlu0.b32.start [1/16] %v5138, 128
      %5204 = vxpose.xlu0.b32.cont [2/16] 0.0, 128
      %5205 = vxpose.xlu0.b32.cont [3/16] 0.0, 128
      %5206 = vxpose.xlu0.b32.cont [4/16] 0.0, 128
      %5207 = vxpose.xlu0.b32.cont [5/16] 0.0, 128
      %5208 = vxpose.xlu0.b32.cont [6/16] 0.0, 128
      %5209 = vxpose.xlu0.b32.cont [7/16] 0.0, 128
      %5210 = vxpose.xlu0.b32.cont [8/16] 0.0, 128
      %5211 = vxpose.xlu0.b32.cont [9/16] 0.0, 128
      %5212 = vxpose.xlu0.b32.cont [10/16] 0.0, 128
      %5213 = vxpose.xlu0.b32.cont [11/16] 0.0, 128
      %5214 = vxpose.xlu0.b32.cont [12/16] 0.0, 128
      %5215 = vxpose.xlu0.b32.cont [13/16] 0.0, 128
      %5216 = vxpose.xlu0.b32.cont [14/16] 0.0, 128
      %5217 = vxpose.xlu0.b32.cont [15/16] 0.0, 128
      %5218 = vxpose.xlu0.b32.end [16/16] 0.0, 128
      %v5219 = vpop.trf.xlu0
      %v5220 = vpop.trf.xlu0
      %v5221 = vpop.trf.xlu0
      %v5222 = vpop.trf.xlu0
      %v5223 = vpop.trf.xlu0
      %v5224 = vpop.trf.xlu0
      %v5225 = vpop.trf.xlu0
      %v5226 = vpop.trf.xlu0
      %v5227 = vpop.trf.xlu0
      %v5228 = vpop.trf.xlu0
      %v5229 = vpop.trf.xlu0
      %v5230 = vpop.trf.xlu0
      %v5231 = vpop.trf.xlu0
      %v5232 = vpop.trf.xlu0
      %v5233 = vpop.trf.xlu0
      %v5234 = vpop.trf.xlu0
      %5235 = vst.msk [vmem:[#allocation2] sm:$0xff] %vm4276, %v5155
      %5236 = vst.msk [vmem:[#allocation2 + $0x8] sm:$0xff] %vm4276, %v5156
      %5237 = vst.msk [vmem:[#allocation2 + $0x10] sm:$0xff] %vm4276, %v5157
      %5238 = vst.msk [vmem:[#allocation2 + $0x18] sm:$0xff] %vm4276, %v5158
      %5239 = vst.msk [vmem:[#allocation2 + $0x20] sm:$0xff] %vm4276, %v5159
      %5240 = vst.msk [vmem:[#allocation2 + $0x28] sm:$0xff] %vm4276, %v5160
      %5241 = vst.msk [vmem:[#allocation2 + $0x30] sm:$0xff] %vm4276, %v5161
      %5242 = vst.msk [vmem:[#allocation2 + $0x38] sm:$0xff] %vm4276, %v5162
      %5243 = vst.msk [vmem:[#allocation2 + $0x40] sm:$0xff] %vm4276, %v5163
      %5244 = vst.msk [vmem:[#allocation2 + $0x48] sm:$0xff] %vm4276, %v5164
      %5245 = vst.msk [vmem:[#allocation2 + $0x50] sm:$0xff] %vm4276, %v5165
      %5246 = vst.msk [vmem:[#allocation2 + $0x58] sm:$0xff] %vm4276, %v5166
      %5247 = vst.msk [vmem:[#allocation2 + $0x60] sm:$0xff] %vm4276, %v5167
      %5248 = vst.msk [vmem:[#allocation2 + $0x68] sm:$0xff] %vm4276, %v5168
      %5249 = vst.msk [vmem:[#allocation2 + $0x70] sm:$0xff] %vm4276, %v5169
      %5250 = vst.msk [vmem:[#allocation2 + $0x78] sm:$0xff] %vm4276, %v5170
      %5251 = vst.msk [vmem:[#allocation2 + $0x80] sm:$0xff] %vm4276, %v5187
      %5252 = vst.msk [vmem:[#allocation2 + $0x88] sm:$0xff] %vm4276, %v5188
      %5253 = vst.msk [vmem:[#allocation2 + $0x90] sm:$0xff] %vm4276, %v5189
      %5254 = vst.msk [vmem:[#allocation2 + $0x98] sm:$0xff] %vm4276, %v5190
      %5255 = vst.msk [vmem:[#allocation2 + $0xa0] sm:$0xff] %vm4276, %v5191
      %5256 = vst.msk [vmem:[#allocation2 + $0xa8] sm:$0xff] %vm4276, %v5192
      %5257 = vst.msk [vmem:[#allocation2 + $0xb0] sm:$0xff] %vm4276, %v5193
      %5258 = vst.msk [vmem:[#allocation2 + $0xb8] sm:$0xff] %vm4276, %v5194
      %5259 = vst.msk [vmem:[#allocation2 + $0xc0] sm:$0xff] %vm4276, %v5195
      %5260 = vst.msk [vmem:[#allocation2 + $0xc8] sm:$0xff] %vm4276, %v5196
      %5261 = vst.msk [vmem:[#allocation2 + $0xd0] sm:$0xff] %vm4276, %v5197
      %5262 = vst.msk [vmem:[#allocation2 + $0xd8] sm:$0xff] %vm4276, %v5198
      %5263 = vst.msk [vmem:[#allocation2 + $0xe0] sm:$0xff] %vm4276, %v5199
      %5264 = vst.msk [vmem:[#allocation2 + $0xe8] sm:$0xff] %vm4276, %v5200
      %5265 = vst.msk [vmem:[#allocation2 + $0xf0] sm:$0xff] %vm4276, %v5201
      %5266 = vst.msk [vmem:[#allocation2 + $0xf8] sm:$0xff] %vm4276, %v5202
      %5267 = vst.msk [vmem:[#allocation2 + $0x100] sm:$0xff] %vm4276, %v5219
      %5268 = vst.msk [vmem:[#allocation2 + $0x108] sm:$0xff] %vm4276, %v5220
      %5269 = vst.msk [vmem:[#allocation2 + $0x110] sm:$0xff] %vm4276, %v5221
      %5270 = vst.msk [vmem:[#allocation2 + $0x118] sm:$0xff] %vm4276, %v5222
      %5271 = vst.msk [vmem:[#allocation2 + $0x120] sm:$0xff] %vm4276, %v5223
      %5272 = vst.msk [vmem:[#allocation2 + $0x128] sm:$0xff] %vm4276, %v5224
      %5273 = vst.msk [vmem:[#allocation2 + $0x130] sm:$0xff] %vm4276, %v5225
      %5274 = vst.msk [vmem:[#allocation2 + $0x138] sm:$0xff] %vm4276, %v5226
      %vm5275 = vcmask 516096
      %5276 = vst.msk [vmem:[#allocation7] sm:$0x1] %vm5275, 0.0
      %v5277 = vld [vmem:[#allocation2] ss:$4 sm:$0xff]
      %v5278 = vld [vmem:[%s2429] ss:$4 sm:$0xff]
      %v5279 = vld [vmem:[%s2433] ss:$4 sm:$0xff]
      %v5280 = vld [vmem:[%s2437] ss:$4 sm:$0xff]
      %v5281 = vld [vmem:[%s2441] ss:$4 sm:$0xff]
      %v5282 = vld [vmem:[%s2445] ss:$4 sm:$0xff]
      %v5283 = vld [vmem:[%s2449] ss:$4 sm:$0xff]
      %v5284 = vld [vmem:[%s2453] ss:$4 sm:$0xff]
      %v5285 = vld [vmem:[%s2457] ss:$4 sm:$0xff]
      %v5286 = vld [vmem:[%s2461] ss:$4 sm:$0x7f]
      %5287 = vst.msk [vmem:[#allocation7 + $0x1] sm:$0xff] %vm4276, %v5277
      %5288 = vst.msk [vmem:[#allocation7 + $0x9] sm:$0xff] %vm4276, %v5278
      %5289 = vst.msk [vmem:[#allocation7 + $0x11] sm:$0xff] %vm4276, %v5279
      %5290 = vst.msk [vmem:[#allocation7 + $0x19] sm:$0xff] %vm4276, %v5280
      %5291 = vst.msk [vmem:[#allocation7 + $0x21] sm:$0xff] %vm4276, %v5281
      %5292 = vst.msk [vmem:[#allocation7 + $0x29] sm:$0xff] %vm4276, %v5282
      %5293 = vst.msk [vmem:[#allocation7 + $0x31] sm:$0xff] %vm4276, %v5283
      %5294 = vst.msk [vmem:[#allocation7 + $0x39] sm:$0xff] %vm4276, %v5284
      %5295 = vst.msk [vmem:[#allocation7 + $0x41] sm:$0xff] %vm4276, %v5285
      %vm5296 = vcmask 63488
      %5297 = vst.msk [vmem:[#allocation7 + $0x49] sm:$0x7f] %vm5296, %v5286
      %v5298 = vld [vmem:[%s2546] ss:$4 sm:$0xff]
      %v5299 = vld [vmem:[%s2550] ss:$4 sm:$0xff]
      %v5300 = vld [vmem:[%s2554] ss:$4 sm:$0xff]
      %v5301 = vld [vmem:[%s2558] ss:$4 sm:$0xff]
      %v5302 = vld [vmem:[%s2562] ss:$4 sm:$0xff]
      %v5303 = vld [vmem:[%s2566] ss:$4 sm:$0xff]
      %v5304 = vld [vmem:[%s2570] ss:$4 sm:$0xff]
      %v5305 = vld [vmem:[%s2574] ss:$4 sm:$0xff]
      %v5306 = vld [vmem:[%s2578] ss:$4 sm:$0xff]
      %v5307 = vld [vmem:[%s2582] ss:$4 sm:$0x7f]
      %5318 = vrot.lane.b32.xlu0 %v5298, 8
      %v5319 = vpop.permute.xlu0 %5318
      %5320 = vrot.lane.b32.xlu0 %v5299, 8
      %v5321 = vpop.permute.xlu0 %5320
      %5322 = vrot.lane.b32.xlu0 %v5300, 8
      %v5323 = vpop.permute.xlu0 %5322
      %5324 = vrot.lane.b32.xlu0 %v5301, 8
      %v5325 = vpop.permute.xlu0 %5324
      %5326 = vrot.lane.b32.xlu0 %v5302, 8
      %v5327 = vpop.permute.xlu0 %5326
      %5328 = vrot.lane.b32.xlu0 %v5303, 8
      %v5329 = vpop.permute.xlu0 %5328
      %5330 = vrot.lane.b32.xlu0 %v5304, 8
      %v5331 = vpop.permute.xlu0 %5330
      %5332 = vrot.lane.b32.xlu0 %v5305, 8
      %v5333 = vpop.permute.xlu0 %5332
      %5334 = vrot.lane.b32.xlu0 %v5306, 8
      %v5335 = vpop.permute.xlu0 %5334
      %5336 = vrot.lane.b32.xlu0 %v5307, 8
      %v5337 = vpop.permute.xlu0 %5336
      %vm5348 = vcmask 130112
      %5349 = vst.msk [vmem:[#allocation7 + $0x1] sm:$0xff] %vm5348, %v5319
      %5350 = vst.msk [vmem:[#allocation7 + $0x9] sm:$0xff] %vm5348, %v5321
      %5351 = vst.msk [vmem:[#allocation7 + $0x11] sm:$0xff] %vm5348, %v5323
      %5352 = vst.msk [vmem:[#allocation7 + $0x19] sm:$0xff] %vm5348, %v5325
      %5353 = vst.msk [vmem:[#allocation7 + $0x21] sm:$0xff] %vm5348, %v5327
      %5354 = vst.msk [vmem:[#allocation7 + $0x29] sm:$0xff] %vm5348, %v5329
      %5355 = vst.msk [vmem:[#allocation7 + $0x31] sm:$0xff] %vm5348, %v5331
      %5356 = vst.msk [vmem:[#allocation7 + $0x39] sm:$0xff] %vm5348, %v5333
      %5357 = vst.msk [vmem:[#allocation7 + $0x41] sm:$0xff] %vm5348, %v5335
      %vm5358 = vcmask 129088
      %5359 = vst.msk [vmem:[#allocation7 + $0x49] sm:$0x7f] %vm5358, %v5337
      %s5360 = scalar_lea.vmem [#allocation2], 2
      %v5361 = vld [vmem:[%s5360] ss:$4 sm:$0xff]
      %s5362 = scalar_lea.vmem [#allocation2], 34
      %v5363 = vld [vmem:[%s5362] ss:$4 sm:$0xff]
      %s5364 = scalar_lea.vmem [#allocation2], 66
      %v5365 = vld [vmem:[%s5364] ss:$4 sm:$0xff]
      %s5366 = scalar_lea.vmem [#allocation2], 98
      %v5367 = vld [vmem:[%s5366] ss:$4 sm:$0xff]
      %s5368 = scalar_lea.vmem [#allocation2], 130
      %v5369 = vld [vmem:[%s5368] ss:$4 sm:$0xff]
      %s5370 = scalar_lea.vmem [#allocation2], 162
      %v5371 = vld [vmem:[%s5370] ss:$4 sm:$0xff]
      %s5372 = scalar_lea.vmem [#allocation2], 194
      %v5373 = vld [vmem:[%s5372] ss:$4 sm:$0xff]
      %s5374 = scalar_lea.vmem [#allocation2], 226
      %v5375 = vld [vmem:[%s5374] ss:$4 sm:$0xff]
      %s5376 = scalar_lea.vmem [#allocation2], 258
      %v5377 = vld [vmem:[%s5376] ss:$4 sm:$0xff]
      %s5378 = scalar_lea.vmem [#allocation2], 290
      %v5379 = vld [vmem:[%s5378] ss:$4 sm:$0x7f]
      %5390 = vrot.lane.b32.xlu0 %v5361, 16
      %v5391 = vpop.permute.xlu0 %5390
      %5392 = vrot.lane.b32.xlu0 %v5363, 16
      %v5393 = vpop.permute.xlu0 %5392
      %5394 = vrot.lane.b32.xlu0 %v5365, 16
      %v5395 = vpop.permute.xlu0 %5394
      %5396 = vrot.lane.b32.xlu0 %v5367, 16
      %v5397 = vpop.permute.xlu0 %5396
      %5398 = vrot.lane.b32.xlu0 %v5369, 16
      %v5399 = vpop.permute.xlu0 %5398
      %5400 = vrot.lane.b32.xlu0 %v5371, 16
      %v5401 = vpop.permute.xlu0 %5400
      %5402 = vrot.lane.b32.xlu0 %v5373, 16
      %v5403 = vpop.permute.xlu0 %5402
      %5404 = vrot.lane.b32.xlu0 %v5375, 16
      %v5405 = vpop.permute.xlu0 %5404
      %5406 = vrot.lane.b32.xlu0 %v5377, 16
      %v5407 = vpop.permute.xlu0 %5406
      %5408 = vrot.lane.b32.xlu0 %v5379, 16
      %v5409 = vpop.permute.xlu0 %5408
      %vm5420 = vcmask 195712
      %5421 = vst.msk [vmem:[#allocation7 + $0x1] sm:$0xff] %vm5420, %v5391
      %5422 = vst.msk [vmem:[#allocation7 + $0x9] sm:$0xff] %vm5420, %v5393
      %5423 = vst.msk [vmem:[#allocation7 + $0x11] sm:$0xff] %vm5420, %v5395
      %5424 = vst.msk [vmem:[#allocation7 + $0x19] sm:$0xff] %vm5420, %v5397
      %5425 = vst.msk [vmem:[#allocation7 + $0x21] sm:$0xff] %vm5420, %v5399
      %5426 = vst.msk [vmem:[#allocation7 + $0x29] sm:$0xff] %vm5420, %v5401
      %5427 = vst.msk [vmem:[#allocation7 + $0x31] sm:$0xff] %vm5420, %v5403
      %5428 = vst.msk [vmem:[#allocation7 + $0x39] sm:$0xff] %vm5420, %v5405
      %5429 = vst.msk [vmem:[#allocation7 + $0x41] sm:$0xff] %vm5420, %v5407
      %vm5430 = vcmask 194688
      %5431 = vst.msk [vmem:[#allocation7 + $0x49] sm:$0x7f] %vm5430, %v5409
      %s5432 = scalar_lea.vmem [#allocation2], 3
      %v5433 = vld [vmem:[%s5432] ss:$4 sm:$0xff]
      %s5434 = scalar_lea.vmem [#allocation2], 35
      %v5435 = vld [vmem:[%s5434] ss:$4 sm:$0xff]
      %s5436 = scalar_lea.vmem [#allocation2], 67
      %v5437 = vld [vmem:[%s5436] ss:$4 sm:$0xff]
      %s5438 = scalar_lea.vmem [#allocation2], 99
      %v5439 = vld [vmem:[%s5438] ss:$4 sm:$0xff]
      %s5440 = scalar_lea.vmem [#allocation2], 131
      %v5441 = vld [vmem:[%s5440] ss:$4 sm:$0xff]
      %s5442 = scalar_lea.vmem [#allocation2], 163
      %v5443 = vld [vmem:[%s5442] ss:$4 sm:$0xff]
      %s5444 = scalar_lea.vmem [#allocation2], 195
      %v5445 = vld [vmem:[%s5444] ss:$4 sm:$0xff]
      %s5446 = scalar_lea.vmem [#allocation2], 227
      %v5447 = vld [vmem:[%s5446] ss:$4 sm:$0xff]
      %s5448 = scalar_lea.vmem [#allocation2], 259
      %v5449 = vld [vmem:[%s5448] ss:$4 sm:$0xff]
      %s5450 = scalar_lea.vmem [#allocation2], 291
      %v5451 = vld [vmem:[%s5450] ss:$4 sm:$0x7f]
      %5462 = vrot.lane.b32.xlu0 %v5433, 24
      %v5463 = vpop.permute.xlu0 %5462
      %5464 = vrot.lane.b32.xlu0 %v5435, 24
      %v5465 = vpop.permute.xlu0 %5464
      %5466 = vrot.lane.b32.xlu0 %v5437, 24
      %v5467 = vpop.permute.xlu0 %5466
      %5468 = vrot.lane.b32.xlu0 %v5439, 24
      %v5469 = vpop.permute.xlu0 %5468
      %5470 = vrot.lane.b32.xlu0 %v5441, 24
      %v5471 = vpop.permute.xlu0 %5470
      %5472 = vrot.lane.b32.xlu0 %v5443, 24
      %v5473 = vpop.permute.xlu0 %5472
      %5474 = vrot.lane.b32.xlu0 %v5445, 24
      %v5475 = vpop.permute.xlu0 %5474
      %5476 = vrot.lane.b32.xlu0 %v5447, 24
      %v5477 = vpop.permute.xlu0 %5476
      %5478 = vrot.lane.b32.xlu0 %v5449, 24
      %v5479 = vpop.permute.xlu0 %5478
      %5480 = vrot.lane.b32.xlu0 %v5451, 24
      %v5481 = vpop.permute.xlu0 %5480
      %vm5492 = vcmask 261312
      %5493 = vst.msk [vmem:[#allocation7 + $0x1] sm:$0xff] %vm5492, %v5463
      %5494 = vst.msk [vmem:[#allocation7 + $0x9] sm:$0xff] %vm5492, %v5465
      %5495 = vst.msk [vmem:[#allocation7 + $0x11] sm:$0xff] %vm5492, %v5467
      %5496 = vst.msk [vmem:[#allocation7 + $0x19] sm:$0xff] %vm5492, %v5469
      %5497 = vst.msk [vmem:[#allocation7 + $0x21] sm:$0xff] %vm5492, %v5471
      %5498 = vst.msk [vmem:[#allocation7 + $0x29] sm:$0xff] %vm5492, %v5473
      %5499 = vst.msk [vmem:[#allocation7 + $0x31] sm:$0xff] %vm5492, %v5475
      %5500 = vst.msk [vmem:[#allocation7 + $0x39] sm:$0xff] %vm5492, %v5477
      %5501 = vst.msk [vmem:[#allocation7 + $0x41] sm:$0xff] %vm5492, %v5479
      %vm5502 = vcmask 260288
      %5503 = vst.msk [vmem:[#allocation7 + $0x49] sm:$0x7f] %vm5502, %v5481
      %v5504 = vld [vmem:[#allocation2] ss:$4 sm:$0xff]
      %v5505 = vld [vmem:[%s2429] ss:$4 sm:$0xff]
      %v5506 = vld [vmem:[%s2433] ss:$4 sm:$0xff]
      %v5507 = vld [vmem:[%s2437] ss:$4 sm:$0xff]
      %v5508 = vld [vmem:[%s2441] ss:$4 sm:$0xff]
      %v5509 = vld [vmem:[%s2445] ss:$4 sm:$0xff]
      %v5510 = vld [vmem:[%s2449] ss:$4 sm:$0xff]
      %v5511 = vld [vmem:[%s2453] ss:$4 sm:$0xff]
      %v5512 = vld [vmem:[%s2457] ss:$4 sm:$0xff]
      %v5513 = vld [vmem:[%s2461] ss:$4 sm:$0xff]
      %5524 = vrot.lane.b32.xlu0 %v5504, 32
      %v5525 = vpop.permute.xlu0 %5524
      %5526 = vrot.lane.b32.xlu0 %v5505, 32
      %v5527 = vpop.permute.xlu0 %5526
      %5528 = vrot.lane.b32.xlu0 %v5506, 32
      %v5529 = vpop.permute.xlu0 %5528
      %5530 = vrot.lane.b32.xlu0 %v5507, 32
      %v5531 = vpop.permute.xlu0 %5530
      %5532 = vrot.lane.b32.xlu0 %v5508, 32
      %v5533 = vpop.permute.xlu0 %5532
      %5534 = vrot.lane.b32.xlu0 %v5509, 32
      %v5535 = vpop.permute.xlu0 %5534
      %5536 = vrot.lane.b32.xlu0 %v5510, 32
      %v5537 = vpop.permute.xlu0 %5536
      %5538 = vrot.lane.b32.xlu0 %v5511, 32
      %v5539 = vpop.permute.xlu0 %5538
      %5540 = vrot.lane.b32.xlu0 %v5512, 32
      %v5541 = vpop.permute.xlu0 %5540
      %5542 = vrot.lane.b32.xlu0 %v5513, 32
      %v5543 = vpop.permute.xlu0 %5542
      %vm5554 = vcmask 326912
      %5555 = vst.msk [vmem:[#allocation7] sm:$0xff] %vm5554, %v5525
      %5556 = vst.msk [vmem:[#allocation7 + $0x8] sm:$0xff] %vm5554, %v5527
      %5557 = vst.msk [vmem:[#allocation7 + $0x10] sm:$0xff] %vm5554, %v5529
      %5558 = vst.msk [vmem:[#allocation7 + $0x18] sm:$0xff] %vm5554, %v5531
      %5559 = vst.msk [vmem:[#allocation7 + $0x20] sm:$0xff] %vm5554, %v5533
      %5560 = vst.msk [vmem:[#allocation7 + $0x28] sm:$0xff] %vm5554, %v5535
      %5561 = vst.msk [vmem:[#allocation7 + $0x30] sm:$0xff] %vm5554, %v5537
      %5562 = vst.msk [vmem:[#allocation7 + $0x38] sm:$0xff] %vm5554, %v5539
      %5563 = vst.msk [vmem:[#allocation7 + $0x40] sm:$0xff] %vm5554, %v5541
      %5564 = vst.msk [vmem:[#allocation7 + $0x48] sm:$0xff] %vm5554, %v5543
      %v5565 = vld [vmem:[%s2546] ss:$4 sm:$0xff]
      %v5566 = vld [vmem:[%s2550] ss:$4 sm:$0xff]
      %v5567 = vld [vmem:[%s2554] ss:$4 sm:$0xff]
      %v5568 = vld [vmem:[%s2558] ss:$4 sm:$0xff]
      %v5569 = vld [vmem:[%s2562] ss:$4 sm:$0xff]
      %v5570 = vld [vmem:[%s2566] ss:$4 sm:$0xff]
      %v5571 = vld [vmem:[%s2570] ss:$4 sm:$0xff]
      %v5572 = vld [vmem:[%s2574] ss:$4 sm:$0xff]
      %v5573 = vld [vmem:[%s2578] ss:$4 sm:$0xff]
      %v5574 = vld [vmem:[%s2582] ss:$4 sm:$0xff]
      %5585 = vrot.lane.b32.xlu0 %v5565, 40
      %v5586 = vpop.permute.xlu0 %5585
      %5587 = vrot.lane.b32.xlu0 %v5566, 40
      %v5588 = vpop.permute.xlu0 %5587
      %5589 = vrot.lane.b32.xlu0 %v5567, 40
      %v5590 = vpop.permute.xlu0 %5589
      %5591 = vrot.lane.b32.xlu0 %v5568, 40
      %v5592 = vpop.permute.xlu0 %5591
      %5593 = vrot.lane.b32.xlu0 %v5569, 40
      %v5594 = vpop.permute.xlu0 %5593
      %5595 = vrot.lane.b32.xlu0 %v5570, 40
      %v5596 = vpop.permute.xlu0 %5595
      %5597 = vrot.lane.b32.xlu0 %v5571, 40
      %v5598 = vpop.permute.xlu0 %5597
      %5599 = vrot.lane.b32.xlu0 %v5572, 40
      %v5600 = vpop.permute.xlu0 %5599
      %5601 = vrot.lane.b32.xlu0 %v5573, 40
      %v5602 = vpop.permute.xlu0 %5601
      %5603 = vrot.lane.b32.xlu0 %v5574, 40
      %v5604 = vpop.permute.xlu0 %5603
      %vm5615 = vcmask 392512
      %5616 = vst.msk [vmem:[#allocation7] sm:$0xff] %vm5615, %v5586
      %5617 = vst.msk [vmem:[#allocation7 + $0x8] sm:$0xff] %vm5615, %v5588
      %5618 = vst.msk [vmem:[#allocation7 + $0x10] sm:$0xff] %vm5615, %v5590
      %5619 = vst.msk [vmem:[#allocation7 + $0x18] sm:$0xff] %vm5615, %v5592
      %5620 = vst.msk [vmem:[#allocation7 + $0x20] sm:$0xff] %vm5615, %v5594
      %5621 = vst.msk [vmem:[#allocation7 + $0x28] sm:$0xff] %vm5615, %v5596
      %5622 = vst.msk [vmem:[#allocation7 + $0x30] sm:$0xff] %vm5615, %v5598
      %5623 = vst.msk [vmem:[#allocation7 + $0x38] sm:$0xff] %vm5615, %v5600
      %5624 = vst.msk [vmem:[#allocation7 + $0x40] sm:$0xff] %vm5615, %v5602
      %5625 = vst.msk [vmem:[#allocation7 + $0x48] sm:$0xff] %vm5615, %v5604
      %v5626 = vld [vmem:[%s5360] ss:$4 sm:$0xff]
      %v5627 = vld [vmem:[%s5362] ss:$4 sm:$0xff]
      %v5628 = vld [vmem:[%s5364] ss:$4 sm:$0xff]
      %v5629 = vld [vmem:[%s5366] ss:$4 sm:$0xff]
      %v5630 = vld [vmem:[%s5368] ss:$4 sm:$0xff]
      %v5631 = vld [vmem:[%s5370] ss:$4 sm:$0xff]
      %v5632 = vld [vmem:[%s5372] ss:$4 sm:$0xff]
      %v5633 = vld [vmem:[%s5374] ss:$4 sm:$0xff]
      %v5634 = vld [vmem:[%s5376] ss:$4 sm:$0xff]
      %v5635 = vld [vmem:[%s5378] ss:$4 sm:$0xff]
      %5646 = vrot.lane.b32.xlu0 %v5626, 48
      %v5647 = vpop.permute.xlu0 %5646
      %5648 = vrot.lane.b32.xlu0 %v5627, 48
      %v5649 = vpop.permute.xlu0 %5648
      %5650 = vrot.lane.b32.xlu0 %v5628, 48
      %v5651 = vpop.permute.xlu0 %5650
      %5652 = vrot.lane.b32.xlu0 %v5629, 48
      %v5653 = vpop.permute.xlu0 %5652
      %5654 = vrot.lane.b32.xlu0 %v5630, 48
      %v5655 = vpop.permute.xlu0 %5654
      %5656 = vrot.lane.b32.xlu0 %v5631, 48
      %v5657 = vpop.permute.xlu0 %5656
      %5658 = vrot.lane.b32.xlu0 %v5632, 48
      %v5659 = vpop.permute.xlu0 %5658
      %5660 = vrot.lane.b32.xlu0 %v5633, 48
      %v5661 = vpop.permute.xlu0 %5660
      %5662 = vrot.lane.b32.xlu0 %v5634, 48
      %v5663 = vpop.permute.xlu0 %5662
      %5664 = vrot.lane.b32.xlu0 %v5635, 48
      %v5665 = vpop.permute.xlu0 %5664
      %vm5676 = vcmask 458112
      %5677 = vst.msk [vmem:[#allocation7] sm:$0xff] %vm5676, %v5647
      %5678 = vst.msk [vmem:[#allocation7 + $0x8] sm:$0xff] %vm5676, %v5649
      %5679 = vst.msk [vmem:[#allocation7 + $0x10] sm:$0xff] %vm5676, %v5651
      %5680 = vst.msk [vmem:[#allocation7 + $0x18] sm:$0xff] %vm5676, %v5653
      %5681 = vst.msk [vmem:[#allocation7 + $0x20] sm:$0xff] %vm5676, %v5655
      %5682 = vst.msk [vmem:[#allocation7 + $0x28] sm:$0xff] %vm5676, %v5657
      %5683 = vst.msk [vmem:[#allocation7 + $0x30] sm:$0xff] %vm5676, %v5659
      %5684 = vst.msk [vmem:[#allocation7 + $0x38] sm:$0xff] %vm5676, %v5661
      %5685 = vst.msk [vmem:[#allocation7 + $0x40] sm:$0xff] %vm5676, %v5663
      %5686 = vst.msk [vmem:[#allocation7 + $0x48] sm:$0xff] %vm5676, %v5665
      %v5687 = vld [vmem:[%s5432] ss:$4 sm:$0xff]
      %v5688 = vld [vmem:[%s5434] ss:$4 sm:$0xff]
      %v5689 = vld [vmem:[%s5436] ss:$4 sm:$0xff]
      %v5690 = vld [vmem:[%s5438] ss:$4 sm:$0xff]
      %v5691 = vld [vmem:[%s5440] ss:$4 sm:$0xff]
      %v5692 = vld [vmem:[%s5442] ss:$4 sm:$0xff]
      %v5693 = vld [vmem:[%s5444] ss:$4 sm:$0xff]
      %v5694 = vld [vmem:[%s5446] ss:$4 sm:$0xff]
      %v5695 = vld [vmem:[%s5448] ss:$4 sm:$0xff]
      %v5696 = vld [vmem:[%s5450] ss:$4 sm:$0xff]
      %5707 = vrot.lane.b32.xlu0 %v5687, 56
      %v5708 = vpop.permute.xlu0 %5707
      %5709 = vrot.lane.b32.xlu0 %v5688, 56
      %v5710 = vpop.permute.xlu0 %5709
      %5711 = vrot.lane.b32.xlu0 %v5689, 56
      %v5712 = vpop.permute.xlu0 %5711
      %5713 = vrot.lane.b32.xlu0 %v5690, 56
      %v5714 = vpop.permute.xlu0 %5713
      %5715 = vrot.lane.b32.xlu0 %v5691, 56
      %v5716 = vpop.permute.xlu0 %5715
      %5717 = vrot.lane.b32.xlu0 %v5692, 56
      %v5718 = vpop.permute.xlu0 %5717
      %5719 = vrot.lane.b32.xlu0 %v5693, 56
      %v5720 = vpop.permute.xlu0 %5719
      %5721 = vrot.lane.b32.xlu0 %v5694, 56
      %v5722 = vpop.permute.xlu0 %5721
      %5723 = vrot.lane.b32.xlu0 %v5695, 56
      %v5724 = vpop.permute.xlu0 %5723
      %5725 = vrot.lane.b32.xlu0 %v5696, 56
      %v5726 = vpop.permute.xlu0 %5725
      %vm5737 = vcmask 523712
      %5738 = vst.msk [vmem:[#allocation7] sm:$0xff] %vm5737, %v5708
      %5739 = vst.msk [vmem:[#allocation7 + $0x8] sm:$0xff] %vm5737, %v5710
      %5740 = vst.msk [vmem:[#allocation7 + $0x10] sm:$0xff] %vm5737, %v5712
      %5741 = vst.msk [vmem:[#allocation7 + $0x18] sm:$0xff] %vm5737, %v5714
      %5742 = vst.msk [vmem:[#allocation7 + $0x20] sm:$0xff] %vm5737, %v5716
      %5743 = vst.msk [vmem:[#allocation7 + $0x28] sm:$0xff] %vm5737, %v5718
      %5744 = vst.msk [vmem:[#allocation7 + $0x30] sm:$0xff] %vm5737, %v5720
      %5745 = vst.msk [vmem:[#allocation7 + $0x38] sm:$0xff] %vm5737, %v5722
      %5746 = vst.msk [vmem:[#allocation7 + $0x40] sm:$0xff] %vm5737, %v5724
      %5747 = vst.msk [vmem:[#allocation7 + $0x48] sm:$0xff] %vm5737, %v5726
      %v5748 = vld [vmem:[#allocation7] sm:$0xff]
      %v5749 = vld [vmem:[#allocation7 + $0x8] sm:$0xff]
      %v5750 = vld [vmem:[#allocation7 + $0x10] sm:$0xff]
      %v5751 = vld [vmem:[#allocation7 + $0x18] sm:$0xff]
      %v5752 = vld [vmem:[#allocation7 + $0x20] sm:$0xff]
      %v5753 = vld [vmem:[#allocation7 + $0x28] sm:$0xff]
      %v5754 = vld [vmem:[#allocation7 + $0x30] sm:$0xff]
      %v5755 = vld [vmem:[#allocation7 + $0x38] sm:$0xff]
      %v5756 = vld [vmem:[#allocation7 + $0x40] sm:$0xff]
      %v5757 = vld [vmem:[#allocation7 + $0x48] sm:$0xff]
      %v5758 = vpack.c.bf16 %v5749, %v5748
      %v5759 = vpack.c.bf16 %v5751, %v5750
      %v5760 = vpack.c.bf16 %v5753, %v5752
      %v5761 = vpack.c.bf16 %v5755, %v5754
      %v5762 = vpack.c.bf16 %v5757, %v5756
      %v5763 = vld [vmem:[%s3 + $0x8] sm:$0xf]
      %v5764 = vld [vmem:[%s3 + $0xc] sm:$0xf]
      %v5765 = vld [vmem:[%s3 + $0x10] sm:$0xf]
      %v5766 = vld [vmem:[%s3 + $0x14] sm:$0xf]
      %v5767 = vld [vmem:[%s3 + $0x18] sm:$0xf]
      %v5768 = vld [vmem:[%s3 + $0x1c] sm:$0xf]
      %v5769 = vld [vmem:[%s3 + $0x20] sm:$0xf]
      %v5770 = vld [vmem:[%s3 + $0x24] sm:$0xf]
      %v5771 = vld [vmem:[%s4 + $0x1] sm:$0x1]
      %v5772 = vlaneseq
      %v5773 = vshrl.u32 %v5772, 7
      %v5774 = vsub.s32 0, %v5773
      %v5775 = vrot.slane %v5771, %v5774
      %v5784 = vunpack.c.l.b16 %v5763
      %v5785 = vunpack.c.l.b16 %v5764
      %v5786 = vunpack.c.l.b16 %v5765
      %v5787 = vunpack.c.l.b16 %v5766
      %v5788 = vunpack.c.l.b16 %v5767
      %v5789 = vunpack.c.l.b16 %v5768
      %v5790 = vunpack.c.l.b16 %v5769
      %v5791 = vunpack.c.l.b16 %v5770
      %v5792 = vpack.c.b16 %v5785, %v5784
      %v5793 = vpack.c.b16 %v5787, %v5786
      %v5794 = vpack.c.b16 %v5789, %v5788
      %v5795 = vpack.c.b16 %v5791, %v5790
      %v5801 = vsel %vm4036, %v5758, 0
      %v5804 = vsel %vm4036, %v5759, 0
      %v5807 = vsel %vm4036, %v5760, 0
      %v5810 = vsel %vm4036, %v5761, 0
      %v5813 = vsel %vm4036, %v5762, 0
      %5815 = vmatprep.subr.bf16.mxu0 0
      %5816 = vmatpush1.bf16.msra.mxu0 %v5792
      %5817 = vmatprep.subr.bf16.mxu0 0
      %5818 = vmatpush1.bf16.msra.mxu0 %v5793
      %5819 = vmatprep.subr.bf16.mxu0 0
      %5820 = vmatpush1.bf16.msra.mxu0 %v5794
      %5821 = vmatprep.subr.bf16.mxu0 0
      %5822 = vmatpush1.bf16.msra.mxu0 %v5795
      %5823 = vmatprep.subr.bf16.mxu0 0
      %5824 = vmatpush1.bf16.msra.mxu0 0
      %5825 = vmatprep.subr.bf16.mxu0 0
      %5826 = vmatpush1.bf16.msra.mxu0 0
      %5827 = vmatprep.subr.bf16.mxu0 0
      %5828 = vmatpush1.bf16.msra.mxu0 0
      %5829 = vmatprep.subr.bf16.mxu0 0
      %5830 = vmatpush1.bf16.msra.mxu0 0
      %5831 = vmatprep.subr.bf16.mxu0 0
      %5832 = vmatpush1.bf16.msra.mxu0 0
      %5833 = vmatprep.subr.bf16.mxu0 0
      %5834 = vmatpush1.bf16.msra.mxu0 0
      %5835 = vmatprep.subr.bf16.mxu0 0
      %5836 = vmatpush1.bf16.msra.mxu0 0
      %5837 = vmatprep.subr.bf16.mxu0 0
      %5838 = vmatpush1.bf16.msra.mxu0 0
      %5839 = vmatprep.subr.bf16.mxu0 0
      %5840 = vmatpush1.bf16.msra.mxu0 0
      %5841 = vmatprep.subr.bf16.mxu0 0
      %5842 = vmatpush1.bf16.msra.mxu0 0
      %5843 = vmatprep.subr.bf16.mxu0 0
      %5844 = vmatpush1.bf16.msra.mxu0 0
      %5845 = vmatprep.subr.bf16.mxu0 0
      %5846 = vmatpush1.bf16.msra.mxu0 0
      %5847 = vmatprep.mubr.bf16.mxu0 0
      %5848 = vmatmul.mubr.bf16.gmra.mrb[0].mxu0 %v5801
      %v5849 = vpop.f32.mrb[0].mxu0
      %v5850 = vadd.f32 %v5775, %v5849
      %v5851 = vpop.f32.mrb[0].mxu0
      %v5852 = vpop.f32.mrb[0].mxu0
      %v5853 = vadd.f32 %v5775, %v5852
      %v5854 = vpop.f32.mrb[0].mxu0
      %5855 = vmatprep.mubr.bf16.mxu0 0
      %5856 = vmatmul.mubr.bf16.gmra.mrb[0].mxu0 %v5804
      %v5857 = vpop.f32.mrb[0].mxu0
      %v5858 = vadd.f32 %v5775, %v5857
      %v5859 = vpop.f32.mrb[0].mxu0
      %v5860 = vpop.f32.mrb[0].mxu0
      %v5861 = vadd.f32 %v5775, %v5860
      %v5862 = vpop.f32.mrb[0].mxu0
      %5863 = vmatprep.mubr.bf16.mxu0 0
      %5864 = vmatmul.mubr.bf16.gmra.mrb[0].mxu0 %v5807
      %v5865 = vpop.f32.mrb[0].mxu0
      %v5866 = vadd.f32 %v5775, %v5865
      %v5867 = vpop.f32.mrb[0].mxu0
      %v5868 = vpop.f32.mrb[0].mxu0
      %v5869 = vadd.f32 %v5775, %v5868
      %v5870 = vpop.f32.mrb[0].mxu0
      %5871 = vmatprep.mubr.bf16.mxu0 0
      %5872 = vmatmul.mubr.bf16.gmra.mrb[0].mxu0 %v5810
      %v5873 = vpop.f32.mrb[0].mxu0
      %v5874 = vadd.f32 %v5775, %v5873
      %v5875 = vpop.f32.mrb[0].mxu0
      %v5876 = vpop.f32.mrb[0].mxu0
      %v5877 = vadd.f32 %v5775, %v5876
      %v5878 = vpop.f32.mrb[0].mxu0
      %5879 = vmatprep.mubr.bf16.mxu0 0
      %5880 = vmatmul.mubr.bf16.gmra.mrb[0].mxu0 %v5813
      %v5881 = vpop.f32.mrb[0].mxu0
      %v5882 = vadd.f32 %v5775, %v5881
      %v5883 = vpop.f32.mrb[0].mxu0
      %v5884 = vpop.f32.mrb[0].mxu0
      %v5885 = vadd.f32 %v5775, %v5884
      %v5886 = vpop.f32.mrb[0].mxu0
      %5887 = vdwg.mxu0
      %vm5888 = vcmp.gt.f32.partialorder %v5850, 0.0
      %vm5889 = vcmp.gt.f32.partialorder %v5853, 0.0
      %vm5890 = vcmp.gt.f32.partialorder %v5858, 0.0
      %vm5891 = vcmp.gt.f32.partialorder %v5861, 0.0
      %vm5892 = vcmp.gt.f32.partialorder %v5866, 0.0
      %vm5893 = vcmp.gt.f32.partialorder %v5869, 0.0
      %vm5894 = vcmp.gt.f32.partialorder %v5874, 0.0
      %vm5895 = vcmp.gt.f32.partialorder %v5877, 0.0
      %vm5896 = vcmp.gt.f32.partialorder %v5882, 0.0
      %vm5897 = vcmp.gt.f32.partialorder %v5885, 0.0
      %v5898 = vmin.f32 %v5850, 0.0
      %v5899 = vmin.f32 %v5853, 0.0
      %v5900 = vmin.f32 %v5858, 0.0
      %v5901 = vmin.f32 %v5861, 0.0
      %v5902 = vmin.f32 %v5866, 0.0
      %v5903 = vmin.f32 %v5869, 0.0
      %v5904 = vmin.f32 %v5874, 0.0
      %v5905 = vmin.f32 %v5877, 0.0
      %v5906 = vmin.f32 %v5882, 0.0
      %v5907 = vmin.f32 %v5885, 0.0
      %v5908 = vmul.f32 %v5898, 1.442695
      %v5909 = vpow.pop %v5908
      %v5910 = vmul.f32 %v5899, 1.442695
      %v5911 = vpow.pop %v5910
      %v5912 = vmul.f32 %v5900, 1.442695
      %v5913 = vpow.pop %v5912
      %v5914 = vmul.f32 %v5901, 1.442695
      %v5915 = vpow.pop %v5914
      %v5916 = vmul.f32 %v5902, 1.442695
      %v5917 = vpow.pop %v5916
      %v5918 = vmul.f32 %v5903, 1.442695
      %v5919 = vpow.pop %v5918
      %v5920 = vmul.f32 %v5904, 1.442695
      %v5921 = vpow.pop %v5920
      %v5922 = vmul.f32 %v5905, 1.442695
      %v5923 = vpow.pop %v5922
      %v5924 = vmul.f32 %v5906, 1.442695
      %v5925 = vpow.pop %v5924
      %v5926 = vmul.f32 %v5907, 1.442695
      %v5927 = vpow.pop %v5926
      %v5928 = vsub.f32 %v5909, 1.0
      %v5929 = vsub.f32 %v5911, 1.0
      %v5930 = vsub.f32 %v5913, 1.0
      %v5931 = vsub.f32 %v5915, 1.0
      %v5932 = vsub.f32 %v5917, 1.0
      %v5933 = vsub.f32 %v5919, 1.0
      %v5934 = vsub.f32 %v5921, 1.0
      %v5935 = vsub.f32 %v5923, 1.0
      %v5936 = vsub.f32 %v5925, 1.0
      %v5937 = vsub.f32 %v5927, 1.0
      %v5938 = vsel %vm5888, %v5850, %v5928
      %v5939 = vsel %vm5889, %v5853, %v5929
      %v5940 = vsel %vm5890, %v5858, %v5930
      %v5941 = vsel %vm5891, %v5861, %v5931
      %v5942 = vsel %vm5892, %v5866, %v5932
      %v5943 = vsel %vm5893, %v5869, %v5933
      %v5944 = vsel %vm5894, %v5874, %v5934
      %v5945 = vsel %vm5895, %v5877, %v5935
      %v5946 = vsel %vm5896, %v5882, %v5936
      %v5947 = vsel %vm5897, %v5885, %v5937
      %5948 = vxpose.xlu0.b32.start [1/16] %v5938, 128
      %5949 = vxpose.xlu0.b32.cont [2/16] %v5939, 128
      %5950 = vxpose.xlu0.b32.cont [3/16] %v5940, 128
      %5951 = vxpose.xlu0.b32.cont [4/16] %v5941, 128
      %5952 = vxpose.xlu0.b32.cont [5/16] %v5942, 128
      %5953 = vxpose.xlu0.b32.cont [6/16] %v5943, 128
      %5954 = vxpose.xlu0.b32.cont [7/16] %v5944, 128
      %5955 = vxpose.xlu0.b32.cont [8/16] %v5945, 128
      %5956 = vxpose.xlu0.b32.cont [9/16] %v5946, 128
      %5957 = vxpose.xlu0.b32.cont [10/16] %v5947, 128
      %5958 = vxpose.xlu0.b32.cont [11/16] 0.0, 128
      %5959 = vxpose.xlu0.b32.cont [12/16] 0.0, 128
      %5960 = vxpose.xlu0.b32.cont [13/16] 0.0, 128
      %5961 = vxpose.xlu0.b32.cont [14/16] 0.0, 128
      %5962 = vxpose.xlu0.b32.cont [15/16] 0.0, 128
      %5963 = vxpose.xlu0.b32.end [16/16] 0.0, 128
      %v5964 = vpop.trf.xlu0
      %v5965 = vpop.trf.xlu0
      %v5966 = vpop.trf.xlu0
      %v5967 = vpop.trf.xlu0
      %v5968 = vpop.trf.xlu0
      %v5969 = vpop.trf.xlu0
      %v5970 = vpop.trf.xlu0
      %v5971 = vpop.trf.xlu0
      %v5972 = vpop.trf.xlu0
      %v5973 = vpop.trf.xlu0
      %v5974 = vpop.trf.xlu0
      %v5975 = vpop.trf.xlu0
      %v5976 = vpop.trf.xlu0
      %v5977 = vpop.trf.xlu0
      %v5978 = vpop.trf.xlu0
      %v5979 = vpop.trf.xlu0
      %5980 = vst.msk [vmem:[#allocation8] sm:$0xff] %vm230, 0.0
      %5981 = vst.msk [vmem:[#allocation8 + $0x8] sm:$0xff] %vm230, 0.0
      %5982 = vst.msk [vmem:[#allocation8 + $0x10] sm:$0xff] %vm230, 0.0
      %5983 = vst.msk [vmem:[#allocation8 + $0x18] sm:$0xff] %vm230, 0.0
      %5984 = vst.msk [vmem:[#allocation8 + $0x20] sm:$0xff] %vm230, 0.0
      %5985 = vst.msk [vmem:[#allocation8 + $0x28] sm:$0xff] %vm230, 0.0
      %5986 = vst.msk [vmem:[#allocation8 + $0x30] sm:$0xff] %vm230, 0.0
      %5987 = vst.msk [vmem:[#allocation8 + $0x38] sm:$0xff] %vm230, 0.0
      %5988 = vst.msk [vmem:[#allocation8 + $0x40] sm:$0xff] %vm230, 0.0
      %5989 = vst.msk [vmem:[#allocation8 + $0x48] sm:$0xff] %vm230, 0.0
      %5990 = vst.msk [vmem:[#allocation8 + $0x50] sm:$0xff] %vm230, 0.0
      %5991 = vst.msk [vmem:[#allocation8 + $0x58] sm:$0xff] %vm230, 0.0
      %5992 = vst.msk [vmem:[#allocation8 + $0x60] sm:$0xff] %vm230, 0.0
      %5993 = vst.msk [vmem:[#allocation8 + $0x68] sm:$0xff] %vm230, 0.0
      %5996 = vrot.lane.b32.xlu0 %v5964, 6
      %v5997 = vpop.permute.xlu0 %5996
      %5998 = vrot.lane.b32.xlu0 %v5965, 6
      %v5999 = vpop.permute.xlu0 %5998
      %vm6002 = vcmask 654384
      %6003 = vst.msk [vmem:[#allocation8] sm:$0xff] %vm6002, %v5997
      %6004 = vst.msk [vmem:[#allocation8 + $0x8] sm:$0xff] %vm6002, %v5999
      %6005 = vrot.lane.b32.xlu0 %v5964, 5
      %v6006 = vpop.permute.xlu0 %6005
      %6007 = vrot.lane.b32.xlu0 %v5965, 5
      %v6008 = vpop.permute.xlu0 %6007
      %vm6011 = vcmask 654376
      %6012 = vst.msk [vmem:[#allocation8 + $0x10] sm:$0xff] %vm6011, %v6006
      %6013 = vst.msk [vmem:[#allocation8 + $0x18] sm:$0xff] %vm6011, %v6008
      %6014 = vrot.lane.b32.xlu0 %v5964, 4
      %v6015 = vpop.permute.xlu0 %6014
      %6016 = vrot.lane.b32.xlu0 %v5965, 4
      %v6017 = vpop.permute.xlu0 %6016
      %vm6020 = vcmask 654368
      %6021 = vst.msk [vmem:[#allocation8 + $0x20] sm:$0xff] %vm6020, %v6015
      %6022 = vst.msk [vmem:[#allocation8 + $0x28] sm:$0xff] %vm6020, %v6017
      %6023 = vrot.lane.b32.xlu0 %v5964, 3
      %v6024 = vpop.permute.xlu0 %6023
      %6025 = vrot.lane.b32.xlu0 %v5965, 3
      %v6026 = vpop.permute.xlu0 %6025
      %vm6029 = vcmask 654360
      %6030 = vst.msk [vmem:[#allocation8 + $0x30] sm:$0xff] %vm6029, %v6024
      %6031 = vst.msk [vmem:[#allocation8 + $0x38] sm:$0xff] %vm6029, %v6026
      %6032 = vrot.lane.b32.xlu0 %v5964, 2
      %v6033 = vpop.permute.xlu0 %6032
      %6034 = vrot.lane.b32.xlu0 %v5965, 2
      %v6035 = vpop.permute.xlu0 %6034
      %vm6038 = vcmask 654352
      %6039 = vst.msk [vmem:[#allocation8 + $0x40] sm:$0xff] %vm6038, %v6033
      %6040 = vst.msk [vmem:[#allocation8 + $0x48] sm:$0xff] %vm6038, %v6035
      %6041 = vrot.lane.b32.xlu0 %v5964, 1
      %v6042 = vpop.permute.xlu0 %6041
      %6043 = vrot.lane.b32.xlu0 %v5965, 1
      %v6044 = vpop.permute.xlu0 %6043
      %vm6047 = vcmask 654344
      %6048 = vst.msk [vmem:[#allocation8 + $0x50] sm:$0xff] %vm6047, %v6042
      %6049 = vst.msk [vmem:[#allocation8 + $0x58] sm:$0xff] %vm6047, %v6044
      %vm6050 = vcmask 654336
      %6051 = vst.msk [vmem:[#allocation8 + $0x60] sm:$0xff] %vm6050, %v5964
      %6052 = vst.msk [vmem:[#allocation8 + $0x68] sm:$0xff] %vm6050, %v5965
      %v6053 = vld [vmem:[#allocation8] sm:$0xff]
      %v6054 = vld [vmem:[#allocation8 + $0x8] sm:$0xff]
      %v6055 = vld [vmem:[#allocation8 + $0x10] sm:$0xff]
      %v6056 = vld [vmem:[#allocation8 + $0x18] sm:$0xff]
      %v6057 = vld [vmem:[#allocation8 + $0x20] sm:$0xff]
      %v6058 = vld [vmem:[#allocation8 + $0x28] sm:$0xff]
      %v6059 = vld [vmem:[#allocation8 + $0x30] sm:$0xff]
      %v6060 = vld [vmem:[#allocation8 + $0x38] sm:$0xff]
      %v6061 = vld [vmem:[#allocation8 + $0x40] sm:$0xff]
      %v6062 = vld [vmem:[#allocation8 + $0x48] sm:$0xff]
      %v6063 = vld [vmem:[#allocation8 + $0x50] sm:$0xff]
      %v6064 = vld [vmem:[#allocation8 + $0x58] sm:$0xff]
      %v6065 = vld [vmem:[#allocation8 + $0x60] sm:$0xff]
      %v6066 = vld [vmem:[#allocation8 + $0x68] sm:$0xff]
      %v6067 = vpack.c.bf16 %v6054, %v6053
      %v6068 = vpack.c.bf16 %v6056, %v6055
      %v6069 = vpack.c.bf16 %v6058, %v6057
      %v6070 = vpack.c.bf16 %v6060, %v6059
      %v6071 = vpack.c.bf16 %v6062, %v6061
      %v6072 = vpack.c.bf16 %v6064, %v6063
      %v6073 = vpack.c.bf16 %v6066, %v6065
      %v6074 = vld [vmem:[%s1 + $0xd0] sm:$0xf]
      %v6075 = vld [vmem:[%s1 + $0xd8] sm:$0xf]
      %v6076 = vld [vmem:[%s2] sm:$0xff]
      %v6077 = vld [vmem:[%s2 + $0x8] sm:$0xff]
      %6079 = vset.pattern.permute.xlu0 13
      %6080 = vperm.xlu0 %6079, %v6076
      %v6081 = vpop.permute.xlu0 %6080
      %6084 = vset.pattern.permute.xlu0 13
      %6085 = vperm.xlu0 %6084, %v6077
      %v6086 = vpop.permute.xlu0 %6085
      %v6090 = vunpack.c.l.b16 %v6074
      %v6091 = vunpack.c.l.b16 %v6075
      %v6092 = vpack.c.b16 %v6091, %v6090
      %vm6093 = vcmask 916480
      %v6095 = vsel %vm6093, %v6092, 0
      %6097 = vmatprep.subr.bf16.mxu0 0
      %6098 = vmatpush1.bf16.msra.mxu0 %v6067
      %6099 = vmatprep.subr.bf16.mxu0 0
      %6100 = vmatpush1.bf16.msra.mxu0 %v6068
      %6101 = vmatprep.subr.bf16.mxu0 0
      %6102 = vmatpush1.bf16.msra.mxu0 %v6069
      %6103 = vmatprep.subr.bf16.mxu0 0
      %6104 = vmatpush1.bf16.msra.mxu0 %v6070
      %6105 = vmatprep.subr.bf16.mxu0 0
      %6106 = vmatpush1.bf16.msra.mxu0 %v6071
      %6107 = vmatprep.subr.bf16.mxu0 0
      %6108 = vmatpush1.bf16.msra.mxu0 %v6072
      %6109 = vmatprep.subr.bf16.mxu0 0
      %6110 = vmatpush1.bf16.msra.mxu0 %v6073
      %6111 = vmatprep.subr.bf16.mxu0 0
      %6112 = vmatpush1.bf16.msra.mxu0 0
      %6113 = vmatprep.subr.bf16.mxu0 0
      %6114 = vmatpush1.bf16.msra.mxu0 0
      %6115 = vmatprep.subr.bf16.mxu0 0
      %6116 = vmatpush1.bf16.msra.mxu0 0
      %6117 = vmatprep.subr.bf16.mxu0 0
      %6118 = vmatpush1.bf16.msra.mxu0 0
      %6119 = vmatprep.subr.bf16.mxu0 0
      %6120 = vmatpush1.bf16.msra.mxu0 0
      %6121 = vmatprep.subr.bf16.mxu0 0
      %6122 = vmatpush1.bf16.msra.mxu0 0
      %6123 = vmatprep.subr.bf16.mxu0 0
      %6124 = vmatpush1.bf16.msra.mxu0 0
      %6125 = vmatprep.subr.bf16.mxu0 0
      %6126 = vmatpush1.bf16.msra.mxu0 0
      %6127 = vmatprep.subr.bf16.mxu0 0
      %6128 = vmatpush1.bf16.msra.mxu0 0
      %6129 = vmatprep.mubr.bf16.mxu0 0
      %6130 = vmatmul.mubr.bf16.gmra.mrb[0].mxu0 %v6095
      %v6131 = vpop.f32.mrb[0].mxu0
      %v6132 = vadd.f32 %v6081, %v6131
      %v6133 = vpop.f32.mrb[0].mxu0
      %v6134 = vpop.f32.mrb[0].mxu0
      %v6135 = vadd.f32 %v6086, %v6134
      %v6136 = vpop.f32.mrb[0].mxu0
      %6137 = vdwg.mxu0
      %vm6138 = vcmp.gt.f32.partialorder %v6132, 0.0
      %vm6139 = vcmp.gt.f32.partialorder %v6135, 0.0
      %v6140 = vmin.f32 %v6132, 0.0
      %v6141 = vmin.f32 %v6135, 0.0
      %v6142 = vmul.f32 %v6140, 1.442695
      %v6143 = vpow.pop %v6142
      %v6144 = vmul.f32 %v6141, 1.442695
      %v6145 = vpow.pop %v6144
      %v6146 = vsub.f32 %v6143, 1.0
      %v6147 = vsub.f32 %v6145, 1.0
      %v6148 = vsel %vm6138, %v6132, %v6146
      %v6149 = vsel %vm6139, %v6135, %v6147
      %v6150 = vpack.c.bf16 %v6149, %v6148
      %v6151 = vld [vmem:[%s1 + $0xe0] sm:$0xf]
      %v6152 = vld [vmem:[%s1 + $0xe8] sm:$0xf]
      %6153 = vset.pattern.permute.xlu0 14
      %6154 = vperm.xlu0 %6153, %v6076
      %v6155 = vpop.permute.xlu0 %6154
      %6157 = vset.pattern.permute.xlu0 14
      %6158 = vperm.xlu0 %6157, %v6077
      %v6159 = vpop.permute.xlu0 %6158
      %v6163 = vunpack.c.l.b16 %v6151
      %v6164 = vunpack.c.l.b16 %v6152
      %v6165 = vpack.c.b16 %v6164, %v6163
      %v6167 = vsel %vm3422, %v6165, 0
      %6169 = vmatprep.subr.bf16.mxu0 0
      %6170 = vmatpush1.bf16.msra.mxu0 %v6150
      %6171 = vmatprep.subr.bf16.mxu0 0
      %6172 = vmatpush1.bf16.msra.mxu0 0
      %6173 = vmatprep.subr.bf16.mxu0 0
      %6174 = vmatpush1.bf16.msra.mxu0 0
      %6175 = vmatprep.subr.bf16.mxu0 0
      %6176 = vmatpush1.bf16.msra.mxu0 0
      %6177 = vmatprep.subr.bf16.mxu0 0
      %6178 = vmatpush1.bf16.msra.mxu0 0
      %6179 = vmatprep.subr.bf16.mxu0 0
      %6180 = vmatpush1.bf16.msra.mxu0 0
      %6181 = vmatprep.subr.bf16.mxu0 0
      %6182 = vmatpush1.bf16.msra.mxu0 0
      %6183 = vmatprep.subr.bf16.mxu0 0
      %6184 = vmatpush1.bf16.msra.mxu0 0
      %6185 = vmatprep.subr.bf16.mxu0 0
      %6186 = vmatpush1.bf16.msra.mxu0 0
      %6187 = vmatprep.subr.bf16.mxu0 0
      %6188 = vmatpush1.bf16.msra.mxu0 0
      %6189 = vmatprep.subr.bf16.mxu0 0
      %6190 = vmatpush1.bf16.msra.mxu0 0
      %6191 = vmatprep.subr.bf16.mxu0 0
      %6192 = vmatpush1.bf16.msra.mxu0 0
      %6193 = vmatprep.subr.bf16.mxu0 0
      %6194 = vmatpush1.bf16.msra.mxu0 0
      %6195 = vmatprep.subr.bf16.mxu0 0
      %6196 = vmatpush1.bf16.msra.mxu0 0
      %6197 = vmatprep.subr.bf16.mxu0 0
      %6198 = vmatpush1.bf16.msra.mxu0 0
      %6199 = vmatprep.subr.bf16.mxu0 0
      %6200 = vmatpush1.bf16.msra.mxu0 0
      %6201 = vmatprep.mubr.bf16.mxu0 0
      %6202 = vmatmul.mubr.bf16.gmra.mrb[0].mxu0 %v6167
      %v6203 = vpop.f32.mrb[0].mxu0
      %v6204 = vadd.f32 %v6155, %v6203
      %v6205 = vpop.f32.mrb[0].mxu0
      %v6206 = vpop.f32.mrb[0].mxu0
      %v6207 = vadd.f32 %v6159, %v6206
      %v6208 = vpop.f32.mrb[0].mxu0
      %6209 = vdwg.mxu0
      %vm6210 = vcmp.gt.f32.partialorder %v6204, 0.0
      %vm6211 = vcmp.gt.f32.partialorder %v6207, 0.0
      %v6212 = vmin.f32 %v6204, 0.0
      %v6213 = vmin.f32 %v6207, 0.0
      %v6214 = vmul.f32 %v6212, 1.442695
      %v6215 = vpow.pop %v6214
      %v6216 = vmul.f32 %v6213, 1.442695
      %v6217 = vpow.pop %v6216
      %v6218 = vsub.f32 %v6215, 1.0
      %v6219 = vsub.f32 %v6217, 1.0
      %v6220 = vsel %vm6210, %v6204, %v6218
      %v6221 = vsel %vm6211, %v6207, %v6219
      %v6222 = vadd.f32 %v6220, %v5964
      %v6223 = vadd.f32 %v6221, %v5965
      %6224 = vst.msk [vmem:[#allocation8] sm:$0xff] %vm1056, 0.0
      %6225 = vst.msk [vmem:[#allocation8 + $0x8] sm:$0xff] %vm1056, 0.0
      %6226 = vst.msk [vmem:[#allocation8 + $0x10] sm:$0xff] %vm1056, 0.0
      %6227 = vst.msk [vmem:[#allocation8 + $0x18] sm:$0xff] %vm1056, 0.0
      %6228 = vst.msk [vmem:[#allocation8 + $0x20] sm:$0xff] %vm1056, 0.0
      %6229 = vst.msk [vmem:[#allocation8 + $0x28] sm:$0xff] %vm1056, 0.0
      %6230 = vst.msk [vmem:[#allocation8 + $0x30] sm:$0xff] %vm1056, 0.0
      %6231 = vst.msk [vmem:[#allocation8 + $0x38] sm:$0xff] %vm1056, 0.0
      %6232 = vst.msk [vmem:[#allocation8 + $0x40] sm:$0xff] %vm1056, 0.0
      %6233 = vst.msk [vmem:[#allocation8 + $0x48] sm:$0xff] %vm1056, 0.0
      %6234 = vst.msk [vmem:[#allocation8 + $0x50] sm:$0xff] %vm1056, 0.0
      %6235 = vst.msk [vmem:[#allocation8 + $0x58] sm:$0xff] %vm1056, 0.0
      %6236 = vst.msk [vmem:[#allocation8 + $0x60] sm:$0xff] %vm1056, 0.0
      %6237 = vst.msk [vmem:[#allocation8 + $0x68] sm:$0xff] %vm1056, 0.0
      %6240 = vrot.lane.b32.xlu0 %v6222, 18
      %v6241 = vpop.permute.xlu0 %6240
      %6242 = vrot.lane.b32.xlu0 %v6223, 18
      %v6243 = vpop.permute.xlu0 %6242
      %vm6246 = vcmask 654480
      %6247 = vst.msk [vmem:[#allocation8] sm:$0xff] %vm6246, %v6241
      %6248 = vst.msk [vmem:[#allocation8 + $0x8] sm:$0xff] %vm6246, %v6243
      %6249 = vrot.lane.b32.xlu0 %v6222, 15
      %v6250 = vpop.permute.xlu0 %6249
      %6251 = vrot.lane.b32.xlu0 %v6223, 15
      %v6252 = vpop.permute.xlu0 %6251
      %vm6255 = vcmask 654456
      %6256 = vst.msk [vmem:[#allocation8 + $0x10] sm:$0xff] %vm6255, %v6250
      %6257 = vst.msk [vmem:[#allocation8 + $0x18] sm:$0xff] %vm6255, %v6252
      %6258 = vrot.lane.b32.xlu0 %v6222, 12
      %v6259 = vpop.permute.xlu0 %6258
      %6260 = vrot.lane.b32.xlu0 %v6223, 12
      %v6261 = vpop.permute.xlu0 %6260
      %vm6264 = vcmask 654432
      %6265 = vst.msk [vmem:[#allocation8 + $0x20] sm:$0xff] %vm6264, %v6259
      %6266 = vst.msk [vmem:[#allocation8 + $0x28] sm:$0xff] %vm6264, %v6261
      %6267 = vrot.lane.b32.xlu0 %v6222, 9
      %v6268 = vpop.permute.xlu0 %6267
      %6269 = vrot.lane.b32.xlu0 %v6223, 9
      %v6270 = vpop.permute.xlu0 %6269
      %vm6273 = vcmask 654408
      %6274 = vst.msk [vmem:[#allocation8 + $0x30] sm:$0xff] %vm6273, %v6268
      %6275 = vst.msk [vmem:[#allocation8 + $0x38] sm:$0xff] %vm6273, %v6270
      %6276 = vrot.lane.b32.xlu0 %v6222, 6
      %v6277 = vpop.permute.xlu0 %6276
      %6278 = vrot.lane.b32.xlu0 %v6223, 6
      %v6279 = vpop.permute.xlu0 %6278
      %6282 = vst.msk [vmem:[#allocation8 + $0x40] sm:$0xff] %vm6002, %v6277
      %6283 = vst.msk [vmem:[#allocation8 + $0x48] sm:$0xff] %vm6002, %v6279
      %6284 = vrot.lane.b32.xlu0 %v6222, 3
      %v6285 = vpop.permute.xlu0 %6284
      %6286 = vrot.lane.b32.xlu0 %v6223, 3
      %v6287 = vpop.permute.xlu0 %6286
      %6290 = vst.msk [vmem:[#allocation8 + $0x50] sm:$0xff] %vm6029, %v6285
      %6291 = vst.msk [vmem:[#allocation8 + $0x58] sm:$0xff] %vm6029, %v6287
      %6292 = vst.msk [vmem:[#allocation8 + $0x60] sm:$0xff] %vm6050, %v6222
      %6293 = vst.msk [vmem:[#allocation8 + $0x68] sm:$0xff] %vm6050, %v6223
      %v6294 = vld [vmem:[#allocation8] sm:$0xff]
      %v6295 = vld [vmem:[#allocation8 + $0x8] sm:$0xff]
      %v6296 = vld [vmem:[#allocation8 + $0x10] sm:$0xff]
      %v6297 = vld [vmem:[#allocation8 + $0x18] sm:$0xff]
      %v6298 = vld [vmem:[#allocation8 + $0x20] sm:$0xff]
      %v6299 = vld [vmem:[#allocation8 + $0x28] sm:$0xff]
      %v6300 = vld [vmem:[#allocation8 + $0x30] sm:$0xff]
      %v6301 = vld [vmem:[#allocation8 + $0x38] sm:$0xff]
      %v6302 = vld [vmem:[#allocation8 + $0x40] sm:$0xff]
      %v6303 = vld [vmem:[#allocation8 + $0x48] sm:$0xff]
      %v6304 = vld [vmem:[#allocation8 + $0x50] sm:$0xff]
      %v6305 = vld [vmem:[#allocation8 + $0x58] sm:$0xff]
      %v6306 = vld [vmem:[#allocation8 + $0x60] sm:$0xff]
      %v6307 = vld [vmem:[#allocation8 + $0x68] sm:$0xff]
      %v6308 = vpack.c.bf16 %v6295, %v6294
      %v6309 = vpack.c.bf16 %v6297, %v6296
      %v6310 = vpack.c.bf16 %v6299, %v6298
      %v6311 = vpack.c.bf16 %v6301, %v6300
      %v6312 = vpack.c.bf16 %v6303, %v6302
      %v6313 = vpack.c.bf16 %v6305, %v6304
      %v6314 = vpack.c.bf16 %v6307, %v6306
      %v6315 = vld [vmem:[%s1 + $0xf0] sm:$0xf]
      %v6316 = vld [vmem:[%s1 + $0xf8] sm:$0xf]
      %v6317 = vld [vmem:[%s2] sm:$0xff]
      %v6318 = vld [vmem:[%s2 + $0x8] sm:$0xff]
      %6320 = vset.pattern.permute.xlu0 15
      %6321 = vperm.xlu0 %6320, %v6317
      %v6322 = vpop.permute.xlu0 %6321
      %6325 = vset.pattern.permute.xlu0 15
      %6326 = vperm.xlu0 %6325, %v6318
      %v6327 = vpop.permute.xlu0 %6326
      %v6331 = vunpack.c.l.b16 %v6315
      %v6332 = vunpack.c.l.b16 %v6316
      %v6333 = vpack.c.b16 %v6332, %v6331
      %v6335 = vsel %vm6093, %v6333, 0
      %6337 = vmatprep.subr.bf16.mxu0 0
      %6338 = vmatpush1.bf16.msra.mxu0 %v6308
      %6339 = vmatprep.subr.bf16.mxu0 0
      %6340 = vmatpush1.bf16.msra.mxu0 %v6309
      %6341 = vmatprep.subr.bf16.mxu0 0
      %6342 = vmatpush1.bf16.msra.mxu0 %v6310
      %6343 = vmatprep.subr.bf16.mxu0 0
      %6344 = vmatpush1.bf16.msra.mxu0 %v6311
      %6345 = vmatprep.subr.bf16.mxu0 0
      %6346 = vmatpush1.bf16.msra.mxu0 %v6312
      %6347 = vmatprep.subr.bf16.mxu0 0
      %6348 = vmatpush1.bf16.msra.mxu0 %v6313
      %6349 = vmatprep.subr.bf16.mxu0 0
      %6350 = vmatpush1.bf16.msra.mxu0 %v6314
      %6351 = vmatprep.subr.bf16.mxu0 0
      %6352 = vmatpush1.bf16.msra.mxu0 0
      %6353 = vmatprep.subr.bf16.mxu0 0
      %6354 = vmatpush1.bf16.msra.mxu0 0
      %6355 = vmatprep.subr.bf16.mxu0 0
      %6356 = vmatpush1.bf16.msra.mxu0 0
      %6357 = vmatprep.subr.bf16.mxu0 0
      %6358 = vmatpush1.bf16.msra.mxu0 0
      %6359 = vmatprep.subr.bf16.mxu0 0
      %6360 = vmatpush1.bf16.msra.mxu0 0
      %6361 = vmatprep.subr.bf16.mxu0 0
      %6362 = vmatpush1.bf16.msra.mxu0 0
      %6363 = vmatprep.subr.bf16.mxu0 0
      %6364 = vmatpush1.bf16.msra.mxu0 0
      %6365 = vmatprep.subr.bf16.mxu0 0
      %6366 = vmatpush1.bf16.msra.mxu0 0
      %6367 = vmatprep.subr.bf16.mxu0 0
      %6368 = vmatpush1.bf16.msra.mxu0 0
      %6369 = vmatprep.mubr.bf16.mxu0 0
      %6370 = vmatmul.mubr.bf16.gmra.mrb[0].mxu0 %v6335
      %v6371 = vpop.f32.mrb[0].mxu0
      %v6372 = vadd.f32 %v6322, %v6371
      %v6373 = vpop.f32.mrb[0].mxu0
      %v6374 = vpop.f32.mrb[0].mxu0
      %v6375 = vadd.f32 %v6327, %v6374
      %v6376 = vpop.f32.mrb[0].mxu0
      %6377 = vdwg.mxu0
      %vm6378 = vcmp.gt.f32.partialorder %v6372, 0.0
      %vm6379 = vcmp.gt.f32.partialorder %v6375, 0.0
      %v6380 = vmin.f32 %v6372, 0.0
      %v6381 = vmin.f32 %v6375, 0.0
      %v6382 = vmul.f32 %v6380, 1.442695
      %v6383 = vpow.pop %v6382
      %v6384 = vmul.f32 %v6381, 1.442695
      %v6385 = vpow.pop %v6384
      %v6386 = vsub.f32 %v6383, 1.0
      %v6387 = vsub.f32 %v6385, 1.0
      %v6388 = vsel %vm6378, %v6372, %v6386
      %v6389 = vsel %vm6379, %v6375, %v6387
      %v6390 = vpack.c.bf16 %v6389, %v6388
      %v6391 = vld [vmem:[%s1 + $0x100] sm:$0xf]
      %v6392 = vld [vmem:[%s1 + $0x108] sm:$0xf]
      %6393 = vset.pattern.permute.xlu0 16
      %6394 = vperm.xlu0 %6393, %v6317
      %v6395 = vpop.permute.xlu0 %6394
      %6397 = vset.pattern.permute.xlu0 16
      %6398 = vperm.xlu0 %6397, %v6318
      %v6399 = vpop.permute.xlu0 %6398
      %v6403 = vunpack.c.l.b16 %v6391
      %v6404 = vunpack.c.l.b16 %v6392
      %v6405 = vpack.c.b16 %v6404, %v6403
      %v6407 = vsel %vm3422, %v6405, 0
      %6409 = vmatprep.subr.bf16.mxu0 0
      %6410 = vmatpush1.bf16.msra.mxu0 %v6390
      %6411 = vmatprep.subr.bf16.mxu0 0
      %6412 = vmatpush1.bf16.msra.mxu0 0
      %6413 = vmatprep.subr.bf16.mxu0 0
      %6414 = vmatpush1.bf16.msra.mxu0 0
      %6415 = vmatprep.subr.bf16.mxu0 0
      %6416 = vmatpush1.bf16.msra.mxu0 0
      %6417 = vmatprep.subr.bf16.mxu0 0
      %6418 = vmatpush1.bf16.msra.mxu0 0
      %6419 = vmatprep.subr.bf16.mxu0 0
      %6420 = vmatpush1.bf16.msra.mxu0 0
      %6421 = vmatprep.subr.bf16.mxu0 0
      %6422 = vmatpush1.bf16.msra.mxu0 0
      %6423 = vmatprep.subr.bf16.mxu0 0
      %6424 = vmatpush1.bf16.msra.mxu0 0
      %6425 = vmatprep.subr.bf16.mxu0 0
      %6426 = vmatpush1.bf16.msra.mxu0 0
      %6427 = vmatprep.subr.bf16.mxu0 0
      %6428 = vmatpush1.bf16.msra.mxu0 0
      %6429 = vmatprep.subr.bf16.mxu0 0
      %6430 = vmatpush1.bf16.msra.mxu0 0
      %6431 = vmatprep.subr.bf16.mxu0 0
      %6432 = vmatpush1.bf16.msra.mxu0 0
      %6433 = vmatprep.subr.bf16.mxu0 0
      %6434 = vmatpush1.bf16.msra.mxu0 0
      %6435 = vmatprep.subr.bf16.mxu0 0
      %6436 = vmatpush1.bf16.msra.mxu0 0
      %6437 = vmatprep.subr.bf16.mxu0 0
      %6438 = vmatpush1.bf16.msra.mxu0 0
      %6439 = vmatprep.subr.bf16.mxu0 0
      %6440 = vmatpush1.bf16.msra.mxu0 0
      %6441 = vmatprep.mubr.bf16.mxu0 0
      %6442 = vmatmul.mubr.bf16.gmra.mrb[0].mxu0 %v6407
      %v6443 = vpop.f32.mrb[0].mxu0
      %v6444 = vadd.f32 %v6395, %v6443
      %v6445 = vpop.f32.mrb[0].mxu0
      %v6446 = vpop.f32.mrb[0].mxu0
      %v6447 = vadd.f32 %v6399, %v6446
      %v6448 = vpop.f32.mrb[0].mxu0
      %6449 = vdwg.mxu0
      %vm6450 = vcmp.gt.f32.partialorder %v6444, 0.0
      %vm6451 = vcmp.gt.f32.partialorder %v6447, 0.0
      %v6452 = vmin.f32 %v6444, 0.0
      %v6453 = vmin.f32 %v6447, 0.0
      %v6454 = vmul.f32 %v6452, 1.442695
      %v6455 = vpow.pop %v6454
      %v6456 = vmul.f32 %v6453, 1.442695
      %v6457 = vpow.pop %v6456
      %v6458 = vsub.f32 %v6455, 1.0
      %v6459 = vsub.f32 %v6457, 1.0
      %v6460 = vsel %vm6450, %v6444, %v6458
      %v6461 = vsel %vm6451, %v6447, %v6459
      %v6462 = vadd.f32 %v6460, %v6222
      %v6463 = vadd.f32 %v6461, %v6223
      %6464 = vst.msk [vmem:[#allocation8] sm:$0xff] %vm1620, 0.0
      %6465 = vst.msk [vmem:[#allocation8 + $0x8] sm:$0xff] %vm1620, 0.0
      %6466 = vst.msk [vmem:[#allocation8 + $0x10] sm:$0xff] %vm1620, 0.0
      %6467 = vst.msk [vmem:[#allocation8 + $0x18] sm:$0xff] %vm1620, 0.0
      %6468 = vst.msk [vmem:[#allocation8 + $0x20] sm:$0xff] %vm1620, 0.0
      %6469 = vst.msk [vmem:[#allocation8 + $0x28] sm:$0xff] %vm1620, 0.0
      %6470 = vst.msk [vmem:[#allocation8 + $0x30] sm:$0xff] %vm1620, 0.0
      %6471 = vst.msk [vmem:[#allocation8 + $0x38] sm:$0xff] %vm1620, 0.0
      %6472 = vst.msk [vmem:[#allocation8 + $0x40] sm:$0xff] %vm1620, 0.0
      %6473 = vst.msk [vmem:[#allocation8 + $0x48] sm:$0xff] %vm1620, 0.0
      %6474 = vst.msk [vmem:[#allocation8 + $0x50] sm:$0xff] %vm1620, 0.0
      %6475 = vst.msk [vmem:[#allocation8 + $0x58] sm:$0xff] %vm1620, 0.0
      %6476 = vst.msk [vmem:[#allocation8 + $0x60] sm:$0xff] %vm1620, 0.0
      %6477 = vst.msk [vmem:[#allocation8 + $0x68] sm:$0xff] %vm1620, 0.0
      %6480 = vrot.lane.b32.xlu0 %v6462, 54
      %v6481 = vpop.permute.xlu0 %6480
      %6482 = vrot.lane.b32.xlu0 %v6463, 54
      %v6483 = vpop.permute.xlu0 %6482
      %vm6486 = vcmask 654768
      %6487 = vst.msk [vmem:[#allocation8] sm:$0xff] %vm6486, %v6481
      %6488 = vst.msk [vmem:[#allocation8 + $0x8] sm:$0xff] %vm6486, %v6483
      %6489 = vrot.lane.b32.xlu0 %v6462, 45
      %v6490 = vpop.permute.xlu0 %6489
      %6491 = vrot.lane.b32.xlu0 %v6463, 45
      %v6492 = vpop.permute.xlu0 %6491
      %vm6495 = vcmask 654696
      %6496 = vst.msk [vmem:[#allocation8 + $0x10] sm:$0xff] %vm6495, %v6490
      %6497 = vst.msk [vmem:[#allocation8 + $0x18] sm:$0xff] %vm6495, %v6492
      %6498 = vrot.lane.b32.xlu0 %v6462, 36
      %v6499 = vpop.permute.xlu0 %6498
      %6500 = vrot.lane.b32.xlu0 %v6463, 36
      %v6501 = vpop.permute.xlu0 %6500
      %vm6504 = vcmask 654624
      %6505 = vst.msk [vmem:[#allocation8 + $0x20] sm:$0xff] %vm6504, %v6499
      %6506 = vst.msk [vmem:[#allocation8 + $0x28] sm:$0xff] %vm6504, %v6501
      %6507 = vrot.lane.b32.xlu0 %v6462, 27
      %v6508 = vpop.permute.xlu0 %6507
      %6509 = vrot.lane.b32.xlu0 %v6463, 27
      %v6510 = vpop.permute.xlu0 %6509
      %vm6513 = vcmask 654552
      %6514 = vst.msk [vmem:[#allocation8 + $0x30] sm:$0xff] %vm6513, %v6508
      %6515 = vst.msk [vmem:[#allocation8 + $0x38] sm:$0xff] %vm6513, %v6510
      %6516 = vrot.lane.b32.xlu0 %v6462, 18
      %v6517 = vpop.permute.xlu0 %6516
      %6518 = vrot.lane.b32.xlu0 %v6463, 18
      %v6519 = vpop.permute.xlu0 %6518
      %6522 = vst.msk [vmem:[#allocation8 + $0x40] sm:$0xff] %vm6246, %v6517
      %6523 = vst.msk [vmem:[#allocation8 + $0x48] sm:$0xff] %vm6246, %v6519
      %6524 = vrot.lane.b32.xlu0 %v6462, 9
      %v6525 = vpop.permute.xlu0 %6524
      %6526 = vrot.lane.b32.xlu0 %v6463, 9
      %v6527 = vpop.permute.xlu0 %6526
      %6530 = vst.msk [vmem:[#allocation8 + $0x50] sm:$0xff] %vm6273, %v6525
      %6531 = vst.msk [vmem:[#allocation8 + $0x58] sm:$0xff] %vm6273, %v6527
      %6532 = vst.msk [vmem:[#allocation8 + $0x60] sm:$0xff] %vm6050, %v6462
      %6533 = vst.msk [vmem:[#allocation8 + $0x68] sm:$0xff] %vm6050, %v6463
      %v6534 = vld [vmem:[#allocation8] sm:$0xff]
      %v6535 = vld [vmem:[#allocation8 + $0x8] sm:$0xff]
      %v6536 = vld [vmem:[#allocation8 + $0x10] sm:$0xff]
      %v6537 = vld [vmem:[#allocation8 + $0x18] sm:$0xff]
      %v6538 = vld [vmem:[#allocation8 + $0x20] sm:$0xff]
      %v6539 = vld [vmem:[#allocation8 + $0x28] sm:$0xff]
      %v6540 = vld [vmem:[#allocation8 + $0x30] sm:$0xff]
      %v6541 = vld [vmem:[#allocation8 + $0x38] sm:$0xff]
      %v6542 = vld [vmem:[#allocation8 + $0x40] sm:$0xff]
      %v6543 = vld [vmem:[#allocation8 + $0x48] sm:$0xff]
      %v6544 = vld [vmem:[#allocation8 + $0x50] sm:$0xff]
      %v6545 = vld [vmem:[#allocation8 + $0x58] sm:$0xff]
      %v6546 = vld [vmem:[#allocation8 + $0x60] sm:$0xff]
      %v6547 = vld [vmem:[#allocation8 + $0x68] sm:$0xff]
      %v6548 = vpack.c.bf16 %v6535, %v6534
      %v6549 = vpack.c.bf16 %v6537, %v6536
      %v6550 = vpack.c.bf16 %v6539, %v6538
      %v6551 = vpack.c.bf16 %v6541, %v6540
      %v6552 = vpack.c.bf16 %v6543, %v6542
      %v6553 = vpack.c.bf16 %v6545, %v6544
      %v6554 = vpack.c.bf16 %v6547, %v6546
      %v6555 = vld [vmem:[%s1 + $0x110] sm:$0xf]
      %v6556 = vld [vmem:[%s1 + $0x118] sm:$0xf]
      %v6557 = vld [vmem:[%s2] sm:$0xff]
      %v6558 = vld [vmem:[%s2 + $0x8] sm:$0xff]
      %6560 = vset.pattern.permute.xlu0 17
      %6561 = vperm.xlu0 %6560, %v6557
      %v6562 = vpop.permute.xlu0 %6561
      %6565 = vset.pattern.permute.xlu0 17
      %6566 = vperm.xlu0 %6565, %v6558
      %v6567 = vpop.permute.xlu0 %6566
      %v6571 = vunpack.c.l.b16 %v6555
      %v6572 = vunpack.c.l.b16 %v6556
      %v6573 = vpack.c.b16 %v6572, %v6571
      %v6575 = vsel %vm6093, %v6573, 0
      %6577 = vmatprep.subr.bf16.mxu0 0
      %6578 = vmatpush1.bf16.msra.mxu0 %v6548
      %6579 = vmatprep.subr.bf16.mxu0 0
      %6580 = vmatpush1.bf16.msra.mxu0 %v6549
      %6581 = vmatprep.subr.bf16.mxu0 0
      %6582 = vmatpush1.bf16.msra.mxu0 %v6550
      %6583 = vmatprep.subr.bf16.mxu0 0
      %6584 = vmatpush1.bf16.msra.mxu0 %v6551
      %6585 = vmatprep.subr.bf16.mxu0 0
      %6586 = vmatpush1.bf16.msra.mxu0 %v6552
      %6587 = vmatprep.subr.bf16.mxu0 0
      %6588 = vmatpush1.bf16.msra.mxu0 %v6553
      %6589 = vmatprep.subr.bf16.mxu0 0
      %6590 = vmatpush1.bf16.msra.mxu0 %v6554
      %6591 = vmatprep.subr.bf16.mxu0 0
      %6592 = vmatpush1.bf16.msra.mxu0 0
      %6593 = vmatprep.subr.bf16.mxu0 0
      %6594 = vmatpush1.bf16.msra.mxu0 0
      %6595 = vmatprep.subr.bf16.mxu0 0
      %6596 = vmatpush1.bf16.msra.mxu0 0
      %6597 = vmatprep.subr.bf16.mxu0 0
      %6598 = vmatpush1.bf16.msra.mxu0 0
      %6599 = vmatprep.subr.bf16.mxu0 0
      %6600 = vmatpush1.bf16.msra.mxu0 0
      %6601 = vmatprep.subr.bf16.mxu0 0
      %6602 = vmatpush1.bf16.msra.mxu0 0
      %6603 = vmatprep.subr.bf16.mxu0 0
      %6604 = vmatpush1.bf16.msra.mxu0 0
      %6605 = vmatprep.subr.bf16.mxu0 0
      %6606 = vmatpush1.bf16.msra.mxu0 0
      %6607 = vmatprep.subr.bf16.mxu0 0
      %6608 = vmatpush1.bf16.msra.mxu0 0
      %6609 = vmatprep.mubr.bf16.mxu0 0
      %6610 = vmatmul.mubr.bf16.gmra.mrb[0].mxu0 %v6575
      %v6611 = vpop.f32.mrb[0].mxu0
      %v6612 = vadd.f32 %v6562, %v6611
      %v6613 = vpop.f32.mrb[0].mxu0
      %v6614 = vpop.f32.mrb[0].mxu0
      %v6615 = vadd.f32 %v6567, %v6614
      %v6616 = vpop.f32.mrb[0].mxu0
      %6617 = vdwg.mxu0
      %vm6618 = vcmp.gt.f32.partialorder %v6612, 0.0
      %vm6619 = vcmp.gt.f32.partialorder %v6615, 0.0
      %v6620 = vmin.f32 %v6612, 0.0
      %v6621 = vmin.f32 %v6615, 0.0
      %v6622 = vmul.f32 %v6620, 1.442695
      %v6623 = vpow.pop %v6622
      %v6624 = vmul.f32 %v6621, 1.442695
      %v6625 = vpow.pop %v6624
      %v6626 = vsub.f32 %v6623, 1.0
      %v6627 = vsub.f32 %v6625, 1.0
      %v6628 = vsel %vm6618, %v6612, %v6626
      %v6629 = vsel %vm6619, %v6615, %v6627
      %v6630 = vpack.c.bf16 %v6629, %v6628
      %v6631 = vld [vmem:[%s1 + $0x120] sm:$0xf]
      %v6632 = vld [vmem:[%s1 + $0x128] sm:$0xf]
      %6633 = vset.pattern.permute.xlu0 18
      %6634 = vperm.xlu0 %6633, %v6557
      %v6635 = vpop.permute.xlu0 %6634
      %6637 = vset.pattern.permute.xlu0 18
      %6638 = vperm.xlu0 %6637, %v6558
      %v6639 = vpop.permute.xlu0 %6638
      %v6643 = vunpack.c.l.b16 %v6631
      %v6644 = vunpack.c.l.b16 %v6632
      %v6645 = vpack.c.b16 %v6644, %v6643
      %v6647 = vsel %vm3422, %v6645, 0
      %6649 = vmatprep.subr.bf16.mxu0 0
      %6650 = vmatpush1.bf16.msra.mxu0 %v6630
      %6651 = vmatprep.subr.bf16.mxu0 0
      %6652 = vmatpush1.bf16.msra.mxu0 0
      %6653 = vmatprep.subr.bf16.mxu0 0
      %6654 = vmatpush1.bf16.msra.mxu0 0
      %6655 = vmatprep.subr.bf16.mxu0 0
      %6656 = vmatpush1.bf16.msra.mxu0 0
      %6657 = vmatprep.subr.bf16.mxu0 0
      %6658 = vmatpush1.bf16.msra.mxu0 0
      %6659 = vmatprep.subr.bf16.mxu0 0
      %6660 = vmatpush1.bf16.msra.mxu0 0
      %6661 = vmatprep.subr.bf16.mxu0 0
      %6662 = vmatpush1.bf16.msra.mxu0 0
      %6663 = vmatprep.subr.bf16.mxu0 0
      %6664 = vmatpush1.bf16.msra.mxu0 0
      %6665 = vmatprep.subr.bf16.mxu0 0
      %6666 = vmatpush1.bf16.msra.mxu0 0
      %6667 = vmatprep.subr.bf16.mxu0 0
      %6668 = vmatpush1.bf16.msra.mxu0 0
      %6669 = vmatprep.subr.bf16.mxu0 0
      %6670 = vmatpush1.bf16.msra.mxu0 0
      %6671 = vmatprep.subr.bf16.mxu0 0
      %6672 = vmatpush1.bf16.msra.mxu0 0
      %6673 = vmatprep.subr.bf16.mxu0 0
      %6674 = vmatpush1.bf16.msra.mxu0 0
      %6675 = vmatprep.subr.bf16.mxu0 0
      %6676 = vmatpush1.bf16.msra.mxu0 0
      %6677 = vmatprep.subr.bf16.mxu0 0
      %6678 = vmatpush1.bf16.msra.mxu0 0
      %6679 = vmatprep.subr.bf16.mxu0 0
      %6680 = vmatpush1.bf16.msra.mxu0 0
      %6681 = vmatprep.mubr.bf16.mxu0 0
      %6682 = vmatmul.mubr.bf16.gmra.mrb[0].mxu0 %v6647
      %v6683 = vpop.f32.mrb[0].mxu0
      %v6684 = vadd.f32 %v6635, %v6683
      %v6685 = vpop.f32.mrb[0].mxu0
      %v6686 = vpop.f32.mrb[0].mxu0
      %v6687 = vadd.f32 %v6639, %v6686
      %v6688 = vpop.f32.mrb[0].mxu0
      %6689 = vdwg.mxu0
      %vm6690 = vcmp.gt.f32.partialorder %v6684, 0.0
      %vm6691 = vcmp.gt.f32.partialorder %v6687, 0.0
      %v6692 = vmin.f32 %v6684, 0.0
      %v6693 = vmin.f32 %v6687, 0.0
      %v6694 = vmul.f32 %v6692, 1.442695
      %v6695 = vpow.pop %v6694
      %v6696 = vmul.f32 %v6693, 1.442695
      %v6697 = vpow.pop %v6696
      %v6698 = vsub.f32 %v6695, 1.0
      %v6699 = vsub.f32 %v6697, 1.0
      %v6700 = vsel %vm6690, %v6684, %v6698
      %v6701 = vsel %vm6691, %v6687, %v6699
      %v6702 = vadd.f32 %v6700, %v6462
      %v6703 = vadd.f32 %v6701, %v6463
      %6704 = vxpose.xlu0.b32.start [1/16] %v6702, 128
      %6705 = vxpose.xlu0.b32.cont [2/16] %v6703, 128
      %6706 = vxpose.xlu0.b32.cont [3/16] 0.0, 128
      %6707 = vxpose.xlu0.b32.cont [4/16] 0.0, 128
      %6708 = vxpose.xlu0.b32.cont [5/16] 0.0, 128
      %6709 = vxpose.xlu0.b32.cont [6/16] 0.0, 128
      %6710 = vxpose.xlu0.b32.cont [7/16] 0.0, 128
      %6711 = vxpose.xlu0.b32.cont [8/16] 0.0, 128
      %6712 = vxpose.xlu0.b32.cont [9/16] 0.0, 128
      %6713 = vxpose.xlu0.b32.cont [10/16] 0.0, 128
      %6714 = vxpose.xlu0.b32.cont [11/16] 0.0, 128
      %6715 = vxpose.xlu0.b32.cont [12/16] 0.0, 128
      %6716 = vxpose.xlu0.b32.cont [13/16] 0.0, 128
      %6717 = vxpose.xlu0.b32.cont [14/16] 0.0, 128
      %6718 = vxpose.xlu0.b32.cont [15/16] 0.0, 128
      %6719 = vxpose.xlu0.b32.end [16/16] 0.0, 128
      %v6720 = vpop.trf.xlu0
      %v6721 = vpop.trf.xlu0
      %v6722 = vpop.trf.xlu0
      %v6723 = vpop.trf.xlu0
      %v6724 = vpop.trf.xlu0
      %v6725 = vpop.trf.xlu0
      %v6726 = vpop.trf.xlu0
      %v6727 = vpop.trf.xlu0
      %v6728 = vpop.trf.xlu0
      %v6729 = vpop.trf.xlu0
      %v6730 = vpop.trf.xlu0
      %v6731 = vpop.trf.xlu0
      %v6732 = vpop.trf.xlu0
      %v6733 = vpop.trf.xlu0
      %v6734 = vpop.trf.xlu0
      %v6735 = vpop.trf.xlu0
      %6736 = vst.msk [vmem:[#allocation2] sm:$0xff] %vm3422, %v6720
      %6737 = vst.msk [vmem:[#allocation2 + $0x8] sm:$0xff] %vm3422, %v6721
      %6738 = vst.msk [vmem:[#allocation2 + $0x10] sm:$0xff] %vm3422, %v6722
      %6739 = vst.msk [vmem:[#allocation2 + $0x18] sm:$0xff] %vm3422, %v6723
      %6740 = vst.msk [vmem:[#allocation2 + $0x20] sm:$0xff] %vm3422, %v6724
      %6741 = vst.msk [vmem:[#allocation2 + $0x28] sm:$0xff] %vm3422, %v6725
      %6742 = vst.msk [vmem:[#allocation2 + $0x30] sm:$0xff] %vm3422, %v6726
      %6743 = vst.msk [vmem:[#allocation2 + $0x38] sm:$0xff] %vm3422, %v6727
      %6744 = vst.msk [vmem:[#allocation2 + $0x40] sm:$0xff] %vm3422, %v6728
      %6745 = vst.msk [vmem:[#allocation2 + $0x48] sm:$0xff] %vm3422, %v6729
      %vm6746 = vcmp.lt.s32.totalorder %v233, 160
      %vm6747 = vmand %vm294, %vm6746
      %6748 = vst.msk [vmem:[#allocation9] ss:$8 sm:$0x3] %vm6747, 0.0
      %6749 = vst.msk [vmem:[#allocation9] ss:$8 sm:$0x0] %vm6747, 0.0
      %v6750 = vld [vmem:[#allocation2] ss:$5 sm:$0xff]
      %s6751 = scalar_lea.vmem [#allocation2], 40
      %v6752 = vld [vmem:[%s6751] ss:$5 sm:$0x7f]
      %vm6755 = vcmask 1040384
      %v6756 = vrot.slane %v6750, 7
      %v6757 = vrot.slane %v6752, 7
      %v6758 = vsel %vm6755, %v6756, %v6757
      %vm6761 = vcmask 130049
      %6762 = vst.msk [vmem:[#allocation9] sm:$0xfe] %vm6761, %v6756
      %6763 = vst.msk [vmem:[#allocation9 + $0x10] sm:$0xff] %vm3422, %v6758
      %v6764 = vld [vmem:[%s2546] ss:$5 sm:$0xff]
      %s6765 = scalar_lea.vmem [#allocation2], 41
      %v6766 = vld [vmem:[%s6765] ss:$5 sm:$0x7f]
      %v6769 = vrot.slane %v6764, 7
      %v6770 = vrot.slane %v6766, 7
      %v6771 = vsel %vm6755, %v6769, %v6770
      %6772 = vrot.lane.b32.xlu0 %v6769, 16
      %v6773 = vpop.permute.xlu0 %6772
      %6774 = vrot.lane.b32.xlu0 %v6771, 16
      %v6775 = vpop.permute.xlu0 %6774
      %vm6778 = vcmask 261249
      %6779 = vst.msk [vmem:[#allocation9] sm:$0xfe] %vm6778, %v6773
      %vm6780 = vcmask 261248
      %6781 = vst.msk [vmem:[#allocation9 + $0x10] sm:$0xff] %vm6780, %v6775
      %v6782 = vld [vmem:[%s5360] ss:$5 sm:$0xff]
      %s6783 = scalar_lea.vmem [#allocation2], 42
      %v6784 = vld [vmem:[%s6783] ss:$5 sm:$0x7f]
      %v6787 = vrot.slane %v6782, 7
      %v6788 = vrot.slane %v6784, 7
      %v6789 = vsel %vm6755, %v6787, %v6788
      %6790 = vrot.lane.b32.xlu0 %v6787, 32
      %v6791 = vpop.permute.xlu0 %6790
      %6792 = vrot.lane.b32.xlu0 %v6789, 32
      %v6793 = vpop.permute.xlu0 %6792
      %vm6796 = vcmask 392449
      %6797 = vst.msk [vmem:[#allocation9] sm:$0xfe] %vm6796, %v6791
      %vm6798 = vcmask 392448
      %6799 = vst.msk [vmem:[#allocation9 + $0x10] sm:$0xff] %vm6798, %v6793
      %v6800 = vld [vmem:[%s5432] ss:$5 sm:$0xff]
      %s6801 = scalar_lea.vmem [#allocation2], 43
      %v6802 = vld [vmem:[%s6801] ss:$5 sm:$0x7f]
      %v6805 = vrot.slane %v6800, 7
      %v6806 = vrot.slane %v6802, 7
      %v6807 = vsel %vm6755, %v6805, %v6806
      %6808 = vrot.lane.b32.xlu0 %v6805, 48
      %v6809 = vpop.permute.xlu0 %6808
      %6810 = vrot.lane.b32.xlu0 %v6807, 48
      %v6811 = vpop.permute.xlu0 %6810
      %vm6814 = vcmask 523649
      %6815 = vst.msk [vmem:[#allocation9] sm:$0xfe] %vm6814, %v6809
      %vm6816 = vcmask 523648
      %6817 = vst.msk [vmem:[#allocation9 + $0x10] sm:$0xff] %vm6816, %v6811
      %s6818 = scalar_lea.vmem [#allocation2], 4
      %v6819 = vld [vmem:[%s6818] ss:$5 sm:$0xff]
      %s6820 = scalar_lea.vmem [#allocation2], 44
      %v6821 = vld [vmem:[%s6820] ss:$5 sm:$0x7f]
      %v6824 = vrot.slane %v6819, 7
      %v6825 = vrot.slane %v6821, 7
      %v6826 = vsel %vm6755, %v6824, %v6825
      %6827 = vrot.lane.b32.xlu0 %v6824, 64
      %v6828 = vpop.permute.xlu0 %6827
      %6829 = vrot.lane.b32.xlu0 %v6826, 64
      %v6830 = vpop.permute.xlu0 %6829
      %vm6833 = vcmask 654849
      %6834 = vst.msk [vmem:[#allocation9] sm:$0xfe] %vm6833, %v6828
      %vm6835 = vcmask 654848
      %6836 = vst.msk [vmem:[#allocation9 + $0x10] sm:$0xff] %vm6835, %v6830
      %v6837 = vld [vmem:[#allocation2] ss:$5 sm:$0xff]
      %v6838 = vld [vmem:[%s6751] ss:$5 sm:$0xff]
      %6841 = vrot.lane.b32.xlu0 %v6837, 80
      %v6842 = vpop.permute.xlu0 %6841
      %6843 = vrot.lane.b32.xlu0 %v6838, 80
      %v6844 = vpop.permute.xlu0 %6843
      %vm6847 = vcmask 786048
      %6848 = vst.msk [vmem:[#allocation9] sm:$0xff] %vm6847, %v6842
      %6849 = vst.msk [vmem:[#allocation9 + $0x10] sm:$0xff] %vm6847, %v6844
      %v6850 = vld [vmem:[%s2546] ss:$5 sm:$0xff]
      %v6851 = vld [vmem:[%s6765] ss:$5 sm:$0xff]
      %6854 = vrot.lane.b32.xlu0 %v6850, 96
      %v6855 = vpop.permute.xlu0 %6854
      %6856 = vrot.lane.b32.xlu0 %v6851, 96
      %v6857 = vpop.permute.xlu0 %6856
      %vm6860 = vcmask 917248
      %6861 = vst.msk [vmem:[#allocation9] sm:$0xff] %vm6860, %v6855
      %6862 = vst.msk [vmem:[#allocation9 + $0x10] sm:$0xff] %vm6860, %v6857
      %v6863 = vld [vmem:[%s5360] ss:$5 sm:$0xff]
      %v6864 = vld [vmem:[%s6783] ss:$5 sm:$0xff]
      %6867 = vrot.lane.b32.xlu0 %v6863, 112
      %v6868 = vpop.permute.xlu0 %6867
      %6869 = vrot.lane.b32.xlu0 %v6864, 112
      %v6870 = vpop.permute.xlu0 %6869
      %vm6873 = vcmask 1048448
      %6874 = vst.msk [vmem:[#allocation9] sm:$0xff] %vm6873, %v6868
      %6875 = vst.msk [vmem:[#allocation9 + $0x10] sm:$0xff] %vm6873, %v6870
      %v6876 = vld [vmem:[%s5432] ss:$5 sm:$0xff]
      %v6877 = vld [vmem:[%s6801] ss:$5 sm:$0xff]
      %6878 = vst.msk [vmem:[#allocation9 + $0x8] sm:$0xff] %vm3422, %v6876
      %6879 = vst.msk [vmem:[#allocation9 + $0x18] sm:$0xff] %vm3422, %v6877
      %v6880 = vld [vmem:[%s6818] ss:$5 sm:$0xff]
      %v6881 = vld [vmem:[%s6820] ss:$5 sm:$0xff]
      %6884 = vrot.lane.b32.xlu0 %v6880, 16
      %v6885 = vpop.permute.xlu0 %6884
      %6886 = vrot.lane.b32.xlu0 %v6881, 16
      %v6887 = vpop.permute.xlu0 %6886
      %6890 = vst.msk [vmem:[#allocation9 + $0x8] sm:$0xff] %vm6780, %v6885
      %6891 = vst.msk [vmem:[#allocation9 + $0x18] sm:$0xff] %vm6780, %v6887
      %v6892 = vld [vmem:[#allocation9] sm:$0xff]
      %v6893 = vld [vmem:[#allocation9 + $0x8] sm:$0xff]
      %v6894 = vld [vmem:[#allocation9 + $0x10] sm:$0xff]
      %v6895 = vld [vmem:[#allocation9 + $0x18] sm:$0xff]
      %v6896 = vpack.c.bf16 %v6894, %v6892
      %v6897 = vpack.c.bf16 %v6895, %v6893
      %v6898 = vld [vmem:[%s3 + $0x28] sm:$0xf]
      %v6899 = vld [vmem:[%s3 + $0x2c] sm:$0xf]
      %v6900 = vld [vmem:[%s3 + $0x30] sm:$0xf]
      %v6901 = vld [vmem:[%s3 + $0x34] sm:$0xf]
      %v6902 = vld [vmem:[%s3 + $0x38] sm:$0xf]
      %v6903 = vld [vmem:[%s3 + $0x3c] sm:$0xf]
      %v6904 = vld [vmem:[%s3 + $0x40] sm:$0xf]
      %v6905 = vld [vmem:[%s3 + $0x44] sm:$0xf]
      %v6906 = vld [vmem:[%s3 + $0x48] sm:$0xf]
      %v6907 = vld [vmem:[%s3 + $0x4c] sm:$0xf]
      %v6908 = vld [vmem:[%s3 + $0x50] sm:$0xf]
      %v6909 = vld [vmem:[%s3 + $0x54] sm:$0xf]
      %v6910 = vld [vmem:[%s3 + $0x58] sm:$0xf]
      %v6911 = vld [vmem:[%s3 + $0x5c] sm:$0xf]
      %v6912 = vld [vmem:[%s3 + $0x60] sm:$0xf]
      %v6913 = vld [vmem:[%s3 + $0x64] sm:$0xf]
      %v6914 = vld [vmem:[%s3 + $0x68] sm:$0xf]
      %v6915 = vld [vmem:[%s3 + $0x6c] sm:$0xf]
      %v6916 = vld [vmem:[%s3 + $0x70] sm:$0xf]
      %v6917 = vld [vmem:[%s3 + $0x74] sm:$0xf]
      %v6918 = vld [vmem:[%s4 + $0x2] sm:$0x1]
      %v6919 = vlaneseq
      %v6920 = vshrl.u32 %v6919, 7
      %v6921 = vsub.s32 0, %v6920
      %v6922 = vrot.slane %v6918, %v6921
      %v6943 = vunpack.c.l.b16 %v6898
      %v6944 = vunpack.c.l.b16 %v6899
      %v6945 = vunpack.c.l.b16 %v6900
      %v6946 = vunpack.c.l.b16 %v6901
      %v6947 = vunpack.c.l.b16 %v6902
      %v6948 = vunpack.c.l.b16 %v6903
      %v6949 = vunpack.c.l.b16 %v6904
      %v6950 = vunpack.c.l.b16 %v6905
      %v6951 = vunpack.c.l.b16 %v6906
      %v6952 = vunpack.c.l.b16 %v6907
      %v6953 = vunpack.c.l.b16 %v6908
      %v6954 = vunpack.c.l.b16 %v6909
      %v6955 = vunpack.c.l.b16 %v6910
      %v6956 = vunpack.c.l.b16 %v6911
      %v6957 = vunpack.c.l.b16 %v6912
      %v6958 = vunpack.c.l.b16 %v6913
      %v6959 = vunpack.c.l.b16 %v6914
      %v6960 = vunpack.c.l.b16 %v6915
      %v6961 = vunpack.c.l.b16 %v6916
      %v6962 = vunpack.c.l.b16 %v6917
      %v6963 = vpack.c.b16 %v6944, %v6943
      %v6964 = vpack.c.b16 %v6946, %v6945
      %v6965 = vpack.c.b16 %v6948, %v6947
      %v6966 = vpack.c.b16 %v6950, %v6949
      %v6967 = vpack.c.b16 %v6952, %v6951
      %v6968 = vpack.c.b16 %v6954, %v6953
      %v6969 = vpack.c.b16 %v6956, %v6955
      %v6970 = vpack.c.b16 %v6958, %v6957
      %v6971 = vpack.c.b16 %v6960, %v6959
      %v6972 = vpack.c.b16 %v6962, %v6961
      %vm6983 = vcmask 261120
      %v6985 = vsel %vm6983, %v6897, 0
      %6987 = vmatprep.subr.bf16.mxu0 0
      %6988 = vmatpush1.bf16.msra.mxu0 %v6963
      %6989 = vmatprep.subr.bf16.mxu0 0
      %6990 = vmatpush1.bf16.msra.mxu0 %v6964
      %6991 = vmatprep.subr.bf16.mxu0 0
      %6992 = vmatpush1.bf16.msra.mxu0 %v6965
      %6993 = vmatprep.subr.bf16.mxu0 0
      %6994 = vmatpush1.bf16.msra.mxu0 %v6966
      %6995 = vmatprep.subr.bf16.mxu0 0
      %6996 = vmatpush1.bf16.msra.mxu0 %v6967
      %6997 = vmatprep.subr.bf16.mxu0 0
      %6998 = vmatpush1.bf16.msra.mxu0 %v6968
      %6999 = vmatprep.subr.bf16.mxu0 0
      %7000 = vmatpush1.bf16.msra.mxu0 %v6969
      %7001 = vmatprep.subr.bf16.mxu0 0
      %7002 = vmatpush1.bf16.msra.mxu0 %v6970
      %7003 = vmatprep.subr.bf16.mxu0 0
      %7004 = vmatpush1.bf16.msra.mxu0 %v6971
      %7005 = vmatprep.subr.bf16.mxu0 0
      %7006 = vmatpush1.bf16.msra.mxu0 %v6972
      %7007 = vmatprep.subr.bf16.mxu0 0
      %7008 = vmatpush1.bf16.msra.mxu0 0
      %7009 = vmatprep.subr.bf16.mxu0 0
      %7010 = vmatpush1.bf16.msra.mxu0 0
      %7011 = vmatprep.subr.bf16.mxu0 0
      %7012 = vmatpush1.bf16.msra.mxu0 0
      %7013 = vmatprep.subr.bf16.mxu0 0
      %7014 = vmatpush1.bf16.msra.mxu0 0
      %7015 = vmatprep.subr.bf16.mxu0 0
      %7016 = vmatpush1.bf16.msra.mxu0 0
      %7017 = vmatprep.subr.bf16.mxu0 0
      %7018 = vmatpush1.bf16.msra.mxu0 0
      %7019 = vmatprep.mubr.bf16.mxu0 %v6985
      %7020 = vmatmul.mubr.bf16.gmra.mrb[0].mxu0 %v6896
      %v7021 = vpop.f32.mrb[0].mxu0
      %v7022 = vadd.f32 %v6922, %v7021
      %v7023 = vpop.f32.mrb[0].mxu0
      %v7024 = vpop.f32.mrb[0].mxu0
      %v7025 = vadd.f32 %v6922, %v7024
      %v7026 = vpop.f32.mrb[0].mxu0
      %7027 = vdwg.mxu0
      %vm7028 = vcmp.gt.f32.partialorder %v7022, 0.0
      %vm7029 = vcmp.gt.f32.partialorder %v7025, 0.0
      %v7030 = vmin.f32 %v7022, 0.0
      %v7031 = vmin.f32 %v7025, 0.0
      %v7032 = vmul.f32 %v7030, 1.442695
      %v7033 = vpow.pop %v7032
      %v7034 = vmul.f32 %v7031, 1.442695
      %v7035 = vpow.pop %v7034
      %v7036 = vsub.f32 %v7033, 1.0
      %v7037 = vsub.f32 %v7035, 1.0
      %v7038 = vsel %vm7028, %v7022, %v7036
      %v7039 = vsel %vm7029, %v7025, %v7037
      %7040 = vxpose.xlu0.b32.start [1/16] %v7038, 128
      %7041 = vxpose.xlu0.b32.cont [2/16] %v7039, 128
      %7042 = vxpose.xlu0.b32.cont [3/16] 0.0, 128
      %7043 = vxpose.xlu0.b32.cont [4/16] 0.0, 128
      %7044 = vxpose.xlu0.b32.cont [5/16] 0.0, 128
      %7045 = vxpose.xlu0.b32.cont [6/16] 0.0, 128
      %7046 = vxpose.xlu0.b32.cont [7/16] 0.0, 128
      %7047 = vxpose.xlu0.b32.cont [8/16] 0.0, 128
      %7048 = vxpose.xlu0.b32.cont [9/16] 0.0, 128
      %7049 = vxpose.xlu0.b32.cont [10/16] 0.0, 128
      %7050 = vxpose.xlu0.b32.cont [11/16] 0.0, 128
      %7051 = vxpose.xlu0.b32.cont [12/16] 0.0, 128
      %7052 = vxpose.xlu0.b32.cont [13/16] 0.0, 128
      %7053 = vxpose.xlu0.b32.cont [14/16] 0.0, 128
      %7054 = vxpose.xlu0.b32.cont [15/16] 0.0, 128
      %7055 = vxpose.xlu0.b32.end [16/16] 0.0, 128
      %v7056 = vpop.trf.xlu0
      %v7057 = vpop.trf.xlu0
      %v7058 = vpop.trf.xlu0
      %v7059 = vpop.trf.xlu0
      %v7060 = vpop.trf.xlu0
      %v7061 = vpop.trf.xlu0
      %v7062 = vpop.trf.xlu0
      %v7063 = vpop.trf.xlu0
      %v7064 = vpop.trf.xlu0
      %v7065 = vpop.trf.xlu0
      %v7066 = vpop.trf.xlu0
      %v7067 = vpop.trf.xlu0
      %v7068 = vpop.trf.xlu0
      %v7069 = vpop.trf.xlu0
      %v7070 = vpop.trf.xlu0
      %v7071 = vpop.trf.xlu0
      %7072 = vst.msk [vmem:[#allocation10] sm:$0xff] %vm230, 0.0
      %7073 = vst.msk [vmem:[#allocation10 + $0x8] sm:$0xff] %vm230, 0.0
      %7074 = vst.msk [vmem:[#allocation10 + $0x10] sm:$0xff] %vm230, 0.0
      %7075 = vst.msk [vmem:[#allocation10 + $0x18] sm:$0xff] %vm230, 0.0
      %7076 = vst.msk [vmem:[#allocation10 + $0x20] sm:$0xff] %vm230, 0.0
      %7077 = vst.msk [vmem:[#allocation10 + $0x28] sm:$0xff] %vm230, 0.0
      %7078 = vst.msk [vmem:[#allocation10 + $0x30] sm:$0xff] %vm230, 0.0
      %7079 = vst.msk [vmem:[#allocation10 + $0x38] sm:$0xff] %vm230, 0.0
      %7080 = vst.msk [vmem:[#allocation10 + $0x40] sm:$0xff] %vm230, 0.0
      %7081 = vst.msk [vmem:[#allocation10 + $0x48] sm:$0xff] %vm230, 0.0
      %7082 = vst.msk [vmem:[#allocation10 + $0x50] sm:$0xff] %vm230, 0.0
      %7083 = vst.msk [vmem:[#allocation10 + $0x58] sm:$0xff] %vm230, 0.0
      %7084 = vst.msk [vmem:[#allocation10 + $0x60] sm:$0xff] %vm230, 0.0
      %7085 = vst.msk [vmem:[#allocation10 + $0x68] sm:$0xff] %vm230, 0.0
      %7086 = vst.msk [vmem:[#allocation10 + $0x70] sm:$0xff] %vm230, 0.0
      %7087 = vst.msk [vmem:[#allocation10 + $0x78] sm:$0xff] %vm230, 0.0
      %7088 = vst.msk [vmem:[#allocation10 + $0x80] sm:$0xff] %vm230, 0.0
      %7089 = vst.msk [vmem:[#allocation10 + $0x88] sm:$0xff] %vm230, 0.0
      %7090 = vst.msk [vmem:[#allocation10 + $0x90] sm:$0xff] %vm230, 0.0
      %7091 = vst.msk [vmem:[#allocation10 + $0x98] sm:$0xff] %vm230, 0.0
      %7092 = vst.msk [vmem:[#allocation10 + $0xa0] sm:$0xff] %vm230, 0.0
      %7093 = vst.msk [vmem:[#allocation10 + $0xa8] sm:$0xff] %vm230, 0.0
      %7094 = vst.msk [vmem:[#allocation10 + $0xb0] sm:$0xff] %vm230, 0.0
      %7095 = vst.msk [vmem:[#allocation10 + $0xb8] sm:$0xff] %vm230, 0.0
      %7096 = vst.msk [vmem:[#allocation10 + $0xc0] sm:$0xff] %vm230, 0.0
      %7097 = vst.msk [vmem:[#allocation10 + $0xc8] sm:$0xff] %vm230, 0.0
      %7098 = vst.msk [vmem:[#allocation10 + $0xd0] sm:$0xff] %vm230, 0.0
      %7099 = vst.msk [vmem:[#allocation10 + $0xd8] sm:$0xff] %vm230, 0.0
      %7104 = vrot.lane.b32.xlu0 %v7056, 6
      %v7105 = vpop.permute.xlu0 %7104
      %7106 = vrot.lane.b32.xlu0 %v7057, 6
      %v7107 = vpop.permute.xlu0 %7106
      %7108 = vrot.lane.b32.xlu0 %v7058, 6
      %v7109 = vpop.permute.xlu0 %7108
      %7110 = vrot.lane.b32.xlu0 %v7059, 6
      %v7111 = vpop.permute.xlu0 %7110
      %vm7116 = vcmask 130096
      %7117 = vst.msk [vmem:[#allocation10] sm:$0xff] %vm7116, %v7105
      %7118 = vst.msk [vmem:[#allocation10 + $0x8] sm:$0xff] %vm7116, %v7107
      %7119 = vst.msk [vmem:[#allocation10 + $0x10] sm:$0xff] %vm7116, %v7109
      %7120 = vst.msk [vmem:[#allocation10 + $0x18] sm:$0xff] %vm7116, %v7111
      %7121 = vrot.lane.b32.xlu0 %v7056, 5
      %v7122 = vpop.permute.xlu0 %7121
      %7123 = vrot.lane.b32.xlu0 %v7057, 5
      %v7124 = vpop.permute.xlu0 %7123
      %7125 = vrot.lane.b32.xlu0 %v7058, 5
      %v7126 = vpop.permute.xlu0 %7125
      %7127 = vrot.lane.b32.xlu0 %v7059, 5
      %v7128 = vpop.permute.xlu0 %7127
      %vm7133 = vcmask 130088
      %7134 = vst.msk [vmem:[#allocation10 + $0x20] sm:$0xff] %vm7133, %v7122
      %7135 = vst.msk [vmem:[#allocation10 + $0x28] sm:$0xff] %vm7133, %v7124
      %7136 = vst.msk [vmem:[#allocation10 + $0x30] sm:$0xff] %vm7133, %v7126
      %7137 = vst.msk [vmem:[#allocation10 + $0x38] sm:$0xff] %vm7133, %v7128
      %7138 = vrot.lane.b32.xlu0 %v7056, 4
      %v7139 = vpop.permute.xlu0 %7138
      %7140 = vrot.lane.b32.xlu0 %v7057, 4
      %v7141 = vpop.permute.xlu0 %7140
      %7142 = vrot.lane.b32.xlu0 %v7058, 4
      %v7143 = vpop.permute.xlu0 %7142
      %7144 = vrot.lane.b32.xlu0 %v7059, 4
      %v7145 = vpop.permute.xlu0 %7144
      %vm7150 = vcmask 130080
      %7151 = vst.msk [vmem:[#allocation10 + $0x40] sm:$0xff] %vm7150, %v7139
      %7152 = vst.msk [vmem:[#allocation10 + $0x48] sm:$0xff] %vm7150, %v7141
      %7153 = vst.msk [vmem:[#allocation10 + $0x50] sm:$0xff] %vm7150, %v7143
      %7154 = vst.msk [vmem:[#allocation10 + $0x58] sm:$0xff] %vm7150, %v7145
      %7155 = vrot.lane.b32.xlu0 %v7056, 3
      %v7156 = vpop.permute.xlu0 %7155
      %7157 = vrot.lane.b32.xlu0 %v7057, 3
      %v7158 = vpop.permute.xlu0 %7157
      %7159 = vrot.lane.b32.xlu0 %v7058, 3
      %v7160 = vpop.permute.xlu0 %7159
      %7161 = vrot.lane.b32.xlu0 %v7059, 3
      %v7162 = vpop.permute.xlu0 %7161
      %vm7167 = vcmask 130072
      %7168 = vst.msk [vmem:[#allocation10 + $0x60] sm:$0xff] %vm7167, %v7156
      %7169 = vst.msk [vmem:[#allocation10 + $0x68] sm:$0xff] %vm7167, %v7158
      %7170 = vst.msk [vmem:[#allocation10 + $0x70] sm:$0xff] %vm7167, %v7160
      %7171 = vst.msk [vmem:[#allocation10 + $0x78] sm:$0xff] %vm7167, %v7162
      %7172 = vrot.lane.b32.xlu0 %v7056, 2
      %v7173 = vpop.permute.xlu0 %7172
      %7174 = vrot.lane.b32.xlu0 %v7057, 2
      %v7175 = vpop.permute.xlu0 %7174
      %7176 = vrot.lane.b32.xlu0 %v7058, 2
      %v7177 = vpop.permute.xlu0 %7176
      %7178 = vrot.lane.b32.xlu0 %v7059, 2
      %v7179 = vpop.permute.xlu0 %7178
      %vm7184 = vcmask 130064
      %7185 = vst.msk [vmem:[#allocation10 + $0x80] sm:$0xff] %vm7184, %v7173
      %7186 = vst.msk [vmem:[#allocation10 + $0x88] sm:$0xff] %vm7184, %v7175
      %7187 = vst.msk [vmem:[#allocation10 + $0x90] sm:$0xff] %vm7184, %v7177
      %7188 = vst.msk [vmem:[#allocation10 + $0x98] sm:$0xff] %vm7184, %v7179
      %7189 = vrot.lane.b32.xlu0 %v7056, 1
      %v7190 = vpop.permute.xlu0 %7189
      %7191 = vrot.lane.b32.xlu0 %v7057, 1
      %v7192 = vpop.permute.xlu0 %7191
      %7193 = vrot.lane.b32.xlu0 %v7058, 1
      %v7194 = vpop.permute.xlu0 %7193
      %7195 = vrot.lane.b32.xlu0 %v7059, 1
      %v7196 = vpop.permute.xlu0 %7195
      %vm7201 = vcmask 130056
      %7202 = vst.msk [vmem:[#allocation10 + $0xa0] sm:$0xff] %vm7201, %v7190
      %7203 = vst.msk [vmem:[#allocation10 + $0xa8] sm:$0xff] %vm7201, %v7192
      %7204 = vst.msk [vmem:[#allocation10 + $0xb0] sm:$0xff] %vm7201, %v7194
      %7205 = vst.msk [vmem:[#allocation10 + $0xb8] sm:$0xff] %vm7201, %v7196
      %7206 = vst.msk [vmem:[#allocation10 + $0xc0] sm:$0xff] %vm3422, %v7056
      %7207 = vst.msk [vmem:[#allocation10 + $0xc8] sm:$0xff] %vm3422, %v7057
      %7208 = vst.msk [vmem:[#allocation10 + $0xd0] sm:$0xff] %vm3422, %v7058
      %7209 = vst.msk [vmem:[#allocation10 + $0xd8] sm:$0xff] %vm3422, %v7059
      %v7210 = vld [vmem:[#allocation10] sm:$0xff]
      %v7211 = vld [vmem:[#allocation10 + $0x8] sm:$0xff]
      %v7212 = vld [vmem:[#allocation10 + $0x10] sm:$0xff]
      %v7213 = vld [vmem:[#allocation10 + $0x18] sm:$0xff]
      %v7214 = vld [vmem:[#allocation10 + $0x20] sm:$0xff]
      %v7215 = vld [vmem:[#allocation10 + $0x28] sm:$0xff]
      %v7216 = vld [vmem:[#allocation10 + $0x30] sm:$0xff]
      %v7217 = vld [vmem:[#allocation10 + $0x38] sm:$0xff]
      %v7218 = vld [vmem:[#allocation10 + $0x40] sm:$0xff]
      %v7219 = vld [vmem:[#allocation10 + $0x48] sm:$0xff]
      %v7220 = vld [vmem:[#allocation10 + $0x50] sm:$0xff]
      %v7221 = vld [vmem:[#allocation10 + $0x58] sm:$0xff]
      %v7222 = vld [vmem:[#allocation10 + $0x60] sm:$0xff]
      %v7223 = vld [vmem:[#allocation10 + $0x68] sm:$0xff]
      %v7224 = vld [vmem:[#allocation10 + $0x70] sm:$0xff]
      %v7225 = vld [vmem:[#allocation10 + $0x78] sm:$0xff]
      %v7226 = vld [vmem:[#allocation10 + $0x80] sm:$0xff]
      %v7227 = vld [vmem:[#allocation10 + $0x88] sm:$0xff]
      %v7228 = vld [vmem:[#allocation10 + $0x90] sm:$0xff]
      %v7229 = vld [vmem:[#allocation10 + $0x98] sm:$0xff]
      %v7230 = vld [vmem:[#allocation10 + $0xa0] sm:$0xff]
      %v7231 = vld [vmem:[#allocation10 + $0xa8] sm:$0xff]
      %v7232 = vld [vmem:[#allocation10 + $0xb0] sm:$0xff]
      %v7233 = vld [vmem:[#allocation10 + $0xb8] sm:$0xff]
      %v7234 = vld [vmem:[#allocation10 + $0xc0] sm:$0xff]
      %v7235 = vld [vmem:[#allocation10 + $0xc8] sm:$0xff]
      %v7236 = vld [vmem:[#allocation10 + $0xd0] sm:$0xff]
      %v7237 = vld [vmem:[#allocation10 + $0xd8] sm:$0xff]
      %v7238 = vpack.c.bf16 %v7211, %v7210
      %v7239 = vpack.c.bf16 %v7213, %v7212
      %v7240 = vpack.c.bf16 %v7215, %v7214
      %v7241 = vpack.c.bf16 %v7217, %v7216
      %v7242 = vpack.c.bf16 %v7219, %v7218
      %v7243 = vpack.c.bf16 %v7221, %v7220
      %v7244 = vpack.c.bf16 %v7223, %v7222
      %v7245 = vpack.c.bf16 %v7225, %v7224
      %v7246 = vpack.c.bf16 %v7227, %v7226
      %v7247 = vpack.c.bf16 %v7229, %v7228
      %v7248 = vpack.c.bf16 %v7231, %v7230
      %v7249 = vpack.c.bf16 %v7233, %v7232
      %v7250 = vpack.c.bf16 %v7235, %v7234
      %v7251 = vpack.c.bf16 %v7237, %v7236
      %v7252 = vld [vmem:[%s1 + $0x130] sm:$0xff]
      %v7253 = vld [vmem:[%s1 + $0x138] sm:$0xff]
      %v7254 = vld [vmem:[%s1 + $0x140] sm:$0xff]
      %v7255 = vld [vmem:[%s1 + $0x148] sm:$0xff]
      %v7256 = vld [vmem:[%s2] sm:$0xff]
      %v7257 = vld [vmem:[%s2 + $0x8] sm:$0xff]
      %v7258 = vld [vmem:[%s2 + $0x10] sm:$0xff]
      %v7259 = vld [vmem:[%s2 + $0x18] sm:$0xff]
      %7261 = vset.pattern.permute.xlu0 19
      %7262 = vperm.xlu0 %7261, %v7256
      %v7263 = vpop.permute.xlu0 %7262
      %7266 = vset.pattern.permute.xlu0 19
      %7267 = vperm.xlu0 %7266, %v7257
      %v7268 = vpop.permute.xlu0 %7267
      %7271 = vset.pattern.permute.xlu0 19
      %7272 = vperm.xlu0 %7271, %v7258
      %v7273 = vpop.permute.xlu0 %7272
      %7276 = vset.pattern.permute.xlu0 19
      %7277 = vperm.xlu0 %7276, %v7259
      %v7278 = vpop.permute.xlu0 %7277
      %v7284 = vunpack.c.l.b16 %v7252
      %v7285 = vunpack.c.h.b16 %v7252
      %v7286 = vunpack.c.l.b16 %v7253
      %v7287 = vunpack.c.h.b16 %v7253
      %v7288 = vunpack.c.l.b16 %v7254
      %v7289 = vunpack.c.h.b16 %v7254
      %v7290 = vunpack.c.l.b16 %v7255
      %v7291 = vunpack.c.h.b16 %v7255
      %v7292 = vpack.c.b16 %v7286, %v7284
      %v7293 = vpack.c.b16 %v7287, %v7285
      %v7294 = vpack.c.b16 %v7290, %v7288
      %v7295 = vpack.c.b16 %v7291, %v7289
      %vm7298 = vcmask 785408
      %v7300 = vsel %vm7298, %v7293, 0
      %v7303 = vsel %vm7298, %v7295, 0
      %7305 = vmatprep.subr.bf16.mxu0 0
      %7306 = vmatpush1.bf16.msra.mxu0 %v7238
      %7307 = vmatprep.subr.bf16.mxu0 0
      %7308 = vmatpush1.bf16.msra.mxu0 %v7239
      %7309 = vmatprep.subr.bf16.mxu0 0
      %7310 = vmatpush1.bf16.msra.mxu0 %v7240
      %7311 = vmatprep.subr.bf16.mxu0 0
      %7312 = vmatpush1.bf16.msra.mxu0 %v7241
      %7313 = vmatprep.subr.bf16.mxu0 0
      %7314 = vmatpush1.bf16.msra.mxu0 %v7242
      %7315 = vmatprep.subr.bf16.mxu0 0
      %7316 = vmatpush1.bf16.msra.mxu0 %v7243
      %7317 = vmatprep.subr.bf16.mxu0 0
      %7318 = vmatpush1.bf16.msra.mxu0 %v7244
      %7319 = vmatprep.subr.bf16.mxu0 0
      %7320 = vmatpush1.bf16.msra.mxu0 %v7245
      %7321 = vmatprep.subr.bf16.mxu0 0
      %7322 = vmatpush1.bf16.msra.mxu0 %v7246
      %7323 = vmatprep.subr.bf16.mxu0 0
      %7324 = vmatpush1.bf16.msra.mxu0 %v7247
      %7325 = vmatprep.subr.bf16.mxu0 0
      %7326 = vmatpush1.bf16.msra.mxu0 %v7248
      %7327 = vmatprep.subr.bf16.mxu0 0
      %7328 = vmatpush1.bf16.msra.mxu0 %v7249
      %7329 = vmatprep.subr.bf16.mxu0 0
      %7330 = vmatpush1.bf16.msra.mxu0 %v7250
      %7331 = vmatprep.subr.bf16.mxu0 0
      %7332 = vmatpush1.bf16.msra.mxu0 %v7251
      %7333 = vmatprep.subr.bf16.mxu0 0
      %7334 = vmatpush1.bf16.msra.mxu0 0
      %7335 = vmatprep.subr.bf16.mxu0 0
      %7336 = vmatpush1.bf16.msra.mxu0 0
      %7337 = vmatprep.mubr.bf16.mxu0 %v7300
      %7338 = vmatmul.mubr.bf16.gmra.mrb[0].mxu0 %v7292
      %v7339 = vpop.f32.mrb[0].mxu0
      %v7340 = vadd.f32 %v7263, %v7339
      %v7341 = vpop.f32.mrb[0].mxu0
      %v7342 = vpop.f32.mrb[0].mxu0
      %v7343 = vadd.f32 %v7268, %v7342
      %v7344 = vpop.f32.mrb[0].mxu0
      %7345 = vmatprep.mubr.bf16.mxu0 %v7303
      %7346 = vmatmul.mubr.bf16.gmra.mrb[0].mxu0 %v7294
      %v7347 = vpop.f32.mrb[0].mxu0
      %v7348 = vadd.f32 %v7273, %v7347
      %v7349 = vpop.f32.mrb[0].mxu0
      %v7350 = vpop.f32.mrb[0].mxu0
      %v7351 = vadd.f32 %v7278, %v7350
      %v7352 = vpop.f32.mrb[0].mxu0
      %7353 = vdwg.mxu0
      %vm7354 = vcmp.gt.f32.partialorder %v7340, 0.0
      %vm7355 = vcmp.gt.f32.partialorder %v7343, 0.0
      %vm7356 = vcmp.gt.f32.partialorder %v7348, 0.0
      %vm7357 = vcmp.gt.f32.partialorder %v7351, 0.0
      %v7358 = vmin.f32 %v7340, 0.0
      %v7359 = vmin.f32 %v7343, 0.0
      %v7360 = vmin.f32 %v7348, 0.0
      %v7361 = vmin.f32 %v7351, 0.0
      %v7362 = vmul.f32 %v7358, 1.442695
      %v7363 = vpow.pop %v7362
      %v7364 = vmul.f32 %v7359, 1.442695
      %v7365 = vpow.pop %v7364
      %v7366 = vmul.f32 %v7360, 1.442695
      %v7367 = vpow.pop %v7366
      %v7368 = vmul.f32 %v7361, 1.442695
      %v7369 = vpow.pop %v7368
      %v7370 = vsub.f32 %v7363, 1.0
      %v7371 = vsub.f32 %v7365, 1.0
      %v7372 = vsub.f32 %v7367, 1.0
      %v7373 = vsub.f32 %v7369, 1.0
      %v7374 = vsel %vm7354, %v7340, %v7370
      %v7375 = vsel %vm7355, %v7343, %v7371
      %v7376 = vsel %vm7356, %v7348, %v7372
      %v7377 = vsel %vm7357, %v7351, %v7373
      %v7378 = vpack.c.bf16 %v7375, %v7374
      %v7379 = vpack.c.bf16 %v7377, %v7376
      %v7380 = vld [vmem:[%s1 + $0x150] sm:$0xf]
      %v7381 = vld [vmem:[%s1 + $0x158] sm:$0xf]
      %v7382 = vld [vmem:[%s1 + $0x160] sm:$0xf]
      %v7383 = vld [vmem:[%s1 + $0x168] sm:$0xf]
      %7384 = vset.pattern.permute.xlu0 20
      %7385 = vperm.xlu0 %7384, %v7256
      %v7386 = vpop.permute.xlu0 %7385
      %7388 = vset.pattern.permute.xlu0 20
      %7389 = vperm.xlu0 %7388, %v7257
      %v7390 = vpop.permute.xlu0 %7389
      %7392 = vset.pattern.permute.xlu0 20
      %7393 = vperm.xlu0 %7392, %v7258
      %v7394 = vpop.permute.xlu0 %7393
      %7396 = vset.pattern.permute.xlu0 20
      %7397 = vperm.xlu0 %7396, %v7259
      %v7398 = vpop.permute.xlu0 %7397
      %v7404 = vunpack.c.l.b16 %v7380
      %v7405 = vunpack.c.l.b16 %v7381
      %v7406 = vunpack.c.l.b16 %v7382
      %v7407 = vunpack.c.l.b16 %v7383
      %v7408 = vpack.c.b16 %v7405, %v7404
      %v7409 = vpack.c.b16 %v7407, %v7406
      %v7411 = vsel %vm6983, %v7408, 0
      %v7414 = vsel %vm6983, %v7409, 0
      %7416 = vmatprep.subr.bf16.mxu0 0
      %7417 = vmatpush1.bf16.msra.mxu0 %v7378
      %7418 = vmatprep.subr.bf16.mxu0 0
      %7419 = vmatpush1.bf16.msra.mxu0 %v7379
      %7420 = vmatprep.subr.bf16.mxu0 0
      %7421 = vmatpush1.bf16.msra.mxu0 0
      %7422 = vmatprep.subr.bf16.mxu0 0
      %7423 = vmatpush1.bf16.msra.mxu0 0
      %7424 = vmatprep.subr.bf16.mxu0 0
      %7425 = vmatpush1.bf16.msra.mxu0 0
      %7426 = vmatprep.subr.bf16.mxu0 0
      %7427 = vmatpush1.bf16.msra.mxu0 0
      %7428 = vmatprep.subr.bf16.mxu0 0
      %7429 = vmatpush1.bf16.msra.mxu0 0
      %7430 = vmatprep.subr.bf16.mxu0 0
      %7431 = vmatpush1.bf16.msra.mxu0 0
      %7432 = vmatprep.subr.bf16.mxu0 0
      %7433 = vmatpush1.bf16.msra.mxu0 0
      %7434 = vmatprep.subr.bf16.mxu0 0
      %7435 = vmatpush1.bf16.msra.mxu0 0
      %7436 = vmatprep.subr.bf16.mxu0 0
      %7437 = vmatpush1.bf16.msra.mxu0 0
      %7438 = vmatprep.subr.bf16.mxu0 0
      %7439 = vmatpush1.bf16.msra.mxu0 0
      %7440 = vmatprep.subr.bf16.mxu0 0
      %7441 = vmatpush1.bf16.msra.mxu0 0
      %7442 = vmatprep.subr.bf16.mxu0 0
      %7443 = vmatpush1.bf16.msra.mxu0 0
      %7444 = vmatprep.subr.bf16.mxu0 0
      %7445 = vmatpush1.bf16.msra.mxu0 0
      %7446 = vmatprep.subr.bf16.mxu0 0
      %7447 = vmatpush1.bf16.msra.mxu0 0
      %7448 = vmatprep.mubr.bf16.mxu0 0
      %7449 = vmatmul.mubr.bf16.gmra.mrb[0].mxu0 %v7411
      %v7450 = vpop.f32.mrb[0].mxu0
      %v7451 = vadd.f32 %v7386, %v7450
      %v7452 = vpop.f32.mrb[0].mxu0
      %v7453 = vpop.f32.mrb[0].mxu0
      %v7454 = vadd.f32 %v7390, %v7453
      %v7455 = vpop.f32.mrb[0].mxu0
      %7456 = vmatprep.mubr.bf16.mxu0 0
      %7457 = vmatmul.mubr.bf16.gmra.mrb[0].mxu0 %v7414
      %v7458 = vpop.f32.mrb[0].mxu0
      %v7459 = vadd.f32 %v7394, %v7458
      %v7460 = vpop.f32.mrb[0].mxu0
      %v7461 = vpop.f32.mrb[0].mxu0
      %v7462 = vadd.f32 %v7398, %v7461
      %v7463 = vpop.f32.mrb[0].mxu0
      %7464 = vdwg.mxu0
      %vm7465 = vcmp.gt.f32.partialorder %v7451, 0.0
      %vm7466 = vcmp.gt.f32.partialorder %v7454, 0.0
      %vm7467 = vcmp.gt.f32.partialorder %v7459, 0.0
      %vm7468 = vcmp.gt.f32.partialorder %v7462, 0.0
      %v7469 = vmin.f32 %v7451, 0.0
      %v7470 = vmin.f32 %v7454, 0.0
      %v7471 = vmin.f32 %v7459, 0.0
      %v7472 = vmin.f32 %v7462, 0.0
      %v7473 = vmul.f32 %v7469, 1.442695
      %v7474 = vpow.pop %v7473
      %v7475 = vmul.f32 %v7470, 1.442695
      %v7476 = vpow.pop %v7475
      %v7477 = vmul.f32 %v7471, 1.442695
      %v7478 = vpow.pop %v7477
      %v7479 = vmul.f32 %v7472, 1.442695
      %v7480 = vpow.pop %v7479
      %v7481 = vsub.f32 %v7474, 1.0
      %v7482 = vsub.f32 %v7476, 1.0
      %v7483 = vsub.f32 %v7478, 1.0
      %v7484 = vsub.f32 %v7480, 1.0
      %v7485 = vsel %vm7465, %v7451, %v7481
      %v7486 = vsel %vm7466, %v7454, %v7482
      %v7487 = vsel %vm7467, %v7459, %v7483
      %v7488 = vsel %vm7468, %v7462, %v7484
      %v7489 = vadd.f32 %v7485, %v7056
      %v7490 = vadd.f32 %v7486, %v7057
      %v7491 = vadd.f32 %v7487, %v7058
      %v7492 = vadd.f32 %v7488, %v7059
      %7493 = vst.msk [vmem:[#allocation10] sm:$0xff] %vm3422, 0.0
      %7494 = vst.msk [vmem:[#allocation10 + $0x8] sm:$0xff] %vm3422, 0.0
      %7495 = vst.msk [vmem:[#allocation10 + $0x10] sm:$0xff] %vm3422, 0.0
      %7496 = vst.msk [vmem:[#allocation10 + $0x18] sm:$0xff] %vm3422, 0.0
      %7497 = vst.msk [vmem:[#allocation10 + $0x20] sm:$0xff] %vm3422, 0.0
      %7498 = vst.msk [vmem:[#allocation10 + $0x28] sm:$0xff] %vm3422, 0.0
      %7499 = vst.msk [vmem:[#allocation10 + $0x30] sm:$0xff] %vm3422, 0.0
      %7500 = vst.msk [vmem:[#allocation10 + $0x38] sm:$0xff] %vm3422, 0.0
      %7501 = vst.msk [vmem:[#allocation10 + $0x40] sm:$0xff] %vm3422, 0.0
      %7502 = vst.msk [vmem:[#allocation10 + $0x48] sm:$0xff] %vm3422, 0.0
      %7503 = vst.msk [vmem:[#allocation10 + $0x50] sm:$0xff] %vm3422, 0.0
      %7504 = vst.msk [vmem:[#allocation10 + $0x58] sm:$0xff] %vm3422, 0.0
      %7505 = vst.msk [vmem:[#allocation10 + $0x60] sm:$0xff] %vm3422, 0.0
      %7506 = vst.msk [vmem:[#allocation10 + $0x68] sm:$0xff] %vm3422, 0.0
      %7507 = vst.msk [vmem:[#allocation10 + $0x70] sm:$0xff] %vm3422, 0.0
      %7508 = vst.msk [vmem:[#allocation10 + $0x78] sm:$0xff] %vm3422, 0.0
      %7509 = vst.msk [vmem:[#allocation10 + $0x80] sm:$0xff] %vm3422, 0.0
      %7510 = vst.msk [vmem:[#allocation10 + $0x88] sm:$0xff] %vm3422, 0.0
      %7511 = vst.msk [vmem:[#allocation10 + $0x90] sm:$0xff] %vm3422, 0.0
      %7512 = vst.msk [vmem:[#allocation10 + $0x98] sm:$0xff] %vm3422, 0.0
      %7513 = vst.msk [vmem:[#allocation10 + $0xa0] sm:$0xff] %vm3422, 0.0
      %7514 = vst.msk [vmem:[#allocation10 + $0xa8] sm:$0xff] %vm3422, 0.0
      %7515 = vst.msk [vmem:[#allocation10 + $0xb0] sm:$0xff] %vm3422, 0.0
      %7516 = vst.msk [vmem:[#allocation10 + $0xb8] sm:$0xff] %vm3422, 0.0
      %7517 = vst.msk [vmem:[#allocation10 + $0xc0] sm:$0xff] %vm3422, 0.0
      %7518 = vst.msk [vmem:[#allocation10 + $0xc8] sm:$0xff] %vm3422, 0.0
      %7519 = vst.msk [vmem:[#allocation10 + $0xd0] sm:$0xff] %vm3422, 0.0
      %7520 = vst.msk [vmem:[#allocation10 + $0xd8] sm:$0xff] %vm3422, 0.0
      %7525 = vrot.lane.b32.xlu0 %v7489, 15
      %v7526 = vpop.permute.xlu0 %7525
      %7527 = vrot.lane.b32.xlu0 %v7490, 15
      %v7528 = vpop.permute.xlu0 %7527
      %7529 = vrot.lane.b32.xlu0 %v7491, 15
      %v7530 = vpop.permute.xlu0 %7529
      %7531 = vrot.lane.b32.xlu0 %v7492, 15
      %v7532 = vpop.permute.xlu0 %7531
      %vm7537 = vcmask 130168
      %7538 = vst.msk [vmem:[#allocation10 + $0x20] sm:$0xff] %vm7537, %v7526
      %7539 = vst.msk [vmem:[#allocation10 + $0x28] sm:$0xff] %vm7537, %v7528
      %7540 = vst.msk [vmem:[#allocation10 + $0x30] sm:$0xff] %vm7537, %v7530
      %7541 = vst.msk [vmem:[#allocation10 + $0x38] sm:$0xff] %vm7537, %v7532
      %7542 = vrot.lane.b32.xlu0 %v7489, 12
      %v7543 = vpop.permute.xlu0 %7542
      %7544 = vrot.lane.b32.xlu0 %v7490, 12
      %v7545 = vpop.permute.xlu0 %7544
      %7546 = vrot.lane.b32.xlu0 %v7491, 12
      %v7547 = vpop.permute.xlu0 %7546
      %7548 = vrot.lane.b32.xlu0 %v7492, 12
      %v7549 = vpop.permute.xlu0 %7548
      %7554 = vst.msk [vmem:[#allocation10 + $0x40] sm:$0xff] %vm3308, %v7543
      %7555 = vst.msk [vmem:[#allocation10 + $0x48] sm:$0xff] %vm3308, %v7545
      %7556 = vst.msk [vmem:[#allocation10 + $0x50] sm:$0xff] %vm3308, %v7547
      %7557 = vst.msk [vmem:[#allocation10 + $0x58] sm:$0xff] %vm3308, %v7549
      %7558 = vrot.lane.b32.xlu0 %v7489, 9
      %v7559 = vpop.permute.xlu0 %7558
      %7560 = vrot.lane.b32.xlu0 %v7490, 9
      %v7561 = vpop.permute.xlu0 %7560
      %7562 = vrot.lane.b32.xlu0 %v7491, 9
      %v7563 = vpop.permute.xlu0 %7562
      %7564 = vrot.lane.b32.xlu0 %v7492, 9
      %v7565 = vpop.permute.xlu0 %7564
      %vm7570 = vcmask 130120
      %7571 = vst.msk [vmem:[#allocation10 + $0x60] sm:$0xff] %vm7570, %v7559
      %7572 = vst.msk [vmem:[#allocation10 + $0x68] sm:$0xff] %vm7570, %v7561
      %7573 = vst.msk [vmem:[#allocation10 + $0x70] sm:$0xff] %vm7570, %v7563
      %7574 = vst.msk [vmem:[#allocation10 + $0x78] sm:$0xff] %vm7570, %v7565
      %7575 = vrot.lane.b32.xlu0 %v7489, 6
      %v7576 = vpop.permute.xlu0 %7575
      %7577 = vrot.lane.b32.xlu0 %v7490, 6
      %v7578 = vpop.permute.xlu0 %7577
      %7579 = vrot.lane.b32.xlu0 %v7491, 6
      %v7580 = vpop.permute.xlu0 %7579
      %7581 = vrot.lane.b32.xlu0 %v7492, 6
      %v7582 = vpop.permute.xlu0 %7581
      %7587 = vst.msk [vmem:[#allocation10 + $0x80] sm:$0xff] %vm7116, %v7576
      %7588 = vst.msk [vmem:[#allocation10 + $0x88] sm:$0xff] %vm7116, %v7578
      %7589 = vst.msk [vmem:[#allocation10 + $0x90] sm:$0xff] %vm7116, %v7580
      %7590 = vst.msk [vmem:[#allocation10 + $0x98] sm:$0xff] %vm7116, %v7582
      %7591 = vrot.lane.b32.xlu0 %v7489, 3
      %v7592 = vpop.permute.xlu0 %7591
      %7593 = vrot.lane.b32.xlu0 %v7490, 3
      %v7594 = vpop.permute.xlu0 %7593
      %7595 = vrot.lane.b32.xlu0 %v7491, 3
      %v7596 = vpop.permute.xlu0 %7595
      %7597 = vrot.lane.b32.xlu0 %v7492, 3
      %v7598 = vpop.permute.xlu0 %7597
      %7603 = vst.msk [vmem:[#allocation10 + $0xa0] sm:$0xff] %vm7167, %v7592
      %7604 = vst.msk [vmem:[#allocation10 + $0xa8] sm:$0xff] %vm7167, %v7594
      %7605 = vst.msk [vmem:[#allocation10 + $0xb0] sm:$0xff] %vm7167, %v7596
      %7606 = vst.msk [vmem:[#allocation10 + $0xb8] sm:$0xff] %vm7167, %v7598
      %7607 = vst.msk [vmem:[#allocation10 + $0xc0] sm:$0xff] %vm3422, %v7489
      %7608 = vst.msk [vmem:[#allocation10 + $0xc8] sm:$0xff] %vm3422, %v7490
      %7609 = vst.msk [vmem:[#allocation10 + $0xd0] sm:$0xff] %vm3422, %v7491
      %7610 = vst.msk [vmem:[#allocation10 + $0xd8] sm:$0xff] %vm3422, %v7492
      %v7611 = vld [vmem:[#allocation10] sm:$0xff]
      %v7612 = vld [vmem:[#allocation10 + $0x8] sm:$0xff]
      %v7613 = vld [vmem:[#allocation10 + $0x10] sm:$0xff]
      %v7614 = vld [vmem:[#allocation10 + $0x18] sm:$0xff]
      %v7615 = vld [vmem:[#allocation10 + $0x20] sm:$0xff]
      %v7616 = vld [vmem:[#allocation10 + $0x28] sm:$0xff]
      %v7617 = vld [vmem:[#allocation10 + $0x30] sm:$0xff]
      %v7618 = vld [vmem:[#allocation10 + $0x38] sm:$0xff]
      %v7619 = vld [vmem:[#allocation10 + $0x40] sm:$0xff]
      %v7620 = vld [vmem:[#allocation10 + $0x48] sm:$0xff]
      %v7621 = vld [vmem:[#allocation10 + $0x50] sm:$0xff]
      %v7622 = vld [vmem:[#allocation10 + $0x58] sm:$0xff]
      %v7623 = vld [vmem:[#allocation10 + $0x60] sm:$0xff]
      %v7624 = vld [vmem:[#allocation10 + $0x68] sm:$0xff]
      %v7625 = vld [vmem:[#allocation10 + $0x70] sm:$0xff]
      %v7626 = vld [vmem:[#allocation10 + $0x78] sm:$0xff]
      %v7627 = vld [vmem:[#allocation10 + $0x80] sm:$0xff]
      %v7628 = vld [vmem:[#allocation10 + $0x88] sm:$0xff]
      %v7629 = vld [vmem:[#allocation10 + $0x90] sm:$0xff]
      %v7630 = vld [vmem:[#allocation10 + $0x98] sm:$0xff]
      %v7631 = vld [vmem:[#allocation10 + $0xa0] sm:$0xff]
      %v7632 = vld [vmem:[#allocation10 + $0xa8] sm:$0xff]
      %v7633 = vld [vmem:[#allocation10 + $0xb0] sm:$0xff]
      %v7634 = vld [vmem:[#allocation10 + $0xb8] sm:$0xff]
      %v7635 = vld [vmem:[#allocation10 + $0xc0] sm:$0xff]
      %v7636 = vld [vmem:[#allocation10 + $0xc8] sm:$0xff]
      %v7637 = vld [vmem:[#allocation10 + $0xd0] sm:$0xff]
      %v7638 = vld [vmem:[#allocation10 + $0xd8] sm:$0xff]
      %v7639 = vpack.c.bf16 %v7612, %v7611
      %v7640 = vpack.c.bf16 %v7614, %v7613
      %v7641 = vpack.c.bf16 %v7616, %v7615
      %v7642 = vpack.c.bf16 %v7618, %v7617
      %v7643 = vpack.c.bf16 %v7620, %v7619
      %v7644 = vpack.c.bf16 %v7622, %v7621
      %v7645 = vpack.c.bf16 %v7624, %v7623
      %v7646 = vpack.c.bf16 %v7626, %v7625
      %v7647 = vpack.c.bf16 %v7628, %v7627
      %v7648 = vpack.c.bf16 %v7630, %v7629
      %v7649 = vpack.c.bf16 %v7632, %v7631
      %v7650 = vpack.c.bf16 %v7634, %v7633
      %v7651 = vpack.c.bf16 %v7636, %v7635
      %v7652 = vpack.c.bf16 %v7638, %v7637
      %v7653 = vld [vmem:[%s1 + $0x170] sm:$0xff]
      %v7654 = vld [vmem:[%s1 + $0x178] sm:$0xff]
      %v7655 = vld [vmem:[%s1 + $0x180] sm:$0xff]
      %v7656 = vld [vmem:[%s1 + $0x188] sm:$0xff]
      %v7657 = vld [vmem:[%s2] sm:$0xff]
      %v7658 = vld [vmem:[%s2 + $0x8] sm:$0xff]
      %v7659 = vld [vmem:[%s2 + $0x10] sm:$0xff]
      %v7660 = vld [vmem:[%s2 + $0x18] sm:$0xff]
      %7662 = vset.pattern.permute.xlu0 21
      %7663 = vperm.xlu0 %7662, %v7657
      %v7664 = vpop.permute.xlu0 %7663
      %7667 = vset.pattern.permute.xlu0 21
      %7668 = vperm.xlu0 %7667, %v7658
      %v7669 = vpop.permute.xlu0 %7668
      %7672 = vset.pattern.permute.xlu0 21
      %7673 = vperm.xlu0 %7672, %v7659
      %v7674 = vpop.permute.xlu0 %7673
      %7677 = vset.pattern.permute.xlu0 21
      %7678 = vperm.xlu0 %7677, %v7660
      %v7679 = vpop.permute.xlu0 %7678
      %v7685 = vunpack.c.l.b16 %v7653
      %v7686 = vunpack.c.h.b16 %v7653
      %v7687 = vunpack.c.l.b16 %v7654
      %v7688 = vunpack.c.h.b16 %v7654
      %v7689 = vunpack.c.l.b16 %v7655
      %v7690 = vunpack.c.h.b16 %v7655
      %v7691 = vunpack.c.l.b16 %v7656
      %v7692 = vunpack.c.h.b16 %v7656
      %v7693 = vpack.c.b16 %v7687, %v7685
      %v7694 = vpack.c.b16 %v7688, %v7686
      %v7695 = vpack.c.b16 %v7691, %v7689
      %v7696 = vpack.c.b16 %v7692, %v7690
      %v7700 = vsel %vm7298, %v7694, 0
      %v7703 = vsel %vm7298, %v7696, 0
      %7705 = vmatprep.subr.bf16.mxu0 0
      %7706 = vmatpush1.bf16.msra.mxu0 %v7639
      %7707 = vmatprep.subr.bf16.mxu0 0
      %7708 = vmatpush1.bf16.msra.mxu0 %v7640
      %7709 = vmatprep.subr.bf16.mxu0 0
      %7710 = vmatpush1.bf16.msra.mxu0 %v7641
      %7711 = vmatprep.subr.bf16.mxu0 0
      %7712 = vmatpush1.bf16.msra.mxu0 %v7642
      %7713 = vmatprep.subr.bf16.mxu0 0
      %7714 = vmatpush1.bf16.msra.mxu0 %v7643
      %7715 = vmatprep.subr.bf16.mxu0 0
      %7716 = vmatpush1.bf16.msra.mxu0 %v7644
      %7717 = vmatprep.subr.bf16.mxu0 0
      %7718 = vmatpush1.bf16.msra.mxu0 %v7645
      %7719 = vmatprep.subr.bf16.mxu0 0
      %7720 = vmatpush1.bf16.msra.mxu0 %v7646
      %7721 = vmatprep.subr.bf16.mxu0 0
      %7722 = vmatpush1.bf16.msra.mxu0 %v7647
      %7723 = vmatprep.subr.bf16.mxu0 0
      %7724 = vmatpush1.bf16.msra.mxu0 %v7648
      %7725 = vmatprep.subr.bf16.mxu0 0
      %7726 = vmatpush1.bf16.msra.mxu0 %v7649
      %7727 = vmatprep.subr.bf16.mxu0 0
      %7728 = vmatpush1.bf16.msra.mxu0 %v7650
      %7729 = vmatprep.subr.bf16.mxu0 0
      %7730 = vmatpush1.bf16.msra.mxu0 %v7651
      %7731 = vmatprep.subr.bf16.mxu0 0
      %7732 = vmatpush1.bf16.msra.mxu0 %v7652
      %7733 = vmatprep.subr.bf16.mxu0 0
      %7734 = vmatpush1.bf16.msra.mxu0 0
      %7735 = vmatprep.subr.bf16.mxu0 0
      %7736 = vmatpush1.bf16.msra.mxu0 0
      %7737 = vmatprep.mubr.bf16.mxu0 %v7700
      %7738 = vmatmul.mubr.bf16.gmra.mrb[0].mxu0 %v7693
      %v7739 = vpop.f32.mrb[0].mxu0
      %v7740 = vadd.f32 %v7664, %v7739
      %v7741 = vpop.f32.mrb[0].mxu0
      %v7742 = vpop.f32.mrb[0].mxu0
      %v7743 = vadd.f32 %v7669, %v7742
      %v7744 = vpop.f32.mrb[0].mxu0
      %7745 = vmatprep.mubr.bf16.mxu0 %v7703
      %7746 = vmatmul.mubr.bf16.gmra.mrb[0].mxu0 %v7695
      %v7747 = vpop.f32.mrb[0].mxu0
      %v7748 = vadd.f32 %v7674, %v7747
      %v7749 = vpop.f32.mrb[0].mxu0
      %v7750 = vpop.f32.mrb[0].mxu0
      %v7751 = vadd.f32 %v7679, %v7750
      %v7752 = vpop.f32.mrb[0].mxu0
      %7753 = vdwg.mxu0
      %vm7754 = vcmp.gt.f32.partialorder %v7740, 0.0
      %vm7755 = vcmp.gt.f32.partialorder %v7743, 0.0
      %vm7756 = vcmp.gt.f32.partialorder %v7748, 0.0
      %vm7757 = vcmp.gt.f32.partialorder %v7751, 0.0
      %v7758 = vmin.f32 %v7740, 0.0
      %v7759 = vmin.f32 %v7743, 0.0
      %v7760 = vmin.f32 %v7748, 0.0
      %v7761 = vmin.f32 %v7751, 0.0
      %v7762 = vmul.f32 %v7758, 1.442695
      %v7763 = vpow.pop %v7762
      %v7764 = vmul.f32 %v7759, 1.442695
      %v7765 = vpow.pop %v7764
      %v7766 = vmul.f32 %v7760, 1.442695
      %v7767 = vpow.pop %v7766
      %v7768 = vmul.f32 %v7761, 1.442695
      %v7769 = vpow.pop %v7768
      %v7770 = vsub.f32 %v7763, 1.0
      %v7771 = vsub.f32 %v7765, 1.0
      %v7772 = vsub.f32 %v7767, 1.0
      %v7773 = vsub.f32 %v7769, 1.0
      %v7774 = vsel %vm7754, %v7740, %v7770
      %v7775 = vsel %vm7755, %v7743, %v7771
      %v7776 = vsel %vm7756, %v7748, %v7772
      %v7777 = vsel %vm7757, %v7751, %v7773
      %v7778 = vpack.c.bf16 %v7775, %v7774
      %v7779 = vpack.c.bf16 %v7777, %v7776
      %v7780 = vld [vmem:[%s1 + $0x190] sm:$0xf]
      %v7781 = vld [vmem:[%s1 + $0x198] sm:$0xf]
      %v7782 = vld [vmem:[%s1 + $0x1a0] sm:$0xf]
      %v7783 = vld [vmem:[%s1 + $0x1a8] sm:$0xf]
      %7784 = vset.pattern.permute.xlu0 22
      %7785 = vperm.xlu0 %7784, %v7657
      %v7786 = vpop.permute.xlu0 %7785
      %7788 = vset.pattern.permute.xlu0 22
      %7789 = vperm.xlu0 %7788, %v7658
      %v7790 = vpop.permute.xlu0 %7789
      %7792 = vset.pattern.permute.xlu0 22
      %7793 = vperm.xlu0 %7792, %v7659
      %v7794 = vpop.permute.xlu0 %7793
      %7796 = vset.pattern.permute.xlu0 22
      %7797 = vperm.xlu0 %7796, %v7660
      %v7798 = vpop.permute.xlu0 %7797
      %v7804 = vunpack.c.l.b16 %v7780
      %v7805 = vunpack.c.l.b16 %v7781
      %v7806 = vunpack.c.l.b16 %v7782
      %v7807 = vunpack.c.l.b16 %v7783
      %v7808 = vpack.c.b16 %v7805, %v7804
      %v7809 = vpack.c.b16 %v7807, %v7806
      %v7811 = vsel %vm6983, %v7808, 0
      %v7814 = vsel %vm6983, %v7809, 0
      %7816 = vmatprep.subr.bf16.mxu0 0
      %7817 = vmatpush1.bf16.msra.mxu0 %v7778
      %7818 = vmatprep.subr.bf16.mxu0 0
      %7819 = vmatpush1.bf16.msra.mxu0 %v7779
      %7820 = vmatprep.subr.bf16.mxu0 0
      %7821 = vmatpush1.bf16.msra.mxu0 0
      %7822 = vmatprep.subr.bf16.mxu0 0
      %7823 = vmatpush1.bf16.msra.mxu0 0
      %7824 = vmatprep.subr.bf16.mxu0 0
      %7825 = vmatpush1.bf16.msra.mxu0 0
      %7826 = vmatprep.subr.bf16.mxu0 0
      %7827 = vmatpush1.bf16.msra.mxu0 0
      %7828 = vmatprep.subr.bf16.mxu0 0
      %7829 = vmatpush1.bf16.msra.mxu0 0
      %7830 = vmatprep.subr.bf16.mxu0 0
      %7831 = vmatpush1.bf16.msra.mxu0 0
      %7832 = vmatprep.subr.bf16.mxu0 0
      %7833 = vmatpush1.bf16.msra.mxu0 0
      %7834 = vmatprep.subr.bf16.mxu0 0
      %7835 = vmatpush1.bf16.msra.mxu0 0
      %7836 = vmatprep.subr.bf16.mxu0 0
      %7837 = vmatpush1.bf16.msra.mxu0 0
      %7838 = vmatprep.subr.bf16.mxu0 0
      %7839 = vmatpush1.bf16.msra.mxu0 0
      %7840 = vmatprep.subr.bf16.mxu0 0
      %7841 = vmatpush1.bf16.msra.mxu0 0
      %7842 = vmatprep.subr.bf16.mxu0 0
      %7843 = vmatpush1.bf16.msra.mxu0 0
      %7844 = vmatprep.subr.bf16.mxu0 0
      %7845 = vmatpush1.bf16.msra.mxu0 0
      %7846 = vmatprep.subr.bf16.mxu0 0
      %7847 = vmatpush1.bf16.msra.mxu0 0
      %7848 = vmatprep.mubr.bf16.mxu0 0
      %7849 = vmatmul.mubr.bf16.gmra.mrb[0].mxu0 %v7811
      %v7850 = vpop.f32.mrb[0].mxu0
      %v7851 = vadd.f32 %v7786, %v7850
      %v7852 = vpop.f32.mrb[0].mxu0
      %v7853 = vpop.f32.mrb[0].mxu0
      %v7854 = vadd.f32 %v7790, %v7853
      %v7855 = vpop.f32.mrb[0].mxu0
      %7856 = vmatprep.mubr.bf16.mxu0 0
      %7857 = vmatmul.mubr.bf16.gmra.mrb[0].mxu0 %v7814
      %v7858 = vpop.f32.mrb[0].mxu0
      %v7859 = vadd.f32 %v7794, %v7858
      %v7860 = vpop.f32.mrb[0].mxu0
      %v7861 = vpop.f32.mrb[0].mxu0
      %v7862 = vadd.f32 %v7798, %v7861
      %v7863 = vpop.f32.mrb[0].mxu0
      %7864 = vdwg.mxu0
      %vm7865 = vcmp.gt.f32.partialorder %v7851, 0.0
      %vm7866 = vcmp.gt.f32.partialorder %v7854, 0.0
      %vm7867 = vcmp.gt.f32.partialorder %v7859, 0.0
      %vm7868 = vcmp.gt.f32.partialorder %v7862, 0.0
      %v7869 = vmin.f32 %v7851, 0.0
      %v7870 = vmin.f32 %v7854, 0.0
      %v7871 = vmin.f32 %v7859, 0.0
      %v7872 = vmin.f32 %v7862, 0.0
      %v7873 = vmul.f32 %v7869, 1.442695
      %v7874 = vpow.pop %v7873
      %v7875 = vmul.f32 %v7870, 1.442695
      %v7876 = vpow.pop %v7875
      %v7877 = vmul.f32 %v7871, 1.442695
      %v7878 = vpow.pop %v7877
      %v7879 = vmul.f32 %v7872, 1.442695
      %v7880 = vpow.pop %v7879
      %v7881 = vsub.f32 %v7874, 1.0
      %v7882 = vsub.f32 %v7876, 1.0
      %v7883 = vsub.f32 %v7878, 1.0
      %v7884 = vsub.f32 %v7880, 1.0
      %v7885 = vsel %vm7865, %v7851, %v7881
      %v7886 = vsel %vm7866, %v7854, %v7882
      %v7887 = vsel %vm7867, %v7859, %v7883
      %v7888 = vsel %vm7868, %v7862, %v7884
      %v7889 = vadd.f32 %v7885, %v7489
      %v7890 = vadd.f32 %v7886, %v7490
      %v7891 = vadd.f32 %v7887, %v7491
      %v7892 = vadd.f32 %v7888, %v7492
      %7893 = vst.msk [vmem:[#allocation10] sm:$0xff] %vm3422, 0.0
      %7894 = vst.msk [vmem:[#allocation10 + $0x8] sm:$0xff] %vm3422, 0.0
      %7895 = vst.msk [vmem:[#allocation10 + $0x10] sm:$0xff] %vm3422, 0.0
      %7896 = vst.msk [vmem:[#allocation10 + $0x18] sm:$0xff] %vm3422, 0.0
      %7897 = vst.msk [vmem:[#allocation10 + $0x20] sm:$0xff] %vm3422, 0.0
      %7898 = vst.msk [vmem:[#allocation10 + $0x28] sm:$0xff] %vm3422, 0.0
      %7899 = vst.msk [vmem:[#allocation10 + $0x30] sm:$0xff] %vm3422, 0.0
      %7900 = vst.msk [vmem:[#allocation10 + $0x38] sm:$0xff] %vm3422, 0.0
      %7901 = vst.msk [vmem:[#allocation10 + $0x40] sm:$0xff] %vm3422, 0.0
      %7902 = vst.msk [vmem:[#allocation10 + $0x48] sm:$0xff] %vm3422, 0.0
      %7903 = vst.msk [vmem:[#allocation10 + $0x50] sm:$0xff] %vm3422, 0.0
      %7904 = vst.msk [vmem:[#allocation10 + $0x58] sm:$0xff] %vm3422, 0.0
      %7905 = vst.msk [vmem:[#allocation10 + $0x60] sm:$0xff] %vm3422, 0.0
      %7906 = vst.msk [vmem:[#allocation10 + $0x68] sm:$0xff] %vm3422, 0.0
      %7907 = vst.msk [vmem:[#allocation10 + $0x70] sm:$0xff] %vm3422, 0.0
      %7908 = vst.msk [vmem:[#allocation10 + $0x78] sm:$0xff] %vm3422, 0.0
      %7909 = vst.msk [vmem:[#allocation10 + $0x80] sm:$0xff] %vm3422, 0.0
      %7910 = vst.msk [vmem:[#allocation10 + $0x88] sm:$0xff] %vm3422, 0.0
      %7911 = vst.msk [vmem:[#allocation10 + $0x90] sm:$0xff] %vm3422, 0.0
      %7912 = vst.msk [vmem:[#allocation10 + $0x98] sm:$0xff] %vm3422, 0.0
      %7913 = vst.msk [vmem:[#allocation10 + $0xa0] sm:$0xff] %vm3422, 0.0
      %7914 = vst.msk [vmem:[#allocation10 + $0xa8] sm:$0xff] %vm3422, 0.0
      %7915 = vst.msk [vmem:[#allocation10 + $0xb0] sm:$0xff] %vm3422, 0.0
      %7916 = vst.msk [vmem:[#allocation10 + $0xb8] sm:$0xff] %vm3422, 0.0
      %7917 = vst.msk [vmem:[#allocation10 + $0xc0] sm:$0xff] %vm3422, 0.0
      %7918 = vst.msk [vmem:[#allocation10 + $0xc8] sm:$0xff] %vm3422, 0.0
      %7919 = vst.msk [vmem:[#allocation10 + $0xd0] sm:$0xff] %vm3422, 0.0
      %7920 = vst.msk [vmem:[#allocation10 + $0xd8] sm:$0xff] %vm3422, 0.0
      %7925 = vrot.lane.b32.xlu0 %v7889, 9
      %v7926 = vpop.permute.xlu0 %7925
      %7927 = vrot.lane.b32.xlu0 %v7890, 9
      %v7928 = vpop.permute.xlu0 %7927
      %7929 = vrot.lane.b32.xlu0 %v7891, 9
      %v7930 = vpop.permute.xlu0 %7929
      %7931 = vrot.lane.b32.xlu0 %v7892, 9
      %v7932 = vpop.permute.xlu0 %7931
      %7937 = vst.msk [vmem:[#allocation10 + $0xa0] sm:$0xff] %vm7570, %v7926
      %7938 = vst.msk [vmem:[#allocation10 + $0xa8] sm:$0xff] %vm7570, %v7928
      %7939 = vst.msk [vmem:[#allocation10 + $0xb0] sm:$0xff] %vm7570, %v7930
      %7940 = vst.msk [vmem:[#allocation10 + $0xb8] sm:$0xff] %vm7570, %v7932
      %7941 = vst.msk [vmem:[#allocation10 + $0xc0] sm:$0xff] %vm3422, %v7889
      %7942 = vst.msk [vmem:[#allocation10 + $0xc8] sm:$0xff] %vm3422, %v7890
      %7943 = vst.msk [vmem:[#allocation10 + $0xd0] sm:$0xff] %vm3422, %v7891
      %7944 = vst.msk [vmem:[#allocation10 + $0xd8] sm:$0xff] %vm3422, %v7892
      %v7945 = vld [vmem:[#allocation10] sm:$0xff]
      %v7946 = vld [vmem:[#allocation10 + $0x8] sm:$0xff]
      %v7947 = vld [vmem:[#allocation10 + $0x10] sm:$0xff]
      %v7948 = vld [vmem:[#allocation10 + $0x18] sm:$0xff]
      %v7949 = vld [vmem:[#allocation10 + $0x20] sm:$0xff]
      %v7950 = vld [vmem:[#allocation10 + $0x28] sm:$0xff]
      %v7951 = vld [vmem:[#allocation10 + $0x30] sm:$0xff]
      %v7952 = vld [vmem:[#allocation10 + $0x38] sm:$0xff]
      %v7953 = vld [vmem:[#allocation10 + $0x40] sm:$0xff]
      %v7954 = vld [vmem:[#allocation10 + $0x48] sm:$0xff]
      %v7955 = vld [vmem:[#allocation10 + $0x50] sm:$0xff]
      %v7956 = vld [vmem:[#allocation10 + $0x58] sm:$0xff]
      %v7957 = vld [vmem:[#allocation10 + $0x60] sm:$0xff]
      %v7958 = vld [vmem:[#allocation10 + $0x68] sm:$0xff]
      %v7959 = vld [vmem:[#allocation10 + $0x70] sm:$0xff]
      %v7960 = vld [vmem:[#allocation10 + $0x78] sm:$0xff]
      %v7961 = vld [vmem:[#allocation10 + $0x80] sm:$0xff]
      %v7962 = vld [vmem:[#allocation10 + $0x88] sm:$0xff]
      %v7963 = vld [vmem:[#allocation10 + $0x90] sm:$0xff]
      %v7964 = vld [vmem:[#allocation10 + $0x98] sm:$0xff]
      %v7965 = vld [vmem:[#allocation10 + $0xa0] sm:$0xff]
      %v7966 = vld [vmem:[#allocation10 + $0xa8] sm:$0xff]
      %v7967 = vld [vmem:[#allocation10 + $0xb0] sm:$0xff]
      %v7968 = vld [vmem:[#allocation10 + $0xb8] sm:$0xff]
      %v7969 = vld [vmem:[#allocation10 + $0xc0] sm:$0xff]
      %v7970 = vld [vmem:[#allocation10 + $0xc8] sm:$0xff]
      %v7971 = vld [vmem:[#allocation10 + $0xd0] sm:$0xff]
      %v7972 = vld [vmem:[#allocation10 + $0xd8] sm:$0xff]
      %v7973 = vpack.c.bf16 %v7946, %v7945
      %v7974 = vpack.c.bf16 %v7948, %v7947
      %v7975 = vpack.c.bf16 %v7950, %v7949
      %v7976 = vpack.c.bf16 %v7952, %v7951
      %v7977 = vpack.c.bf16 %v7954, %v7953
      %v7978 = vpack.c.bf16 %v7956, %v7955
      %v7979 = vpack.c.bf16 %v7958, %v7957
      %v7980 = vpack.c.bf16 %v7960, %v7959
      %v7981 = vpack.c.bf16 %v7962, %v7961
      %v7982 = vpack.c.bf16 %v7964, %v7963
      %v7983 = vpack.c.bf16 %v7966, %v7965
      %v7984 = vpack.c.bf16 %v7968, %v7967
      %v7985 = vpack.c.bf16 %v7970, %v7969
      %v7986 = vpack.c.bf16 %v7972, %v7971
      %v7987 = vld [vmem:[%s1 + $0x1b0] sm:$0xff]
      %v7988 = vld [vmem:[%s1 + $0x1b8] sm:$0xff]
      %v7989 = vld [vmem:[%s1 + $0x1c0] sm:$0xff]
      %v7990 = vld [vmem:[%s1 + $0x1c8] sm:$0xff]
      %v7991 = vld [vmem:[%s2] sm:$0xff]
      %v7992 = vld [vmem:[%s2 + $0x8] sm:$0xff]
      %v7993 = vld [vmem:[%s2 + $0x10] sm:$0xff]
      %v7994 = vld [vmem:[%s2 + $0x18] sm:$0xff]
      %7996 = vset.pattern.permute.xlu0 23
      %7997 = vperm.xlu0 %7996, %v7991
      %v7998 = vpop.permute.xlu0 %7997
      %8001 = vset.pattern.permute.xlu0 23
      %8002 = vperm.xlu0 %8001, %v7992
      %v8003 = vpop.permute.xlu0 %8002
      %8006 = vset.pattern.permute.xlu0 23
      %8007 = vperm.xlu0 %8006, %v7993
      %v8008 = vpop.permute.xlu0 %8007
      %8011 = vset.pattern.permute.xlu0 23
      %8012 = vperm.xlu0 %8011, %v7994
      %v8013 = vpop.permute.xlu0 %8012
      %v8019 = vunpack.c.l.b16 %v7987
      %v8020 = vunpack.c.h.b16 %v7987
      %v8021 = vunpack.c.l.b16 %v7988
      %v8022 = vunpack.c.h.b16 %v7988
      %v8023 = vunpack.c.l.b16 %v7989
      %v8024 = vunpack.c.h.b16 %v7989
      %v8025 = vunpack.c.l.b16 %v7990
      %v8026 = vunpack.c.h.b16 %v7990
      %v8027 = vpack.c.b16 %v8021, %v8019
      %v8028 = vpack.c.b16 %v8022, %v8020
      %v8029 = vpack.c.b16 %v8025, %v8023
      %v8030 = vpack.c.b16 %v8026, %v8024
      %v8034 = vsel %vm7298, %v8028, 0
      %v8037 = vsel %vm7298, %v8030, 0
      %8039 = vmatprep.subr.bf16.mxu0 0
      %8040 = vmatpush1.bf16.msra.mxu0 %v7973
      %8041 = vmatprep.subr.bf16.mxu0 0
      %8042 = vmatpush1.bf16.msra.mxu0 %v7974
      %8043 = vmatprep.subr.bf16.mxu0 0
      %8044 = vmatpush1.bf16.msra.mxu0 %v7975
      %8045 = vmatprep.subr.bf16.mxu0 0
      %8046 = vmatpush1.bf16.msra.mxu0 %v7976
      %8047 = vmatprep.subr.bf16.mxu0 0
      %8048 = vmatpush1.bf16.msra.mxu0 %v7977
      %8049 = vmatprep.subr.bf16.mxu0 0
      %8050 = vmatpush1.bf16.msra.mxu0 %v7978
      %8051 = vmatprep.subr.bf16.mxu0 0
      %8052 = vmatpush1.bf16.msra.mxu0 %v7979
      %8053 = vmatprep.subr.bf16.mxu0 0
      %8054 = vmatpush1.bf16.msra.mxu0 %v7980
      %8055 = vmatprep.subr.bf16.mxu0 0
      %8056 = vmatpush1.bf16.msra.mxu0 %v7981
      %8057 = vmatprep.subr.bf16.mxu0 0
      %8058 = vmatpush1.bf16.msra.mxu0 %v7982
      %8059 = vmatprep.subr.bf16.mxu0 0
      %8060 = vmatpush1.bf16.msra.mxu0 %v7983
      %8061 = vmatprep.subr.bf16.mxu0 0
      %8062 = vmatpush1.bf16.msra.mxu0 %v7984
      %8063 = vmatprep.subr.bf16.mxu0 0
      %8064 = vmatpush1.bf16.msra.mxu0 %v7985
      %8065 = vmatprep.subr.bf16.mxu0 0
      %8066 = vmatpush1.bf16.msra.mxu0 %v7986
      %8067 = vmatprep.subr.bf16.mxu0 0
      %8068 = vmatpush1.bf16.msra.mxu0 0
      %8069 = vmatprep.subr.bf16.mxu0 0
      %8070 = vmatpush1.bf16.msra.mxu0 0
      %8071 = vmatprep.mubr.bf16.mxu0 %v8034
      %8072 = vmatmul.mubr.bf16.gmra.mrb[0].mxu0 %v8027
      %v8073 = vpop.f32.mrb[0].mxu0
      %v8074 = vadd.f32 %v7998, %v8073
      %v8075 = vpop.f32.mrb[0].mxu0
      %v8076 = vpop.f32.mrb[0].mxu0
      %v8077 = vadd.f32 %v8003, %v8076
      %v8078 = vpop.f32.mrb[0].mxu0
      %8079 = vmatprep.mubr.bf16.mxu0 %v8037
      %8080 = vmatmul.mubr.bf16.gmra.mrb[0].mxu0 %v8029
      %v8081 = vpop.f32.mrb[0].mxu0
      %v8082 = vadd.f32 %v8008, %v8081
      %v8083 = vpop.f32.mrb[0].mxu0
      %v8084 = vpop.f32.mrb[0].mxu0
      %v8085 = vadd.f32 %v8013, %v8084
      %v8086 = vpop.f32.mrb[0].mxu0
      %8087 = vdwg.mxu0
      %vm8088 = vcmp.gt.f32.partialorder %v8074, 0.0
      %vm8089 = vcmp.gt.f32.partialorder %v8077, 0.0
      %vm8090 = vcmp.gt.f32.partialorder %v8082, 0.0
      %vm8091 = vcmp.gt.f32.partialorder %v8085, 0.0
      %v8092 = vmin.f32 %v8074, 0.0
      %v8093 = vmin.f32 %v8077, 0.0
      %v8094 = vmin.f32 %v8082, 0.0
      %v8095 = vmin.f32 %v8085, 0.0
      %v8096 = vmul.f32 %v8092, 1.442695
      %v8097 = vpow.pop %v8096
      %v8098 = vmul.f32 %v8093, 1.442695
      %v8099 = vpow.pop %v8098
      %v8100 = vmul.f32 %v8094, 1.442695
      %v8101 = vpow.pop %v8100
      %v8102 = vmul.f32 %v8095, 1.442695
      %v8103 = vpow.pop %v8102
      %v8104 = vsub.f32 %v8097, 1.0
      %v8105 = vsub.f32 %v8099, 1.0
      %v8106 = vsub.f32 %v8101, 1.0
      %v8107 = vsub.f32 %v8103, 1.0
      %v8108 = vsel %vm8088, %v8074, %v8104
      %v8109 = vsel %vm8089, %v8077, %v8105
      %v8110 = vsel %vm8090, %v8082, %v8106
      %v8111 = vsel %vm8091, %v8085, %v8107
      %v8112 = vpack.c.bf16 %v8109, %v8108
      %v8113 = vpack.c.bf16 %v8111, %v8110
      %v8114 = vld [vmem:[%s1 + $0x1d0] sm:$0xf]
      %v8115 = vld [vmem:[%s1 + $0x1d8] sm:$0xf]
      %v8116 = vld [vmem:[%s1 + $0x1e0] sm:$0xf]
      %v8117 = vld [vmem:[%s1 + $0x1e8] sm:$0xf]
      %8118 = vset.pattern.permute.xlu0 24
      %8119 = vperm.xlu0 %8118, %v7991
      %v8120 = vpop.permute.xlu0 %8119
      %8122 = vset.pattern.permute.xlu0 24
      %8123 = vperm.xlu0 %8122, %v7992
      %v8124 = vpop.permute.xlu0 %8123
      %8126 = vset.pattern.permute.xlu0 24
      %8127 = vperm.xlu0 %8126, %v7993
      %v8128 = vpop.permute.xlu0 %8127
      %8130 = vset.pattern.permute.xlu0 24
      %8131 = vperm.xlu0 %8130, %v7994
      %v8132 = vpop.permute.xlu0 %8131
      %v8138 = vunpack.c.l.b16 %v8114
      %v8139 = vunpack.c.l.b16 %v8115
      %v8140 = vunpack.c.l.b16 %v8116
      %v8141 = vunpack.c.l.b16 %v8117
      %v8142 = vpack.c.b16 %v8139, %v8138
      %v8143 = vpack.c.b16 %v8141, %v8140
      %v8145 = vsel %vm6983, %v8142, 0
      %v8148 = vsel %vm6983, %v8143, 0
      %8150 = vmatprep.subr.bf16.mxu0 0
      %8151 = vmatpush1.bf16.msra.mxu0 %v8112
      %8152 = vmatprep.subr.bf16.mxu0 0
      %8153 = vmatpush1.bf16.msra.mxu0 %v8113
      %8154 = vmatprep.subr.bf16.mxu0 0
      %8155 = vmatpush1.bf16.msra.mxu0 0
      %8156 = vmatprep.subr.bf16.mxu0 0
      %8157 = vmatpush1.bf16.msra.mxu0 0
      %8158 = vmatprep.subr.bf16.mxu0 0
      %8159 = vmatpush1.bf16.msra.mxu0 0
      %8160 = vmatprep.subr.bf16.mxu0 0
      %8161 = vmatpush1.bf16.msra.mxu0 0
      %8162 = vmatprep.subr.bf16.mxu0 0
      %8163 = vmatpush1.bf16.msra.mxu0 0
      %8164 = vmatprep.subr.bf16.mxu0 0
      %8165 = vmatpush1.bf16.msra.mxu0 0
      %8166 = vmatprep.subr.bf16.mxu0 0
      %8167 = vmatpush1.bf16.msra.mxu0 0
      %8168 = vmatprep.subr.bf16.mxu0 0
      %8169 = vmatpush1.bf16.msra.mxu0 0
      %8170 = vmatprep.subr.bf16.mxu0 0
      %8171 = vmatpush1.bf16.msra.mxu0 0
      %8172 = vmatprep.subr.bf16.mxu0 0
      %8173 = vmatpush1.bf16.msra.mxu0 0
      %8174 = vmatprep.subr.bf16.mxu0 0
      %8175 = vmatpush1.bf16.msra.mxu0 0
      %8176 = vmatprep.subr.bf16.mxu0 0
      %8177 = vmatpush1.bf16.msra.mxu0 0
      %8178 = vmatprep.subr.bf16.mxu0 0
      %8179 = vmatpush1.bf16.msra.mxu0 0
      %8180 = vmatprep.subr.bf16.mxu0 0
      %8181 = vmatpush1.bf16.msra.mxu0 0
      %8182 = vmatprep.mubr.bf16.mxu0 0
      %8183 = vmatmul.mubr.bf16.gmra.mrb[0].mxu0 %v8145
      %v8184 = vpop.f32.mrb[0].mxu0
      %v8185 = vadd.f32 %v8120, %v8184
      %v8186 = vpop.f32.mrb[0].mxu0
      %v8187 = vpop.f32.mrb[0].mxu0
      %v8188 = vadd.f32 %v8124, %v8187
      %v8189 = vpop.f32.mrb[0].mxu0
      %8190 = vmatprep.mubr.bf16.mxu0 0
      %8191 = vmatmul.mubr.bf16.gmra.mrb[0].mxu0 %v8148
      %v8192 = vpop.f32.mrb[0].mxu0
      %v8193 = vadd.f32 %v8128, %v8192
      %v8194 = vpop.f32.mrb[0].mxu0
      %v8195 = vpop.f32.mrb[0].mxu0
      %v8196 = vadd.f32 %v8132, %v8195
      %v8197 = vpop.f32.mrb[0].mxu0
      %8198 = vdwg.mxu0
      %vm8199 = vcmp.gt.f32.partialorder %v8185, 0.0
      %vm8200 = vcmp.gt.f32.partialorder %v8188, 0.0
      %vm8201 = vcmp.gt.f32.partialorder %v8193, 0.0
      %vm8202 = vcmp.gt.f32.partialorder %v8196, 0.0
      %v8203 = vmin.f32 %v8185, 0.0
      %v8204 = vmin.f32 %v8188, 0.0
      %v8205 = vmin.f32 %v8193, 0.0
      %v8206 = vmin.f32 %v8196, 0.0
      %v8207 = vmul.f32 %v8203, 1.442695
      %v8208 = vpow.pop %v8207
      %v8209 = vmul.f32 %v8204, 1.442695
      %v8210 = vpow.pop %v8209
      %v8211 = vmul.f32 %v8205, 1.442695
      %v8212 = vpow.pop %v8211
      %v8213 = vmul.f32 %v8206, 1.442695
      %v8214 = vpow.pop %v8213
      %v8215 = vsub.f32 %v8208, 1.0
      %v8216 = vsub.f32 %v8210, 1.0
      %v8217 = vsub.f32 %v8212, 1.0
      %v8218 = vsub.f32 %v8214, 1.0
      %v8219 = vsel %vm8199, %v8185, %v8215
      %v8220 = vsel %vm8200, %v8188, %v8216
      %v8221 = vsel %vm8201, %v8193, %v8217
      %v8222 = vsel %vm8202, %v8196, %v8218
      %v8223 = vadd.f32 %v8219, %v7889
      %v8224 = vadd.f32 %v8220, %v7890
      %v8225 = vadd.f32 %v8221, %v7891
      %v8226 = vadd.f32 %v8222, %v7892
      %8227 = vxpose.xlu0.b32.start [1/16] %v8223, 128
      %8228 = vxpose.xlu0.b32.cont [2/16] %v8224, 128
      %8229 = vxpose.xlu0.b32.cont [3/16] %v8225, 128
      %8230 = vxpose.xlu0.b32.cont [4/16] %v8226, 128
      %8231 = vxpose.xlu0.b32.cont [5/16] 0.0, 128
      %8232 = vxpose.xlu0.b32.cont [6/16] 0.0, 128
      %8233 = vxpose.xlu0.b32.cont [7/16] 0.0, 128
      %8234 = vxpose.xlu0.b32.cont [8/16] 0.0, 128
      %8235 = vxpose.xlu0.b32.cont [9/16] 0.0, 128
      %8236 = vxpose.xlu0.b32.cont [10/16] 0.0, 128
      %8237 = vxpose.xlu0.b32.cont [11/16] 0.0, 128
      %8238 = vxpose.xlu0.b32.cont [12/16] 0.0, 128
      %8239 = vxpose.xlu0.b32.cont [13/16] 0.0, 128
      %8240 = vxpose.xlu0.b32.cont [14/16] 0.0, 128
      %8241 = vxpose.xlu0.b32.cont [15/16] 0.0, 128
      %8242 = vxpose.xlu0.b32.end [16/16] 0.0, 128
      %v8243 = vpop.trf.xlu0
      %v8244 = vpop.trf.xlu0
      %v8245 = vpop.trf.xlu0
      %v8246 = vpop.trf.xlu0
      %v8247 = vpop.trf.xlu0
      %v8248 = vpop.trf.xlu0
      %v8249 = vpop.trf.xlu0
      %v8250 = vpop.trf.xlu0
      %v8251 = vpop.trf.xlu0
      %v8252 = vpop.trf.xlu0
      %v8253 = vpop.trf.xlu0
      %v8254 = vpop.trf.xlu0
      %v8255 = vpop.trf.xlu0
      %v8256 = vpop.trf.xlu0
      %v8257 = vpop.trf.xlu0
      %v8258 = vpop.trf.xlu0
      %8259 = vst.msk [vmem:[#allocation2] sm:$0xff] %vm6983, %v8243
      %8260 = vst.msk [vmem:[#allocation2 + $0x8] sm:$0xff] %vm6983, %v8244
      %vm8261 = vcmp.lt.s32.totalorder %v233, 512
      %vm8262 = vmand %vm294, %vm8261
      %8263 = vst.msk [vmem:[#allocation11] ss:$8 sm:$0xf] %vm8262, 0.0
      %8264 = vst.msk [vmem:[#allocation11] ss:$8 sm:$0x0] %vm8262, 0.0
      %v8265 = vld [vmem:[#allocation2] sm:$0x1]
      %vm8266 = vcmask 253952
      %8267 = vst.msk [vmem:[#allocation11 + $0x1] sm:$0x1] %vm8266, %v8265
      %v8268 = vld [vmem:[#allocation2 + $0x1] sm:$0x1]
      %8270 = vrot.lane.b32.xlu0 %v8268, 32
      %v8271 = vpop.permute.xlu0 %8270
      %vm8273 = vcmask 516352
      %8274 = vst.msk [vmem:[#allocation11 + $0x1] sm:$0x1] %vm8273, %v8271
      %v8275 = vld [vmem:[#allocation2 + $0x2] sm:$0x1]
      %8277 = vrot.lane.b32.xlu0 %v8275, 64
      %v8278 = vpop.permute.xlu0 %8277
      %vm8280 = vcmask 778752
      %8281 = vst.msk [vmem:[#allocation11 + $0x1] sm:$0x1] %vm8280, %v8278
      %v8282 = vld [vmem:[#allocation2 + $0x3] sm:$0x1]
      %8284 = vrot.lane.b32.xlu0 %v8282, 96
      %v8285 = vpop.permute.xlu0 %8284
      %vm8287 = vcmask 1041152
      %8288 = vst.msk [vmem:[#allocation11 + $0x1] sm:$0x1] %vm8287, %v8285
      %v8289 = vld [vmem:[#allocation2 + $0x4] sm:$0x1]
      %8290 = vst.msk [vmem:[#allocation11 + $0x9] sm:$0x1] %vm8266, %v8289
      %v8291 = vld [vmem:[#allocation2 + $0x5] sm:$0x1]
      %8293 = vrot.lane.b32.xlu0 %v8291, 32
      %v8294 = vpop.permute.xlu0 %8293
      %8296 = vst.msk [vmem:[#allocation11 + $0x9] sm:$0x1] %vm8273, %v8294
      %v8297 = vld [vmem:[#allocation2 + $0x6] sm:$0x1]
      %8299 = vrot.lane.b32.xlu0 %v8297, 64
      %v8300 = vpop.permute.xlu0 %8299
      %8302 = vst.msk [vmem:[#allocation11 + $0x9] sm:$0x1] %vm8280, %v8300
      %v8303 = vld [vmem:[#allocation2 + $0x7] sm:$0x1]
      %8305 = vrot.lane.b32.xlu0 %v8303, 96
      %v8306 = vpop.permute.xlu0 %8305
      %8308 = vst.msk [vmem:[#allocation11 + $0x9] sm:$0x1] %vm8287, %v8306
      %v8309 = vld [vmem:[#allocation2] ss:$8 sm:$0x3]
      %vm8310 = vcmask 254976
      %8311 = vst.msk [vmem:[#allocation11 + $0x10] sm:$0x3] %vm8310, %v8309
      %v8312 = vld [vmem:[%s2546] ss:$8 sm:$0x3]
      %8314 = vrot.lane.b32.xlu0 %v8312, 32
      %v8315 = vpop.permute.xlu0 %8314
      %vm8317 = vcmask 517376
      %8318 = vst.msk [vmem:[#allocation11 + $0x10] sm:$0x3] %vm8317, %v8315
      %v8319 = vld [vmem:[%s5360] ss:$8 sm:$0x3]
      %8321 = vrot.lane.b32.xlu0 %v8319, 64
      %v8322 = vpop.permute.xlu0 %8321
      %vm8324 = vcmask 779776
      %8325 = vst.msk [vmem:[#allocation11 + $0x10] sm:$0x3] %vm8324, %v8322
      %v8326 = vld [vmem:[%s5432] ss:$8 sm:$0x3]
      %8328 = vrot.lane.b32.xlu0 %v8326, 96
      %v8329 = vpop.permute.xlu0 %8328
      %vm8331 = vcmask 1042176
      %8332 = vst.msk [vmem:[#allocation11 + $0x10] sm:$0x3] %vm8331, %v8329
      %v8333 = vld [vmem:[%s6818] ss:$8 sm:$0x3]
      %8334 = vst.msk [vmem:[#allocation11 + $0x18] sm:$0x3] %vm8310, %v8333
      %s8335 = scalar_lea.vmem [#allocation2], 5
      %v8336 = vld [vmem:[%s8335] ss:$8 sm:$0x3]
      %8338 = vrot.lane.b32.xlu0 %v8336, 32
      %v8339 = vpop.permute.xlu0 %8338
      %8341 = vst.msk [vmem:[#allocation11 + $0x18] sm:$0x3] %vm8317, %v8339
      %s8342 = scalar_lea.vmem [#allocation2], 6
      %v8343 = vld [vmem:[%s8342] ss:$8 sm:$0x3]
      %8345 = vrot.lane.b32.xlu0 %v8343, 64
      %v8346 = vpop.permute.xlu0 %8345
      %8348 = vst.msk [vmem:[#allocation11 + $0x18] sm:$0x3] %vm8324, %v8346
      %s8349 = scalar_lea.vmem [#allocation2], 7
      %v8350 = vld [vmem:[%s8349] ss:$8 sm:$0x3]
      %8352 = vrot.lane.b32.xlu0 %v8350, 96
      %v8353 = vpop.permute.xlu0 %8352
      %8355 = vst.msk [vmem:[#allocation11 + $0x18] sm:$0x3] %vm8331, %v8353
      %v8356 = vld [vmem:[#allocation11] sm:$0x3]
      %v8357 = vld [vmem:[#allocation11 + $0x8] sm:$0x3]
      %v8358 = vld [vmem:[#allocation11 + $0x10] sm:$0x3]
      %v8359 = vld [vmem:[#allocation11 + $0x18] sm:$0x3]
      %v8360 = vpack.c.bf16 %v8356, %v8356
      %v8361 = vpack.c.bf16 %v8357, %v8357
      %v8362 = vpack.c.bf16 %v8358, %v8358
      %v8363 = vpack.c.bf16 %v8359, %v8359
      %v8364 = vld [vmem:[%s3 + $0x78] sm:$0xf]
      %v8365 = vld [vmem:[%s3 + $0x7c] sm:$0xf]
      %v8366 = vld [vmem:[%s3 + $0x80] sm:$0xf]
      %v8367 = vld [vmem:[%s3 + $0x84] sm:$0xf]
      %v8368 = vld [vmem:[%s3 + $0x88] sm:$0xf]
      %v8369 = vld [vmem:[%s3 + $0x8c] sm:$0xf]
      %v8370 = vld [vmem:[%s3 + $0x90] sm:$0xf]
      %v8371 = vld [vmem:[%s3 + $0x94] sm:$0xf]
      %v8372 = vld [vmem:[%s3 + $0x98] sm:$0xf]
      %v8373 = vld [vmem:[%s3 + $0x9c] sm:$0xf]
      %v8374 = vld [vmem:[%s3 + $0xa0] sm:$0xf]
      %v8375 = vld [vmem:[%s3 + $0xa4] sm:$0xf]
      %v8376 = vld [vmem:[%s3 + $0xa8] sm:$0xf]
      %v8377 = vld [vmem:[%s3 + $0xac] sm:$0xf]
      %v8378 = vld [vmem:[%s3 + $0xb0] sm:$0xf]
      %v8379 = vld [vmem:[%s3 + $0xb4] sm:$0xf]
      %v8380 = vld [vmem:[%s3 + $0xb8] sm:$0xf]
      %v8381 = vld [vmem:[%s3 + $0xbc] sm:$0xf]
      %v8382 = vld [vmem:[%s3 + $0xc0] sm:$0xf]
      %v8383 = vld [vmem:[%s3 + $0xc4] sm:$0xf]
      %v8384 = vld [vmem:[%s3 + $0xc8] sm:$0xf]
      %v8385 = vld [vmem:[%s3 + $0xcc] sm:$0xf]
      %v8386 = vld [vmem:[%s3 + $0xd0] sm:$0xf]
      %v8387 = vld [vmem:[%s3 + $0xd4] sm:$0xf]
      %v8388 = vld [vmem:[%s3 + $0xd8] sm:$0xf]
      %v8389 = vld [vmem:[%s3 + $0xdc] sm:$0xf]
      %v8390 = vld [vmem:[%s3 + $0xe0] sm:$0xf]
      %v8391 = vld [vmem:[%s3 + $0xe4] sm:$0xf]
      %v8392 = vld [vmem:[%s3 + $0xe8] sm:$0xf]
      %v8393 = vld [vmem:[%s3 + $0xec] sm:$0xf]
      %v8394 = vld [vmem:[%s3 + $0xf0] sm:$0xf]
      %v8395 = vld [vmem:[%s3 + $0xf4] sm:$0xf]
      %v8396 = vld [vmem:[%s3 + $0xf8] sm:$0xf]
      %v8397 = vld [vmem:[%s3 + $0xfc] sm:$0xf]
      %v8398 = vld [vmem:[%s3 + $0x100] sm:$0xf]
      %v8399 = vld [vmem:[%s3 + $0x104] sm:$0xf]
      %v8400 = vld [vmem:[%s3 + $0x108] sm:$0xf]
      %v8401 = vld [vmem:[%s3 + $0x10c] sm:$0xf]
      %v8402 = vld [vmem:[%s3 + $0x110] sm:$0xf]
      %v8403 = vld [vmem:[%s3 + $0x114] sm:$0xf]
      %v8404 = vld [vmem:[%s3 + $0x118] sm:$0xf]
      %v8405 = vld [vmem:[%s3 + $0x11c] sm:$0xf]
      %v8406 = vld [vmem:[%s3 + $0x120] sm:$0xf]
      %v8407 = vld [vmem:[%s3 + $0x124] sm:$0xf]
      %v8408 = vld [vmem:[%s3 + $0x128] sm:$0xf]
      %v8409 = vld [vmem:[%s3 + $0x12c] sm:$0xf]
      %v8410 = vld [vmem:[%s3 + $0x130] sm:$0xf]
      %v8411 = vld [vmem:[%s3 + $0x134] sm:$0xf]
      %v8412 = vld [vmem:[%s3 + $0x138] sm:$0xf]
      %v8413 = vld [vmem:[%s3 + $0x13c] sm:$0xf]
      %v8414 = vld [vmem:[%s3 + $0x140] sm:$0xf]
      %v8415 = vld [vmem:[%s3 + $0x144] sm:$0xf]
      %v8416 = vld [vmem:[%s3 + $0x148] sm:$0xf]
      %v8417 = vld [vmem:[%s3 + $0x14c] sm:$0xf]
      %v8418 = vld [vmem:[%s3 + $0x150] sm:$0xf]
      %v8419 = vld [vmem:[%s3 + $0x154] sm:$0xf]
      %v8420 = vld [vmem:[%s3 + $0x158] sm:$0xf]
      %v8421 = vld [vmem:[%s3 + $0x15c] sm:$0xf]
      %v8422 = vld [vmem:[%s3 + $0x160] sm:$0xf]
      %v8423 = vld [vmem:[%s3 + $0x164] sm:$0xf]
      %v8424 = vld [vmem:[%s3 + $0x168] sm:$0xf]
      %v8425 = vld [vmem:[%s3 + $0x16c] sm:$0xf]
      %v8426 = vld [vmem:[%s3 + $0x170] sm:$0xf]
      %v8427 = vld [vmem:[%s3 + $0x174] sm:$0xf]
      %v8428 = vld [vmem:[%s4 + $0x3] sm:$0x1]
      %v8429 = vlaneseq
      %v8430 = vshrl.u32 %v8429, 7
      %v8431 = vsub.s32 0, %v8430
      %v8432 = vrot.slane %v8428, %v8431
      %v8497 = vunpack.c.l.b16 %v8364
      %v8498 = vunpack.c.l.b16 %v8365
      %v8499 = vunpack.c.l.b16 %v8366
      %v8500 = vunpack.c.l.b16 %v8367
      %v8501 = vunpack.c.l.b16 %v8368
      %v8502 = vunpack.c.l.b16 %v8369
      %v8503 = vunpack.c.l.b16 %v8370
      %v8504 = vunpack.c.l.b16 %v8371
      %v8505 = vunpack.c.l.b16 %v8372
      %v8506 = vunpack.c.l.b16 %v8373
      %v8507 = vunpack.c.l.b16 %v8374
      %v8508 = vunpack.c.l.b16 %v8375
      %v8509 = vunpack.c.l.b16 %v8376
      %v8510 = vunpack.c.l.b16 %v8377
      %v8511 = vunpack.c.l.b16 %v8378
      %v8512 = vunpack.c.l.b16 %v8379
      %v8513 = vunpack.c.l.b16 %v8380
      %v8514 = vunpack.c.l.b16 %v8381
      %v8515 = vunpack.c.l.b16 %v8382
      %v8516 = vunpack.c.l.b16 %v8383
      %v8517 = vunpack.c.l.b16 %v8384
      %v8518 = vunpack.c.l.b16 %v8385
      %v8519 = vunpack.c.l.b16 %v8386
      %v8520 = vunpack.c.l.b16 %v8387
      %v8521 = vunpack.c.l.b16 %v8388
      %v8522 = vunpack.c.l.b16 %v8389
      %v8523 = vunpack.c.l.b16 %v8390
      %v8524 = vunpack.c.l.b16 %v8391
      %v8525 = vunpack.c.l.b16 %v8392
      %v8526 = vunpack.c.l.b16 %v8393
      %v8527 = vunpack.c.l.b16 %v8394
      %v8528 = vunpack.c.l.b16 %v8395
      %v8529 = vunpack.c.l.b16 %v8396
      %v8530 = vunpack.c.l.b16 %v8397
      %v8531 = vunpack.c.l.b16 %v8398
      %v8532 = vunpack.c.l.b16 %v8399
      %v8533 = vunpack.c.l.b16 %v8400
      %v8534 = vunpack.c.l.b16 %v8401
      %v8535 = vunpack.c.l.b16 %v8402
      %v8536 = vunpack.c.l.b16 %v8403
      %v8537 = vunpack.c.l.b16 %v8404
      %v8538 = vunpack.c.l.b16 %v8405
      %v8539 = vunpack.c.l.b16 %v8406
      %v8540 = vunpack.c.l.b16 %v8407
      %v8541 = vunpack.c.l.b16 %v8408
      %v8542 = vunpack.c.l.b16 %v8409
      %v8543 = vunpack.c.l.b16 %v8410
      %v8544 = vunpack.c.l.b16 %v8411
      %v8545 = vunpack.c.l.b16 %v8412
      %v8546 = vunpack.c.l.b16 %v8413
      %v8547 = vunpack.c.l.b16 %v8414
      %v8548 = vunpack.c.l.b16 %v8415
      %v8549 = vunpack.c.l.b16 %v8416
      %v8550 = vunpack.c.l.b16 %v8417
      %v8551 = vunpack.c.l.b16 %v8418
      %v8552 = vunpack.c.l.b16 %v8419
      %v8553 = vunpack.c.l.b16 %v8420
      %v8554 = vunpack.c.l.b16 %v8421
      %v8555 = vunpack.c.l.b16 %v8422
      %v8556 = vunpack.c.l.b16 %v8423
      %v8557 = vunpack.c.l.b16 %v8424
      %v8558 = vunpack.c.l.b16 %v8425
      %v8559 = vunpack.c.l.b16 %v8426
      %v8560 = vunpack.c.l.b16 %v8427
      %v8561 = vpack.c.b16 %v8498, %v8497
      %v8562 = vpack.c.b16 %v8500, %v8499
      %v8563 = vpack.c.b16 %v8502, %v8501
      %v8564 = vpack.c.b16 %v8504, %v8503
      %v8565 = vpack.c.b16 %v8506, %v8505
      %v8566 = vpack.c.b16 %v8508, %v8507
      %v8567 = vpack.c.b16 %v8510, %v8509
      %v8568 = vpack.c.b16 %v8512, %v8511
      %v8569 = vpack.c.b16 %v8514, %v8513
      %v8570 = vpack.c.b16 %v8516, %v8515
      %v8571 = vpack.c.b16 %v8518, %v8517
      %v8572 = vpack.c.b16 %v8520, %v8519
      %v8573 = vpack.c.b16 %v8522, %v8521
      %v8574 = vpack.c.b16 %v8524, %v8523
      %v8575 = vpack.c.b16 %v8526, %v8525
      %v8576 = vpack.c.b16 %v8528, %v8527
      %v8577 = vpack.c.b16 %v8530, %v8529
      %v8578 = vpack.c.b16 %v8532, %v8531
      %v8579 = vpack.c.b16 %v8534, %v8533
      %v8580 = vpack.c.b16 %v8536, %v8535
      %v8581 = vpack.c.b16 %v8538, %v8537
      %v8582 = vpack.c.b16 %v8540, %v8539
      %v8583 = vpack.c.b16 %v8542, %v8541
      %v8584 = vpack.c.b16 %v8544, %v8543
      %v8585 = vpack.c.b16 %v8546, %v8545
      %v8586 = vpack.c.b16 %v8548, %v8547
      %v8587 = vpack.c.b16 %v8550, %v8549
      %v8588 = vpack.c.b16 %v8552, %v8551
      %v8589 = vpack.c.b16 %v8554, %v8553
      %v8590 = vpack.c.b16 %v8556, %v8555
      %v8591 = vpack.c.b16 %v8558, %v8557
      %v8592 = vpack.c.b16 %v8560, %v8559
      %8625 = vmatprep.subr.bf16.mxu0 0
      %8626 = vmatpush1.bf16.msra.mxu0 %v8561
      %8627 = vmatprep.subr.bf16.mxu0 0
      %8628 = vmatpush1.bf16.msra.mxu0 %v8562
      %8629 = vmatprep.subr.bf16.mxu0 0
      %8630 = vmatpush1.bf16.msra.mxu0 %v8563
      %8631 = vmatprep.subr.bf16.mxu0 0
      %8632 = vmatpush1.bf16.msra.mxu0 %v8564
      %8633 = vmatprep.subr.bf16.mxu0 0
      %8634 = vmatpush1.bf16.msra.mxu0 %v8565
      %8635 = vmatprep.subr.bf16.mxu0 0
      %8636 = vmatpush1.bf16.msra.mxu0 %v8566
      %8637 = vmatprep.subr.bf16.mxu0 0
      %8638 = vmatpush1.bf16.msra.mxu0 %v8567
      %8639 = vmatprep.subr.bf16.mxu0 0
      %8640 = vmatpush1.bf16.msra.mxu0 %v8568
      %8641 = vmatprep.subr.bf16.mxu0 0
      %8642 = vmatpush1.bf16.msra.mxu0 %v8569
      %8643 = vmatprep.subr.bf16.mxu0 0
      %8644 = vmatpush1.bf16.msra.mxu0 %v8570
      %8645 = vmatprep.subr.bf16.mxu0 0
      %8646 = vmatpush1.bf16.msra.mxu0 %v8571
      %8647 = vmatprep.subr.bf16.mxu0 0
      %8648 = vmatpush1.bf16.msra.mxu0 %v8572
      %8649 = vmatprep.subr.bf16.mxu0 0
      %8650 = vmatpush1.bf16.msra.mxu0 %v8573
      %8651 = vmatprep.subr.bf16.mxu0 0
      %8652 = vmatpush1.bf16.msra.mxu0 %v8574
      %8653 = vmatprep.subr.bf16.mxu0 0
      %8654 = vmatpush1.bf16.msra.mxu0 %v8575
      %8655 = vmatprep.subr.bf16.mxu0 0
      %8656 = vmatpush1.bf16.msra.mxu0 %v8576
      %8657 = vmatprep.mubr.bf16.mxu0 %v8361
      %8658 = vmatmul.mubr.bf16.gmra.mrb[0].mxu0 %v8360
      %v8659 = vpop.f32.mrb[0].mxu0
      %v8660 = vadd.f32 %v8432, %v8659
      %v8661 = vpop.f32.mrb[0].mxu0
      %v8662 = vpop.f32.mrb[0].mxu0
      %v8663 = vpop.f32.mrb[0].mxu0
      %8664 = vdwg.mxu0
      %8665 = vmatprep.subr.bf16.mxu0 0
      %8666 = vmatpush1.bf16.msra.mxu0 %v8577
      %8667 = vmatprep.subr.bf16.mxu0 0
      %8668 = vmatpush1.bf16.msra.mxu0 %v8578
      %8669 = vmatprep.subr.bf16.mxu0 0
      %8670 = vmatpush1.bf16.msra.mxu0 %v8579
      %8671 = vmatprep.subr.bf16.mxu0 0
      %8672 = vmatpush1.bf16.msra.mxu0 %v8580
      %8673 = vmatprep.subr.bf16.mxu0 0
      %8674 = vmatpush1.bf16.msra.mxu0 %v8581
      %8675 = vmatprep.subr.bf16.mxu0 0
      %8676 = vmatpush1.bf16.msra.mxu0 %v8582
      %8677 = vmatprep.subr.bf16.mxu0 0
      %8678 = vmatpush1.bf16.msra.mxu0 %v8583
      %8679 = vmatprep.subr.bf16.mxu0 0
      %8680 = vmatpush1.bf16.msra.mxu0 %v8584
      %8681 = vmatprep.subr.bf16.mxu0 0
      %8682 = vmatpush1.bf16.msra.mxu0 %v8585
      %8683 = vmatprep.subr.bf16.mxu0 0
      %8684 = vmatpush1.bf16.msra.mxu0 %v8586
      %8685 = vmatprep.subr.bf16.mxu0 0
      %8686 = vmatpush1.bf16.msra.mxu0 %v8587
      %8687 = vmatprep.subr.bf16.mxu0 0
      %8688 = vmatpush1.bf16.msra.mxu0 %v8588
      %8689 = vmatprep.subr.bf16.mxu0 0
      %8690 = vmatpush1.bf16.msra.mxu0 %v8589
      %8691 = vmatprep.subr.bf16.mxu0 0
      %8692 = vmatpush1.bf16.msra.mxu0 %v8590
      %8693 = vmatprep.subr.bf16.mxu0 0
      %8694 = vmatpush1.bf16.msra.mxu0 %v8591
      %8695 = vmatprep.subr.bf16.mxu0 0
      %8696 = vmatpush1.bf16.msra.mxu0 %v8592
      %8697 = vmatprep.mubr.bf16.mxu0 %v8363
      %8698 = vmatmul.mubr.bf16.gmra.mrb[0].mxu0 %v8362
      %v8699 = vpop.f32.mrb[0].mxu0
      %v8700 = vadd.f32 %v8660, %v8699
      %v8701 = vpop.f32.mrb[0].mxu0
      %v8702 = vpop.f32.mrb[0].mxu0
      %v8703 = vpop.f32.mrb[0].mxu0
      %8704 = vdwg.mxu0
      %vm8705 = vcmp.gt.f32.partialorder %v8700, 0.0
      %v8706 = vmin.f32 %v8700, 0.0
      %v8707 = vmul.f32 %v8706, 1.442695
      %v8708 = vpow.pop %v8707
      %v8709 = vsub.f32 %v8708, 1.0
      %v8710 = vsel %vm8705, %v8700, %v8709
      %8711 = vxpose.xlu0.b32.start [1/16] %v8710, 128
      %8712 = vxpose.xlu0.b32.cont [2/16] 0.0, 128
      %8713 = vxpose.xlu0.b32.cont [3/16] 0.0, 128
      %8714 = vxpose.xlu0.b32.cont [4/16] 0.0, 128
      %8715 = vxpose.xlu0.b32.cont [5/16] 0.0, 128
      %8716 = vxpose.xlu0.b32.cont [6/16] 0.0, 128
      %8717 = vxpose.xlu0.b32.cont [7/16] 0.0, 128
      %8718 = vxpose.xlu0.b32.cont [8/16] 0.0, 128
      %8719 = vxpose.xlu0.b32.cont [9/16] 0.0, 128
      %8720 = vxpose.xlu0.b32.cont [10/16] 0.0, 128
      %8721 = vxpose.xlu0.b32.cont [11/16] 0.0, 128
      %8722 = vxpose.xlu0.b32.cont [12/16] 0.0, 128
      %8723 = vxpose.xlu0.b32.cont [13/16] 0.0, 128
      %8724 = vxpose.xlu0.b32.cont [14/16] 0.0, 128
      %8725 = vxpose.xlu0.b32.cont [15/16] 0.0, 128
      %8726 = vxpose.xlu0.b32.end [16/16] 0.0, 128
      %v8727 = vpop.trf.xlu0
      %v8728 = vpop.trf.xlu0
      %v8729 = vpop.trf.xlu0
      %v8730 = vpop.trf.xlu0
      %v8731 = vpop.trf.xlu0
      %v8732 = vpop.trf.xlu0
      %v8733 = vpop.trf.xlu0
      %v8734 = vpop.trf.xlu0
      %v8735 = vpop.trf.xlu0
      %v8736 = vpop.trf.xlu0
      %v8737 = vpop.trf.xlu0
      %v8738 = vpop.trf.xlu0
      %v8739 = vpop.trf.xlu0
      %v8740 = vpop.trf.xlu0
      %v8741 = vpop.trf.xlu0
      %v8742 = vpop.trf.xlu0
      %8743 = vst.msk [vmem:[#allocation12] sm:$0xff] %vm275, 0.0
      %8744 = vst.msk [vmem:[#allocation12 + $0x8] sm:$0xff] %vm275, 0.0
      %8745 = vst.msk [vmem:[#allocation12 + $0x10] sm:$0xff] %vm275, 0.0
      %8746 = vst.msk [vmem:[#allocation12 + $0x18] sm:$0xff] %vm275, 0.0
      %8747 = vst.msk [vmem:[#allocation12 + $0x20] sm:$0xff] %vm275, 0.0
      %8748 = vst.msk [vmem:[#allocation12 + $0x28] sm:$0xff] %vm275, 0.0
      %8749 = vst.msk [vmem:[#allocation12 + $0x30] sm:$0xff] %vm275, 0.0
      %8750 = vst.msk [vmem:[#allocation12 + $0x38] sm:$0xff] %vm275, 0.0
      %8751 = vst.msk [vmem:[#allocation12 + $0x40] sm:$0xff] %vm275, 0.0
      %8752 = vst.msk [vmem:[#allocation12 + $0x48] sm:$0xff] %vm275, 0.0
      %8753 = vst.msk [vmem:[#allocation12 + $0x50] sm:$0xff] %vm275, 0.0
      %8754 = vst.msk [vmem:[#allocation12 + $0x58] sm:$0xff] %vm275, 0.0
      %8755 = vst.msk [vmem:[#allocation12 + $0x60] sm:$0xff] %vm275, 0.0
      %8756 = vst.msk [vmem:[#allocation12 + $0x68] sm:$0xff] %vm275, 0.0
      %8757 = vst.msk [vmem:[#allocation12 + $0x70] sm:$0xff] %vm275, 0.0
      %8758 = vst.msk [vmem:[#allocation12 + $0x78] sm:$0xff] %vm275, 0.0
      %8759 = vst.msk [vmem:[#allocation12 + $0x80] sm:$0xff] %vm275, 0.0
      %8760 = vst.msk [vmem:[#allocation12 + $0x88] sm:$0xff] %vm275, 0.0
      %8761 = vst.msk [vmem:[#allocation12 + $0x90] sm:$0xff] %vm275, 0.0
      %8762 = vst.msk [vmem:[#allocation12 + $0x98] sm:$0xff] %vm275, 0.0
      %8763 = vst.msk [vmem:[#allocation12 + $0xa0] sm:$0xff] %vm275, 0.0
      %8764 = vst.msk [vmem:[#allocation12 + $0xa8] sm:$0xff] %vm275, 0.0
      %8765 = vst.msk [vmem:[#allocation12 + $0xb0] sm:$0xff] %vm275, 0.0
      %8766 = vst.msk [vmem:[#allocation12 + $0xb8] sm:$0xff] %vm275, 0.0
      %8775 = vrot.lane.b32.xlu0 %v8727, 1
      %v8776 = vpop.permute.xlu0 %8775
      %8777 = vrot.lane.b32.xlu0 %v8728, 1
      %v8778 = vpop.permute.xlu0 %8777
      %8779 = vrot.lane.b32.xlu0 %v8729, 1
      %v8780 = vpop.permute.xlu0 %8779
      %8781 = vrot.lane.b32.xlu0 %v8730, 1
      %v8782 = vpop.permute.xlu0 %8781
      %8783 = vrot.lane.b32.xlu0 %v8731, 1
      %v8784 = vpop.permute.xlu0 %8783
      %8785 = vrot.lane.b32.xlu0 %v8732, 1
      %v8786 = vpop.permute.xlu0 %8785
      %8787 = vrot.lane.b32.xlu0 %v8733, 1
      %v8788 = vpop.permute.xlu0 %8787
      %8789 = vrot.lane.b32.xlu0 %v8734, 1
      %v8790 = vpop.permute.xlu0 %8789
      %vm8799 = vcmask 15368
      %8800 = vst.msk [vmem:[#allocation12 + $0x40] sm:$0xff] %vm8799, %v8776
      %8801 = vst.msk [vmem:[#allocation12 + $0x48] sm:$0xff] %vm8799, %v8778
      %8802 = vst.msk [vmem:[#allocation12 + $0x50] sm:$0xff] %vm8799, %v8780
      %8803 = vst.msk [vmem:[#allocation12 + $0x58] sm:$0xff] %vm8799, %v8782
      %8804 = vst.msk [vmem:[#allocation12 + $0x60] sm:$0xff] %vm8799, %v8784
      %8805 = vst.msk [vmem:[#allocation12 + $0x68] sm:$0xff] %vm8799, %v8786
      %8806 = vst.msk [vmem:[#allocation12 + $0x70] sm:$0xff] %vm8799, %v8788
      %8807 = vst.msk [vmem:[#allocation12 + $0x78] sm:$0xff] %vm8799, %v8790
      %8808 = vst.msk [vmem:[#allocation12 + $0x80] sm:$0xff] %vm275, %v8727
      %8809 = vst.msk [vmem:[#allocation12 + $0x88] sm:$0xff] %vm275, %v8728
      %8810 = vst.msk [vmem:[#allocation12 + $0x90] sm:$0xff] %vm275, %v8729
      %8811 = vst.msk [vmem:[#allocation12 + $0x98] sm:$0xff] %vm275, %v8730
      %8812 = vst.msk [vmem:[#allocation12 + $0xa0] sm:$0xff] %vm275, %v8731
      %8813 = vst.msk [vmem:[#allocation12 + $0xa8] sm:$0xff] %vm275, %v8732
      %8814 = vst.msk [vmem:[#allocation12 + $0xb0] sm:$0xff] %vm275, %v8733
      %8815 = vst.msk [vmem:[#allocation12 + $0xb8] sm:$0xff] %vm275, %v8734
      %v8816 = vld [vmem:[#allocation12] sm:$0xff]
      %v8817 = vld [vmem:[#allocation12 + $0x8] sm:$0xff]
      %v8818 = vld [vmem:[#allocation12 + $0x10] sm:$0xff]
      %v8819 = vld [vmem:[#allocation12 + $0x18] sm:$0xff]
      %v8820 = vld [vmem:[#allocation12 + $0x20] sm:$0xff]
      %v8821 = vld [vmem:[#allocation12 + $0x28] sm:$0xff]
      %v8822 = vld [vmem:[#allocation12 + $0x30] sm:$0xff]
      %v8823 = vld [vmem:[#allocation12 + $0x38] sm:$0xff]
      %v8824 = vld [vmem:[#allocation12 + $0x40] sm:$0xff]
      %v8825 = vld [vmem:[#allocation12 + $0x48] sm:$0xff]
      %v8826 = vld [vmem:[#allocation12 + $0x50] sm:$0xff]
      %v8827 = vld [vmem:[#allocation12 + $0x58] sm:$0xff]
      %v8828 = vld [vmem:[#allocation12 + $0x60] sm:$0xff]
      %v8829 = vld [vmem:[#allocation12 + $0x68] sm:$0xff]
      %v8830 = vld [vmem:[#allocation12 + $0x70] sm:$0xff]
      %v8831 = vld [vmem:[#allocation12 + $0x78] sm:$0xff]
      %v8832 = vld [vmem:[#allocation12 + $0x80] sm:$0xff]
      %v8833 = vld [vmem:[#allocation12 + $0x88] sm:$0xff]
      %v8834 = vld [vmem:[#allocation12 + $0x90] sm:$0xff]
      %v8835 = vld [vmem:[#allocation12 + $0x98] sm:$0xff]
      %v8836 = vld [vmem:[#allocation12 + $0xa0] sm:$0xff]
      %v8837 = vld [vmem:[#allocation12 + $0xa8] sm:$0xff]
      %v8838 = vld [vmem:[#allocation12 + $0xb0] sm:$0xff]
      %v8839 = vld [vmem:[#allocation12 + $0xb8] sm:$0xff]
      %v8840 = vpack.c.bf16 %v8817, %v8816
      %v8841 = vpack.c.bf16 %v8819, %v8818
      %v8842 = vpack.c.bf16 %v8821, %v8820
      %v8843 = vpack.c.bf16 %v8823, %v8822
      %v8844 = vpack.c.bf16 %v8825, %v8824
      %v8845 = vpack.c.bf16 %v8827, %v8826
      %v8846 = vpack.c.bf16 %v8829, %v8828
      %v8847 = vpack.c.bf16 %v8831, %v8830
      %v8848 = vpack.c.bf16 %v8833, %v8832
      %v8849 = vpack.c.bf16 %v8835, %v8834
      %v8850 = vpack.c.bf16 %v8837, %v8836
      %v8851 = vpack.c.bf16 %v8839, %v8838
      %v8852 = vld [vmem:[%s1 + $0x1f0] sm:$0xff]
      %v8853 = vld [vmem:[%s1 + $0x1f8] sm:$0xff]
      %v8854 = vld [vmem:[%s2] sm:$0xff]
      %v8855 = vld [vmem:[%s2 + $0x8] sm:$0xff]
      %8857 = vset.pattern.permute.xlu0 25
      %8858 = vperm.xlu0 %8857, %v8854
      %v8859 = vpop.permute.xlu0 %8858
      %8862 = vset.pattern.permute.xlu0 25
      %8863 = vperm.xlu0 %8862, %v8855
      %v8864 = vpop.permute.xlu0 %8863
      %v8868 = vunpack.c.l.b16 %v8852
      %v8869 = vunpack.c.h.b16 %v8852
      %v8870 = vunpack.c.l.b16 %v8853
      %v8871 = vunpack.c.h.b16 %v8853
      %v8872 = vpack.c.b16 %v8870, %v8868
      %v8873 = vpack.c.b16 %v8871, %v8869
      %v8876 = vsel %vm4036, %v8873, 0
      %8878 = vmatprep.subr.bf16.mxu0 0
      %8879 = vmatpush1.bf16.msra.mxu0 %v8840
      %8880 = vmatprep.subr.bf16.mxu0 0
      %8881 = vmatpush1.bf16.msra.mxu0 %v8841
      %8882 = vmatprep.subr.bf16.mxu0 0
      %8883 = vmatpush1.bf16.msra.mxu0 %v8842
      %8884 = vmatprep.subr.bf16.mxu0 0
      %8885 = vmatpush1.bf16.msra.mxu0 %v8843
      %8886 = vmatprep.subr.bf16.mxu0 0
      %8887 = vmatpush1.bf16.msra.mxu0 %v8844
      %8888 = vmatprep.subr.bf16.mxu0 0
      %8889 = vmatpush1.bf16.msra.mxu0 %v8845
      %8890 = vmatprep.subr.bf16.mxu0 0
      %8891 = vmatpush1.bf16.msra.mxu0 %v8846
      %8892 = vmatprep.subr.bf16.mxu0 0
      %8893 = vmatpush1.bf16.msra.mxu0 %v8847
      %8894 = vmatprep.subr.bf16.mxu0 0
      %8895 = vmatpush1.bf16.msra.mxu0 %v8848
      %8896 = vmatprep.subr.bf16.mxu0 0
      %8897 = vmatpush1.bf16.msra.mxu0 %v8849
      %8898 = vmatprep.subr.bf16.mxu0 0
      %8899 = vmatpush1.bf16.msra.mxu0 %v8850
      %8900 = vmatprep.subr.bf16.mxu0 0
      %8901 = vmatpush1.bf16.msra.mxu0 %v8851
      %8902 = vmatprep.subr.bf16.mxu0 0
      %8903 = vmatpush1.bf16.msra.mxu0 0
      %8904 = vmatprep.subr.bf16.mxu0 0
      %8905 = vmatpush1.bf16.msra.mxu0 0
      %8906 = vmatprep.subr.bf16.mxu0 0
      %8907 = vmatpush1.bf16.msra.mxu0 0
      %8908 = vmatprep.subr.bf16.mxu0 0
      %8909 = vmatpush1.bf16.msra.mxu0 0
      %8910 = vmatprep.mubr.bf16.mxu0 %v8876
      %8911 = vmatmul.mubr.bf16.gmra.mrb[0].mxu0 %v8872
      %v8912 = vpop.f32.mrb[0].mxu0
      %v8913 = vadd.f32 %v8859, %v8912
      %v8914 = vpop.f32.mrb[0].mxu0
      %v8915 = vpop.f32.mrb[0].mxu0
      %v8916 = vadd.f32 %v8864, %v8915
      %v8917 = vpop.f32.mrb[0].mxu0
      %8918 = vdwg.mxu0
      %vm8919 = vcmp.gt.f32.partialorder %v8913, 0.0
      %vm8920 = vcmp.gt.f32.partialorder %v8916, 0.0
      %v8921 = vmin.f32 %v8913, 0.0
      %v8922 = vmin.f32 %v8916, 0.0
      %v8923 = vmul.f32 %v8921, 1.442695
      %v8924 = vpow.pop %v8923
      %v8925 = vmul.f32 %v8922, 1.442695
      %v8926 = vpow.pop %v8925
      %v8927 = vsub.f32 %v8924, 1.0
      %v8928 = vsub.f32 %v8926, 1.0
      %v8929 = vsel %vm8919, %v8913, %v8927
      %v8930 = vsel %vm8920, %v8916, %v8928
      %8931 = vst.msk [vmem:[%s221] sm:$0xff] %vm275, %v8929
      %8932 = vst.msk [vmem:[%s221 + $0x8] sm:$0xff] %vm275, %v8930
      %p8933 = scmp.lt.s32.totalorder %s16, 1
      %s8934 = scalar_select %p8933, %s16, 1
      %s8935 = smul.addr %s8934, 2
      %s8936 = smul.addr %s8935, 8
      %s8937 = scalar_lea.vmem %s5, %s8936
      // Predicated region
      $region41: #{encoder_forward.1} parent=39 // pred_check
        %p8938 = pneg %p144
      $region42: #{encoder_forward.1} parent=39 // pred_check_branch
        %8940 = sbr.rel (%p8938) target = $region44
      $region43: #{encoder_forward.1} parent=39 // pred_region
        _
      $region44: #{encoder_forward.1} parent=39 // pred_fallthru
        _
    $region40: #{encoder_forward.1} parent=5 // pred_fallthru
      _
    %p8941 = scmp.le.s32.totalorder 2, %s11
    // Predicated region
    $region45: #{encoder_forward.1} parent=5 // pred_check
      %p8942 = pneg %p8941
    $region46: #{encoder_forward.1} parent=5 // pred_check_branch
      %8944 = sbr.rel (%p8942) target = $region48
    $region47: #{encoder_forward.1} parent=5 // pred_region
      %s8945 = ssub.s32 %s11, 2
      // Predicated region
      $region49: #{encoder_forward.1} parent=47 // pred_check
        %p8946 = pneg %p150
      $region50: #{encoder_forward.1} parent=47 // pred_check_branch
        %8948 = sbr.rel (%p8946) target = $region52
      $region51: #{encoder_forward.1} parent=47 // pred_region
        %p8949 = scmp.lt.s32.totalorder %s17, 1
        %s8950 = scalar_select %p8949, %s17, 1
        %s8951 = smul.addr %s8950, 2
        %s8952 = smul.addr %s8951, 8
        %s8953 = scalar_lea.vmem %s5, %s8952
      $region52: #{encoder_forward.1} parent=47 // pred_fallthru
        _
    $region48: #{encoder_forward.1} parent=5 // pred_fallthru
      _
  $region6: #{encoder_forward.1} parent=0 // loop_footer
    %s15 = sadd.s32 1, %s11
  $region7: #{encoder_forward.1} parent=0 // loop_footer_branch
    %10 = sbr.rel target = $region3
  $region8: #{encoder_forward.1} parent=0 // loop_exit
    _

</llo_original>
